<compile_context>
chip_gen: v5e
topology: v5e:2x2
jax: 0.10.0
libtpu: 0.0.40
codegen_flags: <defaults>
</compile_context>

<pallas_src>
import functools

import jax
import jax.numpy as jnp
import numpy as np
from jax import lax
from jax.experimental import pallas as pl
from jax.experimental.pallas import tpu as pltpu

LANES = 128


def _round_up(x, m):
    return (x + m - 1) // m * m


# ---------------------------------------------------------------------------
# Fused Conv5x5(stride 1, pad 2) + bias + MaxPool2x2, `bb` images per grid step
# ---------------------------------------------------------------------------
def _conv_pool_kernel(cc00_ref, cc01_ref, cc10_ref, cc11_ref, w_ref, b_ref,
                      o_ref, *, hq, wq, kh):
    """One grid step: `bb` images -> pooled (bb, hq*wq, 128) block.

    cc{a}{q}_ref : (bb, (hq+2)*wq, kw*cin_p) bf16. Row-parity-a / output-col-
                   parity-q polyphase view of the padded input with the kw
                   column taps pre-concatenated along lanes (wrapper-built).
    w_ref        : (kh*kw*cin_p, 128) bf16 im2col weights, Cout padded to 128.
    b_ref        : (1, 128) f32 bias, padded to 128.
    o_ref        : (bb, hq*wq, 128) pooled conv output (bias added).
    """
    bb, _, kw_cin = cc00_ref.shape
    m = hq * wq
    bm = bb * m
    refs = ((cc00_ref, cc01_ref), (cc10_ref, cc11_ref))  # [row parity][col parity]

    # Load each of the (kh//2 + 1) row-offset windows of each phase once.
    win = {}
    for a in range(2):
        for q in range(2):
            for off in range(kh // 2 + 1):
                win[(a, q, off)] = (
                    refs[a][q][:, off * wq: off * wq + m, :].reshape(bm, kw_cin))

    # Build the 4 pool-parity im2col matrices (5 wide lane-concats each) and
    # stack them along M so a single MXU matmul covers the whole step.
    parts = []
    for ph in range(2):
        for q in range(2):
            taps = [win[((ph + dy) % 2, q, (ph + dy) // 2)] for dy in range(kh)]
            parts.append(jnp.concatenate(taps, axis=-1))      # (bm, kh*kw*cin_p)
    patches = jnp.concatenate(parts, axis=0)                   # (4*bm, K)

    acc = jnp.dot(patches, w_ref[...], preferred_element_type=jnp.float32)
    pooled = jnp.maximum(jnp.maximum(acc[:bm], acc[bm:2 * bm]),
                         jnp.maximum(acc[2 * bm:3 * bm], acc[3 * bm:]))
    # Per-channel bias commutes with the max; keep the add in f32, then cast.
    out = (pooled + b_ref[...]).astype(o_ref.dtype)
    o_ref[...] = out.reshape(bb, m, out.shape[-1])


def conv5x5_pool2(x_nhwc, w_oihw, bias, *, block_b=8, out_dtype=jnp.bfloat16):
    """Conv2d(Cin->Cout, 5, 1, 2) + MaxPool2d(2): (N,H,W,Cin) -> (N,H/2,W/2,128).

    Output channels are zero-padded to 128 lanes (caller slices [..., :cout]).
    `block_b` images are processed per grid step; with realistic batch sizes
    (N >= 16) this keeps >= 2 grid steps so v7x megacore still shards them.
    """
    kh = kw = 5
    pad = 2
    n, h, w, cin = x_nhwc.shape
    cout = w_oihw.shape[0]
    cin_p = _round_up(cin, 8)
    hq, wq = h // 2, w // 2
    m = hq * wq
    rrows = (hq + 2) * wq
    kw_cin = kw * cin_p
    kdim = kh * kw_cin

    bb = min(block_b, n)
    n_pad = (-n) % bb
    xb = x_nhwc.astype(jnp.bfloat16)                      # bf16 inputs: half the DMA
    if n_pad:
        xb = jnp.pad(xb, ((0, n_pad), (0, 0), (0, 0), (0, 0)))
    nt = xb.shape[0]

    # Spatial 'same' padding + channel padding.
    xp = jnp.pad(xb, ((0, 0), (pad, pad), (pad, pad), (0, cin_p - cin)))

    # Polyphase views with the kw column taps pre-concatenated along lanes:
    #   cc[a][q][b, r*wq + j, dx*cin_p + ci] = xp[b, 2r + a, q + dx + 2j, ci]
    ccs = []
    for a in range(2):
        for q in range(2):
            cols = [xp[:, a::2, q + dx: q + dx + 2 * wq: 2, :] for dx in range(kw)]
            cc = jnp.concatenate(cols, axis=-1)           # (nt, hq+2, wq, kw*cin_p)
            ccs.append(cc.reshape(nt, rrows, kw_cin))

    # im2col weights: row index = (dy*kw + dx)*cin_p + ci ; Cout padded to 128.
    w4 = jnp.transpose(w_oihw, (2, 3, 1, 0)).astype(jnp.float32)  # (kh,kw,cin,cout)
    w4 = jnp.pad(w4, ((0, 0), (0, 0), (0, cin_p - cin), (0, LANES - cout)))
    wmat = w4.reshape(kdim, LANES).astype(jnp.bfloat16)
    bvec = jnp.pad(bias.astype(jnp.float32), (0, LANES - cout)).reshape(1, LANES)

    kernel = functools.partial(_conv_pool_kernel, hq=hq, wq=wq, kh=kh)
    cc_spec = pl.BlockSpec((bb, rrows, kw_cin), lambda i: (i, 0, 0))
    out_bytes = jnp.dtype(out_dtype).itemsize
    flops = 2 * nt * 4 * m * kdim * LANES
    bytes_accessed = (4 * nt * rrows * kw_cin * 2 + kdim * LANES * 2
                      + nt * m * LANES * out_bytes)

    out = pl.pallas_call(
        kernel,
        out_shape=jax.ShapeDtypeStruct((nt, m, LANES), out_dtype),
        grid=(nt // bb,),
        in_specs=[cc_spec, cc_spec, cc_spec, cc_spec,
                  pl.BlockSpec((kdim, LANES), lambda i: (0, 0)),
                  pl.BlockSpec((1, LANES), lambda i: (0, 0))],
        out_specs=pl.BlockSpec((bb, m, LANES), lambda i: (i, 0, 0)),
        compiler_params=pltpu.CompilerParams(
            dimension_semantics=("parallel",),
            vmem_limit_bytes=48 * 1024 * 1024),
        cost_estimate=pl.CostEstimate(flops=flops, transcendentals=0,
                                      bytes_accessed=bytes_accessed),
    )(*ccs, wmat, bvec)

    return out[:n].reshape(n, hq, wq, LANES)


# ---------------------------------------------------------------------------
# Fused MLP head: Linear(K -> 64) + Linear(64 -> 10) in one kernel
# ---------------------------------------------------------------------------
def _mlp_kernel(x_ref, w1_ref, b1_ref, w2_ref, b2_ref, o_ref):
    h = jnp.dot(x_ref[...], w1_ref[...], preferred_element_type=jnp.float32)
    h = (h + b1_ref[...]).astype(jnp.bfloat16)
    o = jnp.dot(h, w2_ref[...], preferred_element_type=jnp.float32)
    o_ref[...] = o + b2_ref[...]


def mlp_head(x_feat, w1_kh, b1, w2_hh, b2):
    """x_feat: (N, K) ; w1_kh: (K, H1) input-major ; w2_hh: (H1, H2)."""
    n, k = x_feat.shape
    h1 = w1_kh.shape[1]
    h2 = w2_hh.shape[1]
    h1p = _round_up(h1, LANES)
    h2p = _round_up(h2, LANES)

    w1 = jnp.pad(w1_kh.astype(jnp.float32), ((0, 0), (0, h1p - h1))).astype(jnp.bfloat16)
    b1v = jnp.pad(b1.astype(jnp.float32), (0, h1p - h1)).reshape(1, h1p)
    w2 = jnp.pad(w2_hh.astype(jnp.float32),
                 ((0, h1p - h1), (0, h2p - h2))).astype(jnp.bfloat16)
    b2v = jnp.pad(b2.astype(jnp.float32), (0, h2p - h2)).reshape(1, h2p)

    tile_m = min(256, _round_up(n, 8))
    pad_m = (-n) % tile_m
    xb = x_feat.astype(jnp.bfloat16)
    if pad_m:
        xb = jnp.pad(xb, ((0, pad_m), (0, 0)))
    mt = xb.shape[0]

    out = pl.pallas_call(
        _mlp_kernel,
        out_shape=jax.ShapeDtypeStruct((mt, h2p), jnp.float32),
        grid=(mt // tile_m,),
        in_specs=[pl.BlockSpec((tile_m, k), lambda i: (i, 0)),
                  pl.BlockSpec((k, h1p), lambda i: (0, 0)),
                  pl.BlockSpec((1, h1p), lambda i: (0, 0)),
                  pl.BlockSpec((h1p, h2p), lambda i: (0, 0)),
                  pl.BlockSpec((1, h2p), lambda i: (0, 0))],
        out_specs=pl.BlockSpec((tile_m, h2p), lambda i: (i, 0)),
        compiler_params=pltpu.CompilerParams(
            dimension_semantics=("parallel",),
            vmem_limit_bytes=48 * 1024 * 1024),
        cost_estimate=pl.CostEstimate(
            flops=2 * mt * k * h1p + 2 * mt * h1p * h2p, transcendentals=0,
            bytes_accessed=mt * k * 2 + k * h1p * 2 + h1p * h2p * 2 + mt * h2p * 4),
    )(xb, w1, b1v, w2, b2v)
    return out[:n, :h2]


# ---------------------------------------------------------------------------
# Full model forward (mirrors the PyTorch Sequential exactly)
# ---------------------------------------------------------------------------
@jax.jit
def cifar10_forward(x_nchw, params):
    x = jnp.transpose(x_nchw, (0, 2, 3, 1))                       # NCHW -> NHWC
    x = conv5x5_pool2(x, params["w1"], params["b1"])[..., :32]    # (N,16,16,32) bf16
    x = conv5x5_pool2(x, params["w2"], params["b2"])[..., :32]    # (N, 8, 8,32) bf16
    x = conv5x5_pool2(x, params["w3"], params["b3"])               # (N, 4, 4,128) bf16
    n, hq, wq, _ = x.shape
    feats = x.reshape(n, hq * wq * LANES)                          # (N, 2048), HWC order

    # Fold torch's Flatten (C,H,W order) into the first Linear by permuting /
    # zero-padding its weight to match the HWC + lane-padded feature layout.
    cout3 = params["w3"].shape[0]                                  # 64
    wl1 = params["wl1"]                                            # (64, cout3*hq*wq)
    w1 = wl1.reshape(wl1.shape[0], cout3, hq, wq)                  # (out, c, h, w)
    w1 = jnp.transpose(w1, (2, 3, 1, 0))                           # (h, w, c, out)
    w1 = jnp.pad(w1, ((0, 0), (0, 0), (0, LANES - cout3), (0, 0)))
    w1 = w1.reshape(hq * wq * LANES, wl1.shape[0])                 # (2048, 64)

    return mlp_head(feats, w1, params["bl1"], params["wl2"].T, params["bl2"])


# ---------------------------------------------------------------------------
# Pure-JAX f32 reference (NCHW throughout) for correctness check
# ---------------------------------------------------------------------------
def reference_forward(x_nchw, params):
    dn = ("NCHW", "OIHW", "NCHW")
    y = x_nchw.astype(jnp.float32)
    for wi, bi in (("w1", "b1"), ("w2", "b2"), ("w3", "b3")):
        y = lax.conv_general_dilated(
            y, params[wi], (1, 1), ((2, 2), (2, 2)),
            dimension_numbers=dn, precision=lax.Precision.HIGHEST)
        y = y + params[bi][None, :, None, None]
        y = lax.reduce_window(y, -jnp.inf, lax.max,
                              (1, 1, 2, 2), (1, 1, 2, 2), "VALID")
    y = y.reshape(y.shape[0], -1)
    y = jnp.dot(y, params["wl1"].T, precision=lax.Precision.HIGHEST) + params["bl1"]
    y = jnp.dot(y, params["wl2"].T, precision=lax.Precision.HIGHEST) + params["bl2"]
    return y


def init_params(key):
    ks = jax.random.split(key, 10)
    n = lambda k, shape: (0.05 * jax.random.normal(k, shape, jnp.float32))
    return {
        "w1": n(ks[0], (32, 3, 5, 5)),  "b1": n(ks[1], (32,)),
        "w2": n(ks[2], (32, 32, 5, 5)), "b2": n(ks[3], (32,)),
        "w3": n(ks[4], (64, 32, 5, 5)), "b3": n(ks[5], (64,)),
        "wl1": n(ks[6], (64, 1024)),    "bl1": n(ks[7], (64,)),
        "wl2": n(ks[8], (10, 64)),      "bl2": n(ks[9], (10,)),
    }


if __name__ == "__main__":
    key = jax.random.PRNGKey(0)
    pkey, xkey = jax.random.split(key)
    params = init_params(pkey)

    # Spatial size must be 32x32 so Flatten yields 64*4*4 = 1024 features.
    x = jax.random.normal(xkey, (2, 3, 32, 32), jnp.float32)

    out = jax.block_until_ready(cifar10_forward(x, params))
    assert out.shape == (2, 10), out.shape

    ref = jax.block_until_ready(reference_forward(x, params))
    # bf16 MXU operands / bf16 activations (f32 accumulation) vs f32 HIGHEST ref.
    np.testing.assert_allclose(np.asarray(out), np.asarray(ref),
                               rtol=3e-2, atol=3e-2)

    print("KERNEL_OK")
</pallas_src>

<mosaic_0001>
module attributes {stable_mosaic.version = 11 : i64} {
  func.func @_conv_pool_kernel(%arg0: i32, %arg1: memref<2x288x40xbf16, #tpu.memory_space<vmem>>, %arg2: memref<2x288x40xbf16, #tpu.memory_space<vmem>>, %arg3: memref<2x288x40xbf16, #tpu.memory_space<vmem>>, %arg4: memref<2x288x40xbf16, #tpu.memory_space<vmem>>, %arg5: memref<200x128xbf16, #tpu.memory_space<vmem>>, %arg6: memref<1x128xf32, #tpu.memory_space<vmem>>, %arg7: memref<2x256x128xbf16, #tpu.memory_space<vmem>>) attributes {dimension_semantics = [#tpu.dimension_semantics<parallel>], iteration_bounds = array<i64: 1>, scalar_prefetch = 0 : i64, scratch_operands = 0 : i64, tpu.core_type = #tpu.core_type<tc>, window_params = [{transform_indices = @transform_0, window_bounds = array<i64: 2, 288, 40>}, {transform_indices = @transform_1, window_bounds = array<i64: 2, 288, 40>}, {transform_indices = @transform_2, window_bounds = array<i64: 2, 288, 40>}, {transform_indices = @transform_3, window_bounds = array<i64: 2, 288, 40>}, {pipeline_mode = #tpu.pipeline_mode<synchronous>, transform_indices = @transform_4, window_bounds = array<i64: 200, 128>}, {pipeline_mode = #tpu.pipeline_mode<synchronous>, transform_indices = @transform_5, window_bounds = array<i64: 1, 128>}, {transform_indices = @transform_6, window_bounds = array<i64: 2, 256, 128>}]} {
    %c0 = arith.constant 0 : index
    %c0_0 = arith.constant 0 : index
    %c0_1 = arith.constant 0 : index
    %0 = vector.load %arg1[%c0, %c0_0, %c0_1] : memref<2x288x40xbf16, #tpu.memory_space<vmem>>, vector<2x256x40xbf16>
    %1 = vector.shape_cast %0 : vector<2x256x40xbf16> to vector<512x40xbf16>
    %c0_2 = arith.constant 0 : index
    %c16 = arith.constant 16 : index
    %c0_3 = arith.constant 0 : index
    %2 = vector.load %arg1[%c0_2, %c16, %c0_3] : memref<2x288x40xbf16, #tpu.memory_space<vmem>>, vector<2x256x40xbf16>
    %3 = vector.shape_cast %2 : vector<2x256x40xbf16> to vector<512x40xbf16>
    %c0_4 = arith.constant 0 : index
    %c32 = arith.constant 32 : index
    %c0_5 = arith.constant 0 : index
    %4 = vector.load %arg1[%c0_4, %c32, %c0_5] : memref<2x288x40xbf16, #tpu.memory_space<vmem>>, vector<2x256x40xbf16>
    %5 = vector.shape_cast %4 : vector<2x256x40xbf16> to vector<512x40xbf16>
    %c0_6 = arith.constant 0 : index
    %c0_7 = arith.constant 0 : index
    %c0_8 = arith.constant 0 : index
    %6 = vector.load %arg2[%c0_6, %c0_7, %c0_8] : memref<2x288x40xbf16, #tpu.memory_space<vmem>>, vector<2x256x40xbf16>
    %7 = vector.shape_cast %6 : vector<2x256x40xbf16> to vector<512x40xbf16>
    %c0_9 = arith.constant 0 : index
    %c16_10 = arith.constant 16 : index
    %c0_11 = arith.constant 0 : index
    %8 = vector.load %arg2[%c0_9, %c16_10, %c0_11] : memref<2x288x40xbf16, #tpu.memory_space<vmem>>, vector<2x256x40xbf16>
    %9 = vector.shape_cast %8 : vector<2x256x40xbf16> to vector<512x40xbf16>
    %c0_12 = arith.constant 0 : index
    %c32_13 = arith.constant 32 : index
    %c0_14 = arith.constant 0 : index
    %10 = vector.load %arg2[%c0_12, %c32_13, %c0_14] : memref<2x288x40xbf16, #tpu.memory_space<vmem>>, vector<2x256x40xbf16>
    %11 = vector.shape_cast %10 : vector<2x256x40xbf16> to vector<512x40xbf16>
    %c0_15 = arith.constant 0 : index
    %c0_16 = arith.constant 0 : index
    %c0_17 = arith.constant 0 : index
    %12 = vector.load %arg3[%c0_15, %c0_16, %c0_17] : memref<2x288x40xbf16, #tpu.memory_space<vmem>>, vector<2x256x40xbf16>
    %13 = vector.shape_cast %12 : vector<2x256x40xbf16> to vector<512x40xbf16>
    %c0_18 = arith.constant 0 : index
    %c16_19 = arith.constant 16 : index
    %c0_20 = arith.constant 0 : index
    %14 = vector.load %arg3[%c0_18, %c16_19, %c0_20] : memref<2x288x40xbf16, #tpu.memory_space<vmem>>, vector<2x256x40xbf16>
    %15 = vector.shape_cast %14 : vector<2x256x40xbf16> to vector<512x40xbf16>
    %c0_21 = arith.constant 0 : index
    %c32_22 = arith.constant 32 : index
    %c0_23 = arith.constant 0 : index
    %16 = vector.load %arg3[%c0_21, %c32_22, %c0_23] : memref<2x288x40xbf16, #tpu.memory_space<vmem>>, vector<2x256x40xbf16>
    %17 = vector.shape_cast %16 : vector<2x256x40xbf16> to vector<512x40xbf16>
    %c0_24 = arith.constant 0 : index
    %c0_25 = arith.constant 0 : index
    %c0_26 = arith.constant 0 : index
    %18 = vector.load %arg4[%c0_24, %c0_25, %c0_26] : memref<2x288x40xbf16, #tpu.memory_space<vmem>>, vector<2x256x40xbf16>
    %19 = vector.shape_cast %18 : vector<2x256x40xbf16> to vector<512x40xbf16>
    %c0_27 = arith.constant 0 : index
    %c16_28 = arith.constant 16 : index
    %c0_29 = arith.constant 0 : index
    %20 = vector.load %arg4[%c0_27, %c16_28, %c0_29] : memref<2x288x40xbf16, #tpu.memory_space<vmem>>, vector<2x256x40xbf16>
    %21 = vector.shape_cast %20 : vector<2x256x40xbf16> to vector<512x40xbf16>
    %c0_30 = arith.constant 0 : index
    %c32_31 = arith.constant 32 : index
    %c0_32 = arith.constant 0 : index
    %22 = vector.load %arg4[%c0_30, %c32_31, %c0_32] : memref<2x288x40xbf16, #tpu.memory_space<vmem>>, vector<2x256x40xbf16>
    %23 = vector.shape_cast %22 : vector<2x256x40xbf16> to vector<512x40xbf16>
    %24 = tpu.concatenate %1, %13, %3, %15, %5 in 1 : vector<512x40xbf16>, vector<512x40xbf16>, vector<512x40xbf16>, vector<512x40xbf16>, vector<512x40xbf16> -> vector<512x200xbf16>
    %25 = tpu.concatenate %7, %19, %9, %21, %11 in 1 : vector<512x40xbf16>, vector<512x40xbf16>, vector<512x40xbf16>, vector<512x40xbf16>, vector<512x40xbf16> -> vector<512x200xbf16>
    %26 = tpu.concatenate %13, %3, %15, %5, %17 in 1 : vector<512x40xbf16>, vector<512x40xbf16>, vector<512x40xbf16>, vector<512x40xbf16>, vector<512x40xbf16> -> vector<512x200xbf16>
    %27 = tpu.concatenate %19, %9, %21, %11, %23 in 1 : vector<512x40xbf16>, vector<512x40xbf16>, vector<512x40xbf16>, vector<512x40xbf16>, vector<512x40xbf16> -> vector<512x200xbf16>
    %28 = tpu.concatenate %24, %25, %26, %27 in 0 : vector<512x200xbf16>, vector<512x200xbf16>, vector<512x200xbf16>, vector<512x200xbf16> -> vector<2048x200xbf16>
    %c0_33 = arith.constant 0 : index
    %c0_34 = arith.constant 0 : index
    %29 = vector.load %arg5[%c0_33, %c0_34] : memref<200x128xbf16, #tpu.memory_space<vmem>>, vector<200x128xbf16>
    %cst = arith.constant dense<0.000000e+00> : vector<2048x128xf32>
    %30 = tpu.matmul %28, %29, %cst {dimension_numbers = #tpu.dot_dimension_numbers<[1], [0], [0], [1], [0, 0, 1, 1], [], []>} : vector<2048x200xbf16>, vector<200x128xbf16>, vector<2048x128xf32> -> vector<2048x128xf32>
    %31 = vector.extract_strided_slice %30 {offsets = [0, 0], sizes = [512, 128], strides = [1, 1]} : vector<2048x128xf32> to vector<512x128xf32>
    %32 = vector.extract_strided_slice %30 {offsets = [512, 0], sizes = [512, 128], strides = [1, 1]} : vector<2048x128xf32> to vector<512x128xf32>
    %33 = arith.maximumf %31, %32 : vector<512x128xf32>
    %34 = vector.extract_strided_slice %30 {offsets = [1024, 0], sizes = [512, 128], strides = [1, 1]} : vector<2048x128xf32> to vector<512x128xf32>
    %35 = vector.extract_strided_slice %30 {offsets = [1536, 0], sizes = [512, 128], strides = [1, 1]} : vector<2048x128xf32> to vector<512x128xf32>
    %36 = arith.maximumf %34, %35 : vector<512x128xf32>
    %37 = arith.maximumf %33, %36 : vector<512x128xf32>
    %c0_35 = arith.constant 0 : index
    %c0_36 = arith.constant 0 : index
    %38 = vector.load %arg6[%c0_35, %c0_36] : memref<1x128xf32, #tpu.memory_space<vmem>>, vector<1x128xf32>
    %39 = vector.broadcast %38 : vector<1x128xf32> to vector<512x128xf32>
    %40 = arith.addf %37, %39 : vector<512x128xf32>
    %41 = arith.truncf %40 : vector<512x128xf32> to vector<512x128xbf16>
    %42 = vector.shape_cast %41 : vector<512x128xbf16> to vector<2x256x128xbf16>
    %c0_37 = arith.constant 0 : index
    %c0_38 = arith.constant 0 : index
    %c0_39 = arith.constant 0 : index
    %43 = vector.load %arg7[%c0_37, %c0_38, %c0_39] : memref<2x256x128xbf16, #tpu.memory_space<vmem>>, vector<2x256x128xbf16>
    tpu.vector_store %arg7[%c0_37, %c0_38, %c0_39], %42 {strides = array<i32>} : memref<2x256x128xbf16, #tpu.memory_space<vmem>>, vector<2x256x128xbf16>,
    return
  }
  func.func @transform_0(%arg0: i32) -> (i32, i32, i32) {
    %c0_i32 = arith.constant 0 : i32
    %c0_i32_0 = arith.constant 0 : i32
    %c0_i32_1 = arith.constant 0 : i32
    return %arg0, %c0_i32, %c0_i32_0 : i32, i32, i32
  }
  func.func @transform_1(%arg0: i32) -> (i32, i32, i32) {
    %c0_i32 = arith.constant 0 : i32
    %c0_i32_0 = arith.constant 0 : i32
    %c0_i32_1 = arith.constant 0 : i32
    return %arg0, %c0_i32, %c0_i32_0 : i32, i32, i32
  }
  func.func @transform_2(%arg0: i32) -> (i32, i32, i32) {
    %c0_i32 = arith.constant 0 : i32
    %c0_i32_0 = arith.constant 0 : i32
    %c0_i32_1 = arith.constant 0 : i32
    return %arg0, %c0_i32, %c0_i32_0 : i32, i32, i32
  }
  func.func @transform_3(%arg0: i32) -> (i32, i32, i32) {
    %c0_i32 = arith.constant 0 : i32
    %c0_i32_0 = arith.constant 0 : i32
    %c0_i32_1 = arith.constant 0 : i32
    return %arg0, %c0_i32, %c0_i32_0 : i32, i32, i32
  }
  func.func @transform_4(%arg0: i32) -> (i32, i32) {
    %c0_i32 = arith.constant 0 : i32
    %c0_i32_0 = arith.constant 0 : i32
    %c0_i32_1 = arith.constant 0 : i32
    return %c0_i32, %c0_i32_0 : i32, i32
  }
  func.func @transform_5(%arg0: i32) -> (i32, i32) {
    %c0_i32 = arith.constant 0 : i32
    %c0_i32_0 = arith.constant 0 : i32
    %c0_i32_1 = arith.constant 0 : i32
    return %c0_i32, %c0_i32_0 : i32, i32
  }
  func.func @transform_6(%arg0: i32) -> (i32, i32, i32) {
    %c0_i32 = arith.constant 0 : i32
    %c0_i32_0 = arith.constant 0 : i32
    %c0_i32_1 = arith.constant 0 : i32
    return %arg0, %c0_i32, %c0_i32_0 : i32, i32, i32
  }
}

module attributes {stable_mosaic.version = 11 : i64} {
  func.func @_conv_pool_kernel(%arg0: i32, %arg1: memref<2x80x160xbf16, #tpu.memory_space<vmem>>, %arg2: memref<2x80x160xbf16, #tpu.memory_space<vmem>>, %arg3: memref<2x80x160xbf16, #tpu.memory_space<vmem>>, %arg4: memref<2x80x160xbf16, #tpu.memory_space<vmem>>, %arg5: memref<800x128xbf16, #tpu.memory_space<vmem>>, %arg6: memref<1x128xf32, #tpu.memory_space<vmem>>, %arg7: memref<2x64x128xbf16, #tpu.memory_space<vmem>>) attributes {dimension_semantics = [#tpu.dimension_semantics<parallel>], iteration_bounds = array<i64: 1>, scalar_prefetch = 0 : i64, scratch_operands = 0 : i64, tpu.core_type = #tpu.core_type<tc>, window_params = [{transform_indices = @transform_0, window_bounds = array<i64: 2, 80, 160>}, {transform_indices = @transform_1, window_bounds = array<i64: 2, 80, 160>}, {transform_indices = @transform_2, window_bounds = array<i64: 2, 80, 160>}, {transform_indices = @transform_3, window_bounds = array<i64: 2, 80, 160>}, {pipeline_mode = #tpu.pipeline_mode<synchronous>, transform_indices = @transform_4, window_bounds = array<i64: 800, 128>}, {pipeline_mode = #tpu.pipeline_mode<synchronous>, transform_indices = @transform_5, window_bounds = array<i64: 1, 128>}, {transform_indices = @transform_6, window_bounds = array<i64: 2, 64, 128>}]} {
    %c0 = arith.constant 0 : index
    %c0_0 = arith.constant 0 : index
    %c0_1 = arith.constant 0 : index
    %0 = vector.load %arg1[%c0, %c0_0, %c0_1] : memref<2x80x160xbf16, #tpu.memory_space<vmem>>, vector<2x64x160xbf16>
    %1 = vector.shape_cast %0 : vector<2x64x160xbf16> to vector<128x160xbf16>
    %c0_2 = arith.constant 0 : index
    %c8 = arith.constant 8 : index
    %c0_3 = arith.constant 0 : index
    %2 = vector.load %arg1[%c0_2, %c8, %c0_3] : memref<2x80x160xbf16, #tpu.memory_space<vmem>>, vector<2x64x160xbf16>
    %3 = vector.shape_cast %2 : vector<2x64x160xbf16> to vector<128x160xbf16>
    %c0_4 = arith.constant 0 : index
    %c16 = arith.constant 16 : index
    %c0_5 = arith.constant 0 : index
    %4 = vector.load %arg1[%c0_4, %c16, %c0_5] : memref<2x80x160xbf16, #tpu.memory_space<vmem>>, vector<2x64x160xbf16>
    %5 = vector.shape_cast %4 : vector<2x64x160xbf16> to vector<128x160xbf16>
    %c0_6 = arith.constant 0 : index
    %c0_7 = arith.constant 0 : index
    %c0_8 = arith.constant 0 : index
    %6 = vector.load %arg2[%c0_6, %c0_7, %c0_8] : memref<2x80x160xbf16, #tpu.memory_space<vmem>>, vector<2x64x160xbf16>
    %7 = vector.shape_cast %6 : vector<2x64x160xbf16> to vector<128x160xbf16>
    %c0_9 = arith.constant 0 : index
    %c8_10 = arith.constant 8 : index
    %c0_11 = arith.constant 0 : index
    %8 = vector.load %arg2[%c0_9, %c8_10, %c0_11] : memref<2x80x160xbf16, #tpu.memory_space<vmem>>, vector<2x64x160xbf16>
    %9 = vector.shape_cast %8 : vector<2x64x160xbf16> to vector<128x160xbf16>
    %c0_12 = arith.constant 0 : index
    %c16_13 = arith.constant 16 : index
    %c0_14 = arith.constant 0 : index
    %10 = vector.load %arg2[%c0_12, %c16_13, %c0_14] : memref<2x80x160xbf16, #tpu.memory_space<vmem>>, vector<2x64x160xbf16>
    %11 = vector.shape_cast %10 : vector<2x64x160xbf16> to vector<128x160xbf16>
    %c0_15 = arith.constant 0 : index
    %c0_16 = arith.constant 0 : index
    %c0_17 = arith.constant 0 : index
    %12 = vector.load %arg3[%c0_15, %c0_16, %c0_17] : memref<2x80x160xbf16, #tpu.memory_space<vmem>>, vector<2x64x160xbf16>
    %13 = vector.shape_cast %12 : vector<2x64x160xbf16> to vector<128x160xbf16>
    %c0_18 = arith.constant 0 : index
    %c8_19 = arith.constant 8 : index
    %c0_20 = arith.constant 0 : index
    %14 = vector.load %arg3[%c0_18, %c8_19, %c0_20] : memref<2x80x160xbf16, #tpu.memory_space<vmem>>, vector<2x64x160xbf16>
    %15 = vector.shape_cast %14 : vector<2x64x160xbf16> to vector<128x160xbf16>
    %c0_21 = arith.constant 0 : index
    %c16_22 = arith.constant 16 : index
    %c0_23 = arith.constant 0 : index
    %16 = vector.load %arg3[%c0_21, %c16_22, %c0_23] : memref<2x80x160xbf16, #tpu.memory_space<vmem>>, vector<2x64x160xbf16>
    %17 = vector.shape_cast %16 : vector<2x64x160xbf16> to vector<128x160xbf16>
    %c0_24 = arith.constant 0 : index
    %c0_25 = arith.constant 0 : index
    %c0_26 = arith.constant 0 : index
    %18 = vector.load %arg4[%c0_24, %c0_25, %c0_26] : memref<2x80x160xbf16, #tpu.memory_space<vmem>>, vector<2x64x160xbf16>
    %19 = vector.shape_cast %18 : vector<2x64x160xbf16> to vector<128x160xbf16>
    %c0_27 = arith.constant 0 : index
    %c8_28 = arith.constant 8 : index
    %c0_29 = arith.constant 0 : index
    %20 = vector.load %arg4[%c0_27, %c8_28, %c0_29] : memref<2x80x160xbf16, #tpu.memory_space<vmem>>, vector<2x64x160xbf16>
    %21 = vector.shape_cast %20 : vector<2x64x160xbf16> to vector<128x160xbf16>
    %c0_30 = arith.constant 0 : index
    %c16_31 = arith.constant 16 : index
    %c0_32 = arith.constant 0 : index
    %22 = vector.load %arg4[%c0_30, %c16_31, %c0_32] : memref<2x80x160xbf16, #tpu.memory_space<vmem>>, vector<2x64x160xbf16>
    %23 = vector.shape_cast %22 : vector<2x64x160xbf16> to vector<128x160xbf16>
    %24 = tpu.concatenate %1, %13, %3, %15, %5 in 1 : vector<128x160xbf16>, vector<128x160xbf16>, vector<128x160xbf16>, vector<128x160xbf16>, vector<128x160xbf16> -> vector<128x800xbf16>
    %25 = tpu.concatenate %7, %19, %9, %21, %11 in 1 : vector<128x160xbf16>, vector<128x160xbf16>, vector<128x160xbf16>, vector<128x160xbf16>, vector<128x160xbf16> -> vector<128x800xbf16>
    %26 = tpu.concatenate %13, %3, %15, %5, %17 in 1 : vector<128x160xbf16>, vector<128x160xbf16>, vector<128x160xbf16>, vector<128x160xbf16>, vector<128x160xbf16> -> vector<128x800xbf16>
    %27 = tpu.concatenate %19, %9, %21, %11, %23 in 1 : vector<128x160xbf16>, vector<128x160xbf16>, vector<128x160xbf16>, vector<128x160xbf16>, vector<128x160xbf16> -> vector<128x800xbf16>
    %28 = tpu.concatenate %24, %25, %26, %27 in 0 : vector<128x800xbf16>, vector<128x800xbf16>, vector<128x800xbf16>, vector<128x800xbf16> -> vector<512x800xbf16>
    %c0_33 = arith.constant 0 : index
    %c0_34 = arith.constant 0 : index
    %29 = vector.load %arg5[%c0_33, %c0_34] : memref<800x128xbf16, #tpu.memory_space<vmem>>, vector<800x128xbf16>
    %cst = arith.constant dense<0.000000e+00> : vector<512x128xf32>
    %30 = tpu.matmul %28, %29, %cst {dimension_numbers = #tpu.dot_dimension_numbers<[1], [0], [0], [1], [0, 0, 1, 1], [], []>} : vector<512x800xbf16>, vector<800x128xbf16>, vector<512x128xf32> -> vector<512x128xf32>
    %31 = vector.extract_strided_slice %30 {offsets = [0, 0], sizes = [128, 128], strides = [1, 1]} : vector<512x128xf32> to vector<128x128xf32>
    %32 = vector.extract_strided_slice %30 {offsets = [128, 0], sizes = [128, 128], strides = [1, 1]} : vector<512x128xf32> to vector<128x128xf32>
    %33 = arith.maximumf %31, %32 : vector<128x128xf32>
    %34 = vector.extract_strided_slice %30 {offsets = [256, 0], sizes = [128, 128], strides = [1, 1]} : vector<512x128xf32> to vector<128x128xf32>
    %35 = vector.extract_strided_slice %30 {offsets = [384, 0], sizes = [128, 128], strides = [1, 1]} : vector<512x128xf32> to vector<128x128xf32>
    %36 = arith.maximumf %34, %35 : vector<128x128xf32>
    %37 = arith.maximumf %33, %36 : vector<128x128xf32>
    %c0_35 = arith.constant 0 : index
    %c0_36 = arith.constant 0 : index
    %38 = vector.load %arg6[%c0_35, %c0_36] : memref<1x128xf32, #tpu.memory_space<vmem>>, vector<1x128xf32>
    %39 = vector.broadcast %38 : vector<1x128xf32> to vector<128x128xf32>
    %40 = arith.addf %37, %39 : vector<128x128xf32>
    %41 = arith.truncf %40 : vector<128x128xf32> to vector<128x128xbf16>
    %42 = vector.shape_cast %41 : vector<128x128xbf16> to vector<2x64x128xbf16>
    %c0_37 = arith.constant 0 : index
    %c0_38 = arith.constant 0 : index
    %c0_39 = arith.constant 0 : index
    %43 = vector.load %arg7[%c0_37, %c0_38, %c0_39] : memref<2x64x128xbf16, #tpu.memory_space<vmem>>, vector<2x64x128xbf16>
    tpu.vector_store %arg7[%c0_37, %c0_38, %c0_39], %42 {strides = array<i32>} : memref<2x64x128xbf16, #tpu.memory_space<vmem>>, vector<2x64x128xbf16>,
    return
  }
  func.func @transform_0(%arg0: i32) -> (i32, i32, i32) {
    %c0_i32 = arith.constant 0 : i32
    %c0_i32_0 = arith.constant 0 : i32
    %c0_i32_1 = arith.constant 0 : i32
    return %arg0, %c0_i32, %c0_i32_0 : i32, i32, i32
  }
  func.func @transform_1(%arg0: i32) -> (i32, i32, i32) {
    %c0_i32 = arith.constant 0 : i32
    %c0_i32_0 = arith.constant 0 : i32
    %c0_i32_1 = arith.constant 0 : i32
    return %arg0, %c0_i32, %c0_i32_0 : i32, i32, i32
  }
  func.func @transform_2(%arg0: i32) -> (i32, i32, i32) {
    %c0_i32 = arith.constant 0 : i32
    %c0_i32_0 = arith.constant 0 : i32
    %c0_i32_1 = arith.constant 0 : i32
    return %arg0, %c0_i32, %c0_i32_0 : i32, i32, i32
  }
  func.func @transform_3(%arg0: i32) -> (i32, i32, i32) {
    %c0_i32 = arith.constant 0 : i32
    %c0_i32_0 = arith.constant 0 : i32
    %c0_i32_1 = arith.constant 0 : i32
    return %arg0, %c0_i32, %c0_i32_0 : i32, i32, i32
  }
  func.func @transform_4(%arg0: i32) -> (i32, i32) {
    %c0_i32 = arith.constant 0 : i32
    %c0_i32_0 = arith.constant 0 : i32
    %c0_i32_1 = arith.constant 0 : i32
    return %c0_i32, %c0_i32_0 : i32, i32
  }
  func.func @transform_5(%arg0: i32) -> (i32, i32) {
    %c0_i32 = arith.constant 0 : i32
    %c0_i32_0 = arith.constant 0 : i32
    %c0_i32_1 = arith.constant 0 : i32
    return %c0_i32, %c0_i32_0 : i32, i32
  }
  func.func @transform_6(%arg0: i32) -> (i32, i32, i32) {
    %c0_i32 = arith.constant 0 : i32
    %c0_i32_0 = arith.constant 0 : i32
    %c0_i32_1 = arith.constant 0 : i32
    return %arg0, %c0_i32, %c0_i32_0 : i32, i32, i32
  }
}

module attributes {stable_mosaic.version = 11 : i64} {
  func.func @_conv_pool_kernel(%arg0: i32, %arg1: memref<2x24x160xbf16, #tpu.memory_space<vmem>>, %arg2: memref<2x24x160xbf16, #tpu.memory_space<vmem>>, %arg3: memref<2x24x160xbf16, #tpu.memory_space<vmem>>, %arg4: memref<2x24x160xbf16, #tpu.memory_space<vmem>>, %arg5: memref<800x128xbf16, #tpu.memory_space<vmem>>, %arg6: memref<1x128xf32, #tpu.memory_space<vmem>>, %arg7: memref<2x16x128xbf16, #tpu.memory_space<vmem>>) attributes {dimension_semantics = [#tpu.dimension_semantics<parallel>], iteration_bounds = array<i64: 1>, scalar_prefetch = 0 : i64, scratch_operands = 0 : i64, tpu.core_type = #tpu.core_type<tc>, window_params = [{transform_indices = @transform_0, window_bounds = array<i64: 2, 24, 160>}, {transform_indices = @transform_1, window_bounds = array<i64: 2, 24, 160>}, {transform_indices = @transform_2, window_bounds = array<i64: 2, 24, 160>}, {transform_indices = @transform_3, window_bounds = array<i64: 2, 24, 160>}, {pipeline_mode = #tpu.pipeline_mode<synchronous>, transform_indices = @transform_4, window_bounds = array<i64: 800, 128>}, {pipeline_mode = #tpu.pipeline_mode<synchronous>, transform_indices = @transform_5, window_bounds = array<i64: 1, 128>}, {transform_indices = @transform_6, window_bounds = array<i64: 2, 16, 128>}]} {
    %c0 = arith.constant 0 : index
    %c0_0 = arith.constant 0 : index
    %c0_1 = arith.constant 0 : index
    %0 = vector.load %arg1[%c0, %c0_0, %c0_1] : memref<2x24x160xbf16, #tpu.memory_space<vmem>>, vector<2x16x160xbf16>
    %1 = vector.shape_cast %0 : vector<2x16x160xbf16> to vector<32x160xbf16>
    %c0_2 = arith.constant 0 : index
    %c4 = arith.constant 4 : index
    %c0_3 = arith.constant 0 : index
    %2 = vector.load %arg1[%c0_2, %c4, %c0_3] : memref<2x24x160xbf16, #tpu.memory_space<vmem>>, vector<2x16x160xbf16>
    %3 = vector.shape_cast %2 : vector<2x16x160xbf16> to vector<32x160xbf16>
    %c0_4 = arith.constant 0 : index
    %c8 = arith.constant 8 : index
    %c0_5 = arith.constant 0 : index
    %4 = vector.load %arg1[%c0_4, %c8, %c0_5] : memref<2x24x160xbf16, #tpu.memory_space<vmem>>, vector<2x16x160xbf16>
    %5 = vector.shape_cast %4 : vector<2x16x160xbf16> to vector<32x160xbf16>
    %c0_6 = arith.constant 0 : index
    %c0_7 = arith.constant 0 : index
    %c0_8 = arith.constant 0 : index
    %6 = vector.load %arg2[%c0_6, %c0_7, %c0_8] : memref<2x24x160xbf16, #tpu.memory_space<vmem>>, vector<2x16x160xbf16>
    %7 = vector.shape_cast %6 : vector<2x16x160xbf16> to vector<32x160xbf16>
    %c0_9 = arith.constant 0 : index
    %c4_10 = arith.constant 4 : index
    %c0_11 = arith.constant 0 : index
    %8 = vector.load %arg2[%c0_9, %c4_10, %c0_11] : memref<2x24x160xbf16, #tpu.memory_space<vmem>>, vector<2x16x160xbf16>
    %9 = vector.shape_cast %8 : vector<2x16x160xbf16> to vector<32x160xbf16>
    %c0_12 = arith.constant 0 : index
    %c8_13 = arith.constant 8 : index
    %c0_14 = arith.constant 0 : index
    %10 = vector.load %arg2[%c0_12, %c8_13, %c0_14] : memref<2x24x160xbf16, #tpu.memory_space<vmem>>, vector<2x16x160xbf16>
    %11 = vector.shape_cast %10 : vector<2x16x160xbf16> to vector<32x160xbf16>
    %c0_15 = arith.constant 0 : index
    %c0_16 = arith.constant 0 : index
    %c0_17 = arith.constant 0 : index
    %12 = vector.load %arg3[%c0_15, %c0_16, %c0_17] : memref<2x24x160xbf16, #tpu.memory_space<vmem>>, vector<2x16x160xbf16>
    %13 = vector.shape_cast %12 : vector<2x16x160xbf16> to vector<32x160xbf16>
    %c0_18 = arith.constant 0 : index
    %c4_19 = arith.constant 4 : index
    %c0_20 = arith.constant 0 : index
    %14 = vector.load %arg3[%c0_18, %c4_19, %c0_20] : memref<2x24x160xbf16, #tpu.memory_space<vmem>>, vector<2x16x160xbf16>
    %15 = vector.shape_cast %14 : vector<2x16x160xbf16> to vector<32x160xbf16>
    %c0_21 = arith.constant 0 : index
    %c8_22 = arith.constant 8 : index
    %c0_23 = arith.constant 0 : index
    %16 = vector.load %arg3[%c0_21, %c8_22, %c0_23] : memref<2x24x160xbf16, #tpu.memory_space<vmem>>, vector<2x16x160xbf16>
    %17 = vector.shape_cast %16 : vector<2x16x160xbf16> to vector<32x160xbf16>
    %c0_24 = arith.constant 0 : index
    %c0_25 = arith.constant 0 : index
    %c0_26 = arith.constant 0 : index
    %18 = vector.load %arg4[%c0_24, %c0_25, %c0_26] : memref<2x24x160xbf16, #tpu.memory_space<vmem>>, vector<2x16x160xbf16>
    %19 = vector.shape_cast %18 : vector<2x16x160xbf16> to vector<32x160xbf16>
    %c0_27 = arith.constant 0 : index
    %c4_28 = arith.constant 4 : index
    %c0_29 = arith.constant 0 : index
    %20 = vector.load %arg4[%c0_27, %c4_28, %c0_29] : memref<2x24x160xbf16, #tpu.memory_space<vmem>>, vector<2x16x160xbf16>
    %21 = vector.shape_cast %20 : vector<2x16x160xbf16> to vector<32x160xbf16>
    %c0_30 = arith.constant 0 : index
    %c8_31 = arith.constant 8 : index
    %c0_32 = arith.constant 0 : index
    %22 = vector.load %arg4[%c0_30, %c8_31, %c0_32] : memref<2x24x160xbf16, #tpu.memory_space<vmem>>, vector<2x16x160xbf16>
    %23 = vector.shape_cast %22 : vector<2x16x160xbf16> to vector<32x160xbf16>
    %24 = tpu.concatenate %1, %13, %3, %15, %5 in 1 : vector<32x160xbf16>, vector<32x160xbf16>, vector<32x160xbf16>, vector<32x160xbf16>, vector<32x160xbf16> -> vector<32x800xbf16>
    %25 = tpu.concatenate %7, %19, %9, %21, %11 in 1 : vector<32x160xbf16>, vector<32x160xbf16>, vector<32x160xbf16>, vector<32x160xbf16>, vector<32x160xbf16> -> vector<32x800xbf16>
    %26 = tpu.concatenate %13, %3, %15, %5, %17 in 1 : vector<32x160xbf16>, vector<32x160xbf16>, vector<32x160xbf16>, vector<32x160xbf16>, vector<32x160xbf16> -> vector<32x800xbf16>
    %27 = tpu.concatenate %19, %9, %21, %11, %23 in 1 : vector<32x160xbf16>, vector<32x160xbf16>, vector<32x160xbf16>, vector<32x160xbf16>, vector<32x160xbf16> -> vector<32x800xbf16>
    %28 = tpu.concatenate %24, %25, %26, %27 in 0 : vector<32x800xbf16>, vector<32x800xbf16>, vector<32x800xbf16>, vector<32x800xbf16> -> vector<128x800xbf16>
    %c0_33 = arith.constant 0 : index
    %c0_34 = arith.constant 0 : index
    %29 = vector.load %arg5[%c0_33, %c0_34] : memref<800x128xbf16, #tpu.memory_space<vmem>>, vector<800x128xbf16>
    %cst = arith.constant dense<0.000000e+00> : vector<128x128xf32>
    %30 = tpu.matmul %28, %29, %cst {dimension_numbers = #tpu.dot_dimension_numbers<[1], [0], [0], [1], [0, 0, 1, 1], [], []>} : vector<128x800xbf16>, vector<800x128xbf16>, vector<128x128xf32> -> vector<128x128xf32>
    %31 = vector.extract_strided_slice %30 {offsets = [0, 0], sizes = [32, 128], strides = [1, 1]} : vector<128x128xf32> to vector<32x128xf32>
    %32 = vector.extract_strided_slice %30 {offsets = [32, 0], sizes = [32, 128], strides = [1, 1]} : vector<128x128xf32> to vector<32x128xf32>
    %33 = arith.maximumf %31, %32 : vector<32x128xf32>
    %34 = vector.extract_strided_slice %30 {offsets = [64, 0], sizes = [32, 128], strides = [1, 1]} : vector<128x128xf32> to vector<32x128xf32>
    %35 = vector.extract_strided_slice %30 {offsets = [96, 0], sizes = [32, 128], strides = [1, 1]} : vector<128x128xf32> to vector<32x128xf32>
    %36 = arith.maximumf %34, %35 : vector<32x128xf32>
    %37 = arith.maximumf %33, %36 : vector<32x128xf32>
    %c0_35 = arith.constant 0 : index
    %c0_36 = arith.constant 0 : index
    %38 = vector.load %arg6[%c0_35, %c0_36] : memref<1x128xf32, #tpu.memory_space<vmem>>, vector<1x128xf32>
    %39 = vector.broadcast %38 : vector<1x128xf32> to vector<32x128xf32>
    %40 = arith.addf %37, %39 : vector<32x128xf32>
    %41 = arith.truncf %40 : vector<32x128xf32> to vector<32x128xbf16>
    %42 = vector.shape_cast %41 : vector<32x128xbf16> to vector<2x16x128xbf16>
    %c0_37 = arith.constant 0 : index
    %c0_38 = arith.constant 0 : index
    %c0_39 = arith.constant 0 : index
    %43 = vector.load %arg7[%c0_37, %c0_38, %c0_39] : memref<2x16x128xbf16, #tpu.memory_space<vmem>>, vector<2x16x128xbf16>
    tpu.vector_store %arg7[%c0_37, %c0_38, %c0_39], %42 {strides = array<i32>} : memref<2x16x128xbf16, #tpu.memory_space<vmem>>, vector<2x16x128xbf16>,
    return
  }
  func.func @transform_0(%arg0: i32) -> (i32, i32, i32) {
    %c0_i32 = arith.constant 0 : i32
    %c0_i32_0 = arith.constant 0 : i32
    %c0_i32_1 = arith.constant 0 : i32
    return %arg0, %c0_i32, %c0_i32_0 : i32, i32, i32
  }
  func.func @transform_1(%arg0: i32) -> (i32, i32, i32) {
    %c0_i32 = arith.constant 0 : i32
    %c0_i32_0 = arith.constant 0 : i32
    %c0_i32_1 = arith.constant 0 : i32
    return %arg0, %c0_i32, %c0_i32_0 : i32, i32, i32
  }
  func.func @transform_2(%arg0: i32) -> (i32, i32, i32) {
    %c0_i32 = arith.constant 0 : i32
    %c0_i32_0 = arith.constant 0 : i32
    %c0_i32_1 = arith.constant 0 : i32
    return %arg0, %c0_i32, %c0_i32_0 : i32, i32, i32
  }
  func.func @transform_3(%arg0: i32) -> (i32, i32, i32) {
    %c0_i32 = arith.constant 0 : i32
    %c0_i32_0 = arith.constant 0 : i32
    %c0_i32_1 = arith.constant 0 : i32
    return %arg0, %c0_i32, %c0_i32_0 : i32, i32, i32
  }
  func.func @transform_4(%arg0: i32) -> (i32, i32) {
    %c0_i32 = arith.constant 0 : i32
    %c0_i32_0 = arith.constant 0 : i32
    %c0_i32_1 = arith.constant 0 : i32
    return %c0_i32, %c0_i32_0 : i32, i32
  }
  func.func @transform_5(%arg0: i32) -> (i32, i32) {
    %c0_i32 = arith.constant 0 : i32
    %c0_i32_0 = arith.constant 0 : i32
    %c0_i32_1 = arith.constant 0 : i32
    return %c0_i32, %c0_i32_0 : i32, i32
  }
  func.func @transform_6(%arg0: i32) -> (i32, i32, i32) {
    %c0_i32 = arith.constant 0 : i32
    %c0_i32_0 = arith.constant 0 : i32
    %c0_i32_1 = arith.constant 0 : i32
    return %arg0, %c0_i32, %c0_i32_0 : i32, i32, i32
  }
}

module attributes {stable_mosaic.version = 11 : i64} {
  func.func @_mlp_kernel(%arg0: i32, %arg1: memref<8x2048xbf16, #tpu.memory_space<vmem>>, %arg2: memref<2048x128xbf16, #tpu.memory_space<vmem>>, %arg3: memref<1x128xf32, #tpu.memory_space<vmem>>, %arg4: memref<128x128xbf16, #tpu.memory_space<vmem>>, %arg5: memref<1x128xf32, #tpu.memory_space<vmem>>, %arg6: memref<8x128xf32, #tpu.memory_space<vmem>>) attributes {dimension_semantics = [#tpu.dimension_semantics<parallel>], iteration_bounds = array<i64: 1>, scalar_prefetch = 0 : i64, scratch_operands = 0 : i64, tpu.core_type = #tpu.core_type<tc>, window_params = [{transform_indices = @transform_0, window_bounds = array<i64: 8, 2048>}, {pipeline_mode = #tpu.pipeline_mode<synchronous>, transform_indices = @transform_1, window_bounds = array<i64: 2048, 128>}, {pipeline_mode = #tpu.pipeline_mode<synchronous>, transform_indices = @transform_2, window_bounds = array<i64: 1, 128>}, {pipeline_mode = #tpu.pipeline_mode<synchronous>, transform_indices = @transform_3, window_bounds = array<i64: 128, 128>}, {pipeline_mode = #tpu.pipeline_mode<synchronous>, transform_indices = @transform_4, window_bounds = array<i64: 1, 128>}, {transform_indices = @transform_5, window_bounds = array<i64: 8, 128>}]} {
    %c0 = arith.constant 0 : index
    %c0_0 = arith.constant 0 : index
    %0 = vector.load %arg1[%c0, %c0_0] : memref<8x2048xbf16, #tpu.memory_space<vmem>>, vector<8x2048xbf16>
    %c0_1 = arith.constant 0 : index
    %c0_2 = arith.constant 0 : index
    %1 = vector.load %arg2[%c0_1, %c0_2] : memref<2048x128xbf16, #tpu.memory_space<vmem>>, vector<2048x128xbf16>
    %cst = arith.constant dense<0.000000e+00> : vector<8x128xf32>
    %2 = tpu.matmul %0, %1, %cst {dimension_numbers = #tpu.dot_dimension_numbers<[1], [0], [0], [1], [0, 0, 1, 1], [], []>} : vector<8x2048xbf16>, vector<2048x128xbf16>, vector<8x128xf32> -> vector<8x128xf32>
    %c0_3 = arith.constant 0 : index
    %c0_4 = arith.constant 0 : index
    %3 = vector.load %arg3[%c0_3, %c0_4] : memref<1x128xf32, #tpu.memory_space<vmem>>, vector<1x128xf32>
    %4 = vector.broadcast %3 : vector<1x128xf32> to vector<8x128xf32>
    %5 = arith.addf %2, %4 : vector<8x128xf32>
    %6 = arith.truncf %5 : vector<8x128xf32> to vector<8x128xbf16>
    %c0_5 = arith.constant 0 : index
    %c0_6 = arith.constant 0 : index
    %7 = vector.load %arg4[%c0_5, %c0_6] : memref<128x128xbf16, #tpu.memory_space<vmem>>, vector<128x128xbf16>
    %cst_7 = arith.constant dense<0.000000e+00> : vector<8x128xf32>
    %8 = tpu.matmul %6, %7, %cst_7 {dimension_numbers = #tpu.dot_dimension_numbers<[1], [0], [0], [1], [0, 0, 1, 1], [], []>} : vector<8x128xbf16>, vector<128x128xbf16>, vector<8x128xf32> -> vector<8x128xf32>
    %c0_8 = arith.constant 0 : index
    %c0_9 = arith.constant 0 : index
    %9 = vector.load %arg5[%c0_8, %c0_9] : memref<1x128xf32, #tpu.memory_space<vmem>>, vector<1x128xf32>
    %10 = vector.broadcast %9 : vector<1x128xf32> to vector<8x128xf32>
    %11 = arith.addf %8, %10 : vector<8x128xf32>
    %c0_10 = arith.constant 0 : index
    %c0_11 = arith.constant 0 : index
    %12 = vector.load %arg6[%c0_10, %c0_11] : memref<8x128xf32, #tpu.memory_space<vmem>>, vector<8x128xf32>
    tpu.vector_store %arg6[%c0_10, %c0_11], %11 {strides = array<i32>} : memref<8x128xf32, #tpu.memory_space<vmem>>, vector<8x128xf32>,
    return
  }
  func.func @transform_0(%arg0: i32) -> (i32, i32) {
    %c0_i32 = arith.constant 0 : i32
    %c0_i32_0 = arith.constant 0 : i32
    return %arg0, %c0_i32 : i32, i32
  }
  func.func @transform_1(%arg0: i32) -> (i32, i32) {
    %c0_i32 = arith.constant 0 : i32
    %c0_i32_0 = arith.constant 0 : i32
    %c0_i32_1 = arith.constant 0 : i32
    return %c0_i32, %c0_i32_0 : i32, i32
  }
  func.func @transform_2(%arg0: i32) -> (i32, i32) {
    %c0_i32 = arith.constant 0 : i32
    %c0_i32_0 = arith.constant 0 : i32
    %c0_i32_1 = arith.constant 0 : i32
    return %c0_i32, %c0_i32_0 : i32, i32
  }
  func.func @transform_3(%arg0: i32) -> (i32, i32) {
    %c0_i32 = arith.constant 0 : i32
    %c0_i32_0 = arith.constant 0 : i32
    %c0_i32_1 = arith.constant 0 : i32
    return %c0_i32, %c0_i32_0 : i32, i32
  }
  func.func @transform_4(%arg0: i32) -> (i32, i32) {
    %c0_i32 = arith.constant 0 : i32
    %c0_i32_0 = arith.constant 0 : i32
    %c0_i32_1 = arith.constant 0 : i32
    return %c0_i32, %c0_i32_0 : i32, i32
  }
  func.func @transform_5(%arg0: i32) -> (i32, i32) {
    %c0_i32 = arith.constant 0 : i32
    %c0_i32_0 = arith.constant 0 : i32
    return %arg0, %c0_i32 : i32, i32
  }
}

</mosaic_0001>

<llo_original>
// kernel: cifar10_forward.5
$region0: #{cifar10_forward.5}
  #allocation0 [shape = 'u32[]', space=smem, size = 0x4, offset = 0x4, fixed_abs, tag = 'smem constant byte address 0x4 - core index']
  #allocation1 [shape = 'u32[72,128]{1,0:T(1,128)}', space=vmem, size = 0x9000, scoped, tag = 'internal scratch']
  %s0 = inlined_call_operand.vmem [shape: bf16[2,80,160], index: 0, kind: input, shape index: {}]
  %s1 = inlined_call_operand.vmem [shape: bf16[2,80,160], index: 1, kind: input, shape index: {}]
  %s2 = inlined_call_operand.vmem [shape: bf16[2,80,160], index: 2, kind: input, shape index: {}]
  %s3 = inlined_call_operand.vmem [shape: bf16[2,80,160], index: 3, kind: input, shape index: {}]
  %s4 = inlined_call_operand.vmem [shape: bf16[800,128], index: 4, kind: input, shape index: {}]
  %s5 = inlined_call_operand.vmem [shape: f32[1,128], index: 5, kind: input, shape index: {}]
  %s6 = inlined_call_operand.vmem [shape: bf16[2,64,128], index: 6, kind: output, shape index: {}]
  %s7 = sld [smem:[#allocation0]]
  $region34: #{cifar10_forward.5} parent=0
    _
  %s9 = ssub.s32 1, %s7
  %s10 = scalar_select 0, %s9, %s7
  // Predicated region
  $region2: #{cifar10_forward.5} parent=0 // pred_check
    _
  $region3: #{cifar10_forward.5} parent=0 // pred_check_branch
    %12 = sbr.rel (0) target = $region5
  $region4: #{cifar10_forward.5} parent=0 // pred_region
    _
  $region5: #{cifar10_forward.5} parent=0 // pred_fallthru
    _
  // Predicated region
  $region6: #{cifar10_forward.5} parent=0 // pred_check
    _
  $region7: #{cifar10_forward.5} parent=0 // pred_check_branch
    %14 = sbr.rel (0) target = $region9
  $region8: #{cifar10_forward.5} parent=0 // pred_region
    _
  $region9: #{cifar10_forward.5} parent=0 // pred_fallthru
    _
  // Predicated region
  $region10: #{cifar10_forward.5} parent=0 // pred_check
    _
  $region11: #{cifar10_forward.5} parent=0 // pred_check_branch
    %16 = sbr.rel (0) target = $region13
  $region12: #{cifar10_forward.5} parent=0 // pred_region
    _
  $region13: #{cifar10_forward.5} parent=0 // pred_fallthru
    _
  // Predicated region
  $region14: #{cifar10_forward.5} parent=0 // pred_check
    _
  $region15: #{cifar10_forward.5} parent=0 // pred_check_branch
    %18 = sbr.rel (0) target = $region17
  $region16: #{cifar10_forward.5} parent=0 // pred_region
    _
  $region17: #{cifar10_forward.5} parent=0 // pred_fallthru
    _
  // Predicated region
  $region18: #{cifar10_forward.5} parent=0 // pred_check
    _
  $region19: #{cifar10_forward.5} parent=0 // pred_check_branch
    %20 = sbr.rel (0) target = $region21
  $region20: #{cifar10_forward.5} parent=0 // pred_region
    _
  $region21: #{cifar10_forward.5} parent=0 // pred_fallthru
    _
  // Predicated region
  $region22: #{cifar10_forward.5} parent=0 // pred_check
    _
  $region23: #{cifar10_forward.5} parent=0 // pred_check_branch
    %22 = sbr.rel (0) target = $region25
  $region24: #{cifar10_forward.5} parent=0 // pred_region
    _
  $region25: #{cifar10_forward.5} parent=0 // pred_fallthru
    _
  %v24 = vld [vmem:[%s0] sm:$0xff]
  %v25 = vld [vmem:[%s0 + $0x8] sm:$0xff]
  %v26 = vld [vmem:[%s0 + $0x10] sm:$0xff]
  %v27 = vld [vmem:[%s0 + $0x18] sm:$0xff]
  %v28 = vld [vmem:[%s0 + $0x20] sm:$0xff]
  %v29 = vld [vmem:[%s0 + $0x28] sm:$0xff]
  %v30 = vld [vmem:[%s0 + $0x30] sm:$0xff]
  %v31 = vld [vmem:[%s0 + $0x38] sm:$0xff]
  %v32 = vld [vmem:[%s0 + $0x50] sm:$0xff]
  %v33 = vld [vmem:[%s0 + $0x58] sm:$0xff]
  %v34 = vld [vmem:[%s0 + $0x60] sm:$0xff]
  %v35 = vld [vmem:[%s0 + $0x68] sm:$0xff]
  %v36 = vld [vmem:[%s0 + $0x70] sm:$0xff]
  %v37 = vld [vmem:[%s0 + $0x78] sm:$0xff]
  %v38 = vld [vmem:[%s0 + $0x80] sm:$0xff]
  %v39 = vld [vmem:[%s0 + $0x88] sm:$0xff]
  %v40 = vld [vmem:[%s0 + $0x40] sm:$0xff]
  %v41 = vld [vmem:[%s0 + $0x90] sm:$0xff]
  %v42 = vld [vmem:[%s0 + $0x48] sm:$0xff]
  %v43 = vld [vmem:[%s0 + $0x98] sm:$0xff]
  %v44 = vld [vmem:[%s1] sm:$0xff]
  %v45 = vld [vmem:[%s1 + $0x8] sm:$0xff]
  %v46 = vld [vmem:[%s1 + $0x10] sm:$0xff]
  %v47 = vld [vmem:[%s1 + $0x18] sm:$0xff]
  %v48 = vld [vmem:[%s1 + $0x20] sm:$0xff]
  %v49 = vld [vmem:[%s1 + $0x28] sm:$0xff]
  %v50 = vld [vmem:[%s1 + $0x30] sm:$0xff]
  %v51 = vld [vmem:[%s1 + $0x38] sm:$0xff]
  %v52 = vld [vmem:[%s1 + $0x50] sm:$0xff]
  %v53 = vld [vmem:[%s1 + $0x58] sm:$0xff]
  %v54 = vld [vmem:[%s1 + $0x60] sm:$0xff]
  %v55 = vld [vmem:[%s1 + $0x68] sm:$0xff]
  %v56 = vld [vmem:[%s1 + $0x70] sm:$0xff]
  %v57 = vld [vmem:[%s1 + $0x78] sm:$0xff]
  %v58 = vld [vmem:[%s1 + $0x80] sm:$0xff]
  %v59 = vld [vmem:[%s1 + $0x88] sm:$0xff]
  %v60 = vld [vmem:[%s1 + $0x40] sm:$0xff]
  %v61 = vld [vmem:[%s1 + $0x90] sm:$0xff]
  %v62 = vld [vmem:[%s1 + $0x48] sm:$0xff]
  %v63 = vld [vmem:[%s1 + $0x98] sm:$0xff]
  %v64 = vld [vmem:[%s2] sm:$0xff]
  %v65 = vld [vmem:[%s2 + $0x8] sm:$0xff]
  %v66 = vld [vmem:[%s2 + $0x10] sm:$0xff]
  %v67 = vld [vmem:[%s2 + $0x18] sm:$0xff]
  %v68 = vld [vmem:[%s2 + $0x20] sm:$0xff]
  %v69 = vld [vmem:[%s2 + $0x28] sm:$0xff]
  %v70 = vld [vmem:[%s2 + $0x30] sm:$0xff]
  %v71 = vld [vmem:[%s2 + $0x38] sm:$0xff]
  %v72 = vld [vmem:[%s2 + $0x50] sm:$0xff]
  %v73 = vld [vmem:[%s2 + $0x58] sm:$0xff]
  %v74 = vld [vmem:[%s2 + $0x60] sm:$0xff]
  %v75 = vld [vmem:[%s2 + $0x68] sm:$0xff]
  %v76 = vld [vmem:[%s2 + $0x70] sm:$0xff]
  %v77 = vld [vmem:[%s2 + $0x78] sm:$0xff]
  %v78 = vld [vmem:[%s2 + $0x80] sm:$0xff]
  %v79 = vld [vmem:[%s2 + $0x88] sm:$0xff]
  %v80 = vld [vmem:[%s2 + $0x40] sm:$0xff]
  %v81 = vld [vmem:[%s2 + $0x90] sm:$0xff]
  %v82 = vld [vmem:[%s2 + $0x48] sm:$0xff]
  %v83 = vld [vmem:[%s2 + $0x98] sm:$0xff]
  %v84 = vld [vmem:[%s3] sm:$0xff]
  %v85 = vld [vmem:[%s3 + $0x8] sm:$0xff]
  %v86 = vld [vmem:[%s3 + $0x10] sm:$0xff]
  %v87 = vld [vmem:[%s3 + $0x18] sm:$0xff]
  %v88 = vld [vmem:[%s3 + $0x20] sm:$0xff]
  %v89 = vld [vmem:[%s3 + $0x28] sm:$0xff]
  %v90 = vld [vmem:[%s3 + $0x30] sm:$0xff]
  %v91 = vld [vmem:[%s3 + $0x38] sm:$0xff]
  %v92 = vld [vmem:[%s3 + $0x50] sm:$0xff]
  %v93 = vld [vmem:[%s3 + $0x58] sm:$0xff]
  %v94 = vld [vmem:[%s3 + $0x60] sm:$0xff]
  %v95 = vld [vmem:[%s3 + $0x68] sm:$0xff]
  %v96 = vld [vmem:[%s3 + $0x70] sm:$0xff]
  %v97 = vld [vmem:[%s3 + $0x78] sm:$0xff]
  %v98 = vld [vmem:[%s3 + $0x80] sm:$0xff]
  %v99 = vld [vmem:[%s3 + $0x88] sm:$0xff]
  %v100 = vld [vmem:[%s3 + $0x40] sm:$0xff]
  %v101 = vld [vmem:[%s3 + $0x90] sm:$0xff]
  %v102 = vld [vmem:[%s3 + $0x48] sm:$0xff]
  %v103 = vld [vmem:[%s3 + $0x98] sm:$0xff]
  %v120 = vunpack.c.l.b16 %v24
  %v121 = vunpack.c.h.b16 %v24
  %v122 = vunpack.c.l.b16 %v25
  %v123 = vunpack.c.h.b16 %v25
  %v124 = vunpack.c.l.b16 %v26
  %v125 = vunpack.c.h.b16 %v26
  %v126 = vunpack.c.l.b16 %v27
  %v127 = vunpack.c.h.b16 %v27
  %v128 = vunpack.c.l.b16 %v28
  %v129 = vunpack.c.h.b16 %v28
  %v130 = vunpack.c.l.b16 %v29
  %v131 = vunpack.c.h.b16 %v29
  %v132 = vunpack.c.l.b16 %v30
  %v133 = vunpack.c.h.b16 %v30
  %v134 = vunpack.c.l.b16 %v31
  %v135 = vunpack.c.h.b16 %v31
  %v136 = vunpack.c.l.b16 %v32
  %v137 = vunpack.c.h.b16 %v32
  %v138 = vunpack.c.l.b16 %v33
  %v139 = vunpack.c.h.b16 %v33
  %v140 = vunpack.c.l.b16 %v34
  %v141 = vunpack.c.h.b16 %v34
  %v142 = vunpack.c.l.b16 %v35
  %v143 = vunpack.c.h.b16 %v35
  %v144 = vunpack.c.l.b16 %v36
  %v145 = vunpack.c.h.b16 %v36
  %v146 = vunpack.c.l.b16 %v37
  %v147 = vunpack.c.h.b16 %v37
  %v148 = vunpack.c.l.b16 %v38
  %v149 = vunpack.c.h.b16 %v38
  %v150 = vunpack.c.l.b16 %v39
  %v151 = vunpack.c.h.b16 %v39
  %v152 = vpack.c.b16 %v122, %v120
  %v153 = vpack.c.b16 %v123, %v121
  %v154 = vpack.c.b16 %v126, %v124
  %v155 = vpack.c.b16 %v127, %v125
  %v156 = vpack.c.b16 %v130, %v128
  %v157 = vpack.c.b16 %v131, %v129
  %v158 = vpack.c.b16 %v134, %v132
  %v159 = vpack.c.b16 %v135, %v133
  %v160 = vpack.c.b16 %v138, %v136
  %v161 = vpack.c.b16 %v139, %v137
  %v162 = vpack.c.b16 %v142, %v140
  %v163 = vpack.c.b16 %v143, %v141
  %v164 = vpack.c.b16 %v146, %v144
  %v165 = vpack.c.b16 %v147, %v145
  %v166 = vpack.c.b16 %v150, %v148
  %v167 = vpack.c.b16 %v151, %v149
  %v192 = vunpack.c.l.b16 %v64
  %v193 = vunpack.c.h.b16 %v64
  %v194 = vunpack.c.l.b16 %v65
  %v195 = vunpack.c.h.b16 %v65
  %v196 = vunpack.c.l.b16 %v66
  %v197 = vunpack.c.h.b16 %v66
  %v198 = vunpack.c.l.b16 %v67
  %v199 = vunpack.c.h.b16 %v67
  %v200 = vunpack.c.l.b16 %v68
  %v201 = vunpack.c.h.b16 %v68
  %v202 = vunpack.c.l.b16 %v69
  %v203 = vunpack.c.h.b16 %v69
  %v204 = vunpack.c.l.b16 %v70
  %v205 = vunpack.c.h.b16 %v70
  %v206 = vunpack.c.l.b16 %v71
  %v207 = vunpack.c.h.b16 %v71
  %v208 = vunpack.c.l.b16 %v72
  %v209 = vunpack.c.h.b16 %v72
  %v210 = vunpack.c.l.b16 %v73
  %v211 = vunpack.c.h.b16 %v73
  %v212 = vunpack.c.l.b16 %v74
  %v213 = vunpack.c.h.b16 %v74
  %v214 = vunpack.c.l.b16 %v75
  %v215 = vunpack.c.h.b16 %v75
  %v216 = vunpack.c.l.b16 %v76
  %v217 = vunpack.c.h.b16 %v76
  %v218 = vunpack.c.l.b16 %v77
  %v219 = vunpack.c.h.b16 %v77
  %v220 = vunpack.c.l.b16 %v78
  %v221 = vunpack.c.h.b16 %v78
  %v222 = vunpack.c.l.b16 %v79
  %v223 = vunpack.c.h.b16 %v79
  %v224 = vpack.c.b16 %v194, %v192
  %v225 = vpack.c.b16 %v195, %v193
  %v226 = vpack.c.b16 %v198, %v196
  %v227 = vpack.c.b16 %v199, %v197
  %v228 = vpack.c.b16 %v202, %v200
  %v229 = vpack.c.b16 %v203, %v201
  %v230 = vpack.c.b16 %v206, %v204
  %v231 = vpack.c.b16 %v207, %v205
  %v232 = vpack.c.b16 %v210, %v208
  %v233 = vpack.c.b16 %v211, %v209
  %v234 = vpack.c.b16 %v214, %v212
  %v235 = vpack.c.b16 %v215, %v213
  %v236 = vpack.c.b16 %v218, %v216
  %v237 = vpack.c.b16 %v219, %v217
  %v238 = vpack.c.b16 %v222, %v220
  %v239 = vpack.c.b16 %v223, %v221
  %240 = vrot.lane.b32.xlu0 %v224, 32
  %v241 = vpop.permute.xlu0 %240
  %242 = vrot.lane.b32.xlu0 %v225, 32
  %v243 = vpop.permute.xlu0 %242
  %244 = vrot.lane.b32.xlu0 %v226, 32
  %v245 = vpop.permute.xlu0 %244
  %246 = vrot.lane.b32.xlu0 %v227, 32
  %v247 = vpop.permute.xlu0 %246
  %248 = vrot.lane.b32.xlu0 %v228, 32
  %v249 = vpop.permute.xlu0 %248
  %250 = vrot.lane.b32.xlu0 %v229, 32
  %v251 = vpop.permute.xlu0 %250
  %252 = vrot.lane.b32.xlu0 %v230, 32
  %v253 = vpop.permute.xlu0 %252
  %254 = vrot.lane.b32.xlu0 %v231, 32
  %v255 = vpop.permute.xlu0 %254
  %256 = vrot.lane.b32.xlu0 %v232, 32
  %v257 = vpop.permute.xlu0 %256
  %258 = vrot.lane.b32.xlu0 %v233, 32
  %v259 = vpop.permute.xlu0 %258
  %260 = vrot.lane.b32.xlu0 %v234, 32
  %v261 = vpop.permute.xlu0 %260
  %262 = vrot.lane.b32.xlu0 %v235, 32
  %v263 = vpop.permute.xlu0 %262
  %264 = vrot.lane.b32.xlu0 %v236, 32
  %v265 = vpop.permute.xlu0 %264
  %266 = vrot.lane.b32.xlu0 %v237, 32
  %v267 = vpop.permute.xlu0 %266
  %268 = vrot.lane.b32.xlu0 %v238, 32
  %v269 = vpop.permute.xlu0 %268
  %270 = vrot.lane.b32.xlu0 %v239, 32
  %v271 = vpop.permute.xlu0 %270
  %vm272 = vcmask 261120
  %v273 = vsel %vm272, %v241, %v243
  %v274 = vsel %vm272, %v245, %v247
  %v275 = vsel %vm272, %v249, %v251
  %v276 = vsel %vm272, %v253, %v255
  %v277 = vsel %vm272, %v257, %v259
  %v278 = vsel %vm272, %v261, %v263
  %v279 = vsel %vm272, %v265, %v267
  %v280 = vsel %vm272, %v269, %v271
  %v283 = vunpack.c.l.b16 %v40
  %v284 = vunpack.c.h.b16 %v40
  %v285 = vunpack.c.l.b16 %v41
  %v286 = vunpack.c.h.b16 %v41
  %v287 = vpack.c.b16 %v124, %v122
  %v288 = vpack.c.b16 %v125, %v123
  %v289 = vpack.c.b16 %v128, %v126
  %v290 = vpack.c.b16 %v129, %v127
  %v291 = vpack.c.b16 %v132, %v130
  %v292 = vpack.c.b16 %v133, %v131
  %v293 = vpack.c.b16 %v283, %v134
  %v294 = vpack.c.b16 %v284, %v135
  %v295 = vpack.c.b16 %v140, %v138
  %v296 = vpack.c.b16 %v141, %v139
  %v297 = vpack.c.b16 %v144, %v142
  %v298 = vpack.c.b16 %v145, %v143
  %v299 = vpack.c.b16 %v148, %v146
  %v300 = vpack.c.b16 %v149, %v147
  %v301 = vpack.c.b16 %v285, %v150
  %v302 = vpack.c.b16 %v286, %v151
  %303 = vrot.lane.b32.xlu0 %v287, 64
  %v304 = vpop.permute.xlu0 %303
  %305 = vrot.lane.b32.xlu0 %v288, 64
  %v306 = vpop.permute.xlu0 %305
  %307 = vrot.lane.b32.xlu0 %v289, 64
  %v308 = vpop.permute.xlu0 %307
  %309 = vrot.lane.b32.xlu0 %v290, 64
  %v310 = vpop.permute.xlu0 %309
  %311 = vrot.lane.b32.xlu0 %v291, 64
  %v312 = vpop.permute.xlu0 %311
  %313 = vrot.lane.b32.xlu0 %v292, 64
  %v314 = vpop.permute.xlu0 %313
  %315 = vrot.lane.b32.xlu0 %v293, 64
  %v316 = vpop.permute.xlu0 %315
  %317 = vrot.lane.b32.xlu0 %v294, 64
  %v318 = vpop.permute.xlu0 %317
  %319 = vrot.lane.b32.xlu0 %v295, 64
  %v320 = vpop.permute.xlu0 %319
  %321 = vrot.lane.b32.xlu0 %v296, 64
  %v322 = vpop.permute.xlu0 %321
  %323 = vrot.lane.b32.xlu0 %v297, 64
  %v324 = vpop.permute.xlu0 %323
  %325 = vrot.lane.b32.xlu0 %v298, 64
  %v326 = vpop.permute.xlu0 %325
  %327 = vrot.lane.b32.xlu0 %v299, 64
  %v328 = vpop.permute.xlu0 %327
  %329 = vrot.lane.b32.xlu0 %v300, 64
  %v330 = vpop.permute.xlu0 %329
  %331 = vrot.lane.b32.xlu0 %v301, 64
  %v332 = vpop.permute.xlu0 %331
  %333 = vrot.lane.b32.xlu0 %v302, 64
  %v334 = vpop.permute.xlu0 %333
  %vm335 = vcmask 523264
  %v336 = vsel %vm335, %v304, %v306
  %v337 = vsel %vm335, %v308, %v310
  %v338 = vsel %vm335, %v312, %v314
  %v339 = vsel %vm335, %v316, %v318
  %v340 = vsel %vm335, %v320, %v322
  %v341 = vsel %vm335, %v324, %v326
  %v342 = vsel %vm335, %v328, %v330
  %v343 = vsel %vm335, %v332, %v334
  %v346 = vunpack.c.l.b16 %v80
  %v347 = vunpack.c.h.b16 %v80
  %v348 = vunpack.c.l.b16 %v81
  %v349 = vunpack.c.h.b16 %v81
  %v350 = vpack.c.b16 %v196, %v194
  %v351 = vpack.c.b16 %v197, %v195
  %v352 = vpack.c.b16 %v200, %v198
  %v353 = vpack.c.b16 %v201, %v199
  %v354 = vpack.c.b16 %v204, %v202
  %v355 = vpack.c.b16 %v205, %v203
  %v356 = vpack.c.b16 %v346, %v206
  %v357 = vpack.c.b16 %v347, %v207
  %v358 = vpack.c.b16 %v212, %v210
  %v359 = vpack.c.b16 %v213, %v211
  %v360 = vpack.c.b16 %v216, %v214
  %v361 = vpack.c.b16 %v217, %v215
  %v362 = vpack.c.b16 %v220, %v218
  %v363 = vpack.c.b16 %v221, %v219
  %v364 = vpack.c.b16 %v348, %v222
  %v365 = vpack.c.b16 %v349, %v223
  %366 = vrot.lane.b32.xlu0 %v350, 96
  %v367 = vpop.permute.xlu0 %366
  %368 = vrot.lane.b32.xlu0 %v351, 96
  %v369 = vpop.permute.xlu0 %368
  %370 = vrot.lane.b32.xlu0 %v352, 96
  %v371 = vpop.permute.xlu0 %370
  %372 = vrot.lane.b32.xlu0 %v353, 96
  %v373 = vpop.permute.xlu0 %372
  %374 = vrot.lane.b32.xlu0 %v354, 96
  %v375 = vpop.permute.xlu0 %374
  %376 = vrot.lane.b32.xlu0 %v355, 96
  %v377 = vpop.permute.xlu0 %376
  %378 = vrot.lane.b32.xlu0 %v356, 96
  %v379 = vpop.permute.xlu0 %378
  %380 = vrot.lane.b32.xlu0 %v357, 96
  %v381 = vpop.permute.xlu0 %380
  %382 = vrot.lane.b32.xlu0 %v358, 96
  %v383 = vpop.permute.xlu0 %382
  %384 = vrot.lane.b32.xlu0 %v359, 96
  %v385 = vpop.permute.xlu0 %384
  %386 = vrot.lane.b32.xlu0 %v360, 96
  %v387 = vpop.permute.xlu0 %386
  %388 = vrot.lane.b32.xlu0 %v361, 96
  %v389 = vpop.permute.xlu0 %388
  %390 = vrot.lane.b32.xlu0 %v362, 96
  %v391 = vpop.permute.xlu0 %390
  %392 = vrot.lane.b32.xlu0 %v363, 96
  %v393 = vpop.permute.xlu0 %392
  %394 = vrot.lane.b32.xlu0 %v364, 96
  %v395 = vpop.permute.xlu0 %394
  %396 = vrot.lane.b32.xlu0 %v365, 96
  %v397 = vpop.permute.xlu0 %396
  %vm398 = vcmask 785408
  %v399 = vsel %vm398, %v367, %v369
  %v400 = vsel %vm398, %v371, %v373
  %v401 = vsel %vm398, %v375, %v377
  %v402 = vsel %vm398, %v379, %v381
  %v403 = vsel %vm398, %v383, %v385
  %v404 = vsel %vm398, %v387, %v389
  %v405 = vsel %vm398, %v391, %v393
  %v406 = vsel %vm398, %v395, %v397
  %v417 = vunpack.c.l.b16 %v42
  %v418 = vunpack.c.h.b16 %v42
  %v419 = vunpack.c.l.b16 %v43
  %v420 = vunpack.c.h.b16 %v43
  %v421 = vpack.c.b16 %v417, %v283
  %v422 = vpack.c.b16 %v418, %v284
  %v423 = vpack.c.b16 %v419, %v285
  %v424 = vpack.c.b16 %v420, %v286
  %vm427 = vcmask 261120
  %v430 = vsel %vm427, %v153, %v241
  %v434 = vsel %vm427, %v155, %v245
  %v438 = vsel %vm427, %v157, %v249
  %v442 = vsel %vm427, %v159, %v253
  %v446 = vsel %vm427, %v161, %v257
  %v450 = vsel %vm427, %v163, %v261
  %v454 = vsel %vm427, %v165, %v265
  %v458 = vsel %vm427, %v167, %v269
  %vm460 = vcmask 523264
  %v463 = vsel %vm460, %v273, %v304
  %v467 = vsel %vm460, %v274, %v308
  %v471 = vsel %vm460, %v275, %v312
  %v475 = vsel %vm460, %v276, %v316
  %v479 = vsel %vm460, %v277, %v320
  %v483 = vsel %vm460, %v278, %v324
  %v487 = vsel %vm460, %v279, %v328
  %v491 = vsel %vm460, %v280, %v332
  %vm493 = vcmask 785408
  %v496 = vsel %vm493, %v336, %v367
  %v500 = vsel %vm493, %v337, %v371
  %v504 = vsel %vm493, %v338, %v375
  %v508 = vsel %vm493, %v339, %v379
  %v512 = vsel %vm493, %v340, %v383
  %v516 = vsel %vm493, %v341, %v387
  %v520 = vsel %vm493, %v342, %v391
  %v524 = vsel %vm493, %v343, %v395
  %v542 = vunpack.c.l.b16 %v44
  %v543 = vunpack.c.h.b16 %v44
  %v544 = vunpack.c.l.b16 %v45
  %v545 = vunpack.c.h.b16 %v45
  %v546 = vunpack.c.l.b16 %v46
  %v547 = vunpack.c.h.b16 %v46
  %v548 = vunpack.c.l.b16 %v47
  %v549 = vunpack.c.h.b16 %v47
  %v550 = vunpack.c.l.b16 %v48
  %v551 = vunpack.c.h.b16 %v48
  %v552 = vunpack.c.l.b16 %v49
  %v553 = vunpack.c.h.b16 %v49
  %v554 = vunpack.c.l.b16 %v50
  %v555 = vunpack.c.h.b16 %v50
  %v556 = vunpack.c.l.b16 %v51
  %v557 = vunpack.c.h.b16 %v51
  %v558 = vunpack.c.l.b16 %v52
  %v559 = vunpack.c.h.b16 %v52
  %v560 = vunpack.c.l.b16 %v53
  %v561 = vunpack.c.h.b16 %v53
  %v562 = vunpack.c.l.b16 %v54
  %v563 = vunpack.c.h.b16 %v54
  %v564 = vunpack.c.l.b16 %v55
  %v565 = vunpack.c.h.b16 %v55
  %v566 = vunpack.c.l.b16 %v56
  %v567 = vunpack.c.h.b16 %v56
  %v568 = vunpack.c.l.b16 %v57
  %v569 = vunpack.c.h.b16 %v57
  %v570 = vunpack.c.l.b16 %v58
  %v571 = vunpack.c.h.b16 %v58
  %v572 = vunpack.c.l.b16 %v59
  %v573 = vunpack.c.h.b16 %v59
  %v574 = vpack.c.b16 %v544, %v542
  %v575 = vpack.c.b16 %v545, %v543
  %v576 = vpack.c.b16 %v548, %v546
  %v577 = vpack.c.b16 %v549, %v547
  %v578 = vpack.c.b16 %v552, %v550
  %v579 = vpack.c.b16 %v553, %v551
  %v580 = vpack.c.b16 %v556, %v554
  %v581 = vpack.c.b16 %v557, %v555
  %v582 = vpack.c.b16 %v560, %v558
  %v583 = vpack.c.b16 %v561, %v559
  %v584 = vpack.c.b16 %v564, %v562
  %v585 = vpack.c.b16 %v565, %v563
  %v586 = vpack.c.b16 %v568, %v566
  %v587 = vpack.c.b16 %v569, %v567
  %v588 = vpack.c.b16 %v572, %v570
  %v589 = vpack.c.b16 %v573, %v571
  %v614 = vunpack.c.l.b16 %v84
  %v615 = vunpack.c.h.b16 %v84
  %v616 = vunpack.c.l.b16 %v85
  %v617 = vunpack.c.h.b16 %v85
  %v618 = vunpack.c.l.b16 %v86
  %v619 = vunpack.c.h.b16 %v86
  %v620 = vunpack.c.l.b16 %v87
  %v621 = vunpack.c.h.b16 %v87
  %v622 = vunpack.c.l.b16 %v88
  %v623 = vunpack.c.h.b16 %v88
  %v624 = vunpack.c.l.b16 %v89
  %v625 = vunpack.c.h.b16 %v89
  %v626 = vunpack.c.l.b16 %v90
  %v627 = vunpack.c.h.b16 %v90
  %v628 = vunpack.c.l.b16 %v91
  %v629 = vunpack.c.h.b16 %v91
  %v630 = vunpack.c.l.b16 %v92
  %v631 = vunpack.c.h.b16 %v92
  %v632 = vunpack.c.l.b16 %v93
  %v633 = vunpack.c.h.b16 %v93
  %v634 = vunpack.c.l.b16 %v94
  %v635 = vunpack.c.h.b16 %v94
  %v636 = vunpack.c.l.b16 %v95
  %v637 = vunpack.c.h.b16 %v95
  %v638 = vunpack.c.l.b16 %v96
  %v639 = vunpack.c.h.b16 %v96
  %v640 = vunpack.c.l.b16 %v97
  %v641 = vunpack.c.h.b16 %v97
  %v642 = vunpack.c.l.b16 %v98
  %v643 = vunpack.c.h.b16 %v98
  %v644 = vunpack.c.l.b16 %v99
  %v645 = vunpack.c.h.b16 %v99
  %v646 = vpack.c.b16 %v616, %v614
  %v647 = vpack.c.b16 %v617, %v615
  %v648 = vpack.c.b16 %v620, %v618
  %v649 = vpack.c.b16 %v621, %v619
  %v650 = vpack.c.b16 %v624, %v622
  %v651 = vpack.c.b16 %v625, %v623
  %v652 = vpack.c.b16 %v628, %v626
  %v653 = vpack.c.b16 %v629, %v627
  %v654 = vpack.c.b16 %v632, %v630
  %v655 = vpack.c.b16 %v633, %v631
  %v656 = vpack.c.b16 %v636, %v634
  %v657 = vpack.c.b16 %v637, %v635
  %v658 = vpack.c.b16 %v640, %v638
  %v659 = vpack.c.b16 %v641, %v639
  %v660 = vpack.c.b16 %v644, %v642
  %v661 = vpack.c.b16 %v645, %v643
  %662 = vrot.lane.b32.xlu0 %v646, 32
  %v663 = vpop.permute.xlu0 %662
  %664 = vrot.lane.b32.xlu0 %v647, 32
  %v665 = vpop.permute.xlu0 %664
  %666 = vrot.lane.b32.xlu0 %v648, 32
  %v667 = vpop.permute.xlu0 %666
  %668 = vrot.lane.b32.xlu0 %v649, 32
  %v669 = vpop.permute.xlu0 %668
  %670 = vrot.lane.b32.xlu0 %v650, 32
  %v671 = vpop.permute.xlu0 %670
  %672 = vrot.lane.b32.xlu0 %v651, 32
  %v673 = vpop.permute.xlu0 %672
  %674 = vrot.lane.b32.xlu0 %v652, 32
  %v675 = vpop.permute.xlu0 %674
  %676 = vrot.lane.b32.xlu0 %v653, 32
  %v677 = vpop.permute.xlu0 %676
  %678 = vrot.lane.b32.xlu0 %v654, 32
  %v679 = vpop.permute.xlu0 %678
  %680 = vrot.lane.b32.xlu0 %v655, 32
  %v681 = vpop.permute.xlu0 %680
  %682 = vrot.lane.b32.xlu0 %v656, 32
  %v683 = vpop.permute.xlu0 %682
  %684 = vrot.lane.b32.xlu0 %v657, 32
  %v685 = vpop.permute.xlu0 %684
  %686 = vrot.lane.b32.xlu0 %v658, 32
  %v687 = vpop.permute.xlu0 %686
  %688 = vrot.lane.b32.xlu0 %v659, 32
  %v689 = vpop.permute.xlu0 %688
  %690 = vrot.lane.b32.xlu0 %v660, 32
  %v691 = vpop.permute.xlu0 %690
  %692 = vrot.lane.b32.xlu0 %v661, 32
  %v693 = vpop.permute.xlu0 %692
  %v694 = vsel %vm272, %v663, %v665
  %v695 = vsel %vm272, %v667, %v669
  %v696 = vsel %vm272, %v671, %v673
  %v697 = vsel %vm272, %v675, %v677
  %v698 = vsel %vm272, %v679, %v681
  %v699 = vsel %vm272, %v683, %v685
  %v700 = vsel %vm272, %v687, %v689
  %v701 = vsel %vm272, %v691, %v693
  %v704 = vunpack.c.l.b16 %v60
  %v705 = vunpack.c.h.b16 %v60
  %v706 = vunpack.c.l.b16 %v61
  %v707 = vunpack.c.h.b16 %v61
  %v708 = vpack.c.b16 %v546, %v544
  %v709 = vpack.c.b16 %v547, %v545
  %v710 = vpack.c.b16 %v550, %v548
  %v711 = vpack.c.b16 %v551, %v549
  %v712 = vpack.c.b16 %v554, %v552
  %v713 = vpack.c.b16 %v555, %v553
  %v714 = vpack.c.b16 %v704, %v556
  %v715 = vpack.c.b16 %v705, %v557
  %v716 = vpack.c.b16 %v562, %v560
  %v717 = vpack.c.b16 %v563, %v561
  %v718 = vpack.c.b16 %v566, %v564
  %v719 = vpack.c.b16 %v567, %v565
  %v720 = vpack.c.b16 %v570, %v568
  %v721 = vpack.c.b16 %v571, %v569
  %v722 = vpack.c.b16 %v706, %v572
  %v723 = vpack.c.b16 %v707, %v573
  %724 = vrot.lane.b32.xlu0 %v708, 64
  %v725 = vpop.permute.xlu0 %724
  %726 = vrot.lane.b32.xlu0 %v709, 64
  %v727 = vpop.permute.xlu0 %726
  %728 = vrot.lane.b32.xlu0 %v710, 64
  %v729 = vpop.permute.xlu0 %728
  %730 = vrot.lane.b32.xlu0 %v711, 64
  %v731 = vpop.permute.xlu0 %730
  %732 = vrot.lane.b32.xlu0 %v712, 64
  %v733 = vpop.permute.xlu0 %732
  %734 = vrot.lane.b32.xlu0 %v713, 64
  %v735 = vpop.permute.xlu0 %734
  %736 = vrot.lane.b32.xlu0 %v714, 64
  %v737 = vpop.permute.xlu0 %736
  %738 = vrot.lane.b32.xlu0 %v715, 64
  %v739 = vpop.permute.xlu0 %738
  %740 = vrot.lane.b32.xlu0 %v716, 64
  %v741 = vpop.permute.xlu0 %740
  %742 = vrot.lane.b32.xlu0 %v717, 64
  %v743 = vpop.permute.xlu0 %742
  %744 = vrot.lane.b32.xlu0 %v718, 64
  %v745 = vpop.permute.xlu0 %744
  %746 = vrot.lane.b32.xlu0 %v719, 64
  %v747 = vpop.permute.xlu0 %746
  %748 = vrot.lane.b32.xlu0 %v720, 64
  %v749 = vpop.permute.xlu0 %748
  %750 = vrot.lane.b32.xlu0 %v721, 64
  %v751 = vpop.permute.xlu0 %750
  %752 = vrot.lane.b32.xlu0 %v722, 64
  %v753 = vpop.permute.xlu0 %752
  %754 = vrot.lane.b32.xlu0 %v723, 64
  %v755 = vpop.permute.xlu0 %754
  %v756 = vsel %vm335, %v725, %v727
  %v757 = vsel %vm335, %v729, %v731
  %v758 = vsel %vm335, %v733, %v735
  %v759 = vsel %vm335, %v737, %v739
  %v760 = vsel %vm335, %v741, %v743
  %v761 = vsel %vm335, %v745, %v747
  %v762 = vsel %vm335, %v749, %v751
  %v763 = vsel %vm335, %v753, %v755
  %v766 = vunpack.c.l.b16 %v100
  %v767 = vunpack.c.h.b16 %v100
  %v768 = vunpack.c.l.b16 %v101
  %v769 = vunpack.c.h.b16 %v101
  %v770 = vpack.c.b16 %v618, %v616
  %v771 = vpack.c.b16 %v619, %v617
  %v772 = vpack.c.b16 %v622, %v620
  %v773 = vpack.c.b16 %v623, %v621
  %v774 = vpack.c.b16 %v626, %v624
  %v775 = vpack.c.b16 %v627, %v625
  %v776 = vpack.c.b16 %v766, %v628
  %v777 = vpack.c.b16 %v767, %v629
  %v778 = vpack.c.b16 %v634, %v632
  %v779 = vpack.c.b16 %v635, %v633
  %v780 = vpack.c.b16 %v638, %v636
  %v781 = vpack.c.b16 %v639, %v637
  %v782 = vpack.c.b16 %v642, %v640
  %v783 = vpack.c.b16 %v643, %v641
  %v784 = vpack.c.b16 %v768, %v644
  %v785 = vpack.c.b16 %v769, %v645
  %786 = vrot.lane.b32.xlu0 %v770, 96
  %v787 = vpop.permute.xlu0 %786
  %788 = vrot.lane.b32.xlu0 %v771, 96
  %v789 = vpop.permute.xlu0 %788
  %790 = vrot.lane.b32.xlu0 %v772, 96
  %v791 = vpop.permute.xlu0 %790
  %792 = vrot.lane.b32.xlu0 %v773, 96
  %v793 = vpop.permute.xlu0 %792
  %794 = vrot.lane.b32.xlu0 %v774, 96
  %v795 = vpop.permute.xlu0 %794
  %796 = vrot.lane.b32.xlu0 %v775, 96
  %v797 = vpop.permute.xlu0 %796
  %798 = vrot.lane.b32.xlu0 %v776, 96
  %v799 = vpop.permute.xlu0 %798
  %800 = vrot.lane.b32.xlu0 %v777, 96
  %v801 = vpop.permute.xlu0 %800
  %802 = vrot.lane.b32.xlu0 %v778, 96
  %v803 = vpop.permute.xlu0 %802
  %804 = vrot.lane.b32.xlu0 %v779, 96
  %v805 = vpop.permute.xlu0 %804
  %806 = vrot.lane.b32.xlu0 %v780, 96
  %v807 = vpop.permute.xlu0 %806
  %808 = vrot.lane.b32.xlu0 %v781, 96
  %v809 = vpop.permute.xlu0 %808
  %810 = vrot.lane.b32.xlu0 %v782, 96
  %v811 = vpop.permute.xlu0 %810
  %812 = vrot.lane.b32.xlu0 %v783, 96
  %v813 = vpop.permute.xlu0 %812
  %814 = vrot.lane.b32.xlu0 %v784, 96
  %v815 = vpop.permute.xlu0 %814
  %816 = vrot.lane.b32.xlu0 %v785, 96
  %v817 = vpop.permute.xlu0 %816
  %v818 = vsel %vm398, %v787, %v789
  %v819 = vsel %vm398, %v791, %v793
  %v820 = vsel %vm398, %v795, %v797
  %v821 = vsel %vm398, %v799, %v801
  %v822 = vsel %vm398, %v803, %v805
  %v823 = vsel %vm398, %v807, %v809
  %v824 = vsel %vm398, %v811, %v813
  %v825 = vsel %vm398, %v815, %v817
  %v836 = vunpack.c.l.b16 %v62
  %v837 = vunpack.c.h.b16 %v62
  %v838 = vunpack.c.l.b16 %v63
  %v839 = vunpack.c.h.b16 %v63
  %v840 = vpack.c.b16 %v836, %v704
  %v841 = vpack.c.b16 %v837, %v705
  %v842 = vpack.c.b16 %v838, %v706
  %v843 = vpack.c.b16 %v839, %v707
  %v848 = vsel %vm427, %v575, %v663
  %v852 = vsel %vm427, %v577, %v667
  %v856 = vsel %vm427, %v579, %v671
  %v860 = vsel %vm427, %v581, %v675
  %v864 = vsel %vm427, %v583, %v679
  %v868 = vsel %vm427, %v585, %v683
  %v872 = vsel %vm427, %v587, %v687
  %v876 = vsel %vm427, %v589, %v691
  %v880 = vsel %vm460, %v694, %v725
  %v884 = vsel %vm460, %v695, %v729
  %v888 = vsel %vm460, %v696, %v733
  %v892 = vsel %vm460, %v697, %v737
  %v896 = vsel %vm460, %v698, %v741
  %v900 = vsel %vm460, %v699, %v745
  %v904 = vsel %vm460, %v700, %v749
  %v908 = vsel %vm460, %v701, %v753
  %v912 = vsel %vm493, %v756, %v787
  %v916 = vsel %vm493, %v757, %v791
  %v920 = vsel %vm493, %v758, %v795
  %v924 = vsel %vm493, %v759, %v799
  %v928 = vsel %vm493, %v760, %v803
  %v932 = vsel %vm493, %v761, %v807
  %v936 = vsel %vm493, %v762, %v811
  %v940 = vsel %vm493, %v763, %v815
  %950 = vrot.lane.b32.xlu0 %v287, 32
  %v951 = vpop.permute.xlu0 %950
  %952 = vrot.lane.b32.xlu0 %v288, 32
  %v953 = vpop.permute.xlu0 %952
  %954 = vrot.lane.b32.xlu0 %v289, 32
  %v955 = vpop.permute.xlu0 %954
  %956 = vrot.lane.b32.xlu0 %v290, 32
  %v957 = vpop.permute.xlu0 %956
  %958 = vrot.lane.b32.xlu0 %v291, 32
  %v959 = vpop.permute.xlu0 %958
  %960 = vrot.lane.b32.xlu0 %v292, 32
  %v961 = vpop.permute.xlu0 %960
  %962 = vrot.lane.b32.xlu0 %v293, 32
  %v963 = vpop.permute.xlu0 %962
  %964 = vrot.lane.b32.xlu0 %v294, 32
  %v965 = vpop.permute.xlu0 %964
  %966 = vrot.lane.b32.xlu0 %v295, 32
  %v967 = vpop.permute.xlu0 %966
  %968 = vrot.lane.b32.xlu0 %v296, 32
  %v969 = vpop.permute.xlu0 %968
  %970 = vrot.lane.b32.xlu0 %v297, 32
  %v971 = vpop.permute.xlu0 %970
  %972 = vrot.lane.b32.xlu0 %v298, 32
  %v973 = vpop.permute.xlu0 %972
  %974 = vrot.lane.b32.xlu0 %v299, 32
  %v975 = vpop.permute.xlu0 %974
  %976 = vrot.lane.b32.xlu0 %v300, 32
  %v977 = vpop.permute.xlu0 %976
  %978 = vrot.lane.b32.xlu0 %v301, 32
  %v979 = vpop.permute.xlu0 %978
  %980 = vrot.lane.b32.xlu0 %v302, 32
  %v981 = vpop.permute.xlu0 %980
  %v982 = vsel %vm272, %v951, %v953
  %v983 = vsel %vm272, %v955, %v957
  %v984 = vsel %vm272, %v959, %v961
  %v985 = vsel %vm272, %v963, %v965
  %v986 = vsel %vm272, %v967, %v969
  %v987 = vsel %vm272, %v971, %v973
  %v988 = vsel %vm272, %v975, %v977
  %v989 = vsel %vm272, %v979, %v981
  %990 = vrot.lane.b32.xlu0 %v350, 64
  %v991 = vpop.permute.xlu0 %990
  %992 = vrot.lane.b32.xlu0 %v351, 64
  %v993 = vpop.permute.xlu0 %992
  %994 = vrot.lane.b32.xlu0 %v352, 64
  %v995 = vpop.permute.xlu0 %994
  %996 = vrot.lane.b32.xlu0 %v353, 64
  %v997 = vpop.permute.xlu0 %996
  %998 = vrot.lane.b32.xlu0 %v354, 64
  %v999 = vpop.permute.xlu0 %998
  %1000 = vrot.lane.b32.xlu0 %v355, 64
  %v1001 = vpop.permute.xlu0 %1000
  %1002 = vrot.lane.b32.xlu0 %v356, 64
  %v1003 = vpop.permute.xlu0 %1002
  %1004 = vrot.lane.b32.xlu0 %v357, 64
  %v1005 = vpop.permute.xlu0 %1004
  %1006 = vrot.lane.b32.xlu0 %v358, 64
  %v1007 = vpop.permute.xlu0 %1006
  %1008 = vrot.lane.b32.xlu0 %v359, 64
  %v1009 = vpop.permute.xlu0 %1008
  %1010 = vrot.lane.b32.xlu0 %v360, 64
  %v1011 = vpop.permute.xlu0 %1010
  %1012 = vrot.lane.b32.xlu0 %v361, 64
  %v1013 = vpop.permute.xlu0 %1012
  %1014 = vrot.lane.b32.xlu0 %v362, 64
  %v1015 = vpop.permute.xlu0 %1014
  %1016 = vrot.lane.b32.xlu0 %v363, 64
  %v1017 = vpop.permute.xlu0 %1016
  %1018 = vrot.lane.b32.xlu0 %v364, 64
  %v1019 = vpop.permute.xlu0 %1018
  %1020 = vrot.lane.b32.xlu0 %v365, 64
  %v1021 = vpop.permute.xlu0 %1020
  %v1022 = vsel %vm335, %v991, %v993
  %v1023 = vsel %vm335, %v995, %v997
  %v1024 = vsel %vm335, %v999, %v1001
  %v1025 = vsel %vm335, %v1003, %v1005
  %v1026 = vsel %vm335, %v1007, %v1009
  %v1027 = vsel %vm335, %v1011, %v1013
  %v1028 = vsel %vm335, %v1015, %v1017
  %v1029 = vsel %vm335, %v1019, %v1021
  %1030 = vrot.lane.b32.xlu0 %v154, 96
  %v1031 = vpop.permute.xlu0 %1030
  %1032 = vrot.lane.b32.xlu0 %v155, 96
  %v1033 = vpop.permute.xlu0 %1032
  %1034 = vrot.lane.b32.xlu0 %v156, 96
  %v1035 = vpop.permute.xlu0 %1034
  %1036 = vrot.lane.b32.xlu0 %v157, 96
  %v1037 = vpop.permute.xlu0 %1036
  %1038 = vrot.lane.b32.xlu0 %v158, 96
  %v1039 = vpop.permute.xlu0 %1038
  %1040 = vrot.lane.b32.xlu0 %v159, 96
  %v1041 = vpop.permute.xlu0 %1040
  %1042 = vrot.lane.b32.xlu0 %v421, 96
  %v1043 = vpop.permute.xlu0 %1042
  %1044 = vrot.lane.b32.xlu0 %v422, 96
  %v1045 = vpop.permute.xlu0 %1044
  %1046 = vrot.lane.b32.xlu0 %v162, 96
  %v1047 = vpop.permute.xlu0 %1046
  %1048 = vrot.lane.b32.xlu0 %v163, 96
  %v1049 = vpop.permute.xlu0 %1048
  %1050 = vrot.lane.b32.xlu0 %v164, 96
  %v1051 = vpop.permute.xlu0 %1050
  %1052 = vrot.lane.b32.xlu0 %v165, 96
  %v1053 = vpop.permute.xlu0 %1052
  %1054 = vrot.lane.b32.xlu0 %v166, 96
  %v1055 = vpop.permute.xlu0 %1054
  %1056 = vrot.lane.b32.xlu0 %v167, 96
  %v1057 = vpop.permute.xlu0 %1056
  %1058 = vrot.lane.b32.xlu0 %v423, 96
  %v1059 = vpop.permute.xlu0 %1058
  %1060 = vrot.lane.b32.xlu0 %v424, 96
  %v1061 = vpop.permute.xlu0 %1060
  %v1062 = vsel %vm398, %v1031, %v1033
  %v1063 = vsel %vm398, %v1035, %v1037
  %v1064 = vsel %vm398, %v1039, %v1041
  %v1065 = vsel %vm398, %v1043, %v1045
  %v1066 = vsel %vm398, %v1047, %v1049
  %v1067 = vsel %vm398, %v1051, %v1053
  %v1068 = vsel %vm398, %v1055, %v1057
  %v1069 = vsel %vm398, %v1059, %v1061
  %v1080 = vunpack.c.l.b16 %v82
  %v1081 = vunpack.c.h.b16 %v82
  %v1082 = vunpack.c.l.b16 %v83
  %v1083 = vunpack.c.h.b16 %v83
  %v1084 = vpack.c.b16 %v1080, %v346
  %v1085 = vpack.c.b16 %v1081, %v347
  %v1086 = vpack.c.b16 %v1082, %v348
  %v1087 = vpack.c.b16 %v1083, %v349
  %v1092 = vsel %vm427, %v225, %v951
  %v1096 = vsel %vm427, %v227, %v955
  %v1100 = vsel %vm427, %v229, %v959
  %v1104 = vsel %vm427, %v231, %v963
  %v1108 = vsel %vm427, %v233, %v967
  %v1112 = vsel %vm427, %v235, %v971
  %v1116 = vsel %vm427, %v237, %v975
  %v1120 = vsel %vm427, %v239, %v979
  %v1124 = vsel %vm460, %v982, %v991
  %v1128 = vsel %vm460, %v983, %v995
  %v1132 = vsel %vm460, %v984, %v999
  %v1136 = vsel %vm460, %v985, %v1003
  %v1140 = vsel %vm460, %v986, %v1007
  %v1144 = vsel %vm460, %v987, %v1011
  %v1148 = vsel %vm460, %v988, %v1015
  %v1152 = vsel %vm460, %v989, %v1019
  %v1156 = vsel %vm493, %v1022, %v1031
  %v1160 = vsel %vm493, %v1023, %v1035
  %v1164 = vsel %vm493, %v1024, %v1039
  %v1168 = vsel %vm493, %v1025, %v1043
  %v1172 = vsel %vm493, %v1026, %v1047
  %v1176 = vsel %vm493, %v1027, %v1051
  %v1180 = vsel %vm493, %v1028, %v1055
  %v1184 = vsel %vm493, %v1029, %v1059
  %1194 = vrot.lane.b32.xlu0 %v708, 32
  %v1195 = vpop.permute.xlu0 %1194
  %1196 = vrot.lane.b32.xlu0 %v709, 32
  %v1197 = vpop.permute.xlu0 %1196
  %1198 = vrot.lane.b32.xlu0 %v710, 32
  %v1199 = vpop.permute.xlu0 %1198
  %1200 = vrot.lane.b32.xlu0 %v711, 32
  %v1201 = vpop.permute.xlu0 %1200
  %1202 = vrot.lane.b32.xlu0 %v712, 32
  %v1203 = vpop.permute.xlu0 %1202
  %1204 = vrot.lane.b32.xlu0 %v713, 32
  %v1205 = vpop.permute.xlu0 %1204
  %1206 = vrot.lane.b32.xlu0 %v714, 32
  %v1207 = vpop.permute.xlu0 %1206
  %1208 = vrot.lane.b32.xlu0 %v715, 32
  %v1209 = vpop.permute.xlu0 %1208
  %1210 = vrot.lane.b32.xlu0 %v716, 32
  %v1211 = vpop.permute.xlu0 %1210
  %1212 = vrot.lane.b32.xlu0 %v717, 32
  %v1213 = vpop.permute.xlu0 %1212
  %1214 = vrot.lane.b32.xlu0 %v718, 32
  %v1215 = vpop.permute.xlu0 %1214
  %1216 = vrot.lane.b32.xlu0 %v719, 32
  %v1217 = vpop.permute.xlu0 %1216
  %1218 = vrot.lane.b32.xlu0 %v720, 32
  %v1219 = vpop.permute.xlu0 %1218
  %1220 = vrot.lane.b32.xlu0 %v721, 32
  %v1221 = vpop.permute.xlu0 %1220
  %1222 = vrot.lane.b32.xlu0 %v722, 32
  %v1223 = vpop.permute.xlu0 %1222
  %1224 = vrot.lane.b32.xlu0 %v723, 32
  %v1225 = vpop.permute.xlu0 %1224
  %v1226 = vsel %vm272, %v1195, %v1197
  %v1227 = vsel %vm272, %v1199, %v1201
  %v1228 = vsel %vm272, %v1203, %v1205
  %v1229 = vsel %vm272, %v1207, %v1209
  %v1230 = vsel %vm272, %v1211, %v1213
  %v1231 = vsel %vm272, %v1215, %v1217
  %v1232 = vsel %vm272, %v1219, %v1221
  %v1233 = vsel %vm272, %v1223, %v1225
  %1234 = vrot.lane.b32.xlu0 %v770, 64
  %v1235 = vpop.permute.xlu0 %1234
  %1236 = vrot.lane.b32.xlu0 %v771, 64
  %v1237 = vpop.permute.xlu0 %1236
  %1238 = vrot.lane.b32.xlu0 %v772, 64
  %v1239 = vpop.permute.xlu0 %1238
  %1240 = vrot.lane.b32.xlu0 %v773, 64
  %v1241 = vpop.permute.xlu0 %1240
  %1242 = vrot.lane.b32.xlu0 %v774, 64
  %v1243 = vpop.permute.xlu0 %1242
  %1244 = vrot.lane.b32.xlu0 %v775, 64
  %v1245 = vpop.permute.xlu0 %1244
  %1246 = vrot.lane.b32.xlu0 %v776, 64
  %v1247 = vpop.permute.xlu0 %1246
  %1248 = vrot.lane.b32.xlu0 %v777, 64
  %v1249 = vpop.permute.xlu0 %1248
  %1250 = vrot.lane.b32.xlu0 %v778, 64
  %v1251 = vpop.permute.xlu0 %1250
  %1252 = vrot.lane.b32.xlu0 %v779, 64
  %v1253 = vpop.permute.xlu0 %1252
  %1254 = vrot.lane.b32.xlu0 %v780, 64
  %v1255 = vpop.permute.xlu0 %1254
  %1256 = vrot.lane.b32.xlu0 %v781, 64
  %v1257 = vpop.permute.xlu0 %1256
  %1258 = vrot.lane.b32.xlu0 %v782, 64
  %v1259 = vpop.permute.xlu0 %1258
  %1260 = vrot.lane.b32.xlu0 %v783, 64
  %v1261 = vpop.permute.xlu0 %1260
  %1262 = vrot.lane.b32.xlu0 %v784, 64
  %v1263 = vpop.permute.xlu0 %1262
  %1264 = vrot.lane.b32.xlu0 %v785, 64
  %v1265 = vpop.permute.xlu0 %1264
  %v1266 = vsel %vm335, %v1235, %v1237
  %v1267 = vsel %vm335, %v1239, %v1241
  %v1268 = vsel %vm335, %v1243, %v1245
  %v1269 = vsel %vm335, %v1247, %v1249
  %v1270 = vsel %vm335, %v1251, %v1253
  %v1271 = vsel %vm335, %v1255, %v1257
  %v1272 = vsel %vm335, %v1259, %v1261
  %v1273 = vsel %vm335, %v1263, %v1265
  %1274 = vrot.lane.b32.xlu0 %v576, 96
  %v1275 = vpop.permute.xlu0 %1274
  %1276 = vrot.lane.b32.xlu0 %v577, 96
  %v1277 = vpop.permute.xlu0 %1276
  %1278 = vrot.lane.b32.xlu0 %v578, 96
  %v1279 = vpop.permute.xlu0 %1278
  %1280 = vrot.lane.b32.xlu0 %v579, 96
  %v1281 = vpop.permute.xlu0 %1280
  %1282 = vrot.lane.b32.xlu0 %v580, 96
  %v1283 = vpop.permute.xlu0 %1282
  %1284 = vrot.lane.b32.xlu0 %v581, 96
  %v1285 = vpop.permute.xlu0 %1284
  %1286 = vrot.lane.b32.xlu0 %v840, 96
  %v1287 = vpop.permute.xlu0 %1286
  %1288 = vrot.lane.b32.xlu0 %v841, 96
  %v1289 = vpop.permute.xlu0 %1288
  %1290 = vrot.lane.b32.xlu0 %v584, 96
  %v1291 = vpop.permute.xlu0 %1290
  %1292 = vrot.lane.b32.xlu0 %v585, 96
  %v1293 = vpop.permute.xlu0 %1292
  %1294 = vrot.lane.b32.xlu0 %v586, 96
  %v1295 = vpop.permute.xlu0 %1294
  %1296 = vrot.lane.b32.xlu0 %v587, 96
  %v1297 = vpop.permute.xlu0 %1296
  %1298 = vrot.lane.b32.xlu0 %v588, 96
  %v1299 = vpop.permute.xlu0 %1298
  %1300 = vrot.lane.b32.xlu0 %v589, 96
  %v1301 = vpop.permute.xlu0 %1300
  %1302 = vrot.lane.b32.xlu0 %v842, 96
  %v1303 = vpop.permute.xlu0 %1302
  %1304 = vrot.lane.b32.xlu0 %v843, 96
  %v1305 = vpop.permute.xlu0 %1304
  %v1306 = vsel %vm398, %v1275, %v1277
  %v1307 = vsel %vm398, %v1279, %v1281
  %v1308 = vsel %vm398, %v1283, %v1285
  %v1309 = vsel %vm398, %v1287, %v1289
  %v1310 = vsel %vm398, %v1291, %v1293
  %v1311 = vsel %vm398, %v1295, %v1297
  %v1312 = vsel %vm398, %v1299, %v1301
  %v1313 = vsel %vm398, %v1303, %v1305
  %v1324 = vunpack.c.l.b16 %v102
  %v1325 = vunpack.c.h.b16 %v102
  %v1326 = vunpack.c.l.b16 %v103
  %v1327 = vunpack.c.h.b16 %v103
  %v1328 = vpack.c.b16 %v1324, %v766
  %v1329 = vpack.c.b16 %v1325, %v767
  %v1330 = vpack.c.b16 %v1326, %v768
  %v1331 = vpack.c.b16 %v1327, %v769
  %v1336 = vsel %vm427, %v647, %v1195
  %v1340 = vsel %vm427, %v649, %v1199
  %v1344 = vsel %vm427, %v651, %v1203
  %v1348 = vsel %vm427, %v653, %v1207
  %v1352 = vsel %vm427, %v655, %v1211
  %v1356 = vsel %vm427, %v657, %v1215
  %v1360 = vsel %vm427, %v659, %v1219
  %v1364 = vsel %vm427, %v661, %v1223
  %v1368 = vsel %vm460, %v1226, %v1235
  %v1372 = vsel %vm460, %v1227, %v1239
  %v1376 = vsel %vm460, %v1228, %v1243
  %v1380 = vsel %vm460, %v1229, %v1247
  %v1384 = vsel %vm460, %v1230, %v1251
  %v1388 = vsel %vm460, %v1231, %v1255
  %v1392 = vsel %vm460, %v1232, %v1259
  %v1396 = vsel %vm460, %v1233, %v1263
  %v1400 = vsel %vm493, %v1266, %v1275
  %v1404 = vsel %vm493, %v1267, %v1279
  %v1408 = vsel %vm493, %v1268, %v1283
  %v1412 = vsel %vm493, %v1269, %v1287
  %v1416 = vsel %vm493, %v1270, %v1291
  %v1420 = vsel %vm493, %v1271, %v1295
  %v1424 = vsel %vm493, %v1272, %v1299
  %v1428 = vsel %vm493, %v1273, %v1303
  %v1430 = vld [vmem:[%s4] sm:$0xf]
  %v1431 = vld [vmem:[%s4 + $0x4] sm:$0xf]
  %v1432 = vld [vmem:[%s4 + $0x8] sm:$0xf]
  %v1433 = vld [vmem:[%s4 + $0xc] sm:$0xf]
  %v1434 = vld [vmem:[%s4 + $0x10] sm:$0xf]
  %v1435 = vld [vmem:[%s4 + $0x14] sm:$0xf]
  %v1436 = vld [vmem:[%s4 + $0x18] sm:$0xf]
  %v1437 = vld [vmem:[%s4 + $0x1c] sm:$0xf]
  %v1438 = vld [vmem:[%s4 + $0x20] sm:$0xf]
  %v1439 = vld [vmem:[%s4 + $0x24] sm:$0xf]
  %v1440 = vld [vmem:[%s4 + $0x28] sm:$0xf]
  %v1441 = vld [vmem:[%s4 + $0x2c] sm:$0xf]
  %v1442 = vld [vmem:[%s4 + $0x30] sm:$0xf]
  %v1443 = vld [vmem:[%s4 + $0x34] sm:$0xf]
  %v1444 = vld [vmem:[%s4 + $0x38] sm:$0xf]
  %v1445 = vld [vmem:[%s4 + $0x3c] sm:$0xf]
  %v1446 = vld [vmem:[%s4 + $0x40] sm:$0xf]
  %v1447 = vld [vmem:[%s4 + $0x44] sm:$0xf]
  %v1448 = vld [vmem:[%s4 + $0x48] sm:$0xf]
  %v1449 = vld [vmem:[%s4 + $0x4c] sm:$0xf]
  %v1450 = vld [vmem:[%s4 + $0x50] sm:$0xf]
  %v1451 = vld [vmem:[%s4 + $0x54] sm:$0xf]
  %v1452 = vld [vmem:[%s4 + $0x58] sm:$0xf]
  %v1453 = vld [vmem:[%s4 + $0x5c] sm:$0xf]
  %v1454 = vld [vmem:[%s4 + $0x60] sm:$0xf]
  %v1455 = vld [vmem:[%s4 + $0x64] sm:$0xf]
  %v1456 = vld [vmem:[%s4 + $0x68] sm:$0xf]
  %v1457 = vld [vmem:[%s4 + $0x6c] sm:$0xf]
  %v1458 = vld [vmem:[%s4 + $0x70] sm:$0xf]
  %v1459 = vld [vmem:[%s4 + $0x74] sm:$0xf]
  %v1460 = vld [vmem:[%s4 + $0x78] sm:$0xf]
  %v1461 = vld [vmem:[%s4 + $0x7c] sm:$0xf]
  %v1462 = vld [vmem:[%s4 + $0x80] sm:$0xf]
  %v1463 = vld [vmem:[%s4 + $0x84] sm:$0xf]
  %v1464 = vld [vmem:[%s4 + $0x88] sm:$0xf]
  %v1465 = vld [vmem:[%s4 + $0x8c] sm:$0xf]
  %v1466 = vld [vmem:[%s4 + $0x90] sm:$0xf]
  %v1467 = vld [vmem:[%s4 + $0x94] sm:$0xf]
  %v1468 = vld [vmem:[%s4 + $0x98] sm:$0xf]
  %v1469 = vld [vmem:[%s4 + $0x9c] sm:$0xf]
  %v1470 = vld [vmem:[%s4 + $0xa0] sm:$0xf]
  %v1471 = vld [vmem:[%s4 + $0xa4] sm:$0xf]
  %v1472 = vld [vmem:[%s4 + $0xa8] sm:$0xf]
  %v1473 = vld [vmem:[%s4 + $0xac] sm:$0xf]
  %v1474 = vld [vmem:[%s4 + $0xb0] sm:$0xf]
  %v1475 = vld [vmem:[%s4 + $0xb4] sm:$0xf]
  %v1476 = vld [vmem:[%s4 + $0xb8] sm:$0xf]
  %v1477 = vld [vmem:[%s4 + $0xbc] sm:$0xf]
  %v1478 = vld [vmem:[%s4 + $0xc0] sm:$0xf]
  %v1479 = vld [vmem:[%s4 + $0xc4] sm:$0xf]
  %v1480 = vld [vmem:[%s4 + $0xc8] sm:$0xf]
  %v1481 = vld [vmem:[%s4 + $0xcc] sm:$0xf]
  %v1482 = vld [vmem:[%s4 + $0xd0] sm:$0xf]
  %v1483 = vld [vmem:[%s4 + $0xd4] sm:$0xf]
  %v1484 = vld [vmem:[%s4 + $0xd8] sm:$0xf]
  %v1485 = vld [vmem:[%s4 + $0xdc] sm:$0xf]
  %v1486 = vld [vmem:[%s4 + $0xe0] sm:$0xf]
  %v1487 = vld [vmem:[%s4 + $0xe4] sm:$0xf]
  %v1488 = vld [vmem:[%s4 + $0xe8] sm:$0xf]
  %v1489 = vld [vmem:[%s4 + $0xec] sm:$0xf]
  %v1490 = vld [vmem:[%s4 + $0xf0] sm:$0xf]
  %v1491 = vld [vmem:[%s4 + $0xf4] sm:$0xf]
  %v1492 = vld [vmem:[%s4 + $0xf8] sm:$0xf]
  %v1493 = vld [vmem:[%s4 + $0xfc] sm:$0xf]
  %v1494 = vld [vmem:[%s4 + $0x100] sm:$0xf]
  %v1495 = vld [vmem:[%s4 + $0x104] sm:$0xf]
  %v1496 = vld [vmem:[%s4 + $0x108] sm:$0xf]
  %v1497 = vld [vmem:[%s4 + $0x10c] sm:$0xf]
  %v1498 = vld [vmem:[%s4 + $0x110] sm:$0xf]
  %v1499 = vld [vmem:[%s4 + $0x114] sm:$0xf]
  %v1500 = vld [vmem:[%s4 + $0x118] sm:$0xf]
  %v1501 = vld [vmem:[%s4 + $0x11c] sm:$0xf]
  %v1502 = vld [vmem:[%s4 + $0x120] sm:$0xf]
  %v1503 = vld [vmem:[%s4 + $0x124] sm:$0xf]
  %v1504 = vld [vmem:[%s4 + $0x128] sm:$0xf]
  %v1505 = vld [vmem:[%s4 + $0x12c] sm:$0xf]
  %v1506 = vld [vmem:[%s4 + $0x130] sm:$0xf]
  %v1507 = vld [vmem:[%s4 + $0x134] sm:$0xf]
  %v1508 = vld [vmem:[%s4 + $0x138] sm:$0xf]
  %v1509 = vld [vmem:[%s4 + $0x13c] sm:$0xf]
  %v1510 = vld [vmem:[%s4 + $0x140] sm:$0xf]
  %v1511 = vld [vmem:[%s4 + $0x144] sm:$0xf]
  %v1512 = vld [vmem:[%s4 + $0x148] sm:$0xf]
  %v1513 = vld [vmem:[%s4 + $0x14c] sm:$0xf]
  %v1514 = vld [vmem:[%s4 + $0x150] sm:$0xf]
  %v1515 = vld [vmem:[%s4 + $0x154] sm:$0xf]
  %v1516 = vld [vmem:[%s4 + $0x158] sm:$0xf]
  %v1517 = vld [vmem:[%s4 + $0x15c] sm:$0xf]
  %v1518 = vld [vmem:[%s4 + $0x160] sm:$0xf]
  %v1519 = vld [vmem:[%s4 + $0x164] sm:$0xf]
  %v1520 = vld [vmem:[%s4 + $0x168] sm:$0xf]
  %v1521 = vld [vmem:[%s4 + $0x16c] sm:$0xf]
  %v1522 = vld [vmem:[%s4 + $0x170] sm:$0xf]
  %v1523 = vld [vmem:[%s4 + $0x174] sm:$0xf]
  %v1524 = vld [vmem:[%s4 + $0x178] sm:$0xf]
  %v1525 = vld [vmem:[%s4 + $0x17c] sm:$0xf]
  %v1526 = vld [vmem:[%s4 + $0x180] sm:$0xf]
  %v1527 = vld [vmem:[%s4 + $0x184] sm:$0xf]
  %v1528 = vld [vmem:[%s4 + $0x188] sm:$0xf]
  %v1529 = vld [vmem:[%s4 + $0x18c] sm:$0xf]
  %v1630 = vunpack.c.l.b16 %v1430
  %v1631 = vunpack.c.l.b16 %v1431
  %v1632 = vunpack.c.l.b16 %v1432
  %v1633 = vunpack.c.l.b16 %v1433
  %v1634 = vunpack.c.l.b16 %v1434
  %v1635 = vunpack.c.l.b16 %v1435
  %v1636 = vunpack.c.l.b16 %v1436
  %v1637 = vunpack.c.l.b16 %v1437
  %v1638 = vunpack.c.l.b16 %v1438
  %v1639 = vunpack.c.l.b16 %v1439
  %v1640 = vunpack.c.l.b16 %v1440
  %v1641 = vunpack.c.l.b16 %v1441
  %v1642 = vunpack.c.l.b16 %v1442
  %v1643 = vunpack.c.l.b16 %v1443
  %v1644 = vunpack.c.l.b16 %v1444
  %v1645 = vunpack.c.l.b16 %v1445
  %v1646 = vunpack.c.l.b16 %v1446
  %v1647 = vunpack.c.l.b16 %v1447
  %v1648 = vunpack.c.l.b16 %v1448
  %v1649 = vunpack.c.l.b16 %v1449
  %v1650 = vunpack.c.l.b16 %v1450
  %v1651 = vunpack.c.l.b16 %v1451
  %v1652 = vunpack.c.l.b16 %v1452
  %v1653 = vunpack.c.l.b16 %v1453
  %v1654 = vunpack.c.l.b16 %v1454
  %v1655 = vunpack.c.l.b16 %v1455
  %v1656 = vunpack.c.l.b16 %v1456
  %v1657 = vunpack.c.l.b16 %v1457
  %v1658 = vunpack.c.l.b16 %v1458
  %v1659 = vunpack.c.l.b16 %v1459
  %v1660 = vunpack.c.l.b16 %v1460
  %v1661 = vunpack.c.l.b16 %v1461
  %v1662 = vunpack.c.l.b16 %v1462
  %v1663 = vunpack.c.l.b16 %v1463
  %v1664 = vunpack.c.l.b16 %v1464
  %v1665 = vunpack.c.l.b16 %v1465
  %v1666 = vunpack.c.l.b16 %v1466
  %v1667 = vunpack.c.l.b16 %v1467
  %v1668 = vunpack.c.l.b16 %v1468
  %v1669 = vunpack.c.l.b16 %v1469
  %v1670 = vunpack.c.l.b16 %v1470
  %v1671 = vunpack.c.l.b16 %v1471
  %v1672 = vunpack.c.l.b16 %v1472
  %v1673 = vunpack.c.l.b16 %v1473
  %v1674 = vunpack.c.l.b16 %v1474
  %v1675 = vunpack.c.l.b16 %v1475
  %v1676 = vunpack.c.l.b16 %v1476
  %v1677 = vunpack.c.l.b16 %v1477
  %v1678 = vunpack.c.l.b16 %v1478
  %v1679 = vunpack.c.l.b16 %v1479
  %v1680 = vunpack.c.l.b16 %v1480
  %v1681 = vunpack.c.l.b16 %v1481
  %v1682 = vunpack.c.l.b16 %v1482
  %v1683 = vunpack.c.l.b16 %v1483
  %v1684 = vunpack.c.l.b16 %v1484
  %v1685 = vunpack.c.l.b16 %v1485
  %v1686 = vunpack.c.l.b16 %v1486
  %v1687 = vunpack.c.l.b16 %v1487
  %v1688 = vunpack.c.l.b16 %v1488
  %v1689 = vunpack.c.l.b16 %v1489
  %v1690 = vunpack.c.l.b16 %v1490
  %v1691 = vunpack.c.l.b16 %v1491
  %v1692 = vunpack.c.l.b16 %v1492
  %v1693 = vunpack.c.l.b16 %v1493
  %v1694 = vunpack.c.l.b16 %v1494
  %v1695 = vunpack.c.l.b16 %v1495
  %v1696 = vunpack.c.l.b16 %v1496
  %v1697 = vunpack.c.l.b16 %v1497
  %v1698 = vunpack.c.l.b16 %v1498
  %v1699 = vunpack.c.l.b16 %v1499
  %v1700 = vunpack.c.l.b16 %v1500
  %v1701 = vunpack.c.l.b16 %v1501
  %v1702 = vunpack.c.l.b16 %v1502
  %v1703 = vunpack.c.l.b16 %v1503
  %v1704 = vunpack.c.l.b16 %v1504
  %v1705 = vunpack.c.l.b16 %v1505
  %v1706 = vunpack.c.l.b16 %v1506
  %v1707 = vunpack.c.l.b16 %v1507
  %v1708 = vunpack.c.l.b16 %v1508
  %v1709 = vunpack.c.l.b16 %v1509
  %v1710 = vunpack.c.l.b16 %v1510
  %v1711 = vunpack.c.l.b16 %v1511
  %v1712 = vunpack.c.l.b16 %v1512
  %v1713 = vunpack.c.l.b16 %v1513
  %v1714 = vunpack.c.l.b16 %v1514
  %v1715 = vunpack.c.l.b16 %v1515
  %v1716 = vunpack.c.l.b16 %v1516
  %v1717 = vunpack.c.l.b16 %v1517
  %v1718 = vunpack.c.l.b16 %v1518
  %v1719 = vunpack.c.l.b16 %v1519
  %v1720 = vunpack.c.l.b16 %v1520
  %v1721 = vunpack.c.l.b16 %v1521
  %v1722 = vunpack.c.l.b16 %v1522
  %v1723 = vunpack.c.l.b16 %v1523
  %v1724 = vunpack.c.l.b16 %v1524
  %v1725 = vunpack.c.l.b16 %v1525
  %v1726 = vunpack.c.l.b16 %v1526
  %v1727 = vunpack.c.l.b16 %v1527
  %v1728 = vunpack.c.l.b16 %v1528
  %v1729 = vunpack.c.l.b16 %v1529
  %v1730 = vpack.c.b16 %v1631, %v1630
  %v1731 = vpack.c.b16 %v1633, %v1632
  %v1732 = vpack.c.b16 %v1635, %v1634
  %v1733 = vpack.c.b16 %v1637, %v1636
  %v1734 = vpack.c.b16 %v1639, %v1638
  %v1735 = vpack.c.b16 %v1641, %v1640
  %v1736 = vpack.c.b16 %v1643, %v1642
  %v1737 = vpack.c.b16 %v1645, %v1644
  %v1738 = vpack.c.b16 %v1647, %v1646
  %v1739 = vpack.c.b16 %v1649, %v1648
  %v1740 = vpack.c.b16 %v1651, %v1650
  %v1741 = vpack.c.b16 %v1653, %v1652
  %v1742 = vpack.c.b16 %v1655, %v1654
  %v1743 = vpack.c.b16 %v1657, %v1656
  %v1744 = vpack.c.b16 %v1659, %v1658
  %v1745 = vpack.c.b16 %v1661, %v1660
  %v1746 = vpack.c.b16 %v1663, %v1662
  %v1747 = vpack.c.b16 %v1665, %v1664
  %v1748 = vpack.c.b16 %v1667, %v1666
  %v1749 = vpack.c.b16 %v1669, %v1668
  %v1750 = vpack.c.b16 %v1671, %v1670
  %v1751 = vpack.c.b16 %v1673, %v1672
  %v1752 = vpack.c.b16 %v1675, %v1674
  %v1753 = vpack.c.b16 %v1677, %v1676
  %v1754 = vpack.c.b16 %v1679, %v1678
  %v1755 = vpack.c.b16 %v1681, %v1680
  %v1756 = vpack.c.b16 %v1683, %v1682
  %v1757 = vpack.c.b16 %v1685, %v1684
  %v1758 = vpack.c.b16 %v1687, %v1686
  %v1759 = vpack.c.b16 %v1689, %v1688
  %v1760 = vpack.c.b16 %v1691, %v1690
  %v1761 = vpack.c.b16 %v1693, %v1692
  %v1762 = vpack.c.b16 %v1695, %v1694
  %v1763 = vpack.c.b16 %v1697, %v1696
  %v1764 = vpack.c.b16 %v1699, %v1698
  %v1765 = vpack.c.b16 %v1701, %v1700
  %v1766 = vpack.c.b16 %v1703, %v1702
  %v1767 = vpack.c.b16 %v1705, %v1704
  %v1768 = vpack.c.b16 %v1707, %v1706
  %v1769 = vpack.c.b16 %v1709, %v1708
  %v1770 = vpack.c.b16 %v1711, %v1710
  %v1771 = vpack.c.b16 %v1713, %v1712
  %v1772 = vpack.c.b16 %v1715, %v1714
  %v1773 = vpack.c.b16 %v1717, %v1716
  %v1774 = vpack.c.b16 %v1719, %v1718
  %v1775 = vpack.c.b16 %v1721, %v1720
  %v1776 = vpack.c.b16 %v1723, %v1722
  %v1777 = vpack.c.b16 %v1725, %v1724
  %v1778 = vpack.c.b16 %v1727, %v1726
  %v1779 = vpack.c.b16 %v1729, %v1728
  %v1830 = vsel %vm427, %v155, 0
  %v1832 = vsel %vm427, %v157, 0
  %v1834 = vsel %vm427, %v159, 0
  %v1837 = vsel %vm427, %v422, 0
  %v1839 = vsel %vm427, %v163, 0
  %v1841 = vsel %vm427, %v165, 0
  %v1843 = vsel %vm427, %v167, 0
  %v1846 = vsel %vm427, %v424, 0
  %v1848 = vsel %vm427, %v577, 0
  %v1850 = vsel %vm427, %v579, 0
  %v1852 = vsel %vm427, %v581, 0
  %v1855 = vsel %vm427, %v841, 0
  %v1857 = vsel %vm427, %v585, 0
  %v1859 = vsel %vm427, %v587, 0
  %v1861 = vsel %vm427, %v589, 0
  %v1864 = vsel %vm427, %v843, 0
  %v1866 = vsel %vm427, %v227, 0
  %v1868 = vsel %vm427, %v229, 0
  %v1870 = vsel %vm427, %v231, 0
  %v1873 = vsel %vm427, %v1085, 0
  %v1875 = vsel %vm427, %v235, 0
  %v1877 = vsel %vm427, %v237, 0
  %v1879 = vsel %vm427, %v239, 0
  %v1882 = vsel %vm427, %v1087, 0
  %v1884 = vsel %vm427, %v649, 0
  %v1886 = vsel %vm427, %v651, 0
  %v1888 = vsel %vm427, %v653, 0
  %v1891 = vsel %vm427, %v1329, 0
  %v1893 = vsel %vm427, %v657, 0
  %v1895 = vsel %vm427, %v659, 0
  %v1897 = vsel %vm427, %v661, 0
  %v1900 = vsel %vm427, %v1331, 0
  %1902 = vmatpush.bf16.msra.mxu0 %v1737
  %1903 = vmatpush.bf16.msra.mxu0 %v1736
  %1904 = vmatpush.bf16.msra.mxu0 %v1735
  %1905 = vmatpush.bf16.msra.mxu0 %v1734
  %1906 = vmatpush.bf16.msra.mxu0 %v1733
  %1907 = vmatpush.bf16.msra.mxu0 %v1732
  %1908 = vmatpush.bf16.msra.mxu0 %v1731
  %1909 = vmatpush.bf16.msra.mxu0 %v1730
  %1910 = vmatmul.bf16.gmra.mxu0 %v152
  %v1911 = vpop.f32.mrf.mxu0
  %v1912 = vadd.f32 0.0, %v1911
  %v1913 = vpop.f32.mrf.mxu0
  %v1914 = vadd.f32 0.0, %v1913
  %1915 = vmatmul.bf16.gmra.mxu0 %v154
  %v1916 = vpop.f32.mrf.mxu0
  %v1917 = vadd.f32 0.0, %v1916
  %v1918 = vpop.f32.mrf.mxu0
  %v1919 = vadd.f32 0.0, %v1918
  %1920 = vmatmul.bf16.gmra.mxu0 %v156
  %v1921 = vpop.f32.mrf.mxu0
  %v1922 = vadd.f32 0.0, %v1921
  %v1923 = vpop.f32.mrf.mxu0
  %v1924 = vadd.f32 0.0, %v1923
  %1925 = vmatmul.bf16.gmra.mxu0 %v158
  %v1926 = vpop.f32.mrf.mxu0
  %v1927 = vadd.f32 0.0, %v1926
  %v1928 = vpop.f32.mrf.mxu0
  %v1929 = vadd.f32 0.0, %v1928
  %1930 = vmatmul.bf16.gmra.mxu0 %v160
  %v1931 = vpop.f32.mrf.mxu0
  %v1932 = vadd.f32 0.0, %v1931
  %v1933 = vpop.f32.mrf.mxu0
  %v1934 = vadd.f32 0.0, %v1933
  %1935 = vmatmul.bf16.gmra.mxu0 %v162
  %v1936 = vpop.f32.mrf.mxu0
  %v1937 = vadd.f32 0.0, %v1936
  %v1938 = vpop.f32.mrf.mxu0
  %v1939 = vadd.f32 0.0, %v1938
  %1940 = vmatmul.bf16.gmra.mxu0 %v164
  %v1941 = vpop.f32.mrf.mxu0
  %v1942 = vadd.f32 0.0, %v1941
  %v1943 = vpop.f32.mrf.mxu0
  %v1944 = vadd.f32 0.0, %v1943
  %1945 = vmatmul.bf16.gmra.mxu0 %v166
  %v1946 = vpop.f32.mrf.mxu0
  %v1947 = vadd.f32 0.0, %v1946
  %v1948 = vpop.f32.mrf.mxu0
  %v1949 = vadd.f32 0.0, %v1948
  %1950 = vmatmul.bf16.gmra.mxu0 %v574
  %v1951 = vpop.f32.mrf.mxu0
  %v1952 = vadd.f32 0.0, %v1951
  %v1953 = vpop.f32.mrf.mxu0
  %v1954 = vadd.f32 0.0, %v1953
  %1955 = vmatmul.bf16.gmra.mxu0 %v576
  %v1956 = vpop.f32.mrf.mxu0
  %v1957 = vadd.f32 0.0, %v1956
  %v1958 = vpop.f32.mrf.mxu0
  %v1959 = vadd.f32 0.0, %v1958
  %1960 = vmatmul.bf16.gmra.mxu0 %v578
  %v1961 = vpop.f32.mrf.mxu0
  %v1962 = vadd.f32 0.0, %v1961
  %v1963 = vpop.f32.mrf.mxu0
  %v1964 = vadd.f32 0.0, %v1963
  %1965 = vmatmul.bf16.gmra.mxu0 %v580
  %v1966 = vpop.f32.mrf.mxu0
  %v1967 = vadd.f32 0.0, %v1966
  %v1968 = vpop.f32.mrf.mxu0
  %v1969 = vadd.f32 0.0, %v1968
  %1970 = vmatmul.bf16.gmra.mxu0 %v582
  %v1971 = vpop.f32.mrf.mxu0
  %v1972 = vadd.f32 0.0, %v1971
  %v1973 = vpop.f32.mrf.mxu0
  %v1974 = vadd.f32 0.0, %v1973
  %1975 = vmatmul.bf16.gmra.mxu0 %v584
  %v1976 = vpop.f32.mrf.mxu0
  %v1977 = vadd.f32 0.0, %v1976
  %v1978 = vpop.f32.mrf.mxu0
  %v1979 = vadd.f32 0.0, %v1978
  %1980 = vmatmul.bf16.gmra.mxu0 %v586
  %v1981 = vpop.f32.mrf.mxu0
  %v1982 = vadd.f32 0.0, %v1981
  %v1983 = vpop.f32.mrf.mxu0
  %v1984 = vadd.f32 0.0, %v1983
  %1985 = vmatmul.bf16.gmra.mxu0 %v588
  %v1986 = vpop.f32.mrf.mxu0
  %v1987 = vadd.f32 0.0, %v1986
  %v1988 = vpop.f32.mrf.mxu0
  %v1989 = vadd.f32 0.0, %v1988
  %1990 = vmatmul.bf16.gmra.mxu0 %v224
  %v1991 = vpop.f32.mrf.mxu0
  %v1992 = vadd.f32 0.0, %v1991
  %v1993 = vpop.f32.mrf.mxu0
  %v1994 = vadd.f32 0.0, %v1993
  %1995 = vmatmul.bf16.gmra.mxu0 %v226
  %v1996 = vpop.f32.mrf.mxu0
  %v1997 = vadd.f32 0.0, %v1996
  %v1998 = vpop.f32.mrf.mxu0
  %v1999 = vadd.f32 0.0, %v1998
  %2000 = vmatmul.bf16.gmra.mxu0 %v228
  %v2001 = vpop.f32.mrf.mxu0
  %v2002 = vadd.f32 0.0, %v2001
  %v2003 = vpop.f32.mrf.mxu0
  %v2004 = vadd.f32 0.0, %v2003
  %2005 = vmatmul.bf16.gmra.mxu0 %v230
  %v2006 = vpop.f32.mrf.mxu0
  %v2007 = vadd.f32 0.0, %v2006
  %v2008 = vpop.f32.mrf.mxu0
  %v2009 = vadd.f32 0.0, %v2008
  %2010 = vmatmul.bf16.gmra.mxu0 %v232
  %v2011 = vpop.f32.mrf.mxu0
  %v2012 = vadd.f32 0.0, %v2011
  %v2013 = vpop.f32.mrf.mxu0
  %v2014 = vadd.f32 0.0, %v2013
  %2015 = vmatmul.bf16.gmra.mxu0 %v234
  %v2016 = vpop.f32.mrf.mxu0
  %v2017 = vadd.f32 0.0, %v2016
  %v2018 = vpop.f32.mrf.mxu0
  %v2019 = vadd.f32 0.0, %v2018
  %2020 = vmatmul.bf16.gmra.mxu0 %v236
  %v2021 = vpop.f32.mrf.mxu0
  %v2022 = vadd.f32 0.0, %v2021
  %v2023 = vpop.f32.mrf.mxu0
  %v2024 = vadd.f32 0.0, %v2023
  %2025 = vmatmul.bf16.gmra.mxu0 %v238
  %v2026 = vpop.f32.mrf.mxu0
  %v2027 = vadd.f32 0.0, %v2026
  %v2028 = vpop.f32.mrf.mxu0
  %v2029 = vadd.f32 0.0, %v2028
  %2030 = vmatmul.bf16.gmra.mxu0 %v646
  %v2031 = vpop.f32.mrf.mxu0
  %v2032 = vadd.f32 0.0, %v2031
  %v2033 = vpop.f32.mrf.mxu0
  %v2034 = vadd.f32 0.0, %v2033
  %2035 = vmatmul.bf16.gmra.mxu0 %v648
  %v2036 = vpop.f32.mrf.mxu0
  %v2037 = vadd.f32 0.0, %v2036
  %v2038 = vpop.f32.mrf.mxu0
  %v2039 = vadd.f32 0.0, %v2038
  %2040 = vmatmul.bf16.gmra.mxu0 %v650
  %v2041 = vpop.f32.mrf.mxu0
  %v2042 = vadd.f32 0.0, %v2041
  %v2043 = vpop.f32.mrf.mxu0
  %v2044 = vadd.f32 0.0, %v2043
  %2045 = vmatmul.bf16.gmra.mxu0 %v652
  %v2046 = vpop.f32.mrf.mxu0
  %v2047 = vadd.f32 0.0, %v2046
  %v2048 = vpop.f32.mrf.mxu0
  %v2049 = vadd.f32 0.0, %v2048
  %2050 = vmatmul.bf16.gmra.mxu0 %v654
  %v2051 = vpop.f32.mrf.mxu0
  %v2052 = vadd.f32 0.0, %v2051
  %v2053 = vpop.f32.mrf.mxu0
  %v2054 = vadd.f32 0.0, %v2053
  %2055 = vmatmul.bf16.gmra.mxu0 %v656
  %v2056 = vpop.f32.mrf.mxu0
  %v2057 = vadd.f32 0.0, %v2056
  %v2058 = vpop.f32.mrf.mxu0
  %v2059 = vadd.f32 0.0, %v2058
  %2060 = vmatmul.bf16.gmra.mxu0 %v658
  %v2061 = vpop.f32.mrf.mxu0
  %v2062 = vadd.f32 0.0, %v2061
  %v2063 = vpop.f32.mrf.mxu0
  %v2064 = vadd.f32 0.0, %v2063
  %2065 = vmatmul.bf16.gmra.mxu0 %v660
  %v2066 = vpop.f32.mrf.mxu0
  %v2067 = vadd.f32 0.0, %v2066
  %v2068 = vpop.f32.mrf.mxu0
  %v2069 = vadd.f32 0.0, %v2068
  %2070 = vdwg.mxu0
  %2071 = vmatpush.bf16.msra.mxu0 %v1745
  %2072 = vmatpush.bf16.msra.mxu0 %v1744
  %2073 = vmatpush.bf16.msra.mxu0 %v1743
  %2074 = vmatpush.bf16.msra.mxu0 %v1742
  %2075 = vmatpush.bf16.msra.mxu0 %v1741
  %2076 = vmatpush.bf16.msra.mxu0 %v1740
  %2077 = vmatpush.bf16.msra.mxu0 %v1739
  %2078 = vmatpush.bf16.msra.mxu0 %v1738
  %2079 = vmatmul.bf16.gmra.mxu0 %v430
  %v2080 = vpop.f32.mrf.mxu0
  %v2081 = vadd.f32 %v1912, %v2080
  %v2082 = vpop.f32.mrf.mxu0
  %v2083 = vadd.f32 %v1914, %v2082
  %2084 = vmatmul.bf16.gmra.mxu0 %v434
  %v2085 = vpop.f32.mrf.mxu0
  %v2086 = vadd.f32 %v1917, %v2085
  %v2087 = vpop.f32.mrf.mxu0
  %v2088 = vadd.f32 %v1919, %v2087
  %2089 = vmatmul.bf16.gmra.mxu0 %v438
  %v2090 = vpop.f32.mrf.mxu0
  %v2091 = vadd.f32 %v1922, %v2090
  %v2092 = vpop.f32.mrf.mxu0
  %v2093 = vadd.f32 %v1924, %v2092
  %2094 = vmatmul.bf16.gmra.mxu0 %v442
  %v2095 = vpop.f32.mrf.mxu0
  %v2096 = vadd.f32 %v1927, %v2095
  %v2097 = vpop.f32.mrf.mxu0
  %v2098 = vadd.f32 %v1929, %v2097
  %2099 = vmatmul.bf16.gmra.mxu0 %v446
  %v2100 = vpop.f32.mrf.mxu0
  %v2101 = vadd.f32 %v1932, %v2100
  %v2102 = vpop.f32.mrf.mxu0
  %v2103 = vadd.f32 %v1934, %v2102
  %2104 = vmatmul.bf16.gmra.mxu0 %v450
  %v2105 = vpop.f32.mrf.mxu0
  %v2106 = vadd.f32 %v1937, %v2105
  %v2107 = vpop.f32.mrf.mxu0
  %v2108 = vadd.f32 %v1939, %v2107
  %2109 = vmatmul.bf16.gmra.mxu0 %v454
  %v2110 = vpop.f32.mrf.mxu0
  %v2111 = vadd.f32 %v1942, %v2110
  %v2112 = vpop.f32.mrf.mxu0
  %v2113 = vadd.f32 %v1944, %v2112
  %2114 = vmatmul.bf16.gmra.mxu0 %v458
  %v2115 = vpop.f32.mrf.mxu0
  %v2116 = vadd.f32 %v1947, %v2115
  %v2117 = vpop.f32.mrf.mxu0
  %v2118 = vadd.f32 %v1949, %v2117
  %2119 = vmatmul.bf16.gmra.mxu0 %v848
  %v2120 = vpop.f32.mrf.mxu0
  %v2121 = vadd.f32 %v1952, %v2120
  %v2122 = vpop.f32.mrf.mxu0
  %v2123 = vadd.f32 %v1954, %v2122
  %2124 = vmatmul.bf16.gmra.mxu0 %v852
  %v2125 = vpop.f32.mrf.mxu0
  %v2126 = vadd.f32 %v1957, %v2125
  %v2127 = vpop.f32.mrf.mxu0
  %v2128 = vadd.f32 %v1959, %v2127
  %2129 = vmatmul.bf16.gmra.mxu0 %v856
  %v2130 = vpop.f32.mrf.mxu0
  %v2131 = vadd.f32 %v1962, %v2130
  %v2132 = vpop.f32.mrf.mxu0
  %v2133 = vadd.f32 %v1964, %v2132
  %2134 = vmatmul.bf16.gmra.mxu0 %v860
  %v2135 = vpop.f32.mrf.mxu0
  %v2136 = vadd.f32 %v1967, %v2135
  %v2137 = vpop.f32.mrf.mxu0
  %v2138 = vadd.f32 %v1969, %v2137
  %2139 = vmatmul.bf16.gmra.mxu0 %v864
  %v2140 = vpop.f32.mrf.mxu0
  %v2141 = vadd.f32 %v1972, %v2140
  %v2142 = vpop.f32.mrf.mxu0
  %v2143 = vadd.f32 %v1974, %v2142
  %2144 = vmatmul.bf16.gmra.mxu0 %v868
  %v2145 = vpop.f32.mrf.mxu0
  %v2146 = vadd.f32 %v1977, %v2145
  %v2147 = vpop.f32.mrf.mxu0
  %v2148 = vadd.f32 %v1979, %v2147
  %2149 = vmatmul.bf16.gmra.mxu0 %v872
  %v2150 = vpop.f32.mrf.mxu0
  %v2151 = vadd.f32 %v1982, %v2150
  %v2152 = vpop.f32.mrf.mxu0
  %v2153 = vadd.f32 %v1984, %v2152
  %2154 = vmatmul.bf16.gmra.mxu0 %v876
  %v2155 = vpop.f32.mrf.mxu0
  %v2156 = vadd.f32 %v1987, %v2155
  %v2157 = vpop.f32.mrf.mxu0
  %v2158 = vadd.f32 %v1989, %v2157
  %2159 = vmatmul.bf16.gmra.mxu0 %v1092
  %v2160 = vpop.f32.mrf.mxu0
  %v2161 = vadd.f32 %v1992, %v2160
  %v2162 = vpop.f32.mrf.mxu0
  %v2163 = vadd.f32 %v1994, %v2162
  %2164 = vmatmul.bf16.gmra.mxu0 %v1096
  %v2165 = vpop.f32.mrf.mxu0
  %v2166 = vadd.f32 %v1997, %v2165
  %v2167 = vpop.f32.mrf.mxu0
  %v2168 = vadd.f32 %v1999, %v2167
  %2169 = vmatmul.bf16.gmra.mxu0 %v1100
  %v2170 = vpop.f32.mrf.mxu0
  %v2171 = vadd.f32 %v2002, %v2170
  %v2172 = vpop.f32.mrf.mxu0
  %v2173 = vadd.f32 %v2004, %v2172
  %2174 = vmatmul.bf16.gmra.mxu0 %v1104
  %v2175 = vpop.f32.mrf.mxu0
  %v2176 = vadd.f32 %v2007, %v2175
  %v2177 = vpop.f32.mrf.mxu0
  %v2178 = vadd.f32 %v2009, %v2177
  %2179 = vmatmul.bf16.gmra.mxu0 %v1108
  %v2180 = vpop.f32.mrf.mxu0
  %v2181 = vadd.f32 %v2012, %v2180
  %v2182 = vpop.f32.mrf.mxu0
  %v2183 = vadd.f32 %v2014, %v2182
  %2184 = vmatmul.bf16.gmra.mxu0 %v1112
  %v2185 = vpop.f32.mrf.mxu0
  %v2186 = vadd.f32 %v2017, %v2185
  %v2187 = vpop.f32.mrf.mxu0
  %v2188 = vadd.f32 %v2019, %v2187
  %2189 = vmatmul.bf16.gmra.mxu0 %v1116
  %v2190 = vpop.f32.mrf.mxu0
  %v2191 = vadd.f32 %v2022, %v2190
  %v2192 = vpop.f32.mrf.mxu0
  %v2193 = vadd.f32 %v2024, %v2192
  %2194 = vmatmul.bf16.gmra.mxu0 %v1120
  %v2195 = vpop.f32.mrf.mxu0
  %v2196 = vadd.f32 %v2027, %v2195
  %v2197 = vpop.f32.mrf.mxu0
  %v2198 = vadd.f32 %v2029, %v2197
  %2199 = vmatmul.bf16.gmra.mxu0 %v1336
  %v2200 = vpop.f32.mrf.mxu0
  %v2201 = vadd.f32 %v2032, %v2200
  %v2202 = vpop.f32.mrf.mxu0
  %v2203 = vadd.f32 %v2034, %v2202
  %2204 = vmatmul.bf16.gmra.mxu0 %v1340
  %v2205 = vpop.f32.mrf.mxu0
  %v2206 = vadd.f32 %v2037, %v2205
  %v2207 = vpop.f32.mrf.mxu0
  %v2208 = vadd.f32 %v2039, %v2207
  %2209 = vmatmul.bf16.gmra.mxu0 %v1344
  %v2210 = vpop.f32.mrf.mxu0
  %v2211 = vadd.f32 %v2042, %v2210
  %v2212 = vpop.f32.mrf.mxu0
  %v2213 = vadd.f32 %v2044, %v2212
  %2214 = vmatmul.bf16.gmra.mxu0 %v1348
  %v2215 = vpop.f32.mrf.mxu0
  %v2216 = vadd.f32 %v2047, %v2215
  %v2217 = vpop.f32.mrf.mxu0
  %v2218 = vadd.f32 %v2049, %v2217
  %2219 = vmatmul.bf16.gmra.mxu0 %v1352
  %v2220 = vpop.f32.mrf.mxu0
  %v2221 = vadd.f32 %v2052, %v2220
  %v2222 = vpop.f32.mrf.mxu0
  %v2223 = vadd.f32 %v2054, %v2222
  %2224 = vmatmul.bf16.gmra.mxu0 %v1356
  %v2225 = vpop.f32.mrf.mxu0
  %v2226 = vadd.f32 %v2057, %v2225
  %v2227 = vpop.f32.mrf.mxu0
  %v2228 = vadd.f32 %v2059, %v2227
  %2229 = vmatmul.bf16.gmra.mxu0 %v1360
  %v2230 = vpop.f32.mrf.mxu0
  %v2231 = vadd.f32 %v2062, %v2230
  %v2232 = vpop.f32.mrf.mxu0
  %v2233 = vadd.f32 %v2064, %v2232
  %2234 = vmatmul.bf16.gmra.mxu0 %v1364
  %v2235 = vpop.f32.mrf.mxu0
  %v2236 = vadd.f32 %v2067, %v2235
  %v2237 = vpop.f32.mrf.mxu0
  %v2238 = vadd.f32 %v2069, %v2237
  %2239 = vdwg.mxu0
  %2240 = vmatpush.bf16.msra.mxu0 %v1753
  %2241 = vmatpush.bf16.msra.mxu0 %v1752
  %2242 = vmatpush.bf16.msra.mxu0 %v1751
  %2243 = vmatpush.bf16.msra.mxu0 %v1750
  %2244 = vmatpush.bf16.msra.mxu0 %v1749
  %2245 = vmatpush.bf16.msra.mxu0 %v1748
  %2246 = vmatpush.bf16.msra.mxu0 %v1747
  %2247 = vmatpush.bf16.msra.mxu0 %v1746
  %2248 = vmatmul.bf16.gmra.mxu0 %v463
  %v2249 = vpop.f32.mrf.mxu0
  %v2250 = vadd.f32 %v2081, %v2249
  %v2251 = vpop.f32.mrf.mxu0
  %v2252 = vadd.f32 %v2083, %v2251
  %2253 = vmatmul.bf16.gmra.mxu0 %v467
  %v2254 = vpop.f32.mrf.mxu0
  %v2255 = vadd.f32 %v2086, %v2254
  %v2256 = vpop.f32.mrf.mxu0
  %v2257 = vadd.f32 %v2088, %v2256
  %2258 = vmatmul.bf16.gmra.mxu0 %v471
  %v2259 = vpop.f32.mrf.mxu0
  %v2260 = vadd.f32 %v2091, %v2259
  %v2261 = vpop.f32.mrf.mxu0
  %v2262 = vadd.f32 %v2093, %v2261
  %2263 = vmatmul.bf16.gmra.mxu0 %v475
  %v2264 = vpop.f32.mrf.mxu0
  %v2265 = vadd.f32 %v2096, %v2264
  %v2266 = vpop.f32.mrf.mxu0
  %v2267 = vadd.f32 %v2098, %v2266
  %2268 = vmatmul.bf16.gmra.mxu0 %v479
  %v2269 = vpop.f32.mrf.mxu0
  %v2270 = vadd.f32 %v2101, %v2269
  %v2271 = vpop.f32.mrf.mxu0
  %v2272 = vadd.f32 %v2103, %v2271
  %2273 = vmatmul.bf16.gmra.mxu0 %v483
  %v2274 = vpop.f32.mrf.mxu0
  %v2275 = vadd.f32 %v2106, %v2274
  %v2276 = vpop.f32.mrf.mxu0
  %v2277 = vadd.f32 %v2108, %v2276
  %2278 = vmatmul.bf16.gmra.mxu0 %v487
  %v2279 = vpop.f32.mrf.mxu0
  %v2280 = vadd.f32 %v2111, %v2279
  %v2281 = vpop.f32.mrf.mxu0
  %v2282 = vadd.f32 %v2113, %v2281
  %2283 = vmatmul.bf16.gmra.mxu0 %v491
  %v2284 = vpop.f32.mrf.mxu0
  %v2285 = vadd.f32 %v2116, %v2284
  %v2286 = vpop.f32.mrf.mxu0
  %v2287 = vadd.f32 %v2118, %v2286
  %2288 = vmatmul.bf16.gmra.mxu0 %v880
  %v2289 = vpop.f32.mrf.mxu0
  %v2290 = vadd.f32 %v2121, %v2289
  %v2291 = vpop.f32.mrf.mxu0
  %v2292 = vadd.f32 %v2123, %v2291
  %2293 = vmatmul.bf16.gmra.mxu0 %v884
  %v2294 = vpop.f32.mrf.mxu0
  %v2295 = vadd.f32 %v2126, %v2294
  %v2296 = vpop.f32.mrf.mxu0
  %v2297 = vadd.f32 %v2128, %v2296
  %2298 = vmatmul.bf16.gmra.mxu0 %v888
  %v2299 = vpop.f32.mrf.mxu0
  %v2300 = vadd.f32 %v2131, %v2299
  %v2301 = vpop.f32.mrf.mxu0
  %v2302 = vadd.f32 %v2133, %v2301
  %2303 = vmatmul.bf16.gmra.mxu0 %v892
  %v2304 = vpop.f32.mrf.mxu0
  %v2305 = vadd.f32 %v2136, %v2304
  %v2306 = vpop.f32.mrf.mxu0
  %v2307 = vadd.f32 %v2138, %v2306
  %2308 = vmatmul.bf16.gmra.mxu0 %v896
  %v2309 = vpop.f32.mrf.mxu0
  %v2310 = vadd.f32 %v2141, %v2309
  %v2311 = vpop.f32.mrf.mxu0
  %v2312 = vadd.f32 %v2143, %v2311
  %2313 = vmatmul.bf16.gmra.mxu0 %v900
  %v2314 = vpop.f32.mrf.mxu0
  %v2315 = vadd.f32 %v2146, %v2314
  %v2316 = vpop.f32.mrf.mxu0
  %v2317 = vadd.f32 %v2148, %v2316
  %2318 = vmatmul.bf16.gmra.mxu0 %v904
  %v2319 = vpop.f32.mrf.mxu0
  %v2320 = vadd.f32 %v2151, %v2319
  %v2321 = vpop.f32.mrf.mxu0
  %v2322 = vadd.f32 %v2153, %v2321
  %2323 = vmatmul.bf16.gmra.mxu0 %v908
  %v2324 = vpop.f32.mrf.mxu0
  %v2325 = vadd.f32 %v2156, %v2324
  %v2326 = vpop.f32.mrf.mxu0
  %v2327 = vadd.f32 %v2158, %v2326
  %2328 = vmatmul.bf16.gmra.mxu0 %v1124
  %v2329 = vpop.f32.mrf.mxu0
  %v2330 = vadd.f32 %v2161, %v2329
  %v2331 = vpop.f32.mrf.mxu0
  %v2332 = vadd.f32 %v2163, %v2331
  %2333 = vmatmul.bf16.gmra.mxu0 %v1128
  %v2334 = vpop.f32.mrf.mxu0
  %v2335 = vadd.f32 %v2166, %v2334
  %v2336 = vpop.f32.mrf.mxu0
  %v2337 = vadd.f32 %v2168, %v2336
  %2338 = vmatmul.bf16.gmra.mxu0 %v1132
  %v2339 = vpop.f32.mrf.mxu0
  %v2340 = vadd.f32 %v2171, %v2339
  %v2341 = vpop.f32.mrf.mxu0
  %v2342 = vadd.f32 %v2173, %v2341
  %2343 = vmatmul.bf16.gmra.mxu0 %v1136
  %v2344 = vpop.f32.mrf.mxu0
  %v2345 = vadd.f32 %v2176, %v2344
  %v2346 = vpop.f32.mrf.mxu0
  %v2347 = vadd.f32 %v2178, %v2346
  %2348 = vmatmul.bf16.gmra.mxu0 %v1140
  %v2349 = vpop.f32.mrf.mxu0
  %v2350 = vadd.f32 %v2181, %v2349
  %v2351 = vpop.f32.mrf.mxu0
  %v2352 = vadd.f32 %v2183, %v2351
  %2353 = vmatmul.bf16.gmra.mxu0 %v1144
  %v2354 = vpop.f32.mrf.mxu0
  %v2355 = vadd.f32 %v2186, %v2354
  %v2356 = vpop.f32.mrf.mxu0
  %v2357 = vadd.f32 %v2188, %v2356
  %2358 = vmatmul.bf16.gmra.mxu0 %v1148
  %v2359 = vpop.f32.mrf.mxu0
  %v2360 = vadd.f32 %v2191, %v2359
  %v2361 = vpop.f32.mrf.mxu0
  %v2362 = vadd.f32 %v2193, %v2361
  %2363 = vmatmul.bf16.gmra.mxu0 %v1152
  %v2364 = vpop.f32.mrf.mxu0
  %v2365 = vadd.f32 %v2196, %v2364
  %v2366 = vpop.f32.mrf.mxu0
  %v2367 = vadd.f32 %v2198, %v2366
  %2368 = vmatmul.bf16.gmra.mxu0 %v1368
  %v2369 = vpop.f32.mrf.mxu0
  %v2370 = vadd.f32 %v2201, %v2369
  %v2371 = vpop.f32.mrf.mxu0
  %v2372 = vadd.f32 %v2203, %v2371
  %2373 = vmatmul.bf16.gmra.mxu0 %v1372
  %v2374 = vpop.f32.mrf.mxu0
  %v2375 = vadd.f32 %v2206, %v2374
  %v2376 = vpop.f32.mrf.mxu0
  %v2377 = vadd.f32 %v2208, %v2376
  %2378 = vmatmul.bf16.gmra.mxu0 %v1376
  %v2379 = vpop.f32.mrf.mxu0
  %v2380 = vadd.f32 %v2211, %v2379
  %v2381 = vpop.f32.mrf.mxu0
  %v2382 = vadd.f32 %v2213, %v2381
  %2383 = vmatmul.bf16.gmra.mxu0 %v1380
  %v2384 = vpop.f32.mrf.mxu0
  %v2385 = vadd.f32 %v2216, %v2384
  %v2386 = vpop.f32.mrf.mxu0
  %v2387 = vadd.f32 %v2218, %v2386
  %2388 = vmatmul.bf16.gmra.mxu0 %v1384
  %v2389 = vpop.f32.mrf.mxu0
  %v2390 = vadd.f32 %v2221, %v2389
  %v2391 = vpop.f32.mrf.mxu0
  %v2392 = vadd.f32 %v2223, %v2391
  %2393 = vmatmul.bf16.gmra.mxu0 %v1388
  %v2394 = vpop.f32.mrf.mxu0
  %v2395 = vadd.f32 %v2226, %v2394
  %v2396 = vpop.f32.mrf.mxu0
  %v2397 = vadd.f32 %v2228, %v2396
  %2398 = vmatmul.bf16.gmra.mxu0 %v1392
  %v2399 = vpop.f32.mrf.mxu0
  %v2400 = vadd.f32 %v2231, %v2399
  %v2401 = vpop.f32.mrf.mxu0
  %v2402 = vadd.f32 %v2233, %v2401
  %2403 = vmatmul.bf16.gmra.mxu0 %v1396
  %v2404 = vpop.f32.mrf.mxu0
  %v2405 = vadd.f32 %v2236, %v2404
  %v2406 = vpop.f32.mrf.mxu0
  %v2407 = vadd.f32 %v2238, %v2406
  %2408 = vdwg.mxu0
  %2409 = vmatpush.bf16.msra.mxu0 %v1761
  %2410 = vmatpush.bf16.msra.mxu0 %v1760
  %2411 = vmatpush.bf16.msra.mxu0 %v1759
  %2412 = vmatpush.bf16.msra.mxu0 %v1758
  %2413 = vmatpush.bf16.msra.mxu0 %v1757
  %2414 = vmatpush.bf16.msra.mxu0 %v1756
  %2415 = vmatpush.bf16.msra.mxu0 %v1755
  %2416 = vmatpush.bf16.msra.mxu0 %v1754
  %2417 = vmatmul.bf16.gmra.mxu0 %v496
  %v2418 = vpop.f32.mrf.mxu0
  %v2419 = vadd.f32 %v2250, %v2418
  %v2420 = vpop.f32.mrf.mxu0
  %v2421 = vadd.f32 %v2252, %v2420
  %2422 = vmatmul.bf16.gmra.mxu0 %v500
  %v2423 = vpop.f32.mrf.mxu0
  %v2424 = vadd.f32 %v2255, %v2423
  %v2425 = vpop.f32.mrf.mxu0
  %v2426 = vadd.f32 %v2257, %v2425
  %2427 = vmatmul.bf16.gmra.mxu0 %v504
  %v2428 = vpop.f32.mrf.mxu0
  %v2429 = vadd.f32 %v2260, %v2428
  %v2430 = vpop.f32.mrf.mxu0
  %v2431 = vadd.f32 %v2262, %v2430
  %2432 = vmatmul.bf16.gmra.mxu0 %v508
  %v2433 = vpop.f32.mrf.mxu0
  %v2434 = vadd.f32 %v2265, %v2433
  %v2435 = vpop.f32.mrf.mxu0
  %v2436 = vadd.f32 %v2267, %v2435
  %2437 = vmatmul.bf16.gmra.mxu0 %v512
  %v2438 = vpop.f32.mrf.mxu0
  %v2439 = vadd.f32 %v2270, %v2438
  %v2440 = vpop.f32.mrf.mxu0
  %v2441 = vadd.f32 %v2272, %v2440
  %2442 = vmatmul.bf16.gmra.mxu0 %v516
  %v2443 = vpop.f32.mrf.mxu0
  %v2444 = vadd.f32 %v2275, %v2443
  %v2445 = vpop.f32.mrf.mxu0
  %v2446 = vadd.f32 %v2277, %v2445
  %2447 = vmatmul.bf16.gmra.mxu0 %v520
  %v2448 = vpop.f32.mrf.mxu0
  %v2449 = vadd.f32 %v2280, %v2448
  %v2450 = vpop.f32.mrf.mxu0
  %v2451 = vadd.f32 %v2282, %v2450
  %2452 = vmatmul.bf16.gmra.mxu0 %v524
  %v2453 = vpop.f32.mrf.mxu0
  %v2454 = vadd.f32 %v2285, %v2453
  %v2455 = vpop.f32.mrf.mxu0
  %v2456 = vadd.f32 %v2287, %v2455
  %2457 = vmatmul.bf16.gmra.mxu0 %v912
  %v2458 = vpop.f32.mrf.mxu0
  %v2459 = vadd.f32 %v2290, %v2458
  %v2460 = vpop.f32.mrf.mxu0
  %v2461 = vadd.f32 %v2292, %v2460
  %2462 = vmatmul.bf16.gmra.mxu0 %v916
  %v2463 = vpop.f32.mrf.mxu0
  %v2464 = vadd.f32 %v2295, %v2463
  %v2465 = vpop.f32.mrf.mxu0
  %v2466 = vadd.f32 %v2297, %v2465
  %2467 = vmatmul.bf16.gmra.mxu0 %v920
  %v2468 = vpop.f32.mrf.mxu0
  %v2469 = vadd.f32 %v2300, %v2468
  %v2470 = vpop.f32.mrf.mxu0
  %v2471 = vadd.f32 %v2302, %v2470
  %2472 = vmatmul.bf16.gmra.mxu0 %v924
  %v2473 = vpop.f32.mrf.mxu0
  %v2474 = vadd.f32 %v2305, %v2473
  %v2475 = vpop.f32.mrf.mxu0
  %v2476 = vadd.f32 %v2307, %v2475
  %2477 = vmatmul.bf16.gmra.mxu0 %v928
  %v2478 = vpop.f32.mrf.mxu0
  %v2479 = vadd.f32 %v2310, %v2478
  %v2480 = vpop.f32.mrf.mxu0
  %v2481 = vadd.f32 %v2312, %v2480
  %2482 = vmatmul.bf16.gmra.mxu0 %v932
  %v2483 = vpop.f32.mrf.mxu0
  %v2484 = vadd.f32 %v2315, %v2483
  %v2485 = vpop.f32.mrf.mxu0
  %v2486 = vadd.f32 %v2317, %v2485
  %2487 = vmatmul.bf16.gmra.mxu0 %v936
  %v2488 = vpop.f32.mrf.mxu0
  %v2489 = vadd.f32 %v2320, %v2488
  %v2490 = vpop.f32.mrf.mxu0
  %v2491 = vadd.f32 %v2322, %v2490
  %2492 = vmatmul.bf16.gmra.mxu0 %v940
  %v2493 = vpop.f32.mrf.mxu0
  %v2494 = vadd.f32 %v2325, %v2493
  %v2495 = vpop.f32.mrf.mxu0
  %v2496 = vadd.f32 %v2327, %v2495
  %2497 = vmatmul.bf16.gmra.mxu0 %v1156
  %v2498 = vpop.f32.mrf.mxu0
  %v2499 = vadd.f32 %v2330, %v2498
  %v2500 = vpop.f32.mrf.mxu0
  %v2501 = vadd.f32 %v2332, %v2500
  %2502 = vmatmul.bf16.gmra.mxu0 %v1160
  %v2503 = vpop.f32.mrf.mxu0
  %v2504 = vadd.f32 %v2335, %v2503
  %v2505 = vpop.f32.mrf.mxu0
  %v2506 = vadd.f32 %v2337, %v2505
  %2507 = vmatmul.bf16.gmra.mxu0 %v1164
  %v2508 = vpop.f32.mrf.mxu0
  %v2509 = vadd.f32 %v2340, %v2508
  %v2510 = vpop.f32.mrf.mxu0
  %v2511 = vadd.f32 %v2342, %v2510
  %2512 = vmatmul.bf16.gmra.mxu0 %v1168
  %v2513 = vpop.f32.mrf.mxu0
  %v2514 = vadd.f32 %v2345, %v2513
  %v2515 = vpop.f32.mrf.mxu0
  %v2516 = vadd.f32 %v2347, %v2515
  %2517 = vmatmul.bf16.gmra.mxu0 %v1172
  %v2518 = vpop.f32.mrf.mxu0
  %v2519 = vadd.f32 %v2350, %v2518
  %v2520 = vpop.f32.mrf.mxu0
  %v2521 = vadd.f32 %v2352, %v2520
  %2522 = vmatmul.bf16.gmra.mxu0 %v1176
  %v2523 = vpop.f32.mrf.mxu0
  %v2524 = vadd.f32 %v2355, %v2523
  %v2525 = vpop.f32.mrf.mxu0
  %v2526 = vadd.f32 %v2357, %v2525
  %2527 = vmatmul.bf16.gmra.mxu0 %v1180
  %v2528 = vpop.f32.mrf.mxu0
  %v2529 = vadd.f32 %v2360, %v2528
  %v2530 = vpop.f32.mrf.mxu0
  %v2531 = vadd.f32 %v2362, %v2530
  %2532 = vmatmul.bf16.gmra.mxu0 %v1184
  %v2533 = vpop.f32.mrf.mxu0
  %v2534 = vadd.f32 %v2365, %v2533
  %v2535 = vpop.f32.mrf.mxu0
  %v2536 = vadd.f32 %v2367, %v2535
  %2537 = vmatmul.bf16.gmra.mxu0 %v1400
  %v2538 = vpop.f32.mrf.mxu0
  %v2539 = vadd.f32 %v2370, %v2538
  %v2540 = vpop.f32.mrf.mxu0
  %v2541 = vadd.f32 %v2372, %v2540
  %2542 = vmatmul.bf16.gmra.mxu0 %v1404
  %v2543 = vpop.f32.mrf.mxu0
  %v2544 = vadd.f32 %v2375, %v2543
  %v2545 = vpop.f32.mrf.mxu0
  %v2546 = vadd.f32 %v2377, %v2545
  %2547 = vmatmul.bf16.gmra.mxu0 %v1408
  %v2548 = vpop.f32.mrf.mxu0
  %v2549 = vadd.f32 %v2380, %v2548
  %v2550 = vpop.f32.mrf.mxu0
  %v2551 = vadd.f32 %v2382, %v2550
  %2552 = vmatmul.bf16.gmra.mxu0 %v1412
  %v2553 = vpop.f32.mrf.mxu0
  %v2554 = vadd.f32 %v2385, %v2553
  %v2555 = vpop.f32.mrf.mxu0
  %v2556 = vadd.f32 %v2387, %v2555
  %2557 = vmatmul.bf16.gmra.mxu0 %v1416
  %v2558 = vpop.f32.mrf.mxu0
  %v2559 = vadd.f32 %v2390, %v2558
  %v2560 = vpop.f32.mrf.mxu0
  %v2561 = vadd.f32 %v2392, %v2560
  %2562 = vmatmul.bf16.gmra.mxu0 %v1420
  %v2563 = vpop.f32.mrf.mxu0
  %v2564 = vadd.f32 %v2395, %v2563
  %v2565 = vpop.f32.mrf.mxu0
  %v2566 = vadd.f32 %v2397, %v2565
  %2567 = vmatmul.bf16.gmra.mxu0 %v1424
  %v2568 = vpop.f32.mrf.mxu0
  %v2569 = vadd.f32 %v2400, %v2568
  %v2570 = vpop.f32.mrf.mxu0
  %v2571 = vadd.f32 %v2402, %v2570
  %2572 = vmatmul.bf16.gmra.mxu0 %v1428
  %v2573 = vpop.f32.mrf.mxu0
  %v2574 = vadd.f32 %v2405, %v2573
  %v2575 = vpop.f32.mrf.mxu0
  %v2576 = vadd.f32 %v2407, %v2575
  %2577 = vdwg.mxu0
  %2578 = vmatpush.bf16.msra.mxu0 %v1769
  %2579 = vmatpush.bf16.msra.mxu0 %v1768
  %2580 = vmatpush.bf16.msra.mxu0 %v1767
  %2581 = vmatpush.bf16.msra.mxu0 %v1766
  %2582 = vmatpush.bf16.msra.mxu0 %v1765
  %2583 = vmatpush.bf16.msra.mxu0 %v1764
  %2584 = vmatpush.bf16.msra.mxu0 %v1763
  %2585 = vmatpush.bf16.msra.mxu0 %v1762
  %2586 = vmatmul.bf16.gmra.mxu0 %v399
  %v2587 = vpop.f32.mrf.mxu0
  %v2588 = vadd.f32 %v2419, %v2587
  %v2589 = vpop.f32.mrf.mxu0
  %v2590 = vadd.f32 %v2421, %v2589
  %2591 = vmatmul.bf16.gmra.mxu0 %v400
  %v2592 = vpop.f32.mrf.mxu0
  %v2593 = vadd.f32 %v2424, %v2592
  %v2594 = vpop.f32.mrf.mxu0
  %v2595 = vadd.f32 %v2426, %v2594
  %2596 = vmatmul.bf16.gmra.mxu0 %v401
  %v2597 = vpop.f32.mrf.mxu0
  %v2598 = vadd.f32 %v2429, %v2597
  %v2599 = vpop.f32.mrf.mxu0
  %v2600 = vadd.f32 %v2431, %v2599
  %2601 = vmatmul.bf16.gmra.mxu0 %v402
  %v2602 = vpop.f32.mrf.mxu0
  %v2603 = vadd.f32 %v2434, %v2602
  %v2604 = vpop.f32.mrf.mxu0
  %v2605 = vadd.f32 %v2436, %v2604
  %2606 = vmatmul.bf16.gmra.mxu0 %v403
  %v2607 = vpop.f32.mrf.mxu0
  %v2608 = vadd.f32 %v2439, %v2607
  %v2609 = vpop.f32.mrf.mxu0
  %v2610 = vadd.f32 %v2441, %v2609
  %2611 = vmatmul.bf16.gmra.mxu0 %v404
  %v2612 = vpop.f32.mrf.mxu0
  %v2613 = vadd.f32 %v2444, %v2612
  %v2614 = vpop.f32.mrf.mxu0
  %v2615 = vadd.f32 %v2446, %v2614
  %2616 = vmatmul.bf16.gmra.mxu0 %v405
  %v2617 = vpop.f32.mrf.mxu0
  %v2618 = vadd.f32 %v2449, %v2617
  %v2619 = vpop.f32.mrf.mxu0
  %v2620 = vadd.f32 %v2451, %v2619
  %2621 = vmatmul.bf16.gmra.mxu0 %v406
  %v2622 = vpop.f32.mrf.mxu0
  %v2623 = vadd.f32 %v2454, %v2622
  %v2624 = vpop.f32.mrf.mxu0
  %v2625 = vadd.f32 %v2456, %v2624
  %2626 = vmatmul.bf16.gmra.mxu0 %v818
  %v2627 = vpop.f32.mrf.mxu0
  %v2628 = vadd.f32 %v2459, %v2627
  %v2629 = vpop.f32.mrf.mxu0
  %v2630 = vadd.f32 %v2461, %v2629
  %2631 = vmatmul.bf16.gmra.mxu0 %v819
  %v2632 = vpop.f32.mrf.mxu0
  %v2633 = vadd.f32 %v2464, %v2632
  %v2634 = vpop.f32.mrf.mxu0
  %v2635 = vadd.f32 %v2466, %v2634
  %2636 = vmatmul.bf16.gmra.mxu0 %v820
  %v2637 = vpop.f32.mrf.mxu0
  %v2638 = vadd.f32 %v2469, %v2637
  %v2639 = vpop.f32.mrf.mxu0
  %v2640 = vadd.f32 %v2471, %v2639
  %2641 = vmatmul.bf16.gmra.mxu0 %v821
  %v2642 = vpop.f32.mrf.mxu0
  %v2643 = vadd.f32 %v2474, %v2642
  %v2644 = vpop.f32.mrf.mxu0
  %v2645 = vadd.f32 %v2476, %v2644
  %2646 = vmatmul.bf16.gmra.mxu0 %v822
  %v2647 = vpop.f32.mrf.mxu0
  %v2648 = vadd.f32 %v2479, %v2647
  %v2649 = vpop.f32.mrf.mxu0
  %v2650 = vadd.f32 %v2481, %v2649
  %2651 = vmatmul.bf16.gmra.mxu0 %v823
  %v2652 = vpop.f32.mrf.mxu0
  %v2653 = vadd.f32 %v2484, %v2652
  %v2654 = vpop.f32.mrf.mxu0
  %v2655 = vadd.f32 %v2486, %v2654
  %2656 = vmatmul.bf16.gmra.mxu0 %v824
  %v2657 = vpop.f32.mrf.mxu0
  %v2658 = vadd.f32 %v2489, %v2657
  %v2659 = vpop.f32.mrf.mxu0
  %v2660 = vadd.f32 %v2491, %v2659
  %2661 = vmatmul.bf16.gmra.mxu0 %v825
  %v2662 = vpop.f32.mrf.mxu0
  %v2663 = vadd.f32 %v2494, %v2662
  %v2664 = vpop.f32.mrf.mxu0
  %v2665 = vadd.f32 %v2496, %v2664
  %2666 = vmatmul.bf16.gmra.mxu0 %v1062
  %v2667 = vpop.f32.mrf.mxu0
  %v2668 = vadd.f32 %v2499, %v2667
  %v2669 = vpop.f32.mrf.mxu0
  %v2670 = vadd.f32 %v2501, %v2669
  %2671 = vmatmul.bf16.gmra.mxu0 %v1063
  %v2672 = vpop.f32.mrf.mxu0
  %v2673 = vadd.f32 %v2504, %v2672
  %v2674 = vpop.f32.mrf.mxu0
  %v2675 = vadd.f32 %v2506, %v2674
  %2676 = vmatmul.bf16.gmra.mxu0 %v1064
  %v2677 = vpop.f32.mrf.mxu0
  %v2678 = vadd.f32 %v2509, %v2677
  %v2679 = vpop.f32.mrf.mxu0
  %v2680 = vadd.f32 %v2511, %v2679
  %2681 = vmatmul.bf16.gmra.mxu0 %v1065
  %v2682 = vpop.f32.mrf.mxu0
  %v2683 = vadd.f32 %v2514, %v2682
  %v2684 = vpop.f32.mrf.mxu0
  %v2685 = vadd.f32 %v2516, %v2684
  %2686 = vmatmul.bf16.gmra.mxu0 %v1066
  %v2687 = vpop.f32.mrf.mxu0
  %v2688 = vadd.f32 %v2519, %v2687
  %v2689 = vpop.f32.mrf.mxu0
  %v2690 = vadd.f32 %v2521, %v2689
  %2691 = vmatmul.bf16.gmra.mxu0 %v1067
  %v2692 = vpop.f32.mrf.mxu0
  %v2693 = vadd.f32 %v2524, %v2692
  %v2694 = vpop.f32.mrf.mxu0
  %v2695 = vadd.f32 %v2526, %v2694
  %2696 = vmatmul.bf16.gmra.mxu0 %v1068
  %v2697 = vpop.f32.mrf.mxu0
  %v2698 = vadd.f32 %v2529, %v2697
  %v2699 = vpop.f32.mrf.mxu0
  %v2700 = vadd.f32 %v2531, %v2699
  %2701 = vmatmul.bf16.gmra.mxu0 %v1069
  %v2702 = vpop.f32.mrf.mxu0
  %v2703 = vadd.f32 %v2534, %v2702
  %v2704 = vpop.f32.mrf.mxu0
  %v2705 = vadd.f32 %v2536, %v2704
  %2706 = vmatmul.bf16.gmra.mxu0 %v1306
  %v2707 = vpop.f32.mrf.mxu0
  %v2708 = vadd.f32 %v2539, %v2707
  %v2709 = vpop.f32.mrf.mxu0
  %v2710 = vadd.f32 %v2541, %v2709
  %2711 = vmatmul.bf16.gmra.mxu0 %v1307
  %v2712 = vpop.f32.mrf.mxu0
  %v2713 = vadd.f32 %v2544, %v2712
  %v2714 = vpop.f32.mrf.mxu0
  %v2715 = vadd.f32 %v2546, %v2714
  %2716 = vmatmul.bf16.gmra.mxu0 %v1308
  %v2717 = vpop.f32.mrf.mxu0
  %v2718 = vadd.f32 %v2549, %v2717
  %v2719 = vpop.f32.mrf.mxu0
  %v2720 = vadd.f32 %v2551, %v2719
  %2721 = vmatmul.bf16.gmra.mxu0 %v1309
  %v2722 = vpop.f32.mrf.mxu0
  %v2723 = vadd.f32 %v2554, %v2722
  %v2724 = vpop.f32.mrf.mxu0
  %v2725 = vadd.f32 %v2556, %v2724
  %2726 = vmatmul.bf16.gmra.mxu0 %v1310
  %v2727 = vpop.f32.mrf.mxu0
  %v2728 = vadd.f32 %v2559, %v2727
  %v2729 = vpop.f32.mrf.mxu0
  %v2730 = vadd.f32 %v2561, %v2729
  %2731 = vmatmul.bf16.gmra.mxu0 %v1311
  %v2732 = vpop.f32.mrf.mxu0
  %v2733 = vadd.f32 %v2564, %v2732
  %v2734 = vpop.f32.mrf.mxu0
  %v2735 = vadd.f32 %v2566, %v2734
  %2736 = vmatmul.bf16.gmra.mxu0 %v1312
  %v2737 = vpop.f32.mrf.mxu0
  %v2738 = vadd.f32 %v2569, %v2737
  %v2739 = vpop.f32.mrf.mxu0
  %v2740 = vadd.f32 %v2571, %v2739
  %2741 = vmatmul.bf16.gmra.mxu0 %v1313
  %v2742 = vpop.f32.mrf.mxu0
  %v2743 = vadd.f32 %v2574, %v2742
  %v2744 = vpop.f32.mrf.mxu0
  %v2745 = vadd.f32 %v2576, %v2744
  %2746 = vdwg.mxu0
  %2747 = vmatpush.bf16.msra.mxu0 %v1777
  %2748 = vmatpush.bf16.msra.mxu0 %v1776
  %2749 = vmatpush.bf16.msra.mxu0 %v1775
  %2750 = vmatpush.bf16.msra.mxu0 %v1774
  %2751 = vmatpush.bf16.msra.mxu0 %v1773
  %2752 = vmatpush.bf16.msra.mxu0 %v1772
  %2753 = vmatpush.bf16.msra.mxu0 %v1771
  %2754 = vmatpush.bf16.msra.mxu0 %v1770
  %2755 = vmatmul.bf16.gmra.mxu0 %v154
  %v2756 = vpop.f32.mrf.mxu0
  %v2757 = vadd.f32 %v2588, %v2756
  %v2758 = vpop.f32.mrf.mxu0
  %v2759 = vadd.f32 %v2590, %v2758
  %2760 = vmatmul.bf16.gmra.mxu0 %v156
  %v2761 = vpop.f32.mrf.mxu0
  %v2762 = vadd.f32 %v2593, %v2761
  %v2763 = vpop.f32.mrf.mxu0
  %v2764 = vadd.f32 %v2595, %v2763
  %2765 = vmatmul.bf16.gmra.mxu0 %v158
  %v2766 = vpop.f32.mrf.mxu0
  %v2767 = vadd.f32 %v2598, %v2766
  %v2768 = vpop.f32.mrf.mxu0
  %v2769 = vadd.f32 %v2600, %v2768
  %2770 = vmatmul.bf16.gmra.mxu0 %v421
  %v2771 = vpop.f32.mrf.mxu0
  %v2772 = vadd.f32 %v2603, %v2771
  %v2773 = vpop.f32.mrf.mxu0
  %v2774 = vadd.f32 %v2605, %v2773
  %2775 = vmatmul.bf16.gmra.mxu0 %v162
  %v2776 = vpop.f32.mrf.mxu0
  %v2777 = vadd.f32 %v2608, %v2776
  %v2778 = vpop.f32.mrf.mxu0
  %v2779 = vadd.f32 %v2610, %v2778
  %2780 = vmatmul.bf16.gmra.mxu0 %v164
  %v2781 = vpop.f32.mrf.mxu0
  %v2782 = vadd.f32 %v2613, %v2781
  %v2783 = vpop.f32.mrf.mxu0
  %v2784 = vadd.f32 %v2615, %v2783
  %2785 = vmatmul.bf16.gmra.mxu0 %v166
  %v2786 = vpop.f32.mrf.mxu0
  %v2787 = vadd.f32 %v2618, %v2786
  %v2788 = vpop.f32.mrf.mxu0
  %v2789 = vadd.f32 %v2620, %v2788
  %2790 = vmatmul.bf16.gmra.mxu0 %v423
  %v2791 = vpop.f32.mrf.mxu0
  %v2792 = vadd.f32 %v2623, %v2791
  %v2793 = vpop.f32.mrf.mxu0
  %v2794 = vadd.f32 %v2625, %v2793
  %2795 = vmatmul.bf16.gmra.mxu0 %v576
  %v2796 = vpop.f32.mrf.mxu0
  %v2797 = vadd.f32 %v2628, %v2796
  %v2798 = vpop.f32.mrf.mxu0
  %v2799 = vadd.f32 %v2630, %v2798
  %2800 = vmatmul.bf16.gmra.mxu0 %v578
  %v2801 = vpop.f32.mrf.mxu0
  %v2802 = vadd.f32 %v2633, %v2801
  %v2803 = vpop.f32.mrf.mxu0
  %v2804 = vadd.f32 %v2635, %v2803
  %2805 = vmatmul.bf16.gmra.mxu0 %v580
  %v2806 = vpop.f32.mrf.mxu0
  %v2807 = vadd.f32 %v2638, %v2806
  %v2808 = vpop.f32.mrf.mxu0
  %v2809 = vadd.f32 %v2640, %v2808
  %2810 = vmatmul.bf16.gmra.mxu0 %v840
  %v2811 = vpop.f32.mrf.mxu0
  %v2812 = vadd.f32 %v2643, %v2811
  %v2813 = vpop.f32.mrf.mxu0
  %v2814 = vadd.f32 %v2645, %v2813
  %2815 = vmatmul.bf16.gmra.mxu0 %v584
  %v2816 = vpop.f32.mrf.mxu0
  %v2817 = vadd.f32 %v2648, %v2816
  %v2818 = vpop.f32.mrf.mxu0
  %v2819 = vadd.f32 %v2650, %v2818
  %2820 = vmatmul.bf16.gmra.mxu0 %v586
  %v2821 = vpop.f32.mrf.mxu0
  %v2822 = vadd.f32 %v2653, %v2821
  %v2823 = vpop.f32.mrf.mxu0
  %v2824 = vadd.f32 %v2655, %v2823
  %2825 = vmatmul.bf16.gmra.mxu0 %v588
  %v2826 = vpop.f32.mrf.mxu0
  %v2827 = vadd.f32 %v2658, %v2826
  %v2828 = vpop.f32.mrf.mxu0
  %v2829 = vadd.f32 %v2660, %v2828
  %2830 = vmatmul.bf16.gmra.mxu0 %v842
  %v2831 = vpop.f32.mrf.mxu0
  %v2832 = vadd.f32 %v2663, %v2831
  %v2833 = vpop.f32.mrf.mxu0
  %v2834 = vadd.f32 %v2665, %v2833
  %2835 = vmatmul.bf16.gmra.mxu0 %v226
  %v2836 = vpop.f32.mrf.mxu0
  %v2837 = vadd.f32 %v2668, %v2836
  %v2838 = vpop.f32.mrf.mxu0
  %v2839 = vadd.f32 %v2670, %v2838
  %2840 = vmatmul.bf16.gmra.mxu0 %v228
  %v2841 = vpop.f32.mrf.mxu0
  %v2842 = vadd.f32 %v2673, %v2841
  %v2843 = vpop.f32.mrf.mxu0
  %v2844 = vadd.f32 %v2675, %v2843
  %2845 = vmatmul.bf16.gmra.mxu0 %v230
  %v2846 = vpop.f32.mrf.mxu0
  %v2847 = vadd.f32 %v2678, %v2846
  %v2848 = vpop.f32.mrf.mxu0
  %v2849 = vadd.f32 %v2680, %v2848
  %2850 = vmatmul.bf16.gmra.mxu0 %v1084
  %v2851 = vpop.f32.mrf.mxu0
  %v2852 = vadd.f32 %v2683, %v2851
  %v2853 = vpop.f32.mrf.mxu0
  %v2854 = vadd.f32 %v2685, %v2853
  %2855 = vmatmul.bf16.gmra.mxu0 %v234
  %v2856 = vpop.f32.mrf.mxu0
  %v2857 = vadd.f32 %v2688, %v2856
  %v2858 = vpop.f32.mrf.mxu0
  %v2859 = vadd.f32 %v2690, %v2858
  %2860 = vmatmul.bf16.gmra.mxu0 %v236
  %v2861 = vpop.f32.mrf.mxu0
  %v2862 = vadd.f32 %v2693, %v2861
  %v2863 = vpop.f32.mrf.mxu0
  %v2864 = vadd.f32 %v2695, %v2863
  %2865 = vmatmul.bf16.gmra.mxu0 %v238
  %v2866 = vpop.f32.mrf.mxu0
  %v2867 = vadd.f32 %v2698, %v2866
  %v2868 = vpop.f32.mrf.mxu0
  %v2869 = vadd.f32 %v2700, %v2868
  %2870 = vmatmul.bf16.gmra.mxu0 %v1086
  %v2871 = vpop.f32.mrf.mxu0
  %v2872 = vadd.f32 %v2703, %v2871
  %v2873 = vpop.f32.mrf.mxu0
  %v2874 = vadd.f32 %v2705, %v2873
  %2875 = vmatmul.bf16.gmra.mxu0 %v648
  %v2876 = vpop.f32.mrf.mxu0
  %v2877 = vadd.f32 %v2708, %v2876
  %v2878 = vpop.f32.mrf.mxu0
  %v2879 = vadd.f32 %v2710, %v2878
  %2880 = vmatmul.bf16.gmra.mxu0 %v650
  %v2881 = vpop.f32.mrf.mxu0
  %v2882 = vadd.f32 %v2713, %v2881
  %v2883 = vpop.f32.mrf.mxu0
  %v2884 = vadd.f32 %v2715, %v2883
  %2885 = vmatmul.bf16.gmra.mxu0 %v652
  %v2886 = vpop.f32.mrf.mxu0
  %v2887 = vadd.f32 %v2718, %v2886
  %v2888 = vpop.f32.mrf.mxu0
  %v2889 = vadd.f32 %v2720, %v2888
  %2890 = vmatmul.bf16.gmra.mxu0 %v1328
  %v2891 = vpop.f32.mrf.mxu0
  %v2892 = vadd.f32 %v2723, %v2891
  %v2893 = vpop.f32.mrf.mxu0
  %v2894 = vadd.f32 %v2725, %v2893
  %2895 = vmatmul.bf16.gmra.mxu0 %v656
  %v2896 = vpop.f32.mrf.mxu0
  %v2897 = vadd.f32 %v2728, %v2896
  %v2898 = vpop.f32.mrf.mxu0
  %v2899 = vadd.f32 %v2730, %v2898
  %2900 = vmatmul.bf16.gmra.mxu0 %v658
  %v2901 = vpop.f32.mrf.mxu0
  %v2902 = vadd.f32 %v2733, %v2901
  %v2903 = vpop.f32.mrf.mxu0
  %v2904 = vadd.f32 %v2735, %v2903
  %2905 = vmatmul.bf16.gmra.mxu0 %v660
  %v2906 = vpop.f32.mrf.mxu0
  %v2907 = vadd.f32 %v2738, %v2906
  %v2908 = vpop.f32.mrf.mxu0
  %v2909 = vadd.f32 %v2740, %v2908
  %2910 = vmatmul.bf16.gmra.mxu0 %v1330
  %v2911 = vpop.f32.mrf.mxu0
  %v2912 = vadd.f32 %v2743, %v2911
  %v2913 = vpop.f32.mrf.mxu0
  %v2914 = vadd.f32 %v2745, %v2913
  %2915 = vdwg.mxu0
  %2916 = vmatpush.bf16.msra.mxu0 0
  %2917 = vmatpush.bf16.msra.mxu0 0
  %2918 = vmatpush.bf16.msra.mxu0 0
  %2919 = vmatpush.bf16.msra.mxu0 0
  %2920 = vmatpush.bf16.msra.mxu0 0
  %2921 = vmatpush.bf16.msra.mxu0 0
  %2922 = vmatpush.bf16.msra.mxu0 %v1779
  %2923 = vmatpush.bf16.msra.mxu0 %v1778
  %2924 = vmatmul.bf16.gmra.mxu0 %v1830
  %v2925 = vpop.f32.mrf.mxu0
  %v2926 = vadd.f32 %v2757, %v2925
  %v2927 = vpop.f32.mrf.mxu0
  %v2928 = vadd.f32 %v2759, %v2927
  %2929 = vmatmul.bf16.gmra.mxu0 %v1832
  %v2930 = vpop.f32.mrf.mxu0
  %v2931 = vadd.f32 %v2762, %v2930
  %v2932 = vpop.f32.mrf.mxu0
  %v2933 = vadd.f32 %v2764, %v2932
  %2934 = vmatmul.bf16.gmra.mxu0 %v1834
  %v2935 = vpop.f32.mrf.mxu0
  %v2936 = vadd.f32 %v2767, %v2935
  %v2937 = vpop.f32.mrf.mxu0
  %v2938 = vadd.f32 %v2769, %v2937
  %2939 = vmatmul.bf16.gmra.mxu0 %v1837
  %v2940 = vpop.f32.mrf.mxu0
  %v2941 = vadd.f32 %v2772, %v2940
  %v2942 = vpop.f32.mrf.mxu0
  %v2943 = vadd.f32 %v2774, %v2942
  %2944 = vmatmul.bf16.gmra.mxu0 %v1839
  %v2945 = vpop.f32.mrf.mxu0
  %v2946 = vadd.f32 %v2777, %v2945
  %v2947 = vpop.f32.mrf.mxu0
  %v2948 = vadd.f32 %v2779, %v2947
  %2949 = vmatmul.bf16.gmra.mxu0 %v1841
  %v2950 = vpop.f32.mrf.mxu0
  %v2951 = vadd.f32 %v2782, %v2950
  %v2952 = vpop.f32.mrf.mxu0
  %v2953 = vadd.f32 %v2784, %v2952
  %2954 = vmatmul.bf16.gmra.mxu0 %v1843
  %v2955 = vpop.f32.mrf.mxu0
  %v2956 = vadd.f32 %v2787, %v2955
  %v2957 = vpop.f32.mrf.mxu0
  %v2958 = vadd.f32 %v2789, %v2957
  %2959 = vmatmul.bf16.gmra.mxu0 %v1846
  %v2960 = vpop.f32.mrf.mxu0
  %v2961 = vadd.f32 %v2792, %v2960
  %v2962 = vpop.f32.mrf.mxu0
  %v2963 = vadd.f32 %v2794, %v2962
  %2964 = vmatmul.bf16.gmra.mxu0 %v1848
  %v2965 = vpop.f32.mrf.mxu0
  %v2966 = vadd.f32 %v2797, %v2965
  %v2967 = vpop.f32.mrf.mxu0
  %v2968 = vadd.f32 %v2799, %v2967
  %2969 = vmatmul.bf16.gmra.mxu0 %v1850
  %v2970 = vpop.f32.mrf.mxu0
  %v2971 = vadd.f32 %v2802, %v2970
  %v2972 = vpop.f32.mrf.mxu0
  %v2973 = vadd.f32 %v2804, %v2972
  %2974 = vmatmul.bf16.gmra.mxu0 %v1852
  %v2975 = vpop.f32.mrf.mxu0
  %v2976 = vadd.f32 %v2807, %v2975
  %v2977 = vpop.f32.mrf.mxu0
  %v2978 = vadd.f32 %v2809, %v2977
  %2979 = vmatmul.bf16.gmra.mxu0 %v1855
  %v2980 = vpop.f32.mrf.mxu0
  %v2981 = vadd.f32 %v2812, %v2980
  %v2982 = vpop.f32.mrf.mxu0
  %v2983 = vadd.f32 %v2814, %v2982
  %2984 = vmatmul.bf16.gmra.mxu0 %v1857
  %v2985 = vpop.f32.mrf.mxu0
  %v2986 = vadd.f32 %v2817, %v2985
  %v2987 = vpop.f32.mrf.mxu0
  %v2988 = vadd.f32 %v2819, %v2987
  %2989 = vmatmul.bf16.gmra.mxu0 %v1859
  %v2990 = vpop.f32.mrf.mxu0
  %v2991 = vadd.f32 %v2822, %v2990
  %v2992 = vpop.f32.mrf.mxu0
  %v2993 = vadd.f32 %v2824, %v2992
  %2994 = vmatmul.bf16.gmra.mxu0 %v1861
  %v2995 = vpop.f32.mrf.mxu0
  %v2996 = vadd.f32 %v2827, %v2995
  %v2997 = vpop.f32.mrf.mxu0
  %v2998 = vadd.f32 %v2829, %v2997
  %2999 = vmatmul.bf16.gmra.mxu0 %v1864
  %v3000 = vpop.f32.mrf.mxu0
  %v3001 = vadd.f32 %v2832, %v3000
  %v3002 = vpop.f32.mrf.mxu0
  %v3003 = vadd.f32 %v2834, %v3002
  %3004 = vmatmul.bf16.gmra.mxu0 %v1866
  %v3005 = vpop.f32.mrf.mxu0
  %v3006 = vadd.f32 %v2837, %v3005
  %v3007 = vpop.f32.mrf.mxu0
  %v3008 = vadd.f32 %v2839, %v3007
  %3009 = vmatmul.bf16.gmra.mxu0 %v1868
  %v3010 = vpop.f32.mrf.mxu0
  %v3011 = vadd.f32 %v2842, %v3010
  %v3012 = vpop.f32.mrf.mxu0
  %v3013 = vadd.f32 %v2844, %v3012
  %3014 = vmatmul.bf16.gmra.mxu0 %v1870
  %v3015 = vpop.f32.mrf.mxu0
  %v3016 = vadd.f32 %v2847, %v3015
  %v3017 = vpop.f32.mrf.mxu0
  %v3018 = vadd.f32 %v2849, %v3017
  %3019 = vmatmul.bf16.gmra.mxu0 %v1873
  %v3020 = vpop.f32.mrf.mxu0
  %v3021 = vadd.f32 %v2852, %v3020
  %v3022 = vpop.f32.mrf.mxu0
  %v3023 = vadd.f32 %v2854, %v3022
  %3024 = vmatmul.bf16.gmra.mxu0 %v1875
  %v3025 = vpop.f32.mrf.mxu0
  %v3026 = vadd.f32 %v2857, %v3025
  %v3027 = vpop.f32.mrf.mxu0
  %v3028 = vadd.f32 %v2859, %v3027
  %3029 = vmatmul.bf16.gmra.mxu0 %v1877
  %v3030 = vpop.f32.mrf.mxu0
  %v3031 = vadd.f32 %v2862, %v3030
  %v3032 = vpop.f32.mrf.mxu0
  %v3033 = vadd.f32 %v2864, %v3032
  %3034 = vmatmul.bf16.gmra.mxu0 %v1879
  %v3035 = vpop.f32.mrf.mxu0
  %v3036 = vadd.f32 %v2867, %v3035
  %v3037 = vpop.f32.mrf.mxu0
  %v3038 = vadd.f32 %v2869, %v3037
  %3039 = vmatmul.bf16.gmra.mxu0 %v1882
  %v3040 = vpop.f32.mrf.mxu0
  %v3041 = vadd.f32 %v2872, %v3040
  %v3042 = vpop.f32.mrf.mxu0
  %v3043 = vadd.f32 %v2874, %v3042
  %3044 = vmatmul.bf16.gmra.mxu0 %v1884
  %v3045 = vpop.f32.mrf.mxu0
  %v3046 = vadd.f32 %v2877, %v3045
  %v3047 = vpop.f32.mrf.mxu0
  %v3048 = vadd.f32 %v2879, %v3047
  %3049 = vmatmul.bf16.gmra.mxu0 %v1886
  %v3050 = vpop.f32.mrf.mxu0
  %v3051 = vadd.f32 %v2882, %v3050
  %v3052 = vpop.f32.mrf.mxu0
  %v3053 = vadd.f32 %v2884, %v3052
  %3054 = vmatmul.bf16.gmra.mxu0 %v1888
  %v3055 = vpop.f32.mrf.mxu0
  %v3056 = vadd.f32 %v2887, %v3055
  %v3057 = vpop.f32.mrf.mxu0
  %v3058 = vadd.f32 %v2889, %v3057
  %3059 = vmatmul.bf16.gmra.mxu0 %v1891
  %v3060 = vpop.f32.mrf.mxu0
  %v3061 = vadd.f32 %v2892, %v3060
  %v3062 = vpop.f32.mrf.mxu0
  %v3063 = vadd.f32 %v2894, %v3062
  %3064 = vmatmul.bf16.gmra.mxu0 %v1893
  %v3065 = vpop.f32.mrf.mxu0
  %v3066 = vadd.f32 %v2897, %v3065
  %v3067 = vpop.f32.mrf.mxu0
  %v3068 = vadd.f32 %v2899, %v3067
  %3069 = vmatmul.bf16.gmra.mxu0 %v1895
  %v3070 = vpop.f32.mrf.mxu0
  %v3071 = vadd.f32 %v2902, %v3070
  %v3072 = vpop.f32.mrf.mxu0
  %v3073 = vadd.f32 %v2904, %v3072
  %3074 = vmatmul.bf16.gmra.mxu0 %v1897
  %v3075 = vpop.f32.mrf.mxu0
  %v3076 = vadd.f32 %v2907, %v3075
  %v3077 = vpop.f32.mrf.mxu0
  %v3078 = vadd.f32 %v2909, %v3077
  %3079 = vmatmul.bf16.gmra.mxu0 %v1900
  %v3080 = vpop.f32.mrf.mxu0
  %v3081 = vadd.f32 %v2912, %v3080
  %v3082 = vpop.f32.mrf.mxu0
  %v3083 = vadd.f32 %v2914, %v3082
  %3084 = vdwg.mxu0
  %v3085 = vmax.f32 %v2926, %v2966
  %v3086 = vmax.f32 %v2928, %v2968
  %v3087 = vmax.f32 %v2931, %v2971
  %v3088 = vmax.f32 %v2933, %v2973
  %v3089 = vmax.f32 %v2936, %v2976
  %v3090 = vmax.f32 %v2938, %v2978
  %v3091 = vmax.f32 %v2941, %v2981
  %v3092 = vmax.f32 %v2943, %v2983
  %v3093 = vmax.f32 %v2946, %v2986
  %v3094 = vmax.f32 %v2948, %v2988
  %v3095 = vmax.f32 %v2951, %v2991
  %v3096 = vmax.f32 %v2953, %v2993
  %v3097 = vmax.f32 %v2956, %v2996
  %v3098 = vmax.f32 %v2958, %v2998
  %v3099 = vmax.f32 %v2961, %v3001
  %v3100 = vmax.f32 %v2963, %v3003
  %v3101 = vmax.f32 %v3006, %v3046
  %v3102 = vmax.f32 %v3008, %v3048
  %v3103 = vmax.f32 %v3011, %v3051
  %v3104 = vmax.f32 %v3013, %v3053
  %v3105 = vmax.f32 %v3016, %v3056
  %v3106 = vmax.f32 %v3018, %v3058
  %v3107 = vmax.f32 %v3021, %v3061
  %v3108 = vmax.f32 %v3023, %v3063
  %v3109 = vmax.f32 %v3026, %v3066
  %v3110 = vmax.f32 %v3028, %v3068
  %v3111 = vmax.f32 %v3031, %v3071
  %v3112 = vmax.f32 %v3033, %v3073
  %v3113 = vmax.f32 %v3036, %v3076
  %v3114 = vmax.f32 %v3038, %v3078
  %v3115 = vmax.f32 %v3041, %v3081
  %v3116 = vmax.f32 %v3043, %v3083
  %v3117 = vmax.f32 %v3085, %v3101
  %v3118 = vmax.f32 %v3086, %v3102
  %v3119 = vmax.f32 %v3087, %v3103
  %v3120 = vmax.f32 %v3088, %v3104
  %v3121 = vmax.f32 %v3089, %v3105
  %v3122 = vmax.f32 %v3090, %v3106
  %v3123 = vmax.f32 %v3091, %v3107
  %v3124 = vmax.f32 %v3092, %v3108
  %v3125 = vmax.f32 %v3093, %v3109
  %v3126 = vmax.f32 %v3094, %v3110
  %v3127 = vmax.f32 %v3095, %v3111
  %v3128 = vmax.f32 %v3096, %v3112
  %v3129 = vmax.f32 %v3097, %v3113
  %v3130 = vmax.f32 %v3098, %v3114
  %v3131 = vmax.f32 %v3099, %v3115
  %v3132 = vmax.f32 %v3100, %v3116
  %v3133 = vld [vmem:[%s5] sm:$0x1]
  %v3135 = vperm.slane %v3133, 0
  %v3137 = vadd.f32 %v3117, %v3135
  %v3138 = vadd.f32 %v3118, %v3135
  %v3139 = vadd.f32 %v3119, %v3135
  %v3140 = vadd.f32 %v3120, %v3135
  %v3141 = vadd.f32 %v3121, %v3135
  %v3142 = vadd.f32 %v3122, %v3135
  %v3143 = vadd.f32 %v3123, %v3135
  %v3144 = vadd.f32 %v3124, %v3135
  %v3145 = vadd.f32 %v3125, %v3135
  %v3146 = vadd.f32 %v3126, %v3135
  %v3147 = vadd.f32 %v3127, %v3135
  %v3148 = vadd.f32 %v3128, %v3135
  %v3149 = vadd.f32 %v3129, %v3135
  %v3150 = vadd.f32 %v3130, %v3135
  %v3151 = vadd.f32 %v3131, %v3135
  %v3152 = vadd.f32 %v3132, %v3135
  %v3153 = vpack.c.bf16 %v3137, %v3137
  %v3154 = vpack.c.bf16 %v3138, %v3138
  %v3155 = vpack.c.bf16 %v3139, %v3139
  %v3156 = vpack.c.bf16 %v3140, %v3140
  %v3157 = vpack.c.bf16 %v3141, %v3141
  %v3158 = vpack.c.bf16 %v3142, %v3142
  %v3159 = vpack.c.bf16 %v3143, %v3143
  %v3160 = vpack.c.bf16 %v3144, %v3144
  %v3161 = vpack.c.bf16 %v3145, %v3145
  %v3162 = vpack.c.bf16 %v3146, %v3146
  %v3163 = vpack.c.bf16 %v3147, %v3147
  %v3164 = vpack.c.bf16 %v3148, %v3148
  %v3165 = vpack.c.bf16 %v3149, %v3149
  %v3166 = vpack.c.bf16 %v3150, %v3150
  %v3167 = vpack.c.bf16 %v3151, %v3151
  %v3168 = vpack.c.bf16 %v3152, %v3152
  %3169 = vst [vmem:[%s6] sm:$0xf] %v3153
  %3170 = vst [vmem:[%s6 + $0x4] sm:$0xf] %v3154
  %3171 = vst [vmem:[%s6 + $0x8] sm:$0xf] %v3155
  %3172 = vst [vmem:[%s6 + $0xc] sm:$0xf] %v3156
  %3173 = vst [vmem:[%s6 + $0x10] sm:$0xf] %v3157
  %3174 = vst [vmem:[%s6 + $0x14] sm:$0xf] %v3158
  %3175 = vst [vmem:[%s6 + $0x18] sm:$0xf] %v3159
  %3176 = vst [vmem:[%s6 + $0x1c] sm:$0xf] %v3160
  %3177 = vst [vmem:[%s6 + $0x20] sm:$0xf] %v3161
  %3178 = vst [vmem:[%s6 + $0x24] sm:$0xf] %v3162
  %3179 = vst [vmem:[%s6 + $0x28] sm:$0xf] %v3163
  %3180 = vst [vmem:[%s6 + $0x2c] sm:$0xf] %v3164
  %3181 = vst [vmem:[%s6 + $0x30] sm:$0xf] %v3165
  %3182 = vst [vmem:[%s6 + $0x34] sm:$0xf] %v3166
  %3183 = vst [vmem:[%s6 + $0x38] sm:$0xf] %v3167
  %3184 = vst [vmem:[%s6 + $0x3c] sm:$0xf] %v3168
  // Predicated region
  $region26: #{cifar10_forward.5} parent=0 // pred_check
    _
  $region27: #{cifar10_forward.5} parent=0 // pred_check_branch
    %3186 = sbr.rel (0) target = $region29
  $region28: #{cifar10_forward.5} parent=0 // pred_region
    _
  $region29: #{cifar10_forward.5} parent=0 // pred_fallthru
    _
  // Predicated region
  $region30: #{cifar10_forward.5} parent=0 // pred_check
    _
  $region31: #{cifar10_forward.5} parent=0 // pred_check_branch
    %3188 = sbr.rel (0) target = $region33
  $region32: #{cifar10_forward.5} parent=0 // pred_region
    _
  $region33: #{cifar10_forward.5} parent=0 // pred_fallthru
    _

// kernel: cifar10_forward.6
$region0: #{cifar10_forward.6}
  #allocation0 [shape = 'u32[]', space=smem, size = 0x4, offset = 0x4, fixed_abs, tag = 'smem constant byte address 0x4 - core index']
  #allocation1 [shape = 'u32[72,128]{1,0:T(1,128)}', space=vmem, size = 0x9000, scoped, tag = 'internal scratch']
  %s0 = inlined_call_operand.vmem [shape: bf16[2,24,160], index: 0, kind: input, shape index: {}]
  %s1 = inlined_call_operand.vmem [shape: bf16[2,24,160], index: 1, kind: input, shape index: {}]
  %s2 = inlined_call_operand.vmem [shape: bf16[2,24,160], index: 2, kind: input, shape index: {}]
  %s3 = inlined_call_operand.vmem [shape: bf16[2,24,160], index: 3, kind: input, shape index: {}]
  %s4 = inlined_call_operand.vmem [shape: bf16[800,128], index: 4, kind: input, shape index: {}]
  %s5 = inlined_call_operand.vmem [shape: f32[1,128], index: 5, kind: input, shape index: {}]
  %s6 = inlined_call_operand.vmem [shape: bf16[2,16,128], index: 6, kind: output, shape index: {}]
  %s7 = sld [smem:[#allocation0]]
  $region34: #{cifar10_forward.6} parent=0
    _
  %s9 = ssub.s32 1, %s7
  %s10 = scalar_select 0, %s9, %s7
  // Predicated region
  $region2: #{cifar10_forward.6} parent=0 // pred_check
    _
  $region3: #{cifar10_forward.6} parent=0 // pred_check_branch
    %12 = sbr.rel (0) target = $region5
  $region4: #{cifar10_forward.6} parent=0 // pred_region
    _
  $region5: #{cifar10_forward.6} parent=0 // pred_fallthru
    _
  // Predicated region
  $region6: #{cifar10_forward.6} parent=0 // pred_check
    _
  $region7: #{cifar10_forward.6} parent=0 // pred_check_branch
    %14 = sbr.rel (0) target = $region9
  $region8: #{cifar10_forward.6} parent=0 // pred_region
    _
  $region9: #{cifar10_forward.6} parent=0 // pred_fallthru
    _
  // Predicated region
  $region10: #{cifar10_forward.6} parent=0 // pred_check
    _
  $region11: #{cifar10_forward.6} parent=0 // pred_check_branch
    %16 = sbr.rel (0) target = $region13
  $region12: #{cifar10_forward.6} parent=0 // pred_region
    _
  $region13: #{cifar10_forward.6} parent=0 // pred_fallthru
    _
  // Predicated region
  $region14: #{cifar10_forward.6} parent=0 // pred_check
    _
  $region15: #{cifar10_forward.6} parent=0 // pred_check_branch
    %18 = sbr.rel (0) target = $region17
  $region16: #{cifar10_forward.6} parent=0 // pred_region
    _
  $region17: #{cifar10_forward.6} parent=0 // pred_fallthru
    _
  // Predicated region
  $region18: #{cifar10_forward.6} parent=0 // pred_check
    _
  $region19: #{cifar10_forward.6} parent=0 // pred_check_branch
    %20 = sbr.rel (0) target = $region21
  $region20: #{cifar10_forward.6} parent=0 // pred_region
    _
  $region21: #{cifar10_forward.6} parent=0 // pred_fallthru
    _
  // Predicated region
  $region22: #{cifar10_forward.6} parent=0 // pred_check
    _
  $region23: #{cifar10_forward.6} parent=0 // pred_check_branch
    %22 = sbr.rel (0) target = $region25
  $region24: #{cifar10_forward.6} parent=0 // pred_region
    _
  $region25: #{cifar10_forward.6} parent=0 // pred_fallthru
    _
  %v24 = vld [vmem:[%s0] sm:$0xff]
  %v25 = vld [vmem:[%s0 + $0x8] sm:$0xff]
  %v26 = vld [vmem:[%s0 + $0x18] sm:$0xff]
  %v27 = vld [vmem:[%s0 + $0x20] sm:$0xff]
  %v28 = vld [vmem:[%s0] sm:$0xcc]
  %v29 = vld [vmem:[%s0 + $0x10] sm:$0x33]
  %v30 = vld [vmem:[%s0 + $0x18] sm:$0xcc]
  %v31 = vld [vmem:[%s0 + $0x28] sm:$0x33]
  %vm38 = vcmask 1041408
  %vm39 = vcmask 1045508
  %vm40 = vmor %vm38, %vm39
  %v41 = vrot.slane %v28, 6
  %v42 = vrot.slane %v41, 4
  %v43 = vrot.slane %v25, 6
  %v44 = vsel %vm40, %v42, %v43
  %v45 = vrot.slane %v43, 4
  %v46 = vrot.slane %v29, 6
  %v47 = vsel %vm40, %v45, %v46
  %v48 = vrot.slane %v30, 6
  %v49 = vrot.slane %v48, 4
  %v50 = vrot.slane %v27, 6
  %v51 = vsel %vm40, %v49, %v50
  %v52 = vrot.slane %v50, 4
  %v53 = vrot.slane %v31, 6
  %v54 = vsel %vm40, %v52, %v53
  %v55 = vld [vmem:[%s0 + $0x10] sm:$0xff]
  %v56 = vld [vmem:[%s0 + $0x28] sm:$0xff]
  %v57 = vld [vmem:[%s1] sm:$0xff]
  %v58 = vld [vmem:[%s1 + $0x8] sm:$0xff]
  %v59 = vld [vmem:[%s1 + $0x18] sm:$0xff]
  %v60 = vld [vmem:[%s1 + $0x20] sm:$0xff]
  %v61 = vld [vmem:[%s1] sm:$0xcc]
  %v62 = vld [vmem:[%s1 + $0x10] sm:$0x33]
  %v63 = vld [vmem:[%s1 + $0x18] sm:$0xcc]
  %v64 = vld [vmem:[%s1 + $0x28] sm:$0x33]
  %v71 = vrot.slane %v61, 6
  %v72 = vrot.slane %v71, 4
  %v73 = vrot.slane %v58, 6
  %v74 = vsel %vm40, %v72, %v73
  %v75 = vrot.slane %v73, 4
  %v76 = vrot.slane %v62, 6
  %v77 = vsel %vm40, %v75, %v76
  %v78 = vrot.slane %v63, 6
  %v79 = vrot.slane %v78, 4
  %v80 = vrot.slane %v60, 6
  %v81 = vsel %vm40, %v79, %v80
  %v82 = vrot.slane %v80, 4
  %v83 = vrot.slane %v64, 6
  %v84 = vsel %vm40, %v82, %v83
  %v85 = vld [vmem:[%s1 + $0x10] sm:$0xff]
  %v86 = vld [vmem:[%s1 + $0x28] sm:$0xff]
  %v87 = vld [vmem:[%s2] sm:$0xff]
  %v88 = vld [vmem:[%s2 + $0x8] sm:$0xff]
  %v89 = vld [vmem:[%s2 + $0x18] sm:$0xff]
  %v90 = vld [vmem:[%s2 + $0x20] sm:$0xff]
  %v91 = vld [vmem:[%s2] sm:$0xcc]
  %v92 = vld [vmem:[%s2 + $0x10] sm:$0x33]
  %v93 = vld [vmem:[%s2 + $0x18] sm:$0xcc]
  %v94 = vld [vmem:[%s2 + $0x28] sm:$0x33]
  %v101 = vrot.slane %v91, 6
  %v102 = vrot.slane %v101, 4
  %v103 = vrot.slane %v88, 6
  %v104 = vsel %vm40, %v102, %v103
  %v105 = vrot.slane %v103, 4
  %v106 = vrot.slane %v92, 6
  %v107 = vsel %vm40, %v105, %v106
  %v108 = vrot.slane %v93, 6
  %v109 = vrot.slane %v108, 4
  %v110 = vrot.slane %v90, 6
  %v111 = vsel %vm40, %v109, %v110
  %v112 = vrot.slane %v110, 4
  %v113 = vrot.slane %v94, 6
  %v114 = vsel %vm40, %v112, %v113
  %v115 = vld [vmem:[%s2 + $0x10] sm:$0xff]
  %v116 = vld [vmem:[%s2 + $0x28] sm:$0xff]
  %v117 = vld [vmem:[%s3] sm:$0xff]
  %v118 = vld [vmem:[%s3 + $0x8] sm:$0xff]
  %v119 = vld [vmem:[%s3 + $0x18] sm:$0xff]
  %v120 = vld [vmem:[%s3 + $0x20] sm:$0xff]
  %v121 = vld [vmem:[%s3] sm:$0xcc]
  %v122 = vld [vmem:[%s3 + $0x10] sm:$0x33]
  %v123 = vld [vmem:[%s3 + $0x18] sm:$0xcc]
  %v124 = vld [vmem:[%s3 + $0x28] sm:$0x33]
  %v131 = vrot.slane %v121, 6
  %v132 = vrot.slane %v131, 4
  %v133 = vrot.slane %v118, 6
  %v134 = vsel %vm40, %v132, %v133
  %v135 = vrot.slane %v133, 4
  %v136 = vrot.slane %v122, 6
  %v137 = vsel %vm40, %v135, %v136
  %v138 = vrot.slane %v123, 6
  %v139 = vrot.slane %v138, 4
  %v140 = vrot.slane %v120, 6
  %v141 = vsel %vm40, %v139, %v140
  %v142 = vrot.slane %v140, 4
  %v143 = vrot.slane %v124, 6
  %v144 = vsel %vm40, %v142, %v143
  %v145 = vld [vmem:[%s3 + $0x10] sm:$0xff]
  %v146 = vld [vmem:[%s3 + $0x28] sm:$0xff]
  %v149 = vunpack.c.l.b16 %v24
  %v150 = vunpack.c.h.b16 %v24
  %v151 = vunpack.c.l.b16 %v25
  %v152 = vunpack.c.h.b16 %v25
  %v153 = vunpack.c.l.b16 %v26
  %v154 = vunpack.c.h.b16 %v26
  %v155 = vunpack.c.l.b16 %v27
  %v156 = vunpack.c.h.b16 %v27
  %v157 = vpack.c.b16 %v151, %v149
  %v158 = vpack.c.b16 %v152, %v150
  %v159 = vpack.c.b16 %v155, %v153
  %v160 = vpack.c.b16 %v156, %v154
  %v165 = vunpack.c.l.b16 %v87
  %v166 = vunpack.c.h.b16 %v87
  %v167 = vunpack.c.l.b16 %v88
  %v168 = vunpack.c.h.b16 %v88
  %v169 = vunpack.c.l.b16 %v89
  %v170 = vunpack.c.h.b16 %v89
  %v171 = vunpack.c.l.b16 %v90
  %v172 = vunpack.c.h.b16 %v90
  %v173 = vpack.c.b16 %v167, %v165
  %v174 = vpack.c.b16 %v168, %v166
  %v175 = vpack.c.b16 %v171, %v169
  %v176 = vpack.c.b16 %v172, %v170
  %177 = vrot.lane.b32.xlu0 %v173, 32
  %v178 = vpop.permute.xlu0 %177
  %179 = vrot.lane.b32.xlu0 %v174, 32
  %v180 = vpop.permute.xlu0 %179
  %181 = vrot.lane.b32.xlu0 %v175, 32
  %v182 = vpop.permute.xlu0 %181
  %183 = vrot.lane.b32.xlu0 %v176, 32
  %v184 = vpop.permute.xlu0 %183
  %vm185 = vcmask 261120
  %v186 = vsel %vm185, %v178, %v180
  %v187 = vsel %vm185, %v182, %v184
  %v188 = vunpack.c.l.b16 %v44
  %v189 = vunpack.c.h.b16 %v44
  %v190 = vunpack.c.l.b16 %v47
  %v191 = vunpack.c.h.b16 %v47
  %v192 = vunpack.c.l.b16 %v51
  %v193 = vunpack.c.h.b16 %v51
  %v194 = vunpack.c.l.b16 %v54
  %v195 = vunpack.c.h.b16 %v54
  %v196 = vpack.c.b16 %v190, %v188
  %v197 = vpack.c.b16 %v191, %v189
  %v198 = vpack.c.b16 %v194, %v192
  %v199 = vpack.c.b16 %v195, %v193
  %200 = vrot.lane.b32.xlu0 %v196, 64
  %v201 = vpop.permute.xlu0 %200
  %202 = vrot.lane.b32.xlu0 %v197, 64
  %v203 = vpop.permute.xlu0 %202
  %204 = vrot.lane.b32.xlu0 %v198, 64
  %v205 = vpop.permute.xlu0 %204
  %206 = vrot.lane.b32.xlu0 %v199, 64
  %v207 = vpop.permute.xlu0 %206
  %vm208 = vcmask 523264
  %v209 = vsel %vm208, %v201, %v203
  %v210 = vsel %vm208, %v205, %v207
  %v211 = vunpack.c.l.b16 %v104
  %v212 = vunpack.c.h.b16 %v104
  %v213 = vunpack.c.l.b16 %v107
  %v214 = vunpack.c.h.b16 %v107
  %v215 = vunpack.c.l.b16 %v111
  %v216 = vunpack.c.h.b16 %v111
  %v217 = vunpack.c.l.b16 %v114
  %v218 = vunpack.c.h.b16 %v114
  %v219 = vpack.c.b16 %v213, %v211
  %v220 = vpack.c.b16 %v214, %v212
  %v221 = vpack.c.b16 %v217, %v215
  %v222 = vpack.c.b16 %v218, %v216
  %223 = vrot.lane.b32.xlu0 %v219, 96
  %v224 = vpop.permute.xlu0 %223
  %225 = vrot.lane.b32.xlu0 %v220, 96
  %v226 = vpop.permute.xlu0 %225
  %227 = vrot.lane.b32.xlu0 %v221, 96
  %v228 = vpop.permute.xlu0 %227
  %229 = vrot.lane.b32.xlu0 %v222, 96
  %v230 = vpop.permute.xlu0 %229
  %vm231 = vcmask 785408
  %v232 = vsel %vm231, %v224, %v226
  %v233 = vsel %vm231, %v228, %v230
  %v238 = vunpack.c.l.b16 %v55
  %v239 = vunpack.c.h.b16 %v55
  %v240 = vunpack.c.l.b16 %v56
  %v241 = vunpack.c.h.b16 %v56
  %v242 = vpack.c.b16 %v238, %v151
  %v243 = vpack.c.b16 %v239, %v152
  %v244 = vpack.c.b16 %v240, %v155
  %v245 = vpack.c.b16 %v241, %v156
  %vm248 = vcmask 261120
  %v251 = vsel %vm248, %v158, %v178
  %v255 = vsel %vm248, %v160, %v182
  %vm257 = vcmask 523264
  %v260 = vsel %vm257, %v186, %v201
  %v264 = vsel %vm257, %v187, %v205
  %vm266 = vcmask 785408
  %v269 = vsel %vm266, %v209, %v224
  %v273 = vsel %vm266, %v210, %v228
  %v277 = vunpack.c.l.b16 %v57
  %v278 = vunpack.c.h.b16 %v57
  %v279 = vunpack.c.l.b16 %v58
  %v280 = vunpack.c.h.b16 %v58
  %v281 = vunpack.c.l.b16 %v59
  %v282 = vunpack.c.h.b16 %v59
  %v283 = vunpack.c.l.b16 %v60
  %v284 = vunpack.c.h.b16 %v60
  %v285 = vpack.c.b16 %v279, %v277
  %v286 = vpack.c.b16 %v280, %v278
  %v287 = vpack.c.b16 %v283, %v281
  %v288 = vpack.c.b16 %v284, %v282
  %v293 = vunpack.c.l.b16 %v117
  %v294 = vunpack.c.h.b16 %v117
  %v295 = vunpack.c.l.b16 %v118
  %v296 = vunpack.c.h.b16 %v118
  %v297 = vunpack.c.l.b16 %v119
  %v298 = vunpack.c.h.b16 %v119
  %v299 = vunpack.c.l.b16 %v120
  %v300 = vunpack.c.h.b16 %v120
  %v301 = vpack.c.b16 %v295, %v293
  %v302 = vpack.c.b16 %v296, %v294
  %v303 = vpack.c.b16 %v299, %v297
  %v304 = vpack.c.b16 %v300, %v298
  %305 = vrot.lane.b32.xlu0 %v301, 32
  %v306 = vpop.permute.xlu0 %305
  %307 = vrot.lane.b32.xlu0 %v302, 32
  %v308 = vpop.permute.xlu0 %307
  %309 = vrot.lane.b32.xlu0 %v303, 32
  %v310 = vpop.permute.xlu0 %309
  %311 = vrot.lane.b32.xlu0 %v304, 32
  %v312 = vpop.permute.xlu0 %311
  %v313 = vsel %vm185, %v306, %v308
  %v314 = vsel %vm185, %v310, %v312
  %v315 = vunpack.c.l.b16 %v74
  %v316 = vunpack.c.h.b16 %v74
  %v317 = vunpack.c.l.b16 %v77
  %v318 = vunpack.c.h.b16 %v77
  %v319 = vunpack.c.l.b16 %v81
  %v320 = vunpack.c.h.b16 %v81
  %v321 = vunpack.c.l.b16 %v84
  %v322 = vunpack.c.h.b16 %v84
  %v323 = vpack.c.b16 %v317, %v315
  %v324 = vpack.c.b16 %v318, %v316
  %v325 = vpack.c.b16 %v321, %v319
  %v326 = vpack.c.b16 %v322, %v320
  %327 = vrot.lane.b32.xlu0 %v323, 64
  %v328 = vpop.permute.xlu0 %327
  %329 = vrot.lane.b32.xlu0 %v324, 64
  %v330 = vpop.permute.xlu0 %329
  %331 = vrot.lane.b32.xlu0 %v325, 64
  %v332 = vpop.permute.xlu0 %331
  %333 = vrot.lane.b32.xlu0 %v326, 64
  %v334 = vpop.permute.xlu0 %333
  %v335 = vsel %vm208, %v328, %v330
  %v336 = vsel %vm208, %v332, %v334
  %v337 = vunpack.c.l.b16 %v134
  %v338 = vunpack.c.h.b16 %v134
  %v339 = vunpack.c.l.b16 %v137
  %v340 = vunpack.c.h.b16 %v137
  %v341 = vunpack.c.l.b16 %v141
  %v342 = vunpack.c.h.b16 %v141
  %v343 = vunpack.c.l.b16 %v144
  %v344 = vunpack.c.h.b16 %v144
  %v345 = vpack.c.b16 %v339, %v337
  %v346 = vpack.c.b16 %v340, %v338
  %v347 = vpack.c.b16 %v343, %v341
  %v348 = vpack.c.b16 %v344, %v342
  %349 = vrot.lane.b32.xlu0 %v345, 96
  %v350 = vpop.permute.xlu0 %349
  %351 = vrot.lane.b32.xlu0 %v346, 96
  %v352 = vpop.permute.xlu0 %351
  %353 = vrot.lane.b32.xlu0 %v347, 96
  %v354 = vpop.permute.xlu0 %353
  %355 = vrot.lane.b32.xlu0 %v348, 96
  %v356 = vpop.permute.xlu0 %355
  %v357 = vsel %vm231, %v350, %v352
  %v358 = vsel %vm231, %v354, %v356
  %v363 = vunpack.c.l.b16 %v85
  %v364 = vunpack.c.h.b16 %v85
  %v365 = vunpack.c.l.b16 %v86
  %v366 = vunpack.c.h.b16 %v86
  %v367 = vpack.c.b16 %v363, %v279
  %v368 = vpack.c.b16 %v364, %v280
  %v369 = vpack.c.b16 %v365, %v283
  %v370 = vpack.c.b16 %v366, %v284
  %v375 = vsel %vm248, %v286, %v306
  %v379 = vsel %vm248, %v288, %v310
  %v383 = vsel %vm257, %v313, %v328
  %v387 = vsel %vm257, %v314, %v332
  %v391 = vsel %vm266, %v335, %v350
  %v395 = vsel %vm266, %v336, %v354
  %399 = vrot.lane.b32.xlu0 %v196, 32
  %v400 = vpop.permute.xlu0 %399
  %401 = vrot.lane.b32.xlu0 %v197, 32
  %v402 = vpop.permute.xlu0 %401
  %403 = vrot.lane.b32.xlu0 %v198, 32
  %v404 = vpop.permute.xlu0 %403
  %405 = vrot.lane.b32.xlu0 %v199, 32
  %v406 = vpop.permute.xlu0 %405
  %v407 = vsel %vm185, %v400, %v402
  %v408 = vsel %vm185, %v404, %v406
  %409 = vrot.lane.b32.xlu0 %v219, 64
  %v410 = vpop.permute.xlu0 %409
  %411 = vrot.lane.b32.xlu0 %v220, 64
  %v412 = vpop.permute.xlu0 %411
  %413 = vrot.lane.b32.xlu0 %v221, 64
  %v414 = vpop.permute.xlu0 %413
  %415 = vrot.lane.b32.xlu0 %v222, 64
  %v416 = vpop.permute.xlu0 %415
  %v417 = vsel %vm208, %v410, %v412
  %v418 = vsel %vm208, %v414, %v416
  %419 = vrot.lane.b32.xlu0 %v242, 96
  %v420 = vpop.permute.xlu0 %419
  %421 = vrot.lane.b32.xlu0 %v243, 96
  %v422 = vpop.permute.xlu0 %421
  %423 = vrot.lane.b32.xlu0 %v244, 96
  %v424 = vpop.permute.xlu0 %423
  %425 = vrot.lane.b32.xlu0 %v245, 96
  %v426 = vpop.permute.xlu0 %425
  %v427 = vsel %vm231, %v420, %v422
  %v428 = vsel %vm231, %v424, %v426
  %v433 = vunpack.c.l.b16 %v115
  %v434 = vunpack.c.h.b16 %v115
  %v435 = vunpack.c.l.b16 %v116
  %v436 = vunpack.c.h.b16 %v116
  %v437 = vpack.c.b16 %v433, %v167
  %v438 = vpack.c.b16 %v434, %v168
  %v439 = vpack.c.b16 %v435, %v171
  %v440 = vpack.c.b16 %v436, %v172
  %v445 = vsel %vm248, %v174, %v400
  %v449 = vsel %vm248, %v176, %v404
  %v453 = vsel %vm257, %v407, %v410
  %v457 = vsel %vm257, %v408, %v414
  %v461 = vsel %vm266, %v417, %v420
  %v465 = vsel %vm266, %v418, %v424
  %469 = vrot.lane.b32.xlu0 %v323, 32
  %v470 = vpop.permute.xlu0 %469
  %471 = vrot.lane.b32.xlu0 %v324, 32
  %v472 = vpop.permute.xlu0 %471
  %473 = vrot.lane.b32.xlu0 %v325, 32
  %v474 = vpop.permute.xlu0 %473
  %475 = vrot.lane.b32.xlu0 %v326, 32
  %v476 = vpop.permute.xlu0 %475
  %v477 = vsel %vm185, %v470, %v472
  %v478 = vsel %vm185, %v474, %v476
  %479 = vrot.lane.b32.xlu0 %v345, 64
  %v480 = vpop.permute.xlu0 %479
  %481 = vrot.lane.b32.xlu0 %v346, 64
  %v482 = vpop.permute.xlu0 %481
  %483 = vrot.lane.b32.xlu0 %v347, 64
  %v484 = vpop.permute.xlu0 %483
  %485 = vrot.lane.b32.xlu0 %v348, 64
  %v486 = vpop.permute.xlu0 %485
  %v487 = vsel %vm208, %v480, %v482
  %v488 = vsel %vm208, %v484, %v486
  %489 = vrot.lane.b32.xlu0 %v367, 96
  %v490 = vpop.permute.xlu0 %489
  %491 = vrot.lane.b32.xlu0 %v368, 96
  %v492 = vpop.permute.xlu0 %491
  %493 = vrot.lane.b32.xlu0 %v369, 96
  %v494 = vpop.permute.xlu0 %493
  %495 = vrot.lane.b32.xlu0 %v370, 96
  %v496 = vpop.permute.xlu0 %495
  %v497 = vsel %vm231, %v490, %v492
  %v498 = vsel %vm231, %v494, %v496
  %v503 = vunpack.c.l.b16 %v145
  %v504 = vunpack.c.h.b16 %v145
  %v505 = vunpack.c.l.b16 %v146
  %v506 = vunpack.c.h.b16 %v146
  %v507 = vpack.c.b16 %v503, %v295
  %v508 = vpack.c.b16 %v504, %v296
  %v509 = vpack.c.b16 %v505, %v299
  %v510 = vpack.c.b16 %v506, %v300
  %v515 = vsel %vm248, %v302, %v470
  %v519 = vsel %vm248, %v304, %v474
  %v523 = vsel %vm257, %v477, %v480
  %v527 = vsel %vm257, %v478, %v484
  %v531 = vsel %vm266, %v487, %v490
  %v535 = vsel %vm266, %v488, %v494
  %v537 = vld [vmem:[%s4] sm:$0xf]
  %v538 = vld [vmem:[%s4 + $0x4] sm:$0xf]
  %v539 = vld [vmem:[%s4 + $0x8] sm:$0xf]
  %v540 = vld [vmem:[%s4 + $0xc] sm:$0xf]
  %v541 = vld [vmem:[%s4 + $0x10] sm:$0xf]
  %v542 = vld [vmem:[%s4 + $0x14] sm:$0xf]
  %v543 = vld [vmem:[%s4 + $0x18] sm:$0xf]
  %v544 = vld [vmem:[%s4 + $0x1c] sm:$0xf]
  %v545 = vld [vmem:[%s4 + $0x20] sm:$0xf]
  %v546 = vld [vmem:[%s4 + $0x24] sm:$0xf]
  %v547 = vld [vmem:[%s4 + $0x28] sm:$0xf]
  %v548 = vld [vmem:[%s4 + $0x2c] sm:$0xf]
  %v549 = vld [vmem:[%s4 + $0x30] sm:$0xf]
  %v550 = vld [vmem:[%s4 + $0x34] sm:$0xf]
  %v551 = vld [vmem:[%s4 + $0x38] sm:$0xf]
  %v552 = vld [vmem:[%s4 + $0x3c] sm:$0xf]
  %v553 = vld [vmem:[%s4 + $0x40] sm:$0xf]
  %v554 = vld [vmem:[%s4 + $0x44] sm:$0xf]
  %v555 = vld [vmem:[%s4 + $0x48] sm:$0xf]
  %v556 = vld [vmem:[%s4 + $0x4c] sm:$0xf]
  %v557 = vld [vmem:[%s4 + $0x50] sm:$0xf]
  %v558 = vld [vmem:[%s4 + $0x54] sm:$0xf]
  %v559 = vld [vmem:[%s4 + $0x58] sm:$0xf]
  %v560 = vld [vmem:[%s4 + $0x5c] sm:$0xf]
  %v561 = vld [vmem:[%s4 + $0x60] sm:$0xf]
  %v562 = vld [vmem:[%s4 + $0x64] sm:$0xf]
  %v563 = vld [vmem:[%s4 + $0x68] sm:$0xf]
  %v564 = vld [vmem:[%s4 + $0x6c] sm:$0xf]
  %v565 = vld [vmem:[%s4 + $0x70] sm:$0xf]
  %v566 = vld [vmem:[%s4 + $0x74] sm:$0xf]
  %v567 = vld [vmem:[%s4 + $0x78] sm:$0xf]
  %v568 = vld [vmem:[%s4 + $0x7c] sm:$0xf]
  %v569 = vld [vmem:[%s4 + $0x80] sm:$0xf]
  %v570 = vld [vmem:[%s4 + $0x84] sm:$0xf]
  %v571 = vld [vmem:[%s4 + $0x88] sm:$0xf]
  %v572 = vld [vmem:[%s4 + $0x8c] sm:$0xf]
  %v573 = vld [vmem:[%s4 + $0x90] sm:$0xf]
  %v574 = vld [vmem:[%s4 + $0x94] sm:$0xf]
  %v575 = vld [vmem:[%s4 + $0x98] sm:$0xf]
  %v576 = vld [vmem:[%s4 + $0x9c] sm:$0xf]
  %v577 = vld [vmem:[%s4 + $0xa0] sm:$0xf]
  %v578 = vld [vmem:[%s4 + $0xa4] sm:$0xf]
  %v579 = vld [vmem:[%s4 + $0xa8] sm:$0xf]
  %v580 = vld [vmem:[%s4 + $0xac] sm:$0xf]
  %v581 = vld [vmem:[%s4 + $0xb0] sm:$0xf]
  %v582 = vld [vmem:[%s4 + $0xb4] sm:$0xf]
  %v583 = vld [vmem:[%s4 + $0xb8] sm:$0xf]
  %v584 = vld [vmem:[%s4 + $0xbc] sm:$0xf]
  %v585 = vld [vmem:[%s4 + $0xc0] sm:$0xf]
  %v586 = vld [vmem:[%s4 + $0xc4] sm:$0xf]
  %v587 = vld [vmem:[%s4 + $0xc8] sm:$0xf]
  %v588 = vld [vmem:[%s4 + $0xcc] sm:$0xf]
  %v589 = vld [vmem:[%s4 + $0xd0] sm:$0xf]
  %v590 = vld [vmem:[%s4 + $0xd4] sm:$0xf]
  %v591 = vld [vmem:[%s4 + $0xd8] sm:$0xf]
  %v592 = vld [vmem:[%s4 + $0xdc] sm:$0xf]
  %v593 = vld [vmem:[%s4 + $0xe0] sm:$0xf]
  %v594 = vld [vmem:[%s4 + $0xe4] sm:$0xf]
  %v595 = vld [vmem:[%s4 + $0xe8] sm:$0xf]
  %v596 = vld [vmem:[%s4 + $0xec] sm:$0xf]
  %v597 = vld [vmem:[%s4 + $0xf0] sm:$0xf]
  %v598 = vld [vmem:[%s4 + $0xf4] sm:$0xf]
  %v599 = vld [vmem:[%s4 + $0xf8] sm:$0xf]
  %v600 = vld [vmem:[%s4 + $0xfc] sm:$0xf]
  %v601 = vld [vmem:[%s4 + $0x100] sm:$0xf]
  %v602 = vld [vmem:[%s4 + $0x104] sm:$0xf]
  %v603 = vld [vmem:[%s4 + $0x108] sm:$0xf]
  %v604 = vld [vmem:[%s4 + $0x10c] sm:$0xf]
  %v605 = vld [vmem:[%s4 + $0x110] sm:$0xf]
  %v606 = vld [vmem:[%s4 + $0x114] sm:$0xf]
  %v607 = vld [vmem:[%s4 + $0x118] sm:$0xf]
  %v608 = vld [vmem:[%s4 + $0x11c] sm:$0xf]
  %v609 = vld [vmem:[%s4 + $0x120] sm:$0xf]
  %v610 = vld [vmem:[%s4 + $0x124] sm:$0xf]
  %v611 = vld [vmem:[%s4 + $0x128] sm:$0xf]
  %v612 = vld [vmem:[%s4 + $0x12c] sm:$0xf]
  %v613 = vld [vmem:[%s4 + $0x130] sm:$0xf]
  %v614 = vld [vmem:[%s4 + $0x134] sm:$0xf]
  %v615 = vld [vmem:[%s4 + $0x138] sm:$0xf]
  %v616 = vld [vmem:[%s4 + $0x13c] sm:$0xf]
  %v617 = vld [vmem:[%s4 + $0x140] sm:$0xf]
  %v618 = vld [vmem:[%s4 + $0x144] sm:$0xf]
  %v619 = vld [vmem:[%s4 + $0x148] sm:$0xf]
  %v620 = vld [vmem:[%s4 + $0x14c] sm:$0xf]
  %v621 = vld [vmem:[%s4 + $0x150] sm:$0xf]
  %v622 = vld [vmem:[%s4 + $0x154] sm:$0xf]
  %v623 = vld [vmem:[%s4 + $0x158] sm:$0xf]
  %v624 = vld [vmem:[%s4 + $0x15c] sm:$0xf]
  %v625 = vld [vmem:[%s4 + $0x160] sm:$0xf]
  %v626 = vld [vmem:[%s4 + $0x164] sm:$0xf]
  %v627 = vld [vmem:[%s4 + $0x168] sm:$0xf]
  %v628 = vld [vmem:[%s4 + $0x16c] sm:$0xf]
  %v629 = vld [vmem:[%s4 + $0x170] sm:$0xf]
  %v630 = vld [vmem:[%s4 + $0x174] sm:$0xf]
  %v631 = vld [vmem:[%s4 + $0x178] sm:$0xf]
  %v632 = vld [vmem:[%s4 + $0x17c] sm:$0xf]
  %v633 = vld [vmem:[%s4 + $0x180] sm:$0xf]
  %v634 = vld [vmem:[%s4 + $0x184] sm:$0xf]
  %v635 = vld [vmem:[%s4 + $0x188] sm:$0xf]
  %v636 = vld [vmem:[%s4 + $0x18c] sm:$0xf]
  %v737 = vunpack.c.l.b16 %v537
  %v738 = vunpack.c.l.b16 %v538
  %v739 = vunpack.c.l.b16 %v539
  %v740 = vunpack.c.l.b16 %v540
  %v741 = vunpack.c.l.b16 %v541
  %v742 = vunpack.c.l.b16 %v542
  %v743 = vunpack.c.l.b16 %v543
  %v744 = vunpack.c.l.b16 %v544
  %v745 = vunpack.c.l.b16 %v545
  %v746 = vunpack.c.l.b16 %v546
  %v747 = vunpack.c.l.b16 %v547
  %v748 = vunpack.c.l.b16 %v548
  %v749 = vunpack.c.l.b16 %v549
  %v750 = vunpack.c.l.b16 %v550
  %v751 = vunpack.c.l.b16 %v551
  %v752 = vunpack.c.l.b16 %v552
  %v753 = vunpack.c.l.b16 %v553
  %v754 = vunpack.c.l.b16 %v554
  %v755 = vunpack.c.l.b16 %v555
  %v756 = vunpack.c.l.b16 %v556
  %v757 = vunpack.c.l.b16 %v557
  %v758 = vunpack.c.l.b16 %v558
  %v759 = vunpack.c.l.b16 %v559
  %v760 = vunpack.c.l.b16 %v560
  %v761 = vunpack.c.l.b16 %v561
  %v762 = vunpack.c.l.b16 %v562
  %v763 = vunpack.c.l.b16 %v563
  %v764 = vunpack.c.l.b16 %v564
  %v765 = vunpack.c.l.b16 %v565
  %v766 = vunpack.c.l.b16 %v566
  %v767 = vunpack.c.l.b16 %v567
  %v768 = vunpack.c.l.b16 %v568
  %v769 = vunpack.c.l.b16 %v569
  %v770 = vunpack.c.l.b16 %v570
  %v771 = vunpack.c.l.b16 %v571
  %v772 = vunpack.c.l.b16 %v572
  %v773 = vunpack.c.l.b16 %v573
  %v774 = vunpack.c.l.b16 %v574
  %v775 = vunpack.c.l.b16 %v575
  %v776 = vunpack.c.l.b16 %v576
  %v777 = vunpack.c.l.b16 %v577
  %v778 = vunpack.c.l.b16 %v578
  %v779 = vunpack.c.l.b16 %v579
  %v780 = vunpack.c.l.b16 %v580
  %v781 = vunpack.c.l.b16 %v581
  %v782 = vunpack.c.l.b16 %v582
  %v783 = vunpack.c.l.b16 %v583
  %v784 = vunpack.c.l.b16 %v584
  %v785 = vunpack.c.l.b16 %v585
  %v786 = vunpack.c.l.b16 %v586
  %v787 = vunpack.c.l.b16 %v587
  %v788 = vunpack.c.l.b16 %v588
  %v789 = vunpack.c.l.b16 %v589
  %v790 = vunpack.c.l.b16 %v590
  %v791 = vunpack.c.l.b16 %v591
  %v792 = vunpack.c.l.b16 %v592
  %v793 = vunpack.c.l.b16 %v593
  %v794 = vunpack.c.l.b16 %v594
  %v795 = vunpack.c.l.b16 %v595
  %v796 = vunpack.c.l.b16 %v596
  %v797 = vunpack.c.l.b16 %v597
  %v798 = vunpack.c.l.b16 %v598
  %v799 = vunpack.c.l.b16 %v599
  %v800 = vunpack.c.l.b16 %v600
  %v801 = vunpack.c.l.b16 %v601
  %v802 = vunpack.c.l.b16 %v602
  %v803 = vunpack.c.l.b16 %v603
  %v804 = vunpack.c.l.b16 %v604
  %v805 = vunpack.c.l.b16 %v605
  %v806 = vunpack.c.l.b16 %v606
  %v807 = vunpack.c.l.b16 %v607
  %v808 = vunpack.c.l.b16 %v608
  %v809 = vunpack.c.l.b16 %v609
  %v810 = vunpack.c.l.b16 %v610
  %v811 = vunpack.c.l.b16 %v611
  %v812 = vunpack.c.l.b16 %v612
  %v813 = vunpack.c.l.b16 %v613
  %v814 = vunpack.c.l.b16 %v614
  %v815 = vunpack.c.l.b16 %v615
  %v816 = vunpack.c.l.b16 %v616
  %v817 = vunpack.c.l.b16 %v617
  %v818 = vunpack.c.l.b16 %v618
  %v819 = vunpack.c.l.b16 %v619
  %v820 = vunpack.c.l.b16 %v620
  %v821 = vunpack.c.l.b16 %v621
  %v822 = vunpack.c.l.b16 %v622
  %v823 = vunpack.c.l.b16 %v623
  %v824 = vunpack.c.l.b16 %v624
  %v825 = vunpack.c.l.b16 %v625
  %v826 = vunpack.c.l.b16 %v626
  %v827 = vunpack.c.l.b16 %v627
  %v828 = vunpack.c.l.b16 %v628
  %v829 = vunpack.c.l.b16 %v629
  %v830 = vunpack.c.l.b16 %v630
  %v831 = vunpack.c.l.b16 %v631
  %v832 = vunpack.c.l.b16 %v632
  %v833 = vunpack.c.l.b16 %v633
  %v834 = vunpack.c.l.b16 %v634
  %v835 = vunpack.c.l.b16 %v635
  %v836 = vunpack.c.l.b16 %v636
  %v837 = vpack.c.b16 %v738, %v737
  %v838 = vpack.c.b16 %v740, %v739
  %v839 = vpack.c.b16 %v742, %v741
  %v840 = vpack.c.b16 %v744, %v743
  %v841 = vpack.c.b16 %v746, %v745
  %v842 = vpack.c.b16 %v748, %v747
  %v843 = vpack.c.b16 %v750, %v749
  %v844 = vpack.c.b16 %v752, %v751
  %v845 = vpack.c.b16 %v754, %v753
  %v846 = vpack.c.b16 %v756, %v755
  %v847 = vpack.c.b16 %v758, %v757
  %v848 = vpack.c.b16 %v760, %v759
  %v849 = vpack.c.b16 %v762, %v761
  %v850 = vpack.c.b16 %v764, %v763
  %v851 = vpack.c.b16 %v766, %v765
  %v852 = vpack.c.b16 %v768, %v767
  %v853 = vpack.c.b16 %v770, %v769
  %v854 = vpack.c.b16 %v772, %v771
  %v855 = vpack.c.b16 %v774, %v773
  %v856 = vpack.c.b16 %v776, %v775
  %v857 = vpack.c.b16 %v778, %v777
  %v858 = vpack.c.b16 %v780, %v779
  %v859 = vpack.c.b16 %v782, %v781
  %v860 = vpack.c.b16 %v784, %v783
  %v861 = vpack.c.b16 %v786, %v785
  %v862 = vpack.c.b16 %v788, %v787
  %v863 = vpack.c.b16 %v790, %v789
  %v864 = vpack.c.b16 %v792, %v791
  %v865 = vpack.c.b16 %v794, %v793
  %v866 = vpack.c.b16 %v796, %v795
  %v867 = vpack.c.b16 %v798, %v797
  %v868 = vpack.c.b16 %v800, %v799
  %v869 = vpack.c.b16 %v802, %v801
  %v870 = vpack.c.b16 %v804, %v803
  %v871 = vpack.c.b16 %v806, %v805
  %v872 = vpack.c.b16 %v808, %v807
  %v873 = vpack.c.b16 %v810, %v809
  %v874 = vpack.c.b16 %v812, %v811
  %v875 = vpack.c.b16 %v814, %v813
  %v876 = vpack.c.b16 %v816, %v815
  %v877 = vpack.c.b16 %v818, %v817
  %v878 = vpack.c.b16 %v820, %v819
  %v879 = vpack.c.b16 %v822, %v821
  %v880 = vpack.c.b16 %v824, %v823
  %v881 = vpack.c.b16 %v826, %v825
  %v882 = vpack.c.b16 %v828, %v827
  %v883 = vpack.c.b16 %v830, %v829
  %v884 = vpack.c.b16 %v832, %v831
  %v885 = vpack.c.b16 %v834, %v833
  %v886 = vpack.c.b16 %v836, %v835
  %v938 = vsel %vm248, %v243, 0
  %v941 = vsel %vm248, %v245, 0
  %v944 = vsel %vm248, %v368, 0
  %v947 = vsel %vm248, %v370, 0
  %v950 = vsel %vm248, %v438, 0
  %v953 = vsel %vm248, %v440, 0
  %v956 = vsel %vm248, %v508, 0
  %v959 = vsel %vm248, %v510, 0
  %961 = vmatpush.bf16.msra.mxu0 %v844
  %962 = vmatpush.bf16.msra.mxu0 %v843
  %963 = vmatpush.bf16.msra.mxu0 %v842
  %964 = vmatpush.bf16.msra.mxu0 %v841
  %965 = vmatpush.bf16.msra.mxu0 %v840
  %966 = vmatpush.bf16.msra.mxu0 %v839
  %967 = vmatpush.bf16.msra.mxu0 %v838
  %968 = vmatpush.bf16.msra.mxu0 %v837
  %969 = vmatmul.bf16.gmra.mxu0 %v157
  %v970 = vpop.f32.mrf.mxu0
  %v971 = vadd.f32 0.0, %v970
  %v972 = vpop.f32.mrf.mxu0
  %v973 = vadd.f32 0.0, %v972
  %974 = vmatmul.bf16.gmra.mxu0 %v159
  %v975 = vpop.f32.mrf.mxu0
  %v976 = vadd.f32 0.0, %v975
  %v977 = vpop.f32.mrf.mxu0
  %v978 = vadd.f32 0.0, %v977
  %979 = vmatmul.bf16.gmra.mxu0 %v285
  %v980 = vpop.f32.mrf.mxu0
  %v981 = vadd.f32 0.0, %v980
  %v982 = vpop.f32.mrf.mxu0
  %v983 = vadd.f32 0.0, %v982
  %984 = vmatmul.bf16.gmra.mxu0 %v287
  %v985 = vpop.f32.mrf.mxu0
  %v986 = vadd.f32 0.0, %v985
  %v987 = vpop.f32.mrf.mxu0
  %v988 = vadd.f32 0.0, %v987
  %989 = vmatmul.bf16.gmra.mxu0 %v173
  %v990 = vpop.f32.mrf.mxu0
  %v991 = vadd.f32 0.0, %v990
  %v992 = vpop.f32.mrf.mxu0
  %v993 = vadd.f32 0.0, %v992
  %994 = vmatmul.bf16.gmra.mxu0 %v175
  %v995 = vpop.f32.mrf.mxu0
  %v996 = vadd.f32 0.0, %v995
  %v997 = vpop.f32.mrf.mxu0
  %v998 = vadd.f32 0.0, %v997
  %999 = vmatmul.bf16.gmra.mxu0 %v301
  %v1000 = vpop.f32.mrf.mxu0
  %v1001 = vadd.f32 0.0, %v1000
  %v1002 = vpop.f32.mrf.mxu0
  %v1003 = vadd.f32 0.0, %v1002
  %1004 = vmatmul.bf16.gmra.mxu0 %v303
  %v1005 = vpop.f32.mrf.mxu0
  %v1006 = vadd.f32 0.0, %v1005
  %v1007 = vpop.f32.mrf.mxu0
  %v1008 = vadd.f32 0.0, %v1007
  %1009 = vdwg.mxu0
  %1010 = vmatpush.bf16.msra.mxu0 %v852
  %1011 = vmatpush.bf16.msra.mxu0 %v851
  %1012 = vmatpush.bf16.msra.mxu0 %v850
  %1013 = vmatpush.bf16.msra.mxu0 %v849
  %1014 = vmatpush.bf16.msra.mxu0 %v848
  %1015 = vmatpush.bf16.msra.mxu0 %v847
  %1016 = vmatpush.bf16.msra.mxu0 %v846
  %1017 = vmatpush.bf16.msra.mxu0 %v845
  %1018 = vmatmul.bf16.gmra.mxu0 %v251
  %v1019 = vpop.f32.mrf.mxu0
  %v1020 = vadd.f32 %v971, %v1019
  %v1021 = vpop.f32.mrf.mxu0
  %v1022 = vadd.f32 %v973, %v1021
  %1023 = vmatmul.bf16.gmra.mxu0 %v255
  %v1024 = vpop.f32.mrf.mxu0
  %v1025 = vadd.f32 %v976, %v1024
  %v1026 = vpop.f32.mrf.mxu0
  %v1027 = vadd.f32 %v978, %v1026
  %1028 = vmatmul.bf16.gmra.mxu0 %v375
  %v1029 = vpop.f32.mrf.mxu0
  %v1030 = vadd.f32 %v981, %v1029
  %v1031 = vpop.f32.mrf.mxu0
  %v1032 = vadd.f32 %v983, %v1031
  %1033 = vmatmul.bf16.gmra.mxu0 %v379
  %v1034 = vpop.f32.mrf.mxu0
  %v1035 = vadd.f32 %v986, %v1034
  %v1036 = vpop.f32.mrf.mxu0
  %v1037 = vadd.f32 %v988, %v1036
  %1038 = vmatmul.bf16.gmra.mxu0 %v445
  %v1039 = vpop.f32.mrf.mxu0
  %v1040 = vadd.f32 %v991, %v1039
  %v1041 = vpop.f32.mrf.mxu0
  %v1042 = vadd.f32 %v993, %v1041
  %1043 = vmatmul.bf16.gmra.mxu0 %v449
  %v1044 = vpop.f32.mrf.mxu0
  %v1045 = vadd.f32 %v996, %v1044
  %v1046 = vpop.f32.mrf.mxu0
  %v1047 = vadd.f32 %v998, %v1046
  %1048 = vmatmul.bf16.gmra.mxu0 %v515
  %v1049 = vpop.f32.mrf.mxu0
  %v1050 = vadd.f32 %v1001, %v1049
  %v1051 = vpop.f32.mrf.mxu0
  %v1052 = vadd.f32 %v1003, %v1051
  %1053 = vmatmul.bf16.gmra.mxu0 %v519
  %v1054 = vpop.f32.mrf.mxu0
  %v1055 = vadd.f32 %v1006, %v1054
  %v1056 = vpop.f32.mrf.mxu0
  %v1057 = vadd.f32 %v1008, %v1056
  %1058 = vdwg.mxu0
  %1059 = vmatpush.bf16.msra.mxu0 %v860
  %1060 = vmatpush.bf16.msra.mxu0 %v859
  %1061 = vmatpush.bf16.msra.mxu0 %v858
  %1062 = vmatpush.bf16.msra.mxu0 %v857
  %1063 = vmatpush.bf16.msra.mxu0 %v856
  %1064 = vmatpush.bf16.msra.mxu0 %v855
  %1065 = vmatpush.bf16.msra.mxu0 %v854
  %1066 = vmatpush.bf16.msra.mxu0 %v853
  %1067 = vmatmul.bf16.gmra.mxu0 %v260
  %v1068 = vpop.f32.mrf.mxu0
  %v1069 = vadd.f32 %v1020, %v1068
  %v1070 = vpop.f32.mrf.mxu0
  %v1071 = vadd.f32 %v1022, %v1070
  %1072 = vmatmul.bf16.gmra.mxu0 %v264
  %v1073 = vpop.f32.mrf.mxu0
  %v1074 = vadd.f32 %v1025, %v1073
  %v1075 = vpop.f32.mrf.mxu0
  %v1076 = vadd.f32 %v1027, %v1075
  %1077 = vmatmul.bf16.gmra.mxu0 %v383
  %v1078 = vpop.f32.mrf.mxu0
  %v1079 = vadd.f32 %v1030, %v1078
  %v1080 = vpop.f32.mrf.mxu0
  %v1081 = vadd.f32 %v1032, %v1080
  %1082 = vmatmul.bf16.gmra.mxu0 %v387
  %v1083 = vpop.f32.mrf.mxu0
  %v1084 = vadd.f32 %v1035, %v1083
  %v1085 = vpop.f32.mrf.mxu0
  %v1086 = vadd.f32 %v1037, %v1085
  %1087 = vmatmul.bf16.gmra.mxu0 %v453
  %v1088 = vpop.f32.mrf.mxu0
  %v1089 = vadd.f32 %v1040, %v1088
  %v1090 = vpop.f32.mrf.mxu0
  %v1091 = vadd.f32 %v1042, %v1090
  %1092 = vmatmul.bf16.gmra.mxu0 %v457
  %v1093 = vpop.f32.mrf.mxu0
  %v1094 = vadd.f32 %v1045, %v1093
  %v1095 = vpop.f32.mrf.mxu0
  %v1096 = vadd.f32 %v1047, %v1095
  %1097 = vmatmul.bf16.gmra.mxu0 %v523
  %v1098 = vpop.f32.mrf.mxu0
  %v1099 = vadd.f32 %v1050, %v1098
  %v1100 = vpop.f32.mrf.mxu0
  %v1101 = vadd.f32 %v1052, %v1100
  %1102 = vmatmul.bf16.gmra.mxu0 %v527
  %v1103 = vpop.f32.mrf.mxu0
  %v1104 = vadd.f32 %v1055, %v1103
  %v1105 = vpop.f32.mrf.mxu0
  %v1106 = vadd.f32 %v1057, %v1105
  %1107 = vdwg.mxu0
  %1108 = vmatpush.bf16.msra.mxu0 %v868
  %1109 = vmatpush.bf16.msra.mxu0 %v867
  %1110 = vmatpush.bf16.msra.mxu0 %v866
  %1111 = vmatpush.bf16.msra.mxu0 %v865
  %1112 = vmatpush.bf16.msra.mxu0 %v864
  %1113 = vmatpush.bf16.msra.mxu0 %v863
  %1114 = vmatpush.bf16.msra.mxu0 %v862
  %1115 = vmatpush.bf16.msra.mxu0 %v861
  %1116 = vmatmul.bf16.gmra.mxu0 %v269
  %v1117 = vpop.f32.mrf.mxu0
  %v1118 = vadd.f32 %v1069, %v1117
  %v1119 = vpop.f32.mrf.mxu0
  %v1120 = vadd.f32 %v1071, %v1119
  %1121 = vmatmul.bf16.gmra.mxu0 %v273
  %v1122 = vpop.f32.mrf.mxu0
  %v1123 = vadd.f32 %v1074, %v1122
  %v1124 = vpop.f32.mrf.mxu0
  %v1125 = vadd.f32 %v1076, %v1124
  %1126 = vmatmul.bf16.gmra.mxu0 %v391
  %v1127 = vpop.f32.mrf.mxu0
  %v1128 = vadd.f32 %v1079, %v1127
  %v1129 = vpop.f32.mrf.mxu0
  %v1130 = vadd.f32 %v1081, %v1129
  %1131 = vmatmul.bf16.gmra.mxu0 %v395
  %v1132 = vpop.f32.mrf.mxu0
  %v1133 = vadd.f32 %v1084, %v1132
  %v1134 = vpop.f32.mrf.mxu0
  %v1135 = vadd.f32 %v1086, %v1134
  %1136 = vmatmul.bf16.gmra.mxu0 %v461
  %v1137 = vpop.f32.mrf.mxu0
  %v1138 = vadd.f32 %v1089, %v1137
  %v1139 = vpop.f32.mrf.mxu0
  %v1140 = vadd.f32 %v1091, %v1139
  %1141 = vmatmul.bf16.gmra.mxu0 %v465
  %v1142 = vpop.f32.mrf.mxu0
  %v1143 = vadd.f32 %v1094, %v1142
  %v1144 = vpop.f32.mrf.mxu0
  %v1145 = vadd.f32 %v1096, %v1144
  %1146 = vmatmul.bf16.gmra.mxu0 %v531
  %v1147 = vpop.f32.mrf.mxu0
  %v1148 = vadd.f32 %v1099, %v1147
  %v1149 = vpop.f32.mrf.mxu0
  %v1150 = vadd.f32 %v1101, %v1149
  %1151 = vmatmul.bf16.gmra.mxu0 %v535
  %v1152 = vpop.f32.mrf.mxu0
  %v1153 = vadd.f32 %v1104, %v1152
  %v1154 = vpop.f32.mrf.mxu0
  %v1155 = vadd.f32 %v1106, %v1154
  %1156 = vdwg.mxu0
  %1157 = vmatpush.bf16.msra.mxu0 %v876
  %1158 = vmatpush.bf16.msra.mxu0 %v875
  %1159 = vmatpush.bf16.msra.mxu0 %v874
  %1160 = vmatpush.bf16.msra.mxu0 %v873
  %1161 = vmatpush.bf16.msra.mxu0 %v872
  %1162 = vmatpush.bf16.msra.mxu0 %v871
  %1163 = vmatpush.bf16.msra.mxu0 %v870
  %1164 = vmatpush.bf16.msra.mxu0 %v869
  %1165 = vmatmul.bf16.gmra.mxu0 %v232
  %v1166 = vpop.f32.mrf.mxu0
  %v1167 = vadd.f32 %v1118, %v1166
  %v1168 = vpop.f32.mrf.mxu0
  %v1169 = vadd.f32 %v1120, %v1168
  %1170 = vmatmul.bf16.gmra.mxu0 %v233
  %v1171 = vpop.f32.mrf.mxu0
  %v1172 = vadd.f32 %v1123, %v1171
  %v1173 = vpop.f32.mrf.mxu0
  %v1174 = vadd.f32 %v1125, %v1173
  %1175 = vmatmul.bf16.gmra.mxu0 %v357
  %v1176 = vpop.f32.mrf.mxu0
  %v1177 = vadd.f32 %v1128, %v1176
  %v1178 = vpop.f32.mrf.mxu0
  %v1179 = vadd.f32 %v1130, %v1178
  %1180 = vmatmul.bf16.gmra.mxu0 %v358
  %v1181 = vpop.f32.mrf.mxu0
  %v1182 = vadd.f32 %v1133, %v1181
  %v1183 = vpop.f32.mrf.mxu0
  %v1184 = vadd.f32 %v1135, %v1183
  %1185 = vmatmul.bf16.gmra.mxu0 %v427
  %v1186 = vpop.f32.mrf.mxu0
  %v1187 = vadd.f32 %v1138, %v1186
  %v1188 = vpop.f32.mrf.mxu0
  %v1189 = vadd.f32 %v1140, %v1188
  %1190 = vmatmul.bf16.gmra.mxu0 %v428
  %v1191 = vpop.f32.mrf.mxu0
  %v1192 = vadd.f32 %v1143, %v1191
  %v1193 = vpop.f32.mrf.mxu0
  %v1194 = vadd.f32 %v1145, %v1193
  %1195 = vmatmul.bf16.gmra.mxu0 %v497
  %v1196 = vpop.f32.mrf.mxu0
  %v1197 = vadd.f32 %v1148, %v1196
  %v1198 = vpop.f32.mrf.mxu0
  %v1199 = vadd.f32 %v1150, %v1198
  %1200 = vmatmul.bf16.gmra.mxu0 %v498
  %v1201 = vpop.f32.mrf.mxu0
  %v1202 = vadd.f32 %v1153, %v1201
  %v1203 = vpop.f32.mrf.mxu0
  %v1204 = vadd.f32 %v1155, %v1203
  %1205 = vdwg.mxu0
  %1206 = vmatpush.bf16.msra.mxu0 %v884
  %1207 = vmatpush.bf16.msra.mxu0 %v883
  %1208 = vmatpush.bf16.msra.mxu0 %v882
  %1209 = vmatpush.bf16.msra.mxu0 %v881
  %1210 = vmatpush.bf16.msra.mxu0 %v880
  %1211 = vmatpush.bf16.msra.mxu0 %v879
  %1212 = vmatpush.bf16.msra.mxu0 %v878
  %1213 = vmatpush.bf16.msra.mxu0 %v877
  %1214 = vmatmul.bf16.gmra.mxu0 %v242
  %v1215 = vpop.f32.mrf.mxu0
  %v1216 = vadd.f32 %v1167, %v1215
  %v1217 = vpop.f32.mrf.mxu0
  %v1218 = vadd.f32 %v1169, %v1217
  %1219 = vmatmul.bf16.gmra.mxu0 %v244
  %v1220 = vpop.f32.mrf.mxu0
  %v1221 = vadd.f32 %v1172, %v1220
  %v1222 = vpop.f32.mrf.mxu0
  %v1223 = vadd.f32 %v1174, %v1222
  %1224 = vmatmul.bf16.gmra.mxu0 %v367
  %v1225 = vpop.f32.mrf.mxu0
  %v1226 = vadd.f32 %v1177, %v1225
  %v1227 = vpop.f32.mrf.mxu0
  %v1228 = vadd.f32 %v1179, %v1227
  %1229 = vmatmul.bf16.gmra.mxu0 %v369
  %v1230 = vpop.f32.mrf.mxu0
  %v1231 = vadd.f32 %v1182, %v1230
  %v1232 = vpop.f32.mrf.mxu0
  %v1233 = vadd.f32 %v1184, %v1232
  %1234 = vmatmul.bf16.gmra.mxu0 %v437
  %v1235 = vpop.f32.mrf.mxu0
  %v1236 = vadd.f32 %v1187, %v1235
  %v1237 = vpop.f32.mrf.mxu0
  %v1238 = vadd.f32 %v1189, %v1237
  %1239 = vmatmul.bf16.gmra.mxu0 %v439
  %v1240 = vpop.f32.mrf.mxu0
  %v1241 = vadd.f32 %v1192, %v1240
  %v1242 = vpop.f32.mrf.mxu0
  %v1243 = vadd.f32 %v1194, %v1242
  %1244 = vmatmul.bf16.gmra.mxu0 %v507
  %v1245 = vpop.f32.mrf.mxu0
  %v1246 = vadd.f32 %v1197, %v1245
  %v1247 = vpop.f32.mrf.mxu0
  %v1248 = vadd.f32 %v1199, %v1247
  %1249 = vmatmul.bf16.gmra.mxu0 %v509
  %v1250 = vpop.f32.mrf.mxu0
  %v1251 = vadd.f32 %v1202, %v1250
  %v1252 = vpop.f32.mrf.mxu0
  %v1253 = vadd.f32 %v1204, %v1252
  %1254 = vdwg.mxu0
  %1255 = vmatpush.bf16.msra.mxu0 0
  %1256 = vmatpush.bf16.msra.mxu0 0
  %1257 = vmatpush.bf16.msra.mxu0 0
  %1258 = vmatpush.bf16.msra.mxu0 0
  %1259 = vmatpush.bf16.msra.mxu0 0
  %1260 = vmatpush.bf16.msra.mxu0 0
  %1261 = vmatpush.bf16.msra.mxu0 %v886
  %1262 = vmatpush.bf16.msra.mxu0 %v885
  %1263 = vmatmul.bf16.gmra.mxu0 %v938
  %v1264 = vpop.f32.mrf.mxu0
  %v1265 = vadd.f32 %v1216, %v1264
  %v1266 = vpop.f32.mrf.mxu0
  %v1267 = vadd.f32 %v1218, %v1266
  %1268 = vmatmul.bf16.gmra.mxu0 %v941
  %v1269 = vpop.f32.mrf.mxu0
  %v1270 = vadd.f32 %v1221, %v1269
  %v1271 = vpop.f32.mrf.mxu0
  %v1272 = vadd.f32 %v1223, %v1271
  %1273 = vmatmul.bf16.gmra.mxu0 %v944
  %v1274 = vpop.f32.mrf.mxu0
  %v1275 = vadd.f32 %v1226, %v1274
  %v1276 = vpop.f32.mrf.mxu0
  %v1277 = vadd.f32 %v1228, %v1276
  %1278 = vmatmul.bf16.gmra.mxu0 %v947
  %v1279 = vpop.f32.mrf.mxu0
  %v1280 = vadd.f32 %v1231, %v1279
  %v1281 = vpop.f32.mrf.mxu0
  %v1282 = vadd.f32 %v1233, %v1281
  %1283 = vmatmul.bf16.gmra.mxu0 %v950
  %v1284 = vpop.f32.mrf.mxu0
  %v1285 = vadd.f32 %v1236, %v1284
  %v1286 = vpop.f32.mrf.mxu0
  %v1287 = vadd.f32 %v1238, %v1286
  %1288 = vmatmul.bf16.gmra.mxu0 %v953
  %v1289 = vpop.f32.mrf.mxu0
  %v1290 = vadd.f32 %v1241, %v1289
  %v1291 = vpop.f32.mrf.mxu0
  %v1292 = vadd.f32 %v1243, %v1291
  %1293 = vmatmul.bf16.gmra.mxu0 %v956
  %v1294 = vpop.f32.mrf.mxu0
  %v1295 = vadd.f32 %v1246, %v1294
  %v1296 = vpop.f32.mrf.mxu0
  %v1297 = vadd.f32 %v1248, %v1296
  %1298 = vmatmul.bf16.gmra.mxu0 %v959
  %v1299 = vpop.f32.mrf.mxu0
  %v1300 = vadd.f32 %v1251, %v1299
  %v1301 = vpop.f32.mrf.mxu0
  %v1302 = vadd.f32 %v1253, %v1301
  %1303 = vdwg.mxu0
  %v1304 = vmax.f32 %v1265, %v1275
  %v1305 = vmax.f32 %v1267, %v1277
  %v1306 = vmax.f32 %v1270, %v1280
  %v1307 = vmax.f32 %v1272, %v1282
  %v1308 = vmax.f32 %v1285, %v1295
  %v1309 = vmax.f32 %v1287, %v1297
  %v1310 = vmax.f32 %v1290, %v1300
  %v1311 = vmax.f32 %v1292, %v1302
  %v1312 = vmax.f32 %v1304, %v1308
  %v1313 = vmax.f32 %v1305, %v1309
  %v1314 = vmax.f32 %v1306, %v1310
  %v1315 = vmax.f32 %v1307, %v1311
  %v1316 = vld [vmem:[%s5] sm:$0x1]
  %v1318 = vperm.slane %v1316, 0
  %v1320 = vadd.f32 %v1312, %v1318
  %v1321 = vadd.f32 %v1313, %v1318
  %v1322 = vadd.f32 %v1314, %v1318
  %v1323 = vadd.f32 %v1315, %v1318
  %v1324 = vpack.c.bf16 %v1320, %v1320
  %v1325 = vpack.c.bf16 %v1321, %v1321
  %v1326 = vpack.c.bf16 %v1322, %v1322
  %v1327 = vpack.c.bf16 %v1323, %v1323
  %1328 = vst [vmem:[%s6] sm:$0xf] %v1324
  %1329 = vst [vmem:[%s6 + $0x4] sm:$0xf] %v1325
  %1330 = vst [vmem:[%s6 + $0x8] sm:$0xf] %v1326
  %1331 = vst [vmem:[%s6 + $0xc] sm:$0xf] %v1327
  // Predicated region
  $region26: #{cifar10_forward.6} parent=0 // pred_check
    _
  $region27: #{cifar10_forward.6} parent=0 // pred_check_branch
    %1333 = sbr.rel (0) target = $region29
  $region28: #{cifar10_forward.6} parent=0 // pred_region
    _
  $region29: #{cifar10_forward.6} parent=0 // pred_fallthru
    _
  // Predicated region
  $region30: #{cifar10_forward.6} parent=0 // pred_check
    _
  $region31: #{cifar10_forward.6} parent=0 // pred_check_branch
    %1335 = sbr.rel (0) target = $region33
  $region32: #{cifar10_forward.6} parent=0 // pred_region
    _
  $region33: #{cifar10_forward.6} parent=0 // pred_fallthru
    _

// kernel: cifar10_forward.4
$region0: #{cifar10_forward.4}
  #allocation0 [shape = 'u32[]', space=smem, size = 0x4, offset = 0x4, fixed_abs, tag = 'smem constant byte address 0x4 - core index']
  #allocation1 [shape = 'u32[72,128]{1,0:T(1,128)}', space=vmem, size = 0x9000, scoped, tag = 'internal scratch']
  %s0 = inlined_call_operand.vmem [shape: bf16[2,288,40], index: 0, kind: input, shape index: {}]
  %s1 = inlined_call_operand.vmem [shape: bf16[2,288,40], index: 1, kind: input, shape index: {}]
  %s2 = inlined_call_operand.vmem [shape: bf16[2,288,40], index: 2, kind: input, shape index: {}]
  %s3 = inlined_call_operand.vmem [shape: bf16[2,288,40], index: 3, kind: input, shape index: {}]
  %s4 = inlined_call_operand.vmem [shape: bf16[200,128], index: 4, kind: input, shape index: {}]
  %s5 = inlined_call_operand.vmem [shape: f32[1,128], index: 5, kind: input, shape index: {}]
  %s6 = inlined_call_operand.vmem [shape: bf16[2,256,128], index: 6, kind: output, shape index: {}]
  %s7 = sld [smem:[#allocation0]]
  $region34: #{cifar10_forward.4} parent=0
    _
  %s9 = ssub.s32 1, %s7
  %s10 = scalar_select 0, %s9, %s7
  // Predicated region
  $region2: #{cifar10_forward.4} parent=0 // pred_check
    _
  $region3: #{cifar10_forward.4} parent=0 // pred_check_branch
    %12 = sbr.rel (0) target = $region5
  $region4: #{cifar10_forward.4} parent=0 // pred_region
    _
  $region5: #{cifar10_forward.4} parent=0 // pred_fallthru
    _
  // Predicated region
  $region6: #{cifar10_forward.4} parent=0 // pred_check
    _
  $region7: #{cifar10_forward.4} parent=0 // pred_check_branch
    %14 = sbr.rel (0) target = $region9
  $region8: #{cifar10_forward.4} parent=0 // pred_region
    _
  $region9: #{cifar10_forward.4} parent=0 // pred_fallthru
    _
  // Predicated region
  $region10: #{cifar10_forward.4} parent=0 // pred_check
    _
  $region11: #{cifar10_forward.4} parent=0 // pred_check_branch
    %16 = sbr.rel (0) target = $region13
  $region12: #{cifar10_forward.4} parent=0 // pred_region
    _
  $region13: #{cifar10_forward.4} parent=0 // pred_fallthru
    _
  // Predicated region
  $region14: #{cifar10_forward.4} parent=0 // pred_check
    _
  $region15: #{cifar10_forward.4} parent=0 // pred_check_branch
    %18 = sbr.rel (0) target = $region17
  $region16: #{cifar10_forward.4} parent=0 // pred_region
    _
  $region17: #{cifar10_forward.4} parent=0 // pred_fallthru
    _
  // Predicated region
  $region18: #{cifar10_forward.4} parent=0 // pred_check
    _
  $region19: #{cifar10_forward.4} parent=0 // pred_check_branch
    %20 = sbr.rel (0) target = $region21
  $region20: #{cifar10_forward.4} parent=0 // pred_region
    _
  $region21: #{cifar10_forward.4} parent=0 // pred_fallthru
    _
  // Predicated region
  $region22: #{cifar10_forward.4} parent=0 // pred_check
    _
  $region23: #{cifar10_forward.4} parent=0 // pred_check_branch
    %22 = sbr.rel (0) target = $region25
  $region24: #{cifar10_forward.4} parent=0 // pred_region
    _
  $region25: #{cifar10_forward.4} parent=0 // pred_fallthru
    _
  %v24 = vld [vmem:[%s0] sm:$0xf]
  %v25 = vld [vmem:[%s0 + $0x4] sm:$0xf]
  %v26 = vld [vmem:[%s0 + $0x8] sm:$0xf]
  %v27 = vld [vmem:[%s0 + $0xc] sm:$0xf]
  %v28 = vld [vmem:[%s0 + $0x10] sm:$0xf]
  %v29 = vld [vmem:[%s0 + $0x14] sm:$0xf]
  %v30 = vld [vmem:[%s0 + $0x18] sm:$0xf]
  %v31 = vld [vmem:[%s0 + $0x1c] sm:$0xf]
  %v32 = vld [vmem:[%s0 + $0x20] sm:$0xf]
  %v33 = vld [vmem:[%s0 + $0x24] sm:$0xf]
  %v34 = vld [vmem:[%s0 + $0x28] sm:$0xf]
  %v35 = vld [vmem:[%s0 + $0x2c] sm:$0xf]
  %v36 = vld [vmem:[%s0 + $0x30] sm:$0xf]
  %v37 = vld [vmem:[%s0 + $0x34] sm:$0xf]
  %v38 = vld [vmem:[%s0 + $0x38] sm:$0xf]
  %v39 = vld [vmem:[%s0 + $0x3c] sm:$0xf]
  %v40 = vld [vmem:[%s0 + $0x40] sm:$0xf]
  %v41 = vld [vmem:[%s0 + $0x44] sm:$0xf]
  %v42 = vld [vmem:[%s0 + $0x48] sm:$0xf]
  %v43 = vld [vmem:[%s0 + $0x4c] sm:$0xf]
  %v44 = vld [vmem:[%s0 + $0x50] sm:$0xf]
  %v45 = vld [vmem:[%s0 + $0x54] sm:$0xf]
  %v46 = vld [vmem:[%s0 + $0x58] sm:$0xf]
  %v47 = vld [vmem:[%s0 + $0x5c] sm:$0xf]
  %v48 = vld [vmem:[%s0 + $0x60] sm:$0xf]
  %v49 = vld [vmem:[%s0 + $0x64] sm:$0xf]
  %v50 = vld [vmem:[%s0 + $0x68] sm:$0xf]
  %v51 = vld [vmem:[%s0 + $0x6c] sm:$0xf]
  %v52 = vld [vmem:[%s0 + $0x70] sm:$0xf]
  %v53 = vld [vmem:[%s0 + $0x74] sm:$0xf]
  %v54 = vld [vmem:[%s0 + $0x78] sm:$0xf]
  %v55 = vld [vmem:[%s0 + $0x7c] sm:$0xf]
  %v56 = vld [vmem:[%s0 + $0x90] sm:$0xf]
  %v57 = vld [vmem:[%s0 + $0x94] sm:$0xf]
  %v58 = vld [vmem:[%s0 + $0x98] sm:$0xf]
  %v59 = vld [vmem:[%s0 + $0x9c] sm:$0xf]
  %v60 = vld [vmem:[%s0 + $0xa0] sm:$0xf]
  %v61 = vld [vmem:[%s0 + $0xa4] sm:$0xf]
  %v62 = vld [vmem:[%s0 + $0xa8] sm:$0xf]
  %v63 = vld [vmem:[%s0 + $0xac] sm:$0xf]
  %v64 = vld [vmem:[%s0 + $0xb0] sm:$0xf]
  %v65 = vld [vmem:[%s0 + $0xb4] sm:$0xf]
  %v66 = vld [vmem:[%s0 + $0xb8] sm:$0xf]
  %v67 = vld [vmem:[%s0 + $0xbc] sm:$0xf]
  %v68 = vld [vmem:[%s0 + $0xc0] sm:$0xf]
  %v69 = vld [vmem:[%s0 + $0xc4] sm:$0xf]
  %v70 = vld [vmem:[%s0 + $0xc8] sm:$0xf]
  %v71 = vld [vmem:[%s0 + $0xcc] sm:$0xf]
  %v72 = vld [vmem:[%s0 + $0xd0] sm:$0xf]
  %v73 = vld [vmem:[%s0 + $0xd4] sm:$0xf]
  %v74 = vld [vmem:[%s0 + $0xd8] sm:$0xf]
  %v75 = vld [vmem:[%s0 + $0xdc] sm:$0xf]
  %v76 = vld [vmem:[%s0 + $0xe0] sm:$0xf]
  %v77 = vld [vmem:[%s0 + $0xe4] sm:$0xf]
  %v78 = vld [vmem:[%s0 + $0xe8] sm:$0xf]
  %v79 = vld [vmem:[%s0 + $0xec] sm:$0xf]
  %v80 = vld [vmem:[%s0 + $0xf0] sm:$0xf]
  %v81 = vld [vmem:[%s0 + $0xf4] sm:$0xf]
  %v82 = vld [vmem:[%s0 + $0xf8] sm:$0xf]
  %v83 = vld [vmem:[%s0 + $0xfc] sm:$0xf]
  %v84 = vld [vmem:[%s0 + $0x100] sm:$0xf]
  %v85 = vld [vmem:[%s0 + $0x104] sm:$0xf]
  %v86 = vld [vmem:[%s0 + $0x108] sm:$0xf]
  %v87 = vld [vmem:[%s0 + $0x10c] sm:$0xf]
  %v88 = vld [vmem:[%s0 + $0x80] sm:$0xf]
  %v89 = vld [vmem:[%s0 + $0x84] sm:$0xf]
  %v90 = vld [vmem:[%s0 + $0x110] sm:$0xf]
  %v91 = vld [vmem:[%s0 + $0x114] sm:$0xf]
  %v92 = vld [vmem:[%s0 + $0x88] sm:$0xf]
  %v93 = vld [vmem:[%s0 + $0x8c] sm:$0xf]
  %v94 = vld [vmem:[%s0 + $0x118] sm:$0xf]
  %v95 = vld [vmem:[%s0 + $0x11c] sm:$0xf]
  %v96 = vld [vmem:[%s1] sm:$0xf]
  %v97 = vld [vmem:[%s1 + $0x4] sm:$0xf]
  %v98 = vld [vmem:[%s1 + $0x8] sm:$0xf]
  %v99 = vld [vmem:[%s1 + $0xc] sm:$0xf]
  %v100 = vld [vmem:[%s1 + $0x10] sm:$0xf]
  %v101 = vld [vmem:[%s1 + $0x14] sm:$0xf]
  %v102 = vld [vmem:[%s1 + $0x18] sm:$0xf]
  %v103 = vld [vmem:[%s1 + $0x1c] sm:$0xf]
  %v104 = vld [vmem:[%s1 + $0x20] sm:$0xf]
  %v105 = vld [vmem:[%s1 + $0x24] sm:$0xf]
  %v106 = vld [vmem:[%s1 + $0x28] sm:$0xf]
  %v107 = vld [vmem:[%s1 + $0x2c] sm:$0xf]
  %v108 = vld [vmem:[%s1 + $0x30] sm:$0xf]
  %v109 = vld [vmem:[%s1 + $0x34] sm:$0xf]
  %v110 = vld [vmem:[%s1 + $0x38] sm:$0xf]
  %v111 = vld [vmem:[%s1 + $0x3c] sm:$0xf]
  %v112 = vld [vmem:[%s1 + $0x40] sm:$0xf]
  %v113 = vld [vmem:[%s1 + $0x44] sm:$0xf]
  %v114 = vld [vmem:[%s1 + $0x48] sm:$0xf]
  %v115 = vld [vmem:[%s1 + $0x4c] sm:$0xf]
  %v116 = vld [vmem:[%s1 + $0x50] sm:$0xf]
  %v117 = vld [vmem:[%s1 + $0x54] sm:$0xf]
  %v118 = vld [vmem:[%s1 + $0x58] sm:$0xf]
  %v119 = vld [vmem:[%s1 + $0x5c] sm:$0xf]
  %v120 = vld [vmem:[%s1 + $0x60] sm:$0xf]
  %v121 = vld [vmem:[%s1 + $0x64] sm:$0xf]
  %v122 = vld [vmem:[%s1 + $0x68] sm:$0xf]
  %v123 = vld [vmem:[%s1 + $0x6c] sm:$0xf]
  %v124 = vld [vmem:[%s1 + $0x70] sm:$0xf]
  %v125 = vld [vmem:[%s1 + $0x74] sm:$0xf]
  %v126 = vld [vmem:[%s1 + $0x78] sm:$0xf]
  %v127 = vld [vmem:[%s1 + $0x7c] sm:$0xf]
  %v128 = vld [vmem:[%s1 + $0x90] sm:$0xf]
  %v129 = vld [vmem:[%s1 + $0x94] sm:$0xf]
  %v130 = vld [vmem:[%s1 + $0x98] sm:$0xf]
  %v131 = vld [vmem:[%s1 + $0x9c] sm:$0xf]
  %v132 = vld [vmem:[%s1 + $0xa0] sm:$0xf]
  %v133 = vld [vmem:[%s1 + $0xa4] sm:$0xf]
  %v134 = vld [vmem:[%s1 + $0xa8] sm:$0xf]
  %v135 = vld [vmem:[%s1 + $0xac] sm:$0xf]
  %v136 = vld [vmem:[%s1 + $0xb0] sm:$0xf]
  %v137 = vld [vmem:[%s1 + $0xb4] sm:$0xf]
  %v138 = vld [vmem:[%s1 + $0xb8] sm:$0xf]
  %v139 = vld [vmem:[%s1 + $0xbc] sm:$0xf]
  %v140 = vld [vmem:[%s1 + $0xc0] sm:$0xf]
  %v141 = vld [vmem:[%s1 + $0xc4] sm:$0xf]
  %v142 = vld [vmem:[%s1 + $0xc8] sm:$0xf]
  %v143 = vld [vmem:[%s1 + $0xcc] sm:$0xf]
  %v144 = vld [vmem:[%s1 + $0xd0] sm:$0xf]
  %v145 = vld [vmem:[%s1 + $0xd4] sm:$0xf]
  %v146 = vld [vmem:[%s1 + $0xd8] sm:$0xf]
  %v147 = vld [vmem:[%s1 + $0xdc] sm:$0xf]
  %v148 = vld [vmem:[%s1 + $0xe0] sm:$0xf]
  %v149 = vld [vmem:[%s1 + $0xe4] sm:$0xf]
  %v150 = vld [vmem:[%s1 + $0xe8] sm:$0xf]
  %v151 = vld [vmem:[%s1 + $0xec] sm:$0xf]
  %v152 = vld [vmem:[%s1 + $0xf0] sm:$0xf]
  %v153 = vld [vmem:[%s1 + $0xf4] sm:$0xf]
  %v154 = vld [vmem:[%s1 + $0xf8] sm:$0xf]
  %v155 = vld [vmem:[%s1 + $0xfc] sm:$0xf]
  %v156 = vld [vmem:[%s1 + $0x100] sm:$0xf]
  %v157 = vld [vmem:[%s1 + $0x104] sm:$0xf]
  %v158 = vld [vmem:[%s1 + $0x108] sm:$0xf]
  %v159 = vld [vmem:[%s1 + $0x10c] sm:$0xf]
  %v160 = vld [vmem:[%s1 + $0x80] sm:$0xf]
  %v161 = vld [vmem:[%s1 + $0x84] sm:$0xf]
  %v162 = vld [vmem:[%s1 + $0x110] sm:$0xf]
  %v163 = vld [vmem:[%s1 + $0x114] sm:$0xf]
  %v164 = vld [vmem:[%s1 + $0x88] sm:$0xf]
  %v165 = vld [vmem:[%s1 + $0x8c] sm:$0xf]
  %v166 = vld [vmem:[%s1 + $0x118] sm:$0xf]
  %v167 = vld [vmem:[%s1 + $0x11c] sm:$0xf]
  %v168 = vld [vmem:[%s2] sm:$0xf]
  %v169 = vld [vmem:[%s2 + $0x4] sm:$0xf]
  %v170 = vld [vmem:[%s2 + $0x8] sm:$0xf]
  %v171 = vld [vmem:[%s2 + $0xc] sm:$0xf]
  %v172 = vld [vmem:[%s2 + $0x10] sm:$0xf]
  %v173 = vld [vmem:[%s2 + $0x14] sm:$0xf]
  %v174 = vld [vmem:[%s2 + $0x18] sm:$0xf]
  %v175 = vld [vmem:[%s2 + $0x1c] sm:$0xf]
  %v176 = vld [vmem:[%s2 + $0x20] sm:$0xf]
  %v177 = vld [vmem:[%s2 + $0x24] sm:$0xf]
  %v178 = vld [vmem:[%s2 + $0x28] sm:$0xf]
  %v179 = vld [vmem:[%s2 + $0x2c] sm:$0xf]
  %v180 = vld [vmem:[%s2 + $0x30] sm:$0xf]
  %v181 = vld [vmem:[%s2 + $0x34] sm:$0xf]
  %v182 = vld [vmem:[%s2 + $0x38] sm:$0xf]
  %v183 = vld [vmem:[%s2 + $0x3c] sm:$0xf]
  %v184 = vld [vmem:[%s2 + $0x40] sm:$0xf]
  %v185 = vld [vmem:[%s2 + $0x44] sm:$0xf]
  %v186 = vld [vmem:[%s2 + $0x48] sm:$0xf]
  %v187 = vld [vmem:[%s2 + $0x4c] sm:$0xf]
  %v188 = vld [vmem:[%s2 + $0x50] sm:$0xf]
  %v189 = vld [vmem:[%s2 + $0x54] sm:$0xf]
  %v190 = vld [vmem:[%s2 + $0x58] sm:$0xf]
  %v191 = vld [vmem:[%s2 + $0x5c] sm:$0xf]
  %v192 = vld [vmem:[%s2 + $0x60] sm:$0xf]
  %v193 = vld [vmem:[%s2 + $0x64] sm:$0xf]
  %v194 = vld [vmem:[%s2 + $0x68] sm:$0xf]
  %v195 = vld [vmem:[%s2 + $0x6c] sm:$0xf]
  %v196 = vld [vmem:[%s2 + $0x70] sm:$0xf]
  %v197 = vld [vmem:[%s2 + $0x74] sm:$0xf]
  %v198 = vld [vmem:[%s2 + $0x78] sm:$0xf]
  %v199 = vld [vmem:[%s2 + $0x7c] sm:$0xf]
  %v200 = vld [vmem:[%s2 + $0x90] sm:$0xf]
  %v201 = vld [vmem:[%s2 + $0x94] sm:$0xf]
  %v202 = vld [vmem:[%s2 + $0x98] sm:$0xf]
  %v203 = vld [vmem:[%s2 + $0x9c] sm:$0xf]
  %v204 = vld [vmem:[%s2 + $0xa0] sm:$0xf]
  %v205 = vld [vmem:[%s2 + $0xa4] sm:$0xf]
  %v206 = vld [vmem:[%s2 + $0xa8] sm:$0xf]
  %v207 = vld [vmem:[%s2 + $0xac] sm:$0xf]
  %v208 = vld [vmem:[%s2 + $0xb0] sm:$0xf]
  %v209 = vld [vmem:[%s2 + $0xb4] sm:$0xf]
  %v210 = vld [vmem:[%s2 + $0xb8] sm:$0xf]
  %v211 = vld [vmem:[%s2 + $0xbc] sm:$0xf]
  %v212 = vld [vmem:[%s2 + $0xc0] sm:$0xf]
  %v213 = vld [vmem:[%s2 + $0xc4] sm:$0xf]
  %v214 = vld [vmem:[%s2 + $0xc8] sm:$0xf]
  %v215 = vld [vmem:[%s2 + $0xcc] sm:$0xf]
  %v216 = vld [vmem:[%s2 + $0xd0] sm:$0xf]
  %v217 = vld [vmem:[%s2 + $0xd4] sm:$0xf]
  %v218 = vld [vmem:[%s2 + $0xd8] sm:$0xf]
  %v219 = vld [vmem:[%s2 + $0xdc] sm:$0xf]
  %v220 = vld [vmem:[%s2 + $0xe0] sm:$0xf]
  %v221 = vld [vmem:[%s2 + $0xe4] sm:$0xf]
  %v222 = vld [vmem:[%s2 + $0xe8] sm:$0xf]
  %v223 = vld [vmem:[%s2 + $0xec] sm:$0xf]
  %v224 = vld [vmem:[%s2 + $0xf0] sm:$0xf]
  %v225 = vld [vmem:[%s2 + $0xf4] sm:$0xf]
  %v226 = vld [vmem:[%s2 + $0xf8] sm:$0xf]
  %v227 = vld [vmem:[%s2 + $0xfc] sm:$0xf]
  %v228 = vld [vmem:[%s2 + $0x100] sm:$0xf]
  %v229 = vld [vmem:[%s2 + $0x104] sm:$0xf]
  %v230 = vld [vmem:[%s2 + $0x108] sm:$0xf]
  %v231 = vld [vmem:[%s2 + $0x10c] sm:$0xf]
  %v232 = vld [vmem:[%s2 + $0x80] sm:$0xf]
  %v233 = vld [vmem:[%s2 + $0x84] sm:$0xf]
  %v234 = vld [vmem:[%s2 + $0x110] sm:$0xf]
  %v235 = vld [vmem:[%s2 + $0x114] sm:$0xf]
  %v236 = vld [vmem:[%s2 + $0x88] sm:$0xf]
  %v237 = vld [vmem:[%s2 + $0x8c] sm:$0xf]
  %v238 = vld [vmem:[%s2 + $0x118] sm:$0xf]
  %v239 = vld [vmem:[%s2 + $0x11c] sm:$0xf]
  %v240 = vld [vmem:[%s3] sm:$0xf]
  %v241 = vld [vmem:[%s3 + $0x4] sm:$0xf]
  %v242 = vld [vmem:[%s3 + $0x8] sm:$0xf]
  %v243 = vld [vmem:[%s3 + $0xc] sm:$0xf]
  %v244 = vld [vmem:[%s3 + $0x10] sm:$0xf]
  %v245 = vld [vmem:[%s3 + $0x14] sm:$0xf]
  %v246 = vld [vmem:[%s3 + $0x18] sm:$0xf]
  %v247 = vld [vmem:[%s3 + $0x1c] sm:$0xf]
  %v248 = vld [vmem:[%s3 + $0x20] sm:$0xf]
  %v249 = vld [vmem:[%s3 + $0x24] sm:$0xf]
  %v250 = vld [vmem:[%s3 + $0x28] sm:$0xf]
  %v251 = vld [vmem:[%s3 + $0x2c] sm:$0xf]
  %v252 = vld [vmem:[%s3 + $0x30] sm:$0xf]
  %v253 = vld [vmem:[%s3 + $0x34] sm:$0xf]
  %v254 = vld [vmem:[%s3 + $0x38] sm:$0xf]
  %v255 = vld [vmem:[%s3 + $0x3c] sm:$0xf]
  %v256 = vld [vmem:[%s3 + $0x40] sm:$0xf]
  %v257 = vld [vmem:[%s3 + $0x44] sm:$0xf]
  %v258 = vld [vmem:[%s3 + $0x48] sm:$0xf]
  %v259 = vld [vmem:[%s3 + $0x4c] sm:$0xf]
  %v260 = vld [vmem:[%s3 + $0x50] sm:$0xf]
  %v261 = vld [vmem:[%s3 + $0x54] sm:$0xf]
  %v262 = vld [vmem:[%s3 + $0x58] sm:$0xf]
  %v263 = vld [vmem:[%s3 + $0x5c] sm:$0xf]
  %v264 = vld [vmem:[%s3 + $0x60] sm:$0xf]
  %v265 = vld [vmem:[%s3 + $0x64] sm:$0xf]
  %v266 = vld [vmem:[%s3 + $0x68] sm:$0xf]
  %v267 = vld [vmem:[%s3 + $0x6c] sm:$0xf]
  %v268 = vld [vmem:[%s3 + $0x70] sm:$0xf]
  %v269 = vld [vmem:[%s3 + $0x74] sm:$0xf]
  %v270 = vld [vmem:[%s3 + $0x78] sm:$0xf]
  %v271 = vld [vmem:[%s3 + $0x7c] sm:$0xf]
  %v272 = vld [vmem:[%s3 + $0x90] sm:$0xf]
  %v273 = vld [vmem:[%s3 + $0x94] sm:$0xf]
  %v274 = vld [vmem:[%s3 + $0x98] sm:$0xf]
  %v275 = vld [vmem:[%s3 + $0x9c] sm:$0xf]
  %v276 = vld [vmem:[%s3 + $0xa0] sm:$0xf]
  %v277 = vld [vmem:[%s3 + $0xa4] sm:$0xf]
  %v278 = vld [vmem:[%s3 + $0xa8] sm:$0xf]
  %v279 = vld [vmem:[%s3 + $0xac] sm:$0xf]
  %v280 = vld [vmem:[%s3 + $0xb0] sm:$0xf]
  %v281 = vld [vmem:[%s3 + $0xb4] sm:$0xf]
  %v282 = vld [vmem:[%s3 + $0xb8] sm:$0xf]
  %v283 = vld [vmem:[%s3 + $0xbc] sm:$0xf]
  %v284 = vld [vmem:[%s3 + $0xc0] sm:$0xf]
  %v285 = vld [vmem:[%s3 + $0xc4] sm:$0xf]
  %v286 = vld [vmem:[%s3 + $0xc8] sm:$0xf]
  %v287 = vld [vmem:[%s3 + $0xcc] sm:$0xf]
  %v288 = vld [vmem:[%s3 + $0xd0] sm:$0xf]
  %v289 = vld [vmem:[%s3 + $0xd4] sm:$0xf]
  %v290 = vld [vmem:[%s3 + $0xd8] sm:$0xf]
  %v291 = vld [vmem:[%s3 + $0xdc] sm:$0xf]
  %v292 = vld [vmem:[%s3 + $0xe0] sm:$0xf]
  %v293 = vld [vmem:[%s3 + $0xe4] sm:$0xf]
  %v294 = vld [vmem:[%s3 + $0xe8] sm:$0xf]
  %v295 = vld [vmem:[%s3 + $0xec] sm:$0xf]
  %v296 = vld [vmem:[%s3 + $0xf0] sm:$0xf]
  %v297 = vld [vmem:[%s3 + $0xf4] sm:$0xf]
  %v298 = vld [vmem:[%s3 + $0xf8] sm:$0xf]
  %v299 = vld [vmem:[%s3 + $0xfc] sm:$0xf]
  %v300 = vld [vmem:[%s3 + $0x100] sm:$0xf]
  %v301 = vld [vmem:[%s3 + $0x104] sm:$0xf]
  %v302 = vld [vmem:[%s3 + $0x108] sm:$0xf]
  %v303 = vld [vmem:[%s3 + $0x10c] sm:$0xf]
  %v304 = vld [vmem:[%s3 + $0x80] sm:$0xf]
  %v305 = vld [vmem:[%s3 + $0x84] sm:$0xf]
  %v306 = vld [vmem:[%s3 + $0x110] sm:$0xf]
  %v307 = vld [vmem:[%s3 + $0x114] sm:$0xf]
  %v308 = vld [vmem:[%s3 + $0x88] sm:$0xf]
  %v309 = vld [vmem:[%s3 + $0x8c] sm:$0xf]
  %v310 = vld [vmem:[%s3 + $0x118] sm:$0xf]
  %v311 = vld [vmem:[%s3 + $0x11c] sm:$0xf]
  %v376 = vunpack.c.l.b16 %v24
  %v377 = vunpack.c.l.b16 %v25
  %v378 = vunpack.c.l.b16 %v26
  %v379 = vunpack.c.l.b16 %v27
  %v380 = vunpack.c.l.b16 %v28
  %v381 = vunpack.c.l.b16 %v29
  %v382 = vunpack.c.l.b16 %v30
  %v383 = vunpack.c.l.b16 %v31
  %v384 = vunpack.c.l.b16 %v32
  %v385 = vunpack.c.l.b16 %v33
  %v386 = vunpack.c.l.b16 %v34
  %v387 = vunpack.c.l.b16 %v35
  %v388 = vunpack.c.l.b16 %v36
  %v389 = vunpack.c.l.b16 %v37
  %v390 = vunpack.c.l.b16 %v38
  %v391 = vunpack.c.l.b16 %v39
  %v392 = vunpack.c.l.b16 %v40
  %v393 = vunpack.c.l.b16 %v41
  %v394 = vunpack.c.l.b16 %v42
  %v395 = vunpack.c.l.b16 %v43
  %v396 = vunpack.c.l.b16 %v44
  %v397 = vunpack.c.l.b16 %v45
  %v398 = vunpack.c.l.b16 %v46
  %v399 = vunpack.c.l.b16 %v47
  %v400 = vunpack.c.l.b16 %v48
  %v401 = vunpack.c.l.b16 %v49
  %v402 = vunpack.c.l.b16 %v50
  %v403 = vunpack.c.l.b16 %v51
  %v404 = vunpack.c.l.b16 %v52
  %v405 = vunpack.c.l.b16 %v53
  %v406 = vunpack.c.l.b16 %v54
  %v407 = vunpack.c.l.b16 %v55
  %v408 = vunpack.c.l.b16 %v56
  %v409 = vunpack.c.l.b16 %v57
  %v410 = vunpack.c.l.b16 %v58
  %v411 = vunpack.c.l.b16 %v59
  %v412 = vunpack.c.l.b16 %v60
  %v413 = vunpack.c.l.b16 %v61
  %v414 = vunpack.c.l.b16 %v62
  %v415 = vunpack.c.l.b16 %v63
  %v416 = vunpack.c.l.b16 %v64
  %v417 = vunpack.c.l.b16 %v65
  %v418 = vunpack.c.l.b16 %v66
  %v419 = vunpack.c.l.b16 %v67
  %v420 = vunpack.c.l.b16 %v68
  %v421 = vunpack.c.l.b16 %v69
  %v422 = vunpack.c.l.b16 %v70
  %v423 = vunpack.c.l.b16 %v71
  %v424 = vunpack.c.l.b16 %v72
  %v425 = vunpack.c.l.b16 %v73
  %v426 = vunpack.c.l.b16 %v74
  %v427 = vunpack.c.l.b16 %v75
  %v428 = vunpack.c.l.b16 %v76
  %v429 = vunpack.c.l.b16 %v77
  %v430 = vunpack.c.l.b16 %v78
  %v431 = vunpack.c.l.b16 %v79
  %v432 = vunpack.c.l.b16 %v80
  %v433 = vunpack.c.l.b16 %v81
  %v434 = vunpack.c.l.b16 %v82
  %v435 = vunpack.c.l.b16 %v83
  %v436 = vunpack.c.l.b16 %v84
  %v437 = vunpack.c.l.b16 %v85
  %v438 = vunpack.c.l.b16 %v86
  %v439 = vunpack.c.l.b16 %v87
  %v440 = vpack.c.b16 %v377, %v376
  %v441 = vpack.c.b16 %v379, %v378
  %v442 = vpack.c.b16 %v381, %v380
  %v443 = vpack.c.b16 %v383, %v382
  %v444 = vpack.c.b16 %v385, %v384
  %v445 = vpack.c.b16 %v387, %v386
  %v446 = vpack.c.b16 %v389, %v388
  %v447 = vpack.c.b16 %v391, %v390
  %v448 = vpack.c.b16 %v393, %v392
  %v449 = vpack.c.b16 %v395, %v394
  %v450 = vpack.c.b16 %v397, %v396
  %v451 = vpack.c.b16 %v399, %v398
  %v452 = vpack.c.b16 %v401, %v400
  %v453 = vpack.c.b16 %v403, %v402
  %v454 = vpack.c.b16 %v405, %v404
  %v455 = vpack.c.b16 %v407, %v406
  %v456 = vpack.c.b16 %v409, %v408
  %v457 = vpack.c.b16 %v411, %v410
  %v458 = vpack.c.b16 %v413, %v412
  %v459 = vpack.c.b16 %v415, %v414
  %v460 = vpack.c.b16 %v417, %v416
  %v461 = vpack.c.b16 %v419, %v418
  %v462 = vpack.c.b16 %v421, %v420
  %v463 = vpack.c.b16 %v423, %v422
  %v464 = vpack.c.b16 %v425, %v424
  %v465 = vpack.c.b16 %v427, %v426
  %v466 = vpack.c.b16 %v429, %v428
  %v467 = vpack.c.b16 %v431, %v430
  %v468 = vpack.c.b16 %v433, %v432
  %v469 = vpack.c.b16 %v435, %v434
  %v470 = vpack.c.b16 %v437, %v436
  %v471 = vpack.c.b16 %v439, %v438
  %v536 = vunpack.c.l.b16 %v168
  %v537 = vunpack.c.l.b16 %v169
  %v538 = vunpack.c.l.b16 %v170
  %v539 = vunpack.c.l.b16 %v171
  %v540 = vunpack.c.l.b16 %v172
  %v541 = vunpack.c.l.b16 %v173
  %v542 = vunpack.c.l.b16 %v174
  %v543 = vunpack.c.l.b16 %v175
  %v544 = vunpack.c.l.b16 %v176
  %v545 = vunpack.c.l.b16 %v177
  %v546 = vunpack.c.l.b16 %v178
  %v547 = vunpack.c.l.b16 %v179
  %v548 = vunpack.c.l.b16 %v180
  %v549 = vunpack.c.l.b16 %v181
  %v550 = vunpack.c.l.b16 %v182
  %v551 = vunpack.c.l.b16 %v183
  %v552 = vunpack.c.l.b16 %v184
  %v553 = vunpack.c.l.b16 %v185
  %v554 = vunpack.c.l.b16 %v186
  %v555 = vunpack.c.l.b16 %v187
  %v556 = vunpack.c.l.b16 %v188
  %v557 = vunpack.c.l.b16 %v189
  %v558 = vunpack.c.l.b16 %v190
  %v559 = vunpack.c.l.b16 %v191
  %v560 = vunpack.c.l.b16 %v192
  %v561 = vunpack.c.l.b16 %v193
  %v562 = vunpack.c.l.b16 %v194
  %v563 = vunpack.c.l.b16 %v195
  %v564 = vunpack.c.l.b16 %v196
  %v565 = vunpack.c.l.b16 %v197
  %v566 = vunpack.c.l.b16 %v198
  %v567 = vunpack.c.l.b16 %v199
  %v568 = vunpack.c.l.b16 %v200
  %v569 = vunpack.c.l.b16 %v201
  %v570 = vunpack.c.l.b16 %v202
  %v571 = vunpack.c.l.b16 %v203
  %v572 = vunpack.c.l.b16 %v204
  %v573 = vunpack.c.l.b16 %v205
  %v574 = vunpack.c.l.b16 %v206
  %v575 = vunpack.c.l.b16 %v207
  %v576 = vunpack.c.l.b16 %v208
  %v577 = vunpack.c.l.b16 %v209
  %v578 = vunpack.c.l.b16 %v210
  %v579 = vunpack.c.l.b16 %v211
  %v580 = vunpack.c.l.b16 %v212
  %v581 = vunpack.c.l.b16 %v213
  %v582 = vunpack.c.l.b16 %v214
  %v583 = vunpack.c.l.b16 %v215
  %v584 = vunpack.c.l.b16 %v216
  %v585 = vunpack.c.l.b16 %v217
  %v586 = vunpack.c.l.b16 %v218
  %v587 = vunpack.c.l.b16 %v219
  %v588 = vunpack.c.l.b16 %v220
  %v589 = vunpack.c.l.b16 %v221
  %v590 = vunpack.c.l.b16 %v222
  %v591 = vunpack.c.l.b16 %v223
  %v592 = vunpack.c.l.b16 %v224
  %v593 = vunpack.c.l.b16 %v225
  %v594 = vunpack.c.l.b16 %v226
  %v595 = vunpack.c.l.b16 %v227
  %v596 = vunpack.c.l.b16 %v228
  %v597 = vunpack.c.l.b16 %v229
  %v598 = vunpack.c.l.b16 %v230
  %v599 = vunpack.c.l.b16 %v231
  %v600 = vpack.c.b16 %v537, %v536
  %v601 = vpack.c.b16 %v539, %v538
  %v602 = vpack.c.b16 %v541, %v540
  %v603 = vpack.c.b16 %v543, %v542
  %v604 = vpack.c.b16 %v545, %v544
  %v605 = vpack.c.b16 %v547, %v546
  %v606 = vpack.c.b16 %v549, %v548
  %v607 = vpack.c.b16 %v551, %v550
  %v608 = vpack.c.b16 %v553, %v552
  %v609 = vpack.c.b16 %v555, %v554
  %v610 = vpack.c.b16 %v557, %v556
  %v611 = vpack.c.b16 %v559, %v558
  %v612 = vpack.c.b16 %v561, %v560
  %v613 = vpack.c.b16 %v563, %v562
  %v614 = vpack.c.b16 %v565, %v564
  %v615 = vpack.c.b16 %v567, %v566
  %v616 = vpack.c.b16 %v569, %v568
  %v617 = vpack.c.b16 %v571, %v570
  %v618 = vpack.c.b16 %v573, %v572
  %v619 = vpack.c.b16 %v575, %v574
  %v620 = vpack.c.b16 %v577, %v576
  %v621 = vpack.c.b16 %v579, %v578
  %v622 = vpack.c.b16 %v581, %v580
  %v623 = vpack.c.b16 %v583, %v582
  %v624 = vpack.c.b16 %v585, %v584
  %v625 = vpack.c.b16 %v587, %v586
  %v626 = vpack.c.b16 %v589, %v588
  %v627 = vpack.c.b16 %v591, %v590
  %v628 = vpack.c.b16 %v593, %v592
  %v629 = vpack.c.b16 %v595, %v594
  %v630 = vpack.c.b16 %v597, %v596
  %v631 = vpack.c.b16 %v599, %v598
  %632 = vrot.lane.b32.xlu0 %v600, 40
  %v633 = vpop.permute.xlu0 %632
  %634 = vrot.lane.b32.xlu0 %v601, 40
  %v635 = vpop.permute.xlu0 %634
  %636 = vrot.lane.b32.xlu0 %v602, 40
  %v637 = vpop.permute.xlu0 %636
  %638 = vrot.lane.b32.xlu0 %v603, 40
  %v639 = vpop.permute.xlu0 %638
  %640 = vrot.lane.b32.xlu0 %v604, 40
  %v641 = vpop.permute.xlu0 %640
  %642 = vrot.lane.b32.xlu0 %v605, 40
  %v643 = vpop.permute.xlu0 %642
  %644 = vrot.lane.b32.xlu0 %v606, 40
  %v645 = vpop.permute.xlu0 %644
  %646 = vrot.lane.b32.xlu0 %v607, 40
  %v647 = vpop.permute.xlu0 %646
  %648 = vrot.lane.b32.xlu0 %v608, 40
  %v649 = vpop.permute.xlu0 %648
  %650 = vrot.lane.b32.xlu0 %v609, 40
  %v651 = vpop.permute.xlu0 %650
  %652 = vrot.lane.b32.xlu0 %v610, 40
  %v653 = vpop.permute.xlu0 %652
  %654 = vrot.lane.b32.xlu0 %v611, 40
  %v655 = vpop.permute.xlu0 %654
  %656 = vrot.lane.b32.xlu0 %v612, 40
  %v657 = vpop.permute.xlu0 %656
  %658 = vrot.lane.b32.xlu0 %v613, 40
  %v659 = vpop.permute.xlu0 %658
  %660 = vrot.lane.b32.xlu0 %v614, 40
  %v661 = vpop.permute.xlu0 %660
  %662 = vrot.lane.b32.xlu0 %v615, 40
  %v663 = vpop.permute.xlu0 %662
  %664 = vrot.lane.b32.xlu0 %v616, 40
  %v665 = vpop.permute.xlu0 %664
  %666 = vrot.lane.b32.xlu0 %v617, 40
  %v667 = vpop.permute.xlu0 %666
  %668 = vrot.lane.b32.xlu0 %v618, 40
  %v669 = vpop.permute.xlu0 %668
  %670 = vrot.lane.b32.xlu0 %v619, 40
  %v671 = vpop.permute.xlu0 %670
  %672 = vrot.lane.b32.xlu0 %v620, 40
  %v673 = vpop.permute.xlu0 %672
  %674 = vrot.lane.b32.xlu0 %v621, 40
  %v675 = vpop.permute.xlu0 %674
  %676 = vrot.lane.b32.xlu0 %v622, 40
  %v677 = vpop.permute.xlu0 %676
  %678 = vrot.lane.b32.xlu0 %v623, 40
  %v679 = vpop.permute.xlu0 %678
  %680 = vrot.lane.b32.xlu0 %v624, 40
  %v681 = vpop.permute.xlu0 %680
  %682 = vrot.lane.b32.xlu0 %v625, 40
  %v683 = vpop.permute.xlu0 %682
  %684 = vrot.lane.b32.xlu0 %v626, 40
  %v685 = vpop.permute.xlu0 %684
  %686 = vrot.lane.b32.xlu0 %v627, 40
  %v687 = vpop.permute.xlu0 %686
  %688 = vrot.lane.b32.xlu0 %v628, 40
  %v689 = vpop.permute.xlu0 %688
  %690 = vrot.lane.b32.xlu0 %v629, 40
  %v691 = vpop.permute.xlu0 %690
  %692 = vrot.lane.b32.xlu0 %v630, 40
  %v693 = vpop.permute.xlu0 %692
  %694 = vrot.lane.b32.xlu0 %v631, 40
  %v695 = vpop.permute.xlu0 %694
  %v700 = vunpack.c.l.b16 %v88
  %v701 = vunpack.c.l.b16 %v89
  %v702 = vunpack.c.l.b16 %v90
  %v703 = vunpack.c.l.b16 %v91
  %v704 = vpack.c.b16 %v701, %v700
  %v705 = vpack.c.b16 %v703, %v702
  %706 = vrot.lane.b32.xlu0 %v441, 80
  %v707 = vpop.permute.xlu0 %706
  %708 = vrot.lane.b32.xlu0 %v442, 80
  %v709 = vpop.permute.xlu0 %708
  %710 = vrot.lane.b32.xlu0 %v443, 80
  %v711 = vpop.permute.xlu0 %710
  %712 = vrot.lane.b32.xlu0 %v444, 80
  %v713 = vpop.permute.xlu0 %712
  %714 = vrot.lane.b32.xlu0 %v445, 80
  %v715 = vpop.permute.xlu0 %714
  %716 = vrot.lane.b32.xlu0 %v446, 80
  %v717 = vpop.permute.xlu0 %716
  %718 = vrot.lane.b32.xlu0 %v447, 80
  %v719 = vpop.permute.xlu0 %718
  %720 = vrot.lane.b32.xlu0 %v448, 80
  %v721 = vpop.permute.xlu0 %720
  %722 = vrot.lane.b32.xlu0 %v449, 80
  %v723 = vpop.permute.xlu0 %722
  %724 = vrot.lane.b32.xlu0 %v450, 80
  %v725 = vpop.permute.xlu0 %724
  %726 = vrot.lane.b32.xlu0 %v451, 80
  %v727 = vpop.permute.xlu0 %726
  %728 = vrot.lane.b32.xlu0 %v452, 80
  %v729 = vpop.permute.xlu0 %728
  %730 = vrot.lane.b32.xlu0 %v453, 80
  %v731 = vpop.permute.xlu0 %730
  %732 = vrot.lane.b32.xlu0 %v454, 80
  %v733 = vpop.permute.xlu0 %732
  %734 = vrot.lane.b32.xlu0 %v455, 80
  %v735 = vpop.permute.xlu0 %734
  %736 = vrot.lane.b32.xlu0 %v704, 80
  %v737 = vpop.permute.xlu0 %736
  %738 = vrot.lane.b32.xlu0 %v457, 80
  %v739 = vpop.permute.xlu0 %738
  %740 = vrot.lane.b32.xlu0 %v458, 80
  %v741 = vpop.permute.xlu0 %740
  %742 = vrot.lane.b32.xlu0 %v459, 80
  %v743 = vpop.permute.xlu0 %742
  %744 = vrot.lane.b32.xlu0 %v460, 80
  %v745 = vpop.permute.xlu0 %744
  %746 = vrot.lane.b32.xlu0 %v461, 80
  %v747 = vpop.permute.xlu0 %746
  %748 = vrot.lane.b32.xlu0 %v462, 80
  %v749 = vpop.permute.xlu0 %748
  %750 = vrot.lane.b32.xlu0 %v463, 80
  %v751 = vpop.permute.xlu0 %750
  %752 = vrot.lane.b32.xlu0 %v464, 80
  %v753 = vpop.permute.xlu0 %752
  %754 = vrot.lane.b32.xlu0 %v465, 80
  %v755 = vpop.permute.xlu0 %754
  %756 = vrot.lane.b32.xlu0 %v466, 80
  %v757 = vpop.permute.xlu0 %756
  %758 = vrot.lane.b32.xlu0 %v467, 80
  %v759 = vpop.permute.xlu0 %758
  %760 = vrot.lane.b32.xlu0 %v468, 80
  %v761 = vpop.permute.xlu0 %760
  %762 = vrot.lane.b32.xlu0 %v469, 80
  %v763 = vpop.permute.xlu0 %762
  %764 = vrot.lane.b32.xlu0 %v470, 80
  %v765 = vpop.permute.xlu0 %764
  %766 = vrot.lane.b32.xlu0 %v471, 80
  %v767 = vpop.permute.xlu0 %766
  %768 = vrot.lane.b32.xlu0 %v705, 80
  %v769 = vpop.permute.xlu0 %768
  %v774 = vunpack.c.l.b16 %v232
  %v775 = vunpack.c.l.b16 %v233
  %v776 = vunpack.c.l.b16 %v234
  %v777 = vunpack.c.l.b16 %v235
  %v778 = vpack.c.b16 %v775, %v774
  %v779 = vpack.c.b16 %v777, %v776
  %780 = vrot.lane.b32.xlu0 %v601, 120
  %v781 = vpop.permute.xlu0 %780
  %782 = vrot.lane.b32.xlu0 %v602, 120
  %v783 = vpop.permute.xlu0 %782
  %784 = vrot.lane.b32.xlu0 %v603, 120
  %v785 = vpop.permute.xlu0 %784
  %786 = vrot.lane.b32.xlu0 %v604, 120
  %v787 = vpop.permute.xlu0 %786
  %788 = vrot.lane.b32.xlu0 %v605, 120
  %v789 = vpop.permute.xlu0 %788
  %790 = vrot.lane.b32.xlu0 %v606, 120
  %v791 = vpop.permute.xlu0 %790
  %792 = vrot.lane.b32.xlu0 %v607, 120
  %v793 = vpop.permute.xlu0 %792
  %794 = vrot.lane.b32.xlu0 %v608, 120
  %v795 = vpop.permute.xlu0 %794
  %796 = vrot.lane.b32.xlu0 %v609, 120
  %v797 = vpop.permute.xlu0 %796
  %798 = vrot.lane.b32.xlu0 %v610, 120
  %v799 = vpop.permute.xlu0 %798
  %800 = vrot.lane.b32.xlu0 %v611, 120
  %v801 = vpop.permute.xlu0 %800
  %802 = vrot.lane.b32.xlu0 %v612, 120
  %v803 = vpop.permute.xlu0 %802
  %804 = vrot.lane.b32.xlu0 %v613, 120
  %v805 = vpop.permute.xlu0 %804
  %806 = vrot.lane.b32.xlu0 %v614, 120
  %v807 = vpop.permute.xlu0 %806
  %808 = vrot.lane.b32.xlu0 %v615, 120
  %v809 = vpop.permute.xlu0 %808
  %810 = vrot.lane.b32.xlu0 %v778, 120
  %v811 = vpop.permute.xlu0 %810
  %812 = vrot.lane.b32.xlu0 %v617, 120
  %v813 = vpop.permute.xlu0 %812
  %814 = vrot.lane.b32.xlu0 %v618, 120
  %v815 = vpop.permute.xlu0 %814
  %816 = vrot.lane.b32.xlu0 %v619, 120
  %v817 = vpop.permute.xlu0 %816
  %818 = vrot.lane.b32.xlu0 %v620, 120
  %v819 = vpop.permute.xlu0 %818
  %820 = vrot.lane.b32.xlu0 %v621, 120
  %v821 = vpop.permute.xlu0 %820
  %822 = vrot.lane.b32.xlu0 %v622, 120
  %v823 = vpop.permute.xlu0 %822
  %824 = vrot.lane.b32.xlu0 %v623, 120
  %v825 = vpop.permute.xlu0 %824
  %826 = vrot.lane.b32.xlu0 %v624, 120
  %v827 = vpop.permute.xlu0 %826
  %828 = vrot.lane.b32.xlu0 %v625, 120
  %v829 = vpop.permute.xlu0 %828
  %830 = vrot.lane.b32.xlu0 %v626, 120
  %v831 = vpop.permute.xlu0 %830
  %832 = vrot.lane.b32.xlu0 %v627, 120
  %v833 = vpop.permute.xlu0 %832
  %834 = vrot.lane.b32.xlu0 %v628, 120
  %v835 = vpop.permute.xlu0 %834
  %836 = vrot.lane.b32.xlu0 %v629, 120
  %v837 = vpop.permute.xlu0 %836
  %838 = vrot.lane.b32.xlu0 %v630, 120
  %v839 = vpop.permute.xlu0 %838
  %840 = vrot.lane.b32.xlu0 %v631, 120
  %v841 = vpop.permute.xlu0 %840
  %842 = vrot.lane.b32.xlu0 %v779, 120
  %v843 = vpop.permute.xlu0 %842
  %v848 = vunpack.c.l.b16 %v92
  %v849 = vunpack.c.l.b16 %v93
  %v850 = vunpack.c.l.b16 %v94
  %v851 = vunpack.c.l.b16 %v95
  %v852 = vpack.c.b16 %v849, %v848
  %v853 = vpack.c.b16 %v851, %v850
  %854 = vrot.lane.b32.xlu0 %v442, 32
  %v855 = vpop.permute.xlu0 %854
  %856 = vrot.lane.b32.xlu0 %v443, 32
  %v857 = vpop.permute.xlu0 %856
  %858 = vrot.lane.b32.xlu0 %v444, 32
  %v859 = vpop.permute.xlu0 %858
  %860 = vrot.lane.b32.xlu0 %v445, 32
  %v861 = vpop.permute.xlu0 %860
  %862 = vrot.lane.b32.xlu0 %v446, 32
  %v863 = vpop.permute.xlu0 %862
  %864 = vrot.lane.b32.xlu0 %v447, 32
  %v865 = vpop.permute.xlu0 %864
  %866 = vrot.lane.b32.xlu0 %v448, 32
  %v867 = vpop.permute.xlu0 %866
  %868 = vrot.lane.b32.xlu0 %v449, 32
  %v869 = vpop.permute.xlu0 %868
  %870 = vrot.lane.b32.xlu0 %v450, 32
  %v871 = vpop.permute.xlu0 %870
  %872 = vrot.lane.b32.xlu0 %v451, 32
  %v873 = vpop.permute.xlu0 %872
  %874 = vrot.lane.b32.xlu0 %v452, 32
  %v875 = vpop.permute.xlu0 %874
  %876 = vrot.lane.b32.xlu0 %v453, 32
  %v877 = vpop.permute.xlu0 %876
  %878 = vrot.lane.b32.xlu0 %v454, 32
  %v879 = vpop.permute.xlu0 %878
  %880 = vrot.lane.b32.xlu0 %v455, 32
  %v881 = vpop.permute.xlu0 %880
  %882 = vrot.lane.b32.xlu0 %v704, 32
  %v883 = vpop.permute.xlu0 %882
  %884 = vrot.lane.b32.xlu0 %v852, 32
  %v885 = vpop.permute.xlu0 %884
  %886 = vrot.lane.b32.xlu0 %v458, 32
  %v887 = vpop.permute.xlu0 %886
  %888 = vrot.lane.b32.xlu0 %v459, 32
  %v889 = vpop.permute.xlu0 %888
  %890 = vrot.lane.b32.xlu0 %v460, 32
  %v891 = vpop.permute.xlu0 %890
  %892 = vrot.lane.b32.xlu0 %v461, 32
  %v893 = vpop.permute.xlu0 %892
  %894 = vrot.lane.b32.xlu0 %v462, 32
  %v895 = vpop.permute.xlu0 %894
  %896 = vrot.lane.b32.xlu0 %v463, 32
  %v897 = vpop.permute.xlu0 %896
  %898 = vrot.lane.b32.xlu0 %v464, 32
  %v899 = vpop.permute.xlu0 %898
  %900 = vrot.lane.b32.xlu0 %v465, 32
  %v901 = vpop.permute.xlu0 %900
  %902 = vrot.lane.b32.xlu0 %v466, 32
  %v903 = vpop.permute.xlu0 %902
  %904 = vrot.lane.b32.xlu0 %v467, 32
  %v905 = vpop.permute.xlu0 %904
  %906 = vrot.lane.b32.xlu0 %v468, 32
  %v907 = vpop.permute.xlu0 %906
  %908 = vrot.lane.b32.xlu0 %v469, 32
  %v909 = vpop.permute.xlu0 %908
  %910 = vrot.lane.b32.xlu0 %v470, 32
  %v911 = vpop.permute.xlu0 %910
  %912 = vrot.lane.b32.xlu0 %v471, 32
  %v913 = vpop.permute.xlu0 %912
  %914 = vrot.lane.b32.xlu0 %v705, 32
  %v915 = vpop.permute.xlu0 %914
  %916 = vrot.lane.b32.xlu0 %v853, 32
  %v917 = vpop.permute.xlu0 %916
  %vm918 = vcmask 326656
  %v921 = vsel %vm918, %v440, %v633
  %v924 = vsel %vm918, %v441, %v635
  %v927 = vsel %vm918, %v442, %v637
  %v930 = vsel %vm918, %v443, %v639
  %v933 = vsel %vm918, %v444, %v641
  %v936 = vsel %vm918, %v445, %v643
  %v939 = vsel %vm918, %v446, %v645
  %v942 = vsel %vm918, %v447, %v647
  %v945 = vsel %vm918, %v448, %v649
  %v948 = vsel %vm918, %v449, %v651
  %v951 = vsel %vm918, %v450, %v653
  %v954 = vsel %vm918, %v451, %v655
  %v957 = vsel %vm918, %v452, %v657
  %v960 = vsel %vm918, %v453, %v659
  %v963 = vsel %vm918, %v454, %v661
  %v966 = vsel %vm918, %v455, %v663
  %v969 = vsel %vm918, %v456, %v665
  %v972 = vsel %vm918, %v457, %v667
  %v975 = vsel %vm918, %v458, %v669
  %v978 = vsel %vm918, %v459, %v671
  %v981 = vsel %vm918, %v460, %v673
  %v984 = vsel %vm918, %v461, %v675
  %v987 = vsel %vm918, %v462, %v677
  %v990 = vsel %vm918, %v463, %v679
  %v993 = vsel %vm918, %v464, %v681
  %v996 = vsel %vm918, %v465, %v683
  %v999 = vsel %vm918, %v466, %v685
  %v1002 = vsel %vm918, %v467, %v687
  %v1005 = vsel %vm918, %v468, %v689
  %v1008 = vsel %vm918, %v469, %v691
  %v1011 = vsel %vm918, %v470, %v693
  %v1014 = vsel %vm918, %v471, %v695
  %vm1015 = vcmask 654336
  %v1017 = vsel %vm1015, %v921, %v707
  %v1019 = vsel %vm1015, %v924, %v709
  %v1021 = vsel %vm1015, %v927, %v711
  %v1023 = vsel %vm1015, %v930, %v713
  %v1025 = vsel %vm1015, %v933, %v715
  %v1027 = vsel %vm1015, %v936, %v717
  %v1029 = vsel %vm1015, %v939, %v719
  %v1031 = vsel %vm1015, %v942, %v721
  %v1033 = vsel %vm1015, %v945, %v723
  %v1035 = vsel %vm1015, %v948, %v725
  %v1037 = vsel %vm1015, %v951, %v727
  %v1039 = vsel %vm1015, %v954, %v729
  %v1041 = vsel %vm1015, %v957, %v731
  %v1043 = vsel %vm1015, %v960, %v733
  %v1045 = vsel %vm1015, %v963, %v735
  %v1047 = vsel %vm1015, %v966, %v737
  %v1049 = vsel %vm1015, %v969, %v739
  %v1051 = vsel %vm1015, %v972, %v741
  %v1053 = vsel %vm1015, %v975, %v743
  %v1055 = vsel %vm1015, %v978, %v745
  %v1057 = vsel %vm1015, %v981, %v747
  %v1059 = vsel %vm1015, %v984, %v749
  %v1061 = vsel %vm1015, %v987, %v751
  %v1063 = vsel %vm1015, %v990, %v753
  %v1065 = vsel %vm1015, %v993, %v755
  %v1067 = vsel %vm1015, %v996, %v757
  %v1069 = vsel %vm1015, %v999, %v759
  %v1071 = vsel %vm1015, %v1002, %v761
  %v1073 = vsel %vm1015, %v1005, %v763
  %v1075 = vsel %vm1015, %v1008, %v765
  %v1077 = vsel %vm1015, %v1011, %v767
  %v1079 = vsel %vm1015, %v1014, %v769
  %vm1080 = vcmask 982016
  %v1082 = vsel %vm1080, %v1017, %v781
  %v1085 = vsel %vm1080, %v1019, %v783
  %v1088 = vsel %vm1080, %v1021, %v785
  %v1091 = vsel %vm1080, %v1023, %v787
  %v1094 = vsel %vm1080, %v1025, %v789
  %v1097 = vsel %vm1080, %v1027, %v791
  %v1100 = vsel %vm1080, %v1029, %v793
  %v1103 = vsel %vm1080, %v1031, %v795
  %v1106 = vsel %vm1080, %v1033, %v797
  %v1109 = vsel %vm1080, %v1035, %v799
  %v1112 = vsel %vm1080, %v1037, %v801
  %v1115 = vsel %vm1080, %v1039, %v803
  %v1118 = vsel %vm1080, %v1041, %v805
  %v1121 = vsel %vm1080, %v1043, %v807
  %v1124 = vsel %vm1080, %v1045, %v809
  %v1127 = vsel %vm1080, %v1047, %v811
  %v1130 = vsel %vm1080, %v1049, %v813
  %v1133 = vsel %vm1080, %v1051, %v815
  %v1136 = vsel %vm1080, %v1053, %v817
  %v1139 = vsel %vm1080, %v1055, %v819
  %v1142 = vsel %vm1080, %v1057, %v821
  %v1145 = vsel %vm1080, %v1059, %v823
  %v1148 = vsel %vm1080, %v1061, %v825
  %v1151 = vsel %vm1080, %v1063, %v827
  %v1154 = vsel %vm1080, %v1065, %v829
  %v1157 = vsel %vm1080, %v1067, %v831
  %v1160 = vsel %vm1080, %v1069, %v833
  %v1163 = vsel %vm1080, %v1071, %v835
  %v1166 = vsel %vm1080, %v1073, %v837
  %v1169 = vsel %vm1080, %v1075, %v839
  %v1172 = vsel %vm1080, %v1077, %v841
  %v1175 = vsel %vm1080, %v1079, %v843
  %vm1177 = vcmask 261120
  %v1179 = vsel %vm1177, %v781, %v855
  %v1181 = vsel %vm1177, %v783, %v857
  %v1183 = vsel %vm1177, %v785, %v859
  %v1185 = vsel %vm1177, %v787, %v861
  %v1187 = vsel %vm1177, %v789, %v863
  %v1189 = vsel %vm1177, %v791, %v865
  %v1191 = vsel %vm1177, %v793, %v867
  %v1193 = vsel %vm1177, %v795, %v869
  %v1195 = vsel %vm1177, %v797, %v871
  %v1197 = vsel %vm1177, %v799, %v873
  %v1199 = vsel %vm1177, %v801, %v875
  %v1201 = vsel %vm1177, %v803, %v877
  %v1203 = vsel %vm1177, %v805, %v879
  %v1205 = vsel %vm1177, %v807, %v881
  %v1207 = vsel %vm1177, %v809, %v883
  %v1209 = vsel %vm1177, %v811, %v885
  %v1211 = vsel %vm1177, %v813, %v887
  %v1213 = vsel %vm1177, %v815, %v889
  %v1215 = vsel %vm1177, %v817, %v891
  %v1217 = vsel %vm1177, %v819, %v893
  %v1219 = vsel %vm1177, %v821, %v895
  %v1221 = vsel %vm1177, %v823, %v897
  %v1223 = vsel %vm1177, %v825, %v899
  %v1225 = vsel %vm1177, %v827, %v901
  %v1227 = vsel %vm1177, %v829, %v903
  %v1229 = vsel %vm1177, %v831, %v905
  %v1231 = vsel %vm1177, %v833, %v907
  %v1233 = vsel %vm1177, %v835, %v909
  %v1235 = vsel %vm1177, %v837, %v911
  %v1237 = vsel %vm1177, %v839, %v913
  %v1239 = vsel %vm1177, %v841, %v915
  %v1241 = vsel %vm1177, %v843, %v917
  %v1306 = vunpack.c.l.b16 %v96
  %v1307 = vunpack.c.l.b16 %v97
  %v1308 = vunpack.c.l.b16 %v98
  %v1309 = vunpack.c.l.b16 %v99
  %v1310 = vunpack.c.l.b16 %v100
  %v1311 = vunpack.c.l.b16 %v101
  %v1312 = vunpack.c.l.b16 %v102
  %v1313 = vunpack.c.l.b16 %v103
  %v1314 = vunpack.c.l.b16 %v104
  %v1315 = vunpack.c.l.b16 %v105
  %v1316 = vunpack.c.l.b16 %v106
  %v1317 = vunpack.c.l.b16 %v107
  %v1318 = vunpack.c.l.b16 %v108
  %v1319 = vunpack.c.l.b16 %v109
  %v1320 = vunpack.c.l.b16 %v110
  %v1321 = vunpack.c.l.b16 %v111
  %v1322 = vunpack.c.l.b16 %v112
  %v1323 = vunpack.c.l.b16 %v113
  %v1324 = vunpack.c.l.b16 %v114
  %v1325 = vunpack.c.l.b16 %v115
  %v1326 = vunpack.c.l.b16 %v116
  %v1327 = vunpack.c.l.b16 %v117
  %v1328 = vunpack.c.l.b16 %v118
  %v1329 = vunpack.c.l.b16 %v119
  %v1330 = vunpack.c.l.b16 %v120
  %v1331 = vunpack.c.l.b16 %v121
  %v1332 = vunpack.c.l.b16 %v122
  %v1333 = vunpack.c.l.b16 %v123
  %v1334 = vunpack.c.l.b16 %v124
  %v1335 = vunpack.c.l.b16 %v125
  %v1336 = vunpack.c.l.b16 %v126
  %v1337 = vunpack.c.l.b16 %v127
  %v1338 = vunpack.c.l.b16 %v128
  %v1339 = vunpack.c.l.b16 %v129
  %v1340 = vunpack.c.l.b16 %v130
  %v1341 = vunpack.c.l.b16 %v131
  %v1342 = vunpack.c.l.b16 %v132
  %v1343 = vunpack.c.l.b16 %v133
  %v1344 = vunpack.c.l.b16 %v134
  %v1345 = vunpack.c.l.b16 %v135
  %v1346 = vunpack.c.l.b16 %v136
  %v1347 = vunpack.c.l.b16 %v137
  %v1348 = vunpack.c.l.b16 %v138
  %v1349 = vunpack.c.l.b16 %v139
  %v1350 = vunpack.c.l.b16 %v140
  %v1351 = vunpack.c.l.b16 %v141
  %v1352 = vunpack.c.l.b16 %v142
  %v1353 = vunpack.c.l.b16 %v143
  %v1354 = vunpack.c.l.b16 %v144
  %v1355 = vunpack.c.l.b16 %v145
  %v1356 = vunpack.c.l.b16 %v146
  %v1357 = vunpack.c.l.b16 %v147
  %v1358 = vunpack.c.l.b16 %v148
  %v1359 = vunpack.c.l.b16 %v149
  %v1360 = vunpack.c.l.b16 %v150
  %v1361 = vunpack.c.l.b16 %v151
  %v1362 = vunpack.c.l.b16 %v152
  %v1363 = vunpack.c.l.b16 %v153
  %v1364 = vunpack.c.l.b16 %v154
  %v1365 = vunpack.c.l.b16 %v155
  %v1366 = vunpack.c.l.b16 %v156
  %v1367 = vunpack.c.l.b16 %v157
  %v1368 = vunpack.c.l.b16 %v158
  %v1369 = vunpack.c.l.b16 %v159
  %v1370 = vpack.c.b16 %v1307, %v1306
  %v1371 = vpack.c.b16 %v1309, %v1308
  %v1372 = vpack.c.b16 %v1311, %v1310
  %v1373 = vpack.c.b16 %v1313, %v1312
  %v1374 = vpack.c.b16 %v1315, %v1314
  %v1375 = vpack.c.b16 %v1317, %v1316
  %v1376 = vpack.c.b16 %v1319, %v1318
  %v1377 = vpack.c.b16 %v1321, %v1320
  %v1378 = vpack.c.b16 %v1323, %v1322
  %v1379 = vpack.c.b16 %v1325, %v1324
  %v1380 = vpack.c.b16 %v1327, %v1326
  %v1381 = vpack.c.b16 %v1329, %v1328
  %v1382 = vpack.c.b16 %v1331, %v1330
  %v1383 = vpack.c.b16 %v1333, %v1332
  %v1384 = vpack.c.b16 %v1335, %v1334
  %v1385 = vpack.c.b16 %v1337, %v1336
  %v1386 = vpack.c.b16 %v1339, %v1338
  %v1387 = vpack.c.b16 %v1341, %v1340
  %v1388 = vpack.c.b16 %v1343, %v1342
  %v1389 = vpack.c.b16 %v1345, %v1344
  %v1390 = vpack.c.b16 %v1347, %v1346
  %v1391 = vpack.c.b16 %v1349, %v1348
  %v1392 = vpack.c.b16 %v1351, %v1350
  %v1393 = vpack.c.b16 %v1353, %v1352
  %v1394 = vpack.c.b16 %v1355, %v1354
  %v1395 = vpack.c.b16 %v1357, %v1356
  %v1396 = vpack.c.b16 %v1359, %v1358
  %v1397 = vpack.c.b16 %v1361, %v1360
  %v1398 = vpack.c.b16 %v1363, %v1362
  %v1399 = vpack.c.b16 %v1365, %v1364
  %v1400 = vpack.c.b16 %v1367, %v1366
  %v1401 = vpack.c.b16 %v1369, %v1368
  %v1466 = vunpack.c.l.b16 %v240
  %v1467 = vunpack.c.l.b16 %v241
  %v1468 = vunpack.c.l.b16 %v242
  %v1469 = vunpack.c.l.b16 %v243
  %v1470 = vunpack.c.l.b16 %v244
  %v1471 = vunpack.c.l.b16 %v245
  %v1472 = vunpack.c.l.b16 %v246
  %v1473 = vunpack.c.l.b16 %v247
  %v1474 = vunpack.c.l.b16 %v248
  %v1475 = vunpack.c.l.b16 %v249
  %v1476 = vunpack.c.l.b16 %v250
  %v1477 = vunpack.c.l.b16 %v251
  %v1478 = vunpack.c.l.b16 %v252
  %v1479 = vunpack.c.l.b16 %v253
  %v1480 = vunpack.c.l.b16 %v254
  %v1481 = vunpack.c.l.b16 %v255
  %v1482 = vunpack.c.l.b16 %v256
  %v1483 = vunpack.c.l.b16 %v257
  %v1484 = vunpack.c.l.b16 %v258
  %v1485 = vunpack.c.l.b16 %v259
  %v1486 = vunpack.c.l.b16 %v260
  %v1487 = vunpack.c.l.b16 %v261
  %v1488 = vunpack.c.l.b16 %v262
  %v1489 = vunpack.c.l.b16 %v263
  %v1490 = vunpack.c.l.b16 %v264
  %v1491 = vunpack.c.l.b16 %v265
  %v1492 = vunpack.c.l.b16 %v266
  %v1493 = vunpack.c.l.b16 %v267
  %v1494 = vunpack.c.l.b16 %v268
  %v1495 = vunpack.c.l.b16 %v269
  %v1496 = vunpack.c.l.b16 %v270
  %v1497 = vunpack.c.l.b16 %v271
  %v1498 = vunpack.c.l.b16 %v272
  %v1499 = vunpack.c.l.b16 %v273
  %v1500 = vunpack.c.l.b16 %v274
  %v1501 = vunpack.c.l.b16 %v275
  %v1502 = vunpack.c.l.b16 %v276
  %v1503 = vunpack.c.l.b16 %v277
  %v1504 = vunpack.c.l.b16 %v278
  %v1505 = vunpack.c.l.b16 %v279
  %v1506 = vunpack.c.l.b16 %v280
  %v1507 = vunpack.c.l.b16 %v281
  %v1508 = vunpack.c.l.b16 %v282
  %v1509 = vunpack.c.l.b16 %v283
  %v1510 = vunpack.c.l.b16 %v284
  %v1511 = vunpack.c.l.b16 %v285
  %v1512 = vunpack.c.l.b16 %v286
  %v1513 = vunpack.c.l.b16 %v287
  %v1514 = vunpack.c.l.b16 %v288
  %v1515 = vunpack.c.l.b16 %v289
  %v1516 = vunpack.c.l.b16 %v290
  %v1517 = vunpack.c.l.b16 %v291
  %v1518 = vunpack.c.l.b16 %v292
  %v1519 = vunpack.c.l.b16 %v293
  %v1520 = vunpack.c.l.b16 %v294
  %v1521 = vunpack.c.l.b16 %v295
  %v1522 = vunpack.c.l.b16 %v296
  %v1523 = vunpack.c.l.b16 %v297
  %v1524 = vunpack.c.l.b16 %v298
  %v1525 = vunpack.c.l.b16 %v299
  %v1526 = vunpack.c.l.b16 %v300
  %v1527 = vunpack.c.l.b16 %v301
  %v1528 = vunpack.c.l.b16 %v302
  %v1529 = vunpack.c.l.b16 %v303
  %v1530 = vpack.c.b16 %v1467, %v1466
  %v1531 = vpack.c.b16 %v1469, %v1468
  %v1532 = vpack.c.b16 %v1471, %v1470
  %v1533 = vpack.c.b16 %v1473, %v1472
  %v1534 = vpack.c.b16 %v1475, %v1474
  %v1535 = vpack.c.b16 %v1477, %v1476
  %v1536 = vpack.c.b16 %v1479, %v1478
  %v1537 = vpack.c.b16 %v1481, %v1480
  %v1538 = vpack.c.b16 %v1483, %v1482
  %v1539 = vpack.c.b16 %v1485, %v1484
  %v1540 = vpack.c.b16 %v1487, %v1486
  %v1541 = vpack.c.b16 %v1489, %v1488
  %v1542 = vpack.c.b16 %v1491, %v1490
  %v1543 = vpack.c.b16 %v1493, %v1492
  %v1544 = vpack.c.b16 %v1495, %v1494
  %v1545 = vpack.c.b16 %v1497, %v1496
  %v1546 = vpack.c.b16 %v1499, %v1498
  %v1547 = vpack.c.b16 %v1501, %v1500
  %v1548 = vpack.c.b16 %v1503, %v1502
  %v1549 = vpack.c.b16 %v1505, %v1504
  %v1550 = vpack.c.b16 %v1507, %v1506
  %v1551 = vpack.c.b16 %v1509, %v1508
  %v1552 = vpack.c.b16 %v1511, %v1510
  %v1553 = vpack.c.b16 %v1513, %v1512
  %v1554 = vpack.c.b16 %v1515, %v1514
  %v1555 = vpack.c.b16 %v1517, %v1516
  %v1556 = vpack.c.b16 %v1519, %v1518
  %v1557 = vpack.c.b16 %v1521, %v1520
  %v1558 = vpack.c.b16 %v1523, %v1522
  %v1559 = vpack.c.b16 %v1525, %v1524
  %v1560 = vpack.c.b16 %v1527, %v1526
  %v1561 = vpack.c.b16 %v1529, %v1528
  %1562 = vrot.lane.b32.xlu0 %v1530, 40
  %v1563 = vpop.permute.xlu0 %1562
  %1564 = vrot.lane.b32.xlu0 %v1531, 40
  %v1565 = vpop.permute.xlu0 %1564
  %1566 = vrot.lane.b32.xlu0 %v1532, 40
  %v1567 = vpop.permute.xlu0 %1566
  %1568 = vrot.lane.b32.xlu0 %v1533, 40
  %v1569 = vpop.permute.xlu0 %1568
  %1570 = vrot.lane.b32.xlu0 %v1534, 40
  %v1571 = vpop.permute.xlu0 %1570
  %1572 = vrot.lane.b32.xlu0 %v1535, 40
  %v1573 = vpop.permute.xlu0 %1572
  %1574 = vrot.lane.b32.xlu0 %v1536, 40
  %v1575 = vpop.permute.xlu0 %1574
  %1576 = vrot.lane.b32.xlu0 %v1537, 40
  %v1577 = vpop.permute.xlu0 %1576
  %1578 = vrot.lane.b32.xlu0 %v1538, 40
  %v1579 = vpop.permute.xlu0 %1578
  %1580 = vrot.lane.b32.xlu0 %v1539, 40
  %v1581 = vpop.permute.xlu0 %1580
  %1582 = vrot.lane.b32.xlu0 %v1540, 40
  %v1583 = vpop.permute.xlu0 %1582
  %1584 = vrot.lane.b32.xlu0 %v1541, 40
  %v1585 = vpop.permute.xlu0 %1584
  %1586 = vrot.lane.b32.xlu0 %v1542, 40
  %v1587 = vpop.permute.xlu0 %1586
  %1588 = vrot.lane.b32.xlu0 %v1543, 40
  %v1589 = vpop.permute.xlu0 %1588
  %1590 = vrot.lane.b32.xlu0 %v1544, 40
  %v1591 = vpop.permute.xlu0 %1590
  %1592 = vrot.lane.b32.xlu0 %v1545, 40
  %v1593 = vpop.permute.xlu0 %1592
  %1594 = vrot.lane.b32.xlu0 %v1546, 40
  %v1595 = vpop.permute.xlu0 %1594
  %1596 = vrot.lane.b32.xlu0 %v1547, 40
  %v1597 = vpop.permute.xlu0 %1596
  %1598 = vrot.lane.b32.xlu0 %v1548, 40
  %v1599 = vpop.permute.xlu0 %1598
  %1600 = vrot.lane.b32.xlu0 %v1549, 40
  %v1601 = vpop.permute.xlu0 %1600
  %1602 = vrot.lane.b32.xlu0 %v1550, 40
  %v1603 = vpop.permute.xlu0 %1602
  %1604 = vrot.lane.b32.xlu0 %v1551, 40
  %v1605 = vpop.permute.xlu0 %1604
  %1606 = vrot.lane.b32.xlu0 %v1552, 40
  %v1607 = vpop.permute.xlu0 %1606
  %1608 = vrot.lane.b32.xlu0 %v1553, 40
  %v1609 = vpop.permute.xlu0 %1608
  %1610 = vrot.lane.b32.xlu0 %v1554, 40
  %v1611 = vpop.permute.xlu0 %1610
  %1612 = vrot.lane.b32.xlu0 %v1555, 40
  %v1613 = vpop.permute.xlu0 %1612
  %1614 = vrot.lane.b32.xlu0 %v1556, 40
  %v1615 = vpop.permute.xlu0 %1614
  %1616 = vrot.lane.b32.xlu0 %v1557, 40
  %v1617 = vpop.permute.xlu0 %1616
  %1618 = vrot.lane.b32.xlu0 %v1558, 40
  %v1619 = vpop.permute.xlu0 %1618
  %1620 = vrot.lane.b32.xlu0 %v1559, 40
  %v1621 = vpop.permute.xlu0 %1620
  %1622 = vrot.lane.b32.xlu0 %v1560, 40
  %v1623 = vpop.permute.xlu0 %1622
  %1624 = vrot.lane.b32.xlu0 %v1561, 40
  %v1625 = vpop.permute.xlu0 %1624
  %v1630 = vunpack.c.l.b16 %v160
  %v1631 = vunpack.c.l.b16 %v161
  %v1632 = vunpack.c.l.b16 %v162
  %v1633 = vunpack.c.l.b16 %v163
  %v1634 = vpack.c.b16 %v1631, %v1630
  %v1635 = vpack.c.b16 %v1633, %v1632
  %1636 = vrot.lane.b32.xlu0 %v1371, 80
  %v1637 = vpop.permute.xlu0 %1636
  %1638 = vrot.lane.b32.xlu0 %v1372, 80
  %v1639 = vpop.permute.xlu0 %1638
  %1640 = vrot.lane.b32.xlu0 %v1373, 80
  %v1641 = vpop.permute.xlu0 %1640
  %1642 = vrot.lane.b32.xlu0 %v1374, 80
  %v1643 = vpop.permute.xlu0 %1642
  %1644 = vrot.lane.b32.xlu0 %v1375, 80
  %v1645 = vpop.permute.xlu0 %1644
  %1646 = vrot.lane.b32.xlu0 %v1376, 80
  %v1647 = vpop.permute.xlu0 %1646
  %1648 = vrot.lane.b32.xlu0 %v1377, 80
  %v1649 = vpop.permute.xlu0 %1648
  %1650 = vrot.lane.b32.xlu0 %v1378, 80
  %v1651 = vpop.permute.xlu0 %1650
  %1652 = vrot.lane.b32.xlu0 %v1379, 80
  %v1653 = vpop.permute.xlu0 %1652
  %1654 = vrot.lane.b32.xlu0 %v1380, 80
  %v1655 = vpop.permute.xlu0 %1654
  %1656 = vrot.lane.b32.xlu0 %v1381, 80
  %v1657 = vpop.permute.xlu0 %1656
  %1658 = vrot.lane.b32.xlu0 %v1382, 80
  %v1659 = vpop.permute.xlu0 %1658
  %1660 = vrot.lane.b32.xlu0 %v1383, 80
  %v1661 = vpop.permute.xlu0 %1660
  %1662 = vrot.lane.b32.xlu0 %v1384, 80
  %v1663 = vpop.permute.xlu0 %1662
  %1664 = vrot.lane.b32.xlu0 %v1385, 80
  %v1665 = vpop.permute.xlu0 %1664
  %1666 = vrot.lane.b32.xlu0 %v1634, 80
  %v1667 = vpop.permute.xlu0 %1666
  %1668 = vrot.lane.b32.xlu0 %v1387, 80
  %v1669 = vpop.permute.xlu0 %1668
  %1670 = vrot.lane.b32.xlu0 %v1388, 80
  %v1671 = vpop.permute.xlu0 %1670
  %1672 = vrot.lane.b32.xlu0 %v1389, 80
  %v1673 = vpop.permute.xlu0 %1672
  %1674 = vrot.lane.b32.xlu0 %v1390, 80
  %v1675 = vpop.permute.xlu0 %1674
  %1676 = vrot.lane.b32.xlu0 %v1391, 80
  %v1677 = vpop.permute.xlu0 %1676
  %1678 = vrot.lane.b32.xlu0 %v1392, 80
  %v1679 = vpop.permute.xlu0 %1678
  %1680 = vrot.lane.b32.xlu0 %v1393, 80
  %v1681 = vpop.permute.xlu0 %1680
  %1682 = vrot.lane.b32.xlu0 %v1394, 80
  %v1683 = vpop.permute.xlu0 %1682
  %1684 = vrot.lane.b32.xlu0 %v1395, 80
  %v1685 = vpop.permute.xlu0 %1684
  %1686 = vrot.lane.b32.xlu0 %v1396, 80
  %v1687 = vpop.permute.xlu0 %1686
  %1688 = vrot.lane.b32.xlu0 %v1397, 80
  %v1689 = vpop.permute.xlu0 %1688
  %1690 = vrot.lane.b32.xlu0 %v1398, 80
  %v1691 = vpop.permute.xlu0 %1690
  %1692 = vrot.lane.b32.xlu0 %v1399, 80
  %v1693 = vpop.permute.xlu0 %1692
  %1694 = vrot.lane.b32.xlu0 %v1400, 80
  %v1695 = vpop.permute.xlu0 %1694
  %1696 = vrot.lane.b32.xlu0 %v1401, 80
  %v1697 = vpop.permute.xlu0 %1696
  %1698 = vrot.lane.b32.xlu0 %v1635, 80
  %v1699 = vpop.permute.xlu0 %1698
  %v1704 = vunpack.c.l.b16 %v304
  %v1705 = vunpack.c.l.b16 %v305
  %v1706 = vunpack.c.l.b16 %v306
  %v1707 = vunpack.c.l.b16 %v307
  %v1708 = vpack.c.b16 %v1705, %v1704
  %v1709 = vpack.c.b16 %v1707, %v1706
  %1710 = vrot.lane.b32.xlu0 %v1531, 120
  %v1711 = vpop.permute.xlu0 %1710
  %1712 = vrot.lane.b32.xlu0 %v1532, 120
  %v1713 = vpop.permute.xlu0 %1712
  %1714 = vrot.lane.b32.xlu0 %v1533, 120
  %v1715 = vpop.permute.xlu0 %1714
  %1716 = vrot.lane.b32.xlu0 %v1534, 120
  %v1717 = vpop.permute.xlu0 %1716
  %1718 = vrot.lane.b32.xlu0 %v1535, 120
  %v1719 = vpop.permute.xlu0 %1718
  %1720 = vrot.lane.b32.xlu0 %v1536, 120
  %v1721 = vpop.permute.xlu0 %1720
  %1722 = vrot.lane.b32.xlu0 %v1537, 120
  %v1723 = vpop.permute.xlu0 %1722
  %1724 = vrot.lane.b32.xlu0 %v1538, 120
  %v1725 = vpop.permute.xlu0 %1724
  %1726 = vrot.lane.b32.xlu0 %v1539, 120
  %v1727 = vpop.permute.xlu0 %1726
  %1728 = vrot.lane.b32.xlu0 %v1540, 120
  %v1729 = vpop.permute.xlu0 %1728
  %1730 = vrot.lane.b32.xlu0 %v1541, 120
  %v1731 = vpop.permute.xlu0 %1730
  %1732 = vrot.lane.b32.xlu0 %v1542, 120
  %v1733 = vpop.permute.xlu0 %1732
  %1734 = vrot.lane.b32.xlu0 %v1543, 120
  %v1735 = vpop.permute.xlu0 %1734
  %1736 = vrot.lane.b32.xlu0 %v1544, 120
  %v1737 = vpop.permute.xlu0 %1736
  %1738 = vrot.lane.b32.xlu0 %v1545, 120
  %v1739 = vpop.permute.xlu0 %1738
  %1740 = vrot.lane.b32.xlu0 %v1708, 120
  %v1741 = vpop.permute.xlu0 %1740
  %1742 = vrot.lane.b32.xlu0 %v1547, 120
  %v1743 = vpop.permute.xlu0 %1742
  %1744 = vrot.lane.b32.xlu0 %v1548, 120
  %v1745 = vpop.permute.xlu0 %1744
  %1746 = vrot.lane.b32.xlu0 %v1549, 120
  %v1747 = vpop.permute.xlu0 %1746
  %1748 = vrot.lane.b32.xlu0 %v1550, 120
  %v1749 = vpop.permute.xlu0 %1748
  %1750 = vrot.lane.b32.xlu0 %v1551, 120
  %v1751 = vpop.permute.xlu0 %1750
  %1752 = vrot.lane.b32.xlu0 %v1552, 120
  %v1753 = vpop.permute.xlu0 %1752
  %1754 = vrot.lane.b32.xlu0 %v1553, 120
  %v1755 = vpop.permute.xlu0 %1754
  %1756 = vrot.lane.b32.xlu0 %v1554, 120
  %v1757 = vpop.permute.xlu0 %1756
  %1758 = vrot.lane.b32.xlu0 %v1555, 120
  %v1759 = vpop.permute.xlu0 %1758
  %1760 = vrot.lane.b32.xlu0 %v1556, 120
  %v1761 = vpop.permute.xlu0 %1760
  %1762 = vrot.lane.b32.xlu0 %v1557, 120
  %v1763 = vpop.permute.xlu0 %1762
  %1764 = vrot.lane.b32.xlu0 %v1558, 120
  %v1765 = vpop.permute.xlu0 %1764
  %1766 = vrot.lane.b32.xlu0 %v1559, 120
  %v1767 = vpop.permute.xlu0 %1766
  %1768 = vrot.lane.b32.xlu0 %v1560, 120
  %v1769 = vpop.permute.xlu0 %1768
  %1770 = vrot.lane.b32.xlu0 %v1561, 120
  %v1771 = vpop.permute.xlu0 %1770
  %1772 = vrot.lane.b32.xlu0 %v1709, 120
  %v1773 = vpop.permute.xlu0 %1772
  %v1778 = vunpack.c.l.b16 %v164
  %v1779 = vunpack.c.l.b16 %v165
  %v1780 = vunpack.c.l.b16 %v166
  %v1781 = vunpack.c.l.b16 %v167
  %v1782 = vpack.c.b16 %v1779, %v1778
  %v1783 = vpack.c.b16 %v1781, %v1780
  %1784 = vrot.lane.b32.xlu0 %v1372, 32
  %v1785 = vpop.permute.xlu0 %1784
  %1786 = vrot.lane.b32.xlu0 %v1373, 32
  %v1787 = vpop.permute.xlu0 %1786
  %1788 = vrot.lane.b32.xlu0 %v1374, 32
  %v1789 = vpop.permute.xlu0 %1788
  %1790 = vrot.lane.b32.xlu0 %v1375, 32
  %v1791 = vpop.permute.xlu0 %1790
  %1792 = vrot.lane.b32.xlu0 %v1376, 32
  %v1793 = vpop.permute.xlu0 %1792
  %1794 = vrot.lane.b32.xlu0 %v1377, 32
  %v1795 = vpop.permute.xlu0 %1794
  %1796 = vrot.lane.b32.xlu0 %v1378, 32
  %v1797 = vpop.permute.xlu0 %1796
  %1798 = vrot.lane.b32.xlu0 %v1379, 32
  %v1799 = vpop.permute.xlu0 %1798
  %1800 = vrot.lane.b32.xlu0 %v1380, 32
  %v1801 = vpop.permute.xlu0 %1800
  %1802 = vrot.lane.b32.xlu0 %v1381, 32
  %v1803 = vpop.permute.xlu0 %1802
  %1804 = vrot.lane.b32.xlu0 %v1382, 32
  %v1805 = vpop.permute.xlu0 %1804
  %1806 = vrot.lane.b32.xlu0 %v1383, 32
  %v1807 = vpop.permute.xlu0 %1806
  %1808 = vrot.lane.b32.xlu0 %v1384, 32
  %v1809 = vpop.permute.xlu0 %1808
  %1810 = vrot.lane.b32.xlu0 %v1385, 32
  %v1811 = vpop.permute.xlu0 %1810
  %1812 = vrot.lane.b32.xlu0 %v1634, 32
  %v1813 = vpop.permute.xlu0 %1812
  %1814 = vrot.lane.b32.xlu0 %v1782, 32
  %v1815 = vpop.permute.xlu0 %1814
  %1816 = vrot.lane.b32.xlu0 %v1388, 32
  %v1817 = vpop.permute.xlu0 %1816
  %1818 = vrot.lane.b32.xlu0 %v1389, 32
  %v1819 = vpop.permute.xlu0 %1818
  %1820 = vrot.lane.b32.xlu0 %v1390, 32
  %v1821 = vpop.permute.xlu0 %1820
  %1822 = vrot.lane.b32.xlu0 %v1391, 32
  %v1823 = vpop.permute.xlu0 %1822
  %1824 = vrot.lane.b32.xlu0 %v1392, 32
  %v1825 = vpop.permute.xlu0 %1824
  %1826 = vrot.lane.b32.xlu0 %v1393, 32
  %v1827 = vpop.permute.xlu0 %1826
  %1828 = vrot.lane.b32.xlu0 %v1394, 32
  %v1829 = vpop.permute.xlu0 %1828
  %1830 = vrot.lane.b32.xlu0 %v1395, 32
  %v1831 = vpop.permute.xlu0 %1830
  %1832 = vrot.lane.b32.xlu0 %v1396, 32
  %v1833 = vpop.permute.xlu0 %1832
  %1834 = vrot.lane.b32.xlu0 %v1397, 32
  %v1835 = vpop.permute.xlu0 %1834
  %1836 = vrot.lane.b32.xlu0 %v1398, 32
  %v1837 = vpop.permute.xlu0 %1836
  %1838 = vrot.lane.b32.xlu0 %v1399, 32
  %v1839 = vpop.permute.xlu0 %1838
  %1840 = vrot.lane.b32.xlu0 %v1400, 32
  %v1841 = vpop.permute.xlu0 %1840
  %1842 = vrot.lane.b32.xlu0 %v1401, 32
  %v1843 = vpop.permute.xlu0 %1842
  %1844 = vrot.lane.b32.xlu0 %v1635, 32
  %v1845 = vpop.permute.xlu0 %1844
  %1846 = vrot.lane.b32.xlu0 %v1783, 32
  %v1847 = vpop.permute.xlu0 %1846
  %v1850 = vsel %vm918, %v1370, %v1563
  %v1853 = vsel %vm918, %v1371, %v1565
  %v1856 = vsel %vm918, %v1372, %v1567
  %v1859 = vsel %vm918, %v1373, %v1569
  %v1862 = vsel %vm918, %v1374, %v1571
  %v1865 = vsel %vm918, %v1375, %v1573
  %v1868 = vsel %vm918, %v1376, %v1575
  %v1871 = vsel %vm918, %v1377, %v1577
  %v1874 = vsel %vm918, %v1378, %v1579
  %v1877 = vsel %vm918, %v1379, %v1581
  %v1880 = vsel %vm918, %v1380, %v1583
  %v1883 = vsel %vm918, %v1381, %v1585
  %v1886 = vsel %vm918, %v1382, %v1587
  %v1889 = vsel %vm918, %v1383, %v1589
  %v1892 = vsel %vm918, %v1384, %v1591
  %v1895 = vsel %vm918, %v1385, %v1593
  %v1898 = vsel %vm918, %v1386, %v1595
  %v1901 = vsel %vm918, %v1387, %v1597
  %v1904 = vsel %vm918, %v1388, %v1599
  %v1907 = vsel %vm918, %v1389, %v1601
  %v1910 = vsel %vm918, %v1390, %v1603
  %v1913 = vsel %vm918, %v1391, %v1605
  %v1916 = vsel %vm918, %v1392, %v1607
  %v1919 = vsel %vm918, %v1393, %v1609
  %v1922 = vsel %vm918, %v1394, %v1611
  %v1925 = vsel %vm918, %v1395, %v1613
  %v1928 = vsel %vm918, %v1396, %v1615
  %v1931 = vsel %vm918, %v1397, %v1617
  %v1934 = vsel %vm918, %v1398, %v1619
  %v1937 = vsel %vm918, %v1399, %v1621
  %v1940 = vsel %vm918, %v1400, %v1623
  %v1943 = vsel %vm918, %v1401, %v1625
  %v1945 = vsel %vm1015, %v1850, %v1637
  %v1947 = vsel %vm1015, %v1853, %v1639
  %v1949 = vsel %vm1015, %v1856, %v1641
  %v1951 = vsel %vm1015, %v1859, %v1643
  %v1953 = vsel %vm1015, %v1862, %v1645
  %v1955 = vsel %vm1015, %v1865, %v1647
  %v1957 = vsel %vm1015, %v1868, %v1649
  %v1959 = vsel %vm1015, %v1871, %v1651
  %v1961 = vsel %vm1015, %v1874, %v1653
  %v1963 = vsel %vm1015, %v1877, %v1655
  %v1965 = vsel %vm1015, %v1880, %v1657
  %v1967 = vsel %vm1015, %v1883, %v1659
  %v1969 = vsel %vm1015, %v1886, %v1661
  %v1971 = vsel %vm1015, %v1889, %v1663
  %v1973 = vsel %vm1015, %v1892, %v1665
  %v1975 = vsel %vm1015, %v1895, %v1667
  %v1977 = vsel %vm1015, %v1898, %v1669
  %v1979 = vsel %vm1015, %v1901, %v1671
  %v1981 = vsel %vm1015, %v1904, %v1673
  %v1983 = vsel %vm1015, %v1907, %v1675
  %v1985 = vsel %vm1015, %v1910, %v1677
  %v1987 = vsel %vm1015, %v1913, %v1679
  %v1989 = vsel %vm1015, %v1916, %v1681
  %v1991 = vsel %vm1015, %v1919, %v1683
  %v1993 = vsel %vm1015, %v1922, %v1685
  %v1995 = vsel %vm1015, %v1925, %v1687
  %v1997 = vsel %vm1015, %v1928, %v1689
  %v1999 = vsel %vm1015, %v1931, %v1691
  %v2001 = vsel %vm1015, %v1934, %v1693
  %v2003 = vsel %vm1015, %v1937, %v1695
  %v2005 = vsel %vm1015, %v1940, %v1697
  %v2007 = vsel %vm1015, %v1943, %v1699
  %v2009 = vsel %vm1080, %v1945, %v1711
  %v2012 = vsel %vm1080, %v1947, %v1713
  %v2015 = vsel %vm1080, %v1949, %v1715
  %v2018 = vsel %vm1080, %v1951, %v1717
  %v2021 = vsel %vm1080, %v1953, %v1719
  %v2024 = vsel %vm1080, %v1955, %v1721
  %v2027 = vsel %vm1080, %v1957, %v1723
  %v2030 = vsel %vm1080, %v1959, %v1725
  %v2033 = vsel %vm1080, %v1961, %v1727
  %v2036 = vsel %vm1080, %v1963, %v1729
  %v2039 = vsel %vm1080, %v1965, %v1731
  %v2042 = vsel %vm1080, %v1967, %v1733
  %v2045 = vsel %vm1080, %v1969, %v1735
  %v2048 = vsel %vm1080, %v1971, %v1737
  %v2051 = vsel %vm1080, %v1973, %v1739
  %v2054 = vsel %vm1080, %v1975, %v1741
  %v2057 = vsel %vm1080, %v1977, %v1743
  %v2060 = vsel %vm1080, %v1979, %v1745
  %v2063 = vsel %vm1080, %v1981, %v1747
  %v2066 = vsel %vm1080, %v1983, %v1749
  %v2069 = vsel %vm1080, %v1985, %v1751
  %v2072 = vsel %vm1080, %v1987, %v1753
  %v2075 = vsel %vm1080, %v1989, %v1755
  %v2078 = vsel %vm1080, %v1991, %v1757
  %v2081 = vsel %vm1080, %v1993, %v1759
  %v2084 = vsel %vm1080, %v1995, %v1761
  %v2087 = vsel %vm1080, %v1997, %v1763
  %v2090 = vsel %vm1080, %v1999, %v1765
  %v2093 = vsel %vm1080, %v2001, %v1767
  %v2096 = vsel %vm1080, %v2003, %v1769
  %v2099 = vsel %vm1080, %v2005, %v1771
  %v2102 = vsel %vm1080, %v2007, %v1773
  %v2105 = vsel %vm1177, %v1711, %v1785
  %v2107 = vsel %vm1177, %v1713, %v1787
  %v2109 = vsel %vm1177, %v1715, %v1789
  %v2111 = vsel %vm1177, %v1717, %v1791
  %v2113 = vsel %vm1177, %v1719, %v1793
  %v2115 = vsel %vm1177, %v1721, %v1795
  %v2117 = vsel %vm1177, %v1723, %v1797
  %v2119 = vsel %vm1177, %v1725, %v1799
  %v2121 = vsel %vm1177, %v1727, %v1801
  %v2123 = vsel %vm1177, %v1729, %v1803
  %v2125 = vsel %vm1177, %v1731, %v1805
  %v2127 = vsel %vm1177, %v1733, %v1807
  %v2129 = vsel %vm1177, %v1735, %v1809
  %v2131 = vsel %vm1177, %v1737, %v1811
  %v2133 = vsel %vm1177, %v1739, %v1813
  %v2135 = vsel %vm1177, %v1741, %v1815
  %v2137 = vsel %vm1177, %v1743, %v1817
  %v2139 = vsel %vm1177, %v1745, %v1819
  %v2141 = vsel %vm1177, %v1747, %v1821
  %v2143 = vsel %vm1177, %v1749, %v1823
  %v2145 = vsel %vm1177, %v1751, %v1825
  %v2147 = vsel %vm1177, %v1753, %v1827
  %v2149 = vsel %vm1177, %v1755, %v1829
  %v2151 = vsel %vm1177, %v1757, %v1831
  %v2153 = vsel %vm1177, %v1759, %v1833
  %v2155 = vsel %vm1177, %v1761, %v1835
  %v2157 = vsel %vm1177, %v1763, %v1837
  %v2159 = vsel %vm1177, %v1765, %v1839
  %v2161 = vsel %vm1177, %v1767, %v1841
  %v2163 = vsel %vm1177, %v1769, %v1843
  %v2165 = vsel %vm1177, %v1771, %v1845
  %v2167 = vsel %vm1177, %v1773, %v1847
  %2168 = vrot.lane.b32.xlu0 %v441, 40
  %v2169 = vpop.permute.xlu0 %2168
  %2170 = vrot.lane.b32.xlu0 %v442, 40
  %v2171 = vpop.permute.xlu0 %2170
  %2172 = vrot.lane.b32.xlu0 %v443, 40
  %v2173 = vpop.permute.xlu0 %2172
  %2174 = vrot.lane.b32.xlu0 %v444, 40
  %v2175 = vpop.permute.xlu0 %2174
  %2176 = vrot.lane.b32.xlu0 %v445, 40
  %v2177 = vpop.permute.xlu0 %2176
  %2178 = vrot.lane.b32.xlu0 %v446, 40
  %v2179 = vpop.permute.xlu0 %2178
  %2180 = vrot.lane.b32.xlu0 %v447, 40
  %v2181 = vpop.permute.xlu0 %2180
  %2182 = vrot.lane.b32.xlu0 %v448, 40
  %v2183 = vpop.permute.xlu0 %2182
  %2184 = vrot.lane.b32.xlu0 %v449, 40
  %v2185 = vpop.permute.xlu0 %2184
  %2186 = vrot.lane.b32.xlu0 %v450, 40
  %v2187 = vpop.permute.xlu0 %2186
  %2188 = vrot.lane.b32.xlu0 %v451, 40
  %v2189 = vpop.permute.xlu0 %2188
  %2190 = vrot.lane.b32.xlu0 %v452, 40
  %v2191 = vpop.permute.xlu0 %2190
  %2192 = vrot.lane.b32.xlu0 %v453, 40
  %v2193 = vpop.permute.xlu0 %2192
  %2194 = vrot.lane.b32.xlu0 %v454, 40
  %v2195 = vpop.permute.xlu0 %2194
  %2196 = vrot.lane.b32.xlu0 %v455, 40
  %v2197 = vpop.permute.xlu0 %2196
  %2198 = vrot.lane.b32.xlu0 %v704, 40
  %v2199 = vpop.permute.xlu0 %2198
  %2200 = vrot.lane.b32.xlu0 %v457, 40
  %v2201 = vpop.permute.xlu0 %2200
  %2202 = vrot.lane.b32.xlu0 %v458, 40
  %v2203 = vpop.permute.xlu0 %2202
  %2204 = vrot.lane.b32.xlu0 %v459, 40
  %v2205 = vpop.permute.xlu0 %2204
  %2206 = vrot.lane.b32.xlu0 %v460, 40
  %v2207 = vpop.permute.xlu0 %2206
  %2208 = vrot.lane.b32.xlu0 %v461, 40
  %v2209 = vpop.permute.xlu0 %2208
  %2210 = vrot.lane.b32.xlu0 %v462, 40
  %v2211 = vpop.permute.xlu0 %2210
  %2212 = vrot.lane.b32.xlu0 %v463, 40
  %v2213 = vpop.permute.xlu0 %2212
  %2214 = vrot.lane.b32.xlu0 %v464, 40
  %v2215 = vpop.permute.xlu0 %2214
  %2216 = vrot.lane.b32.xlu0 %v465, 40
  %v2217 = vpop.permute.xlu0 %2216
  %2218 = vrot.lane.b32.xlu0 %v466, 40
  %v2219 = vpop.permute.xlu0 %2218
  %2220 = vrot.lane.b32.xlu0 %v467, 40
  %v2221 = vpop.permute.xlu0 %2220
  %2222 = vrot.lane.b32.xlu0 %v468, 40
  %v2223 = vpop.permute.xlu0 %2222
  %2224 = vrot.lane.b32.xlu0 %v469, 40
  %v2225 = vpop.permute.xlu0 %2224
  %2226 = vrot.lane.b32.xlu0 %v470, 40
  %v2227 = vpop.permute.xlu0 %2226
  %2228 = vrot.lane.b32.xlu0 %v471, 40
  %v2229 = vpop.permute.xlu0 %2228
  %2230 = vrot.lane.b32.xlu0 %v705, 40
  %v2231 = vpop.permute.xlu0 %2230
  %2232 = vrot.lane.b32.xlu0 %v601, 80
  %v2233 = vpop.permute.xlu0 %2232
  %2234 = vrot.lane.b32.xlu0 %v602, 80
  %v2235 = vpop.permute.xlu0 %2234
  %2236 = vrot.lane.b32.xlu0 %v603, 80
  %v2237 = vpop.permute.xlu0 %2236
  %2238 = vrot.lane.b32.xlu0 %v604, 80
  %v2239 = vpop.permute.xlu0 %2238
  %2240 = vrot.lane.b32.xlu0 %v605, 80
  %v2241 = vpop.permute.xlu0 %2240
  %2242 = vrot.lane.b32.xlu0 %v606, 80
  %v2243 = vpop.permute.xlu0 %2242
  %2244 = vrot.lane.b32.xlu0 %v607, 80
  %v2245 = vpop.permute.xlu0 %2244
  %2246 = vrot.lane.b32.xlu0 %v608, 80
  %v2247 = vpop.permute.xlu0 %2246
  %2248 = vrot.lane.b32.xlu0 %v609, 80
  %v2249 = vpop.permute.xlu0 %2248
  %2250 = vrot.lane.b32.xlu0 %v610, 80
  %v2251 = vpop.permute.xlu0 %2250
  %2252 = vrot.lane.b32.xlu0 %v611, 80
  %v2253 = vpop.permute.xlu0 %2252
  %2254 = vrot.lane.b32.xlu0 %v612, 80
  %v2255 = vpop.permute.xlu0 %2254
  %2256 = vrot.lane.b32.xlu0 %v613, 80
  %v2257 = vpop.permute.xlu0 %2256
  %2258 = vrot.lane.b32.xlu0 %v614, 80
  %v2259 = vpop.permute.xlu0 %2258
  %2260 = vrot.lane.b32.xlu0 %v615, 80
  %v2261 = vpop.permute.xlu0 %2260
  %2262 = vrot.lane.b32.xlu0 %v778, 80
  %v2263 = vpop.permute.xlu0 %2262
  %2264 = vrot.lane.b32.xlu0 %v617, 80
  %v2265 = vpop.permute.xlu0 %2264
  %2266 = vrot.lane.b32.xlu0 %v618, 80
  %v2267 = vpop.permute.xlu0 %2266
  %2268 = vrot.lane.b32.xlu0 %v619, 80
  %v2269 = vpop.permute.xlu0 %2268
  %2270 = vrot.lane.b32.xlu0 %v620, 80
  %v2271 = vpop.permute.xlu0 %2270
  %2272 = vrot.lane.b32.xlu0 %v621, 80
  %v2273 = vpop.permute.xlu0 %2272
  %2274 = vrot.lane.b32.xlu0 %v622, 80
  %v2275 = vpop.permute.xlu0 %2274
  %2276 = vrot.lane.b32.xlu0 %v623, 80
  %v2277 = vpop.permute.xlu0 %2276
  %2278 = vrot.lane.b32.xlu0 %v624, 80
  %v2279 = vpop.permute.xlu0 %2278
  %2280 = vrot.lane.b32.xlu0 %v625, 80
  %v2281 = vpop.permute.xlu0 %2280
  %2282 = vrot.lane.b32.xlu0 %v626, 80
  %v2283 = vpop.permute.xlu0 %2282
  %2284 = vrot.lane.b32.xlu0 %v627, 80
  %v2285 = vpop.permute.xlu0 %2284
  %2286 = vrot.lane.b32.xlu0 %v628, 80
  %v2287 = vpop.permute.xlu0 %2286
  %2288 = vrot.lane.b32.xlu0 %v629, 80
  %v2289 = vpop.permute.xlu0 %2288
  %2290 = vrot.lane.b32.xlu0 %v630, 80
  %v2291 = vpop.permute.xlu0 %2290
  %2292 = vrot.lane.b32.xlu0 %v631, 80
  %v2293 = vpop.permute.xlu0 %2292
  %2294 = vrot.lane.b32.xlu0 %v779, 80
  %v2295 = vpop.permute.xlu0 %2294
  %2296 = vrot.lane.b32.xlu0 %v442, 120
  %v2297 = vpop.permute.xlu0 %2296
  %2298 = vrot.lane.b32.xlu0 %v443, 120
  %v2299 = vpop.permute.xlu0 %2298
  %2300 = vrot.lane.b32.xlu0 %v444, 120
  %v2301 = vpop.permute.xlu0 %2300
  %2302 = vrot.lane.b32.xlu0 %v445, 120
  %v2303 = vpop.permute.xlu0 %2302
  %2304 = vrot.lane.b32.xlu0 %v446, 120
  %v2305 = vpop.permute.xlu0 %2304
  %2306 = vrot.lane.b32.xlu0 %v447, 120
  %v2307 = vpop.permute.xlu0 %2306
  %2308 = vrot.lane.b32.xlu0 %v448, 120
  %v2309 = vpop.permute.xlu0 %2308
  %2310 = vrot.lane.b32.xlu0 %v449, 120
  %v2311 = vpop.permute.xlu0 %2310
  %2312 = vrot.lane.b32.xlu0 %v450, 120
  %v2313 = vpop.permute.xlu0 %2312
  %2314 = vrot.lane.b32.xlu0 %v451, 120
  %v2315 = vpop.permute.xlu0 %2314
  %2316 = vrot.lane.b32.xlu0 %v452, 120
  %v2317 = vpop.permute.xlu0 %2316
  %2318 = vrot.lane.b32.xlu0 %v453, 120
  %v2319 = vpop.permute.xlu0 %2318
  %2320 = vrot.lane.b32.xlu0 %v454, 120
  %v2321 = vpop.permute.xlu0 %2320
  %2322 = vrot.lane.b32.xlu0 %v455, 120
  %v2323 = vpop.permute.xlu0 %2322
  %2324 = vrot.lane.b32.xlu0 %v704, 120
  %v2325 = vpop.permute.xlu0 %2324
  %2326 = vrot.lane.b32.xlu0 %v852, 120
  %v2327 = vpop.permute.xlu0 %2326
  %2328 = vrot.lane.b32.xlu0 %v458, 120
  %v2329 = vpop.permute.xlu0 %2328
  %2330 = vrot.lane.b32.xlu0 %v459, 120
  %v2331 = vpop.permute.xlu0 %2330
  %2332 = vrot.lane.b32.xlu0 %v460, 120
  %v2333 = vpop.permute.xlu0 %2332
  %2334 = vrot.lane.b32.xlu0 %v461, 120
  %v2335 = vpop.permute.xlu0 %2334
  %2336 = vrot.lane.b32.xlu0 %v462, 120
  %v2337 = vpop.permute.xlu0 %2336
  %2338 = vrot.lane.b32.xlu0 %v463, 120
  %v2339 = vpop.permute.xlu0 %2338
  %2340 = vrot.lane.b32.xlu0 %v464, 120
  %v2341 = vpop.permute.xlu0 %2340
  %2342 = vrot.lane.b32.xlu0 %v465, 120
  %v2343 = vpop.permute.xlu0 %2342
  %2344 = vrot.lane.b32.xlu0 %v466, 120
  %v2345 = vpop.permute.xlu0 %2344
  %2346 = vrot.lane.b32.xlu0 %v467, 120
  %v2347 = vpop.permute.xlu0 %2346
  %2348 = vrot.lane.b32.xlu0 %v468, 120
  %v2349 = vpop.permute.xlu0 %2348
  %2350 = vrot.lane.b32.xlu0 %v469, 120
  %v2351 = vpop.permute.xlu0 %2350
  %2352 = vrot.lane.b32.xlu0 %v470, 120
  %v2353 = vpop.permute.xlu0 %2352
  %2354 = vrot.lane.b32.xlu0 %v471, 120
  %v2355 = vpop.permute.xlu0 %2354
  %2356 = vrot.lane.b32.xlu0 %v705, 120
  %v2357 = vpop.permute.xlu0 %2356
  %2358 = vrot.lane.b32.xlu0 %v853, 120
  %v2359 = vpop.permute.xlu0 %2358
  %v2364 = vunpack.c.l.b16 %v236
  %v2365 = vunpack.c.l.b16 %v237
  %v2366 = vunpack.c.l.b16 %v238
  %v2367 = vunpack.c.l.b16 %v239
  %v2368 = vpack.c.b16 %v2365, %v2364
  %v2369 = vpack.c.b16 %v2367, %v2366
  %2370 = vrot.lane.b32.xlu0 %v602, 32
  %v2371 = vpop.permute.xlu0 %2370
  %2372 = vrot.lane.b32.xlu0 %v603, 32
  %v2373 = vpop.permute.xlu0 %2372
  %2374 = vrot.lane.b32.xlu0 %v604, 32
  %v2375 = vpop.permute.xlu0 %2374
  %2376 = vrot.lane.b32.xlu0 %v605, 32
  %v2377 = vpop.permute.xlu0 %2376
  %2378 = vrot.lane.b32.xlu0 %v606, 32
  %v2379 = vpop.permute.xlu0 %2378
  %2380 = vrot.lane.b32.xlu0 %v607, 32
  %v2381 = vpop.permute.xlu0 %2380
  %2382 = vrot.lane.b32.xlu0 %v608, 32
  %v2383 = vpop.permute.xlu0 %2382
  %2384 = vrot.lane.b32.xlu0 %v609, 32
  %v2385 = vpop.permute.xlu0 %2384
  %2386 = vrot.lane.b32.xlu0 %v610, 32
  %v2387 = vpop.permute.xlu0 %2386
  %2388 = vrot.lane.b32.xlu0 %v611, 32
  %v2389 = vpop.permute.xlu0 %2388
  %2390 = vrot.lane.b32.xlu0 %v612, 32
  %v2391 = vpop.permute.xlu0 %2390
  %2392 = vrot.lane.b32.xlu0 %v613, 32
  %v2393 = vpop.permute.xlu0 %2392
  %2394 = vrot.lane.b32.xlu0 %v614, 32
  %v2395 = vpop.permute.xlu0 %2394
  %2396 = vrot.lane.b32.xlu0 %v615, 32
  %v2397 = vpop.permute.xlu0 %2396
  %2398 = vrot.lane.b32.xlu0 %v778, 32
  %v2399 = vpop.permute.xlu0 %2398
  %2400 = vrot.lane.b32.xlu0 %v2368, 32
  %v2401 = vpop.permute.xlu0 %2400
  %2402 = vrot.lane.b32.xlu0 %v618, 32
  %v2403 = vpop.permute.xlu0 %2402
  %2404 = vrot.lane.b32.xlu0 %v619, 32
  %v2405 = vpop.permute.xlu0 %2404
  %2406 = vrot.lane.b32.xlu0 %v620, 32
  %v2407 = vpop.permute.xlu0 %2406
  %2408 = vrot.lane.b32.xlu0 %v621, 32
  %v2409 = vpop.permute.xlu0 %2408
  %2410 = vrot.lane.b32.xlu0 %v622, 32
  %v2411 = vpop.permute.xlu0 %2410
  %2412 = vrot.lane.b32.xlu0 %v623, 32
  %v2413 = vpop.permute.xlu0 %2412
  %2414 = vrot.lane.b32.xlu0 %v624, 32
  %v2415 = vpop.permute.xlu0 %2414
  %2416 = vrot.lane.b32.xlu0 %v625, 32
  %v2417 = vpop.permute.xlu0 %2416
  %2418 = vrot.lane.b32.xlu0 %v626, 32
  %v2419 = vpop.permute.xlu0 %2418
  %2420 = vrot.lane.b32.xlu0 %v627, 32
  %v2421 = vpop.permute.xlu0 %2420
  %2422 = vrot.lane.b32.xlu0 %v628, 32
  %v2423 = vpop.permute.xlu0 %2422
  %2424 = vrot.lane.b32.xlu0 %v629, 32
  %v2425 = vpop.permute.xlu0 %2424
  %2426 = vrot.lane.b32.xlu0 %v630, 32
  %v2427 = vpop.permute.xlu0 %2426
  %2428 = vrot.lane.b32.xlu0 %v631, 32
  %v2429 = vpop.permute.xlu0 %2428
  %2430 = vrot.lane.b32.xlu0 %v779, 32
  %v2431 = vpop.permute.xlu0 %2430
  %2432 = vrot.lane.b32.xlu0 %v2369, 32
  %v2433 = vpop.permute.xlu0 %2432
  %v2436 = vsel %vm918, %v600, %v2169
  %v2439 = vsel %vm918, %v601, %v2171
  %v2442 = vsel %vm918, %v602, %v2173
  %v2445 = vsel %vm918, %v603, %v2175
  %v2448 = vsel %vm918, %v604, %v2177
  %v2451 = vsel %vm918, %v605, %v2179
  %v2454 = vsel %vm918, %v606, %v2181
  %v2457 = vsel %vm918, %v607, %v2183
  %v2460 = vsel %vm918, %v608, %v2185
  %v2463 = vsel %vm918, %v609, %v2187
  %v2466 = vsel %vm918, %v610, %v2189
  %v2469 = vsel %vm918, %v611, %v2191
  %v2472 = vsel %vm918, %v612, %v2193
  %v2475 = vsel %vm918, %v613, %v2195
  %v2478 = vsel %vm918, %v614, %v2197
  %v2481 = vsel %vm918, %v615, %v2199
  %v2484 = vsel %vm918, %v616, %v2201
  %v2487 = vsel %vm918, %v617, %v2203
  %v2490 = vsel %vm918, %v618, %v2205
  %v2493 = vsel %vm918, %v619, %v2207
  %v2496 = vsel %vm918, %v620, %v2209
  %v2499 = vsel %vm918, %v621, %v2211
  %v2502 = vsel %vm918, %v622, %v2213
  %v2505 = vsel %vm918, %v623, %v2215
  %v2508 = vsel %vm918, %v624, %v2217
  %v2511 = vsel %vm918, %v625, %v2219
  %v2514 = vsel %vm918, %v626, %v2221
  %v2517 = vsel %vm918, %v627, %v2223
  %v2520 = vsel %vm918, %v628, %v2225
  %v2523 = vsel %vm918, %v629, %v2227
  %v2526 = vsel %vm918, %v630, %v2229
  %v2529 = vsel %vm918, %v631, %v2231
  %v2531 = vsel %vm1015, %v2436, %v2233
  %v2533 = vsel %vm1015, %v2439, %v2235
  %v2535 = vsel %vm1015, %v2442, %v2237
  %v2537 = vsel %vm1015, %v2445, %v2239
  %v2539 = vsel %vm1015, %v2448, %v2241
  %v2541 = vsel %vm1015, %v2451, %v2243
  %v2543 = vsel %vm1015, %v2454, %v2245
  %v2545 = vsel %vm1015, %v2457, %v2247
  %v2547 = vsel %vm1015, %v2460, %v2249
  %v2549 = vsel %vm1015, %v2463, %v2251
  %v2551 = vsel %vm1015, %v2466, %v2253
  %v2553 = vsel %vm1015, %v2469, %v2255
  %v2555 = vsel %vm1015, %v2472, %v2257
  %v2557 = vsel %vm1015, %v2475, %v2259
  %v2559 = vsel %vm1015, %v2478, %v2261
  %v2561 = vsel %vm1015, %v2481, %v2263
  %v2563 = vsel %vm1015, %v2484, %v2265
  %v2565 = vsel %vm1015, %v2487, %v2267
  %v2567 = vsel %vm1015, %v2490, %v2269
  %v2569 = vsel %vm1015, %v2493, %v2271
  %v2571 = vsel %vm1015, %v2496, %v2273
  %v2573 = vsel %vm1015, %v2499, %v2275
  %v2575 = vsel %vm1015, %v2502, %v2277
  %v2577 = vsel %vm1015, %v2505, %v2279
  %v2579 = vsel %vm1015, %v2508, %v2281
  %v2581 = vsel %vm1015, %v2511, %v2283
  %v2583 = vsel %vm1015, %v2514, %v2285
  %v2585 = vsel %vm1015, %v2517, %v2287
  %v2587 = vsel %vm1015, %v2520, %v2289
  %v2589 = vsel %vm1015, %v2523, %v2291
  %v2591 = vsel %vm1015, %v2526, %v2293
  %v2593 = vsel %vm1015, %v2529, %v2295
  %v2595 = vsel %vm1080, %v2531, %v2297
  %v2598 = vsel %vm1080, %v2533, %v2299
  %v2601 = vsel %vm1080, %v2535, %v2301
  %v2604 = vsel %vm1080, %v2537, %v2303
  %v2607 = vsel %vm1080, %v2539, %v2305
  %v2610 = vsel %vm1080, %v2541, %v2307
  %v2613 = vsel %vm1080, %v2543, %v2309
  %v2616 = vsel %vm1080, %v2545, %v2311
  %v2619 = vsel %vm1080, %v2547, %v2313
  %v2622 = vsel %vm1080, %v2549, %v2315
  %v2625 = vsel %vm1080, %v2551, %v2317
  %v2628 = vsel %vm1080, %v2553, %v2319
  %v2631 = vsel %vm1080, %v2555, %v2321
  %v2634 = vsel %vm1080, %v2557, %v2323
  %v2637 = vsel %vm1080, %v2559, %v2325
  %v2640 = vsel %vm1080, %v2561, %v2327
  %v2643 = vsel %vm1080, %v2563, %v2329
  %v2646 = vsel %vm1080, %v2565, %v2331
  %v2649 = vsel %vm1080, %v2567, %v2333
  %v2652 = vsel %vm1080, %v2569, %v2335
  %v2655 = vsel %vm1080, %v2571, %v2337
  %v2658 = vsel %vm1080, %v2573, %v2339
  %v2661 = vsel %vm1080, %v2575, %v2341
  %v2664 = vsel %vm1080, %v2577, %v2343
  %v2667 = vsel %vm1080, %v2579, %v2345
  %v2670 = vsel %vm1080, %v2581, %v2347
  %v2673 = vsel %vm1080, %v2583, %v2349
  %v2676 = vsel %vm1080, %v2585, %v2351
  %v2679 = vsel %vm1080, %v2587, %v2353
  %v2682 = vsel %vm1080, %v2589, %v2355
  %v2685 = vsel %vm1080, %v2591, %v2357
  %v2688 = vsel %vm1080, %v2593, %v2359
  %v2691 = vsel %vm1177, %v2297, %v2371
  %v2693 = vsel %vm1177, %v2299, %v2373
  %v2695 = vsel %vm1177, %v2301, %v2375
  %v2697 = vsel %vm1177, %v2303, %v2377
  %v2699 = vsel %vm1177, %v2305, %v2379
  %v2701 = vsel %vm1177, %v2307, %v2381
  %v2703 = vsel %vm1177, %v2309, %v2383
  %v2705 = vsel %vm1177, %v2311, %v2385
  %v2707 = vsel %vm1177, %v2313, %v2387
  %v2709 = vsel %vm1177, %v2315, %v2389
  %v2711 = vsel %vm1177, %v2317, %v2391
  %v2713 = vsel %vm1177, %v2319, %v2393
  %v2715 = vsel %vm1177, %v2321, %v2395
  %v2717 = vsel %vm1177, %v2323, %v2397
  %v2719 = vsel %vm1177, %v2325, %v2399
  %v2721 = vsel %vm1177, %v2327, %v2401
  %v2723 = vsel %vm1177, %v2329, %v2403
  %v2725 = vsel %vm1177, %v2331, %v2405
  %v2727 = vsel %vm1177, %v2333, %v2407
  %v2729 = vsel %vm1177, %v2335, %v2409
  %v2731 = vsel %vm1177, %v2337, %v2411
  %v2733 = vsel %vm1177, %v2339, %v2413
  %v2735 = vsel %vm1177, %v2341, %v2415
  %v2737 = vsel %vm1177, %v2343, %v2417
  %v2739 = vsel %vm1177, %v2345, %v2419
  %v2741 = vsel %vm1177, %v2347, %v2421
  %v2743 = vsel %vm1177, %v2349, %v2423
  %v2745 = vsel %vm1177, %v2351, %v2425
  %v2747 = vsel %vm1177, %v2353, %v2427
  %v2749 = vsel %vm1177, %v2355, %v2429
  %v2751 = vsel %vm1177, %v2357, %v2431
  %v2753 = vsel %vm1177, %v2359, %v2433
  %2754 = vrot.lane.b32.xlu0 %v1371, 40
  %v2755 = vpop.permute.xlu0 %2754
  %2756 = vrot.lane.b32.xlu0 %v1372, 40
  %v2757 = vpop.permute.xlu0 %2756
  %2758 = vrot.lane.b32.xlu0 %v1373, 40
  %v2759 = vpop.permute.xlu0 %2758
  %2760 = vrot.lane.b32.xlu0 %v1374, 40
  %v2761 = vpop.permute.xlu0 %2760
  %2762 = vrot.lane.b32.xlu0 %v1375, 40
  %v2763 = vpop.permute.xlu0 %2762
  %2764 = vrot.lane.b32.xlu0 %v1376, 40
  %v2765 = vpop.permute.xlu0 %2764
  %2766 = vrot.lane.b32.xlu0 %v1377, 40
  %v2767 = vpop.permute.xlu0 %2766
  %2768 = vrot.lane.b32.xlu0 %v1378, 40
  %v2769 = vpop.permute.xlu0 %2768
  %2770 = vrot.lane.b32.xlu0 %v1379, 40
  %v2771 = vpop.permute.xlu0 %2770
  %2772 = vrot.lane.b32.xlu0 %v1380, 40
  %v2773 = vpop.permute.xlu0 %2772
  %2774 = vrot.lane.b32.xlu0 %v1381, 40
  %v2775 = vpop.permute.xlu0 %2774
  %2776 = vrot.lane.b32.xlu0 %v1382, 40
  %v2777 = vpop.permute.xlu0 %2776
  %2778 = vrot.lane.b32.xlu0 %v1383, 40
  %v2779 = vpop.permute.xlu0 %2778
  %2780 = vrot.lane.b32.xlu0 %v1384, 40
  %v2781 = vpop.permute.xlu0 %2780
  %2782 = vrot.lane.b32.xlu0 %v1385, 40
  %v2783 = vpop.permute.xlu0 %2782
  %2784 = vrot.lane.b32.xlu0 %v1634, 40
  %v2785 = vpop.permute.xlu0 %2784
  %2786 = vrot.lane.b32.xlu0 %v1387, 40
  %v2787 = vpop.permute.xlu0 %2786
  %2788 = vrot.lane.b32.xlu0 %v1388, 40
  %v2789 = vpop.permute.xlu0 %2788
  %2790 = vrot.lane.b32.xlu0 %v1389, 40
  %v2791 = vpop.permute.xlu0 %2790
  %2792 = vrot.lane.b32.xlu0 %v1390, 40
  %v2793 = vpop.permute.xlu0 %2792
  %2794 = vrot.lane.b32.xlu0 %v1391, 40
  %v2795 = vpop.permute.xlu0 %2794
  %2796 = vrot.lane.b32.xlu0 %v1392, 40
  %v2797 = vpop.permute.xlu0 %2796
  %2798 = vrot.lane.b32.xlu0 %v1393, 40
  %v2799 = vpop.permute.xlu0 %2798
  %2800 = vrot.lane.b32.xlu0 %v1394, 40
  %v2801 = vpop.permute.xlu0 %2800
  %2802 = vrot.lane.b32.xlu0 %v1395, 40
  %v2803 = vpop.permute.xlu0 %2802
  %2804 = vrot.lane.b32.xlu0 %v1396, 40
  %v2805 = vpop.permute.xlu0 %2804
  %2806 = vrot.lane.b32.xlu0 %v1397, 40
  %v2807 = vpop.permute.xlu0 %2806
  %2808 = vrot.lane.b32.xlu0 %v1398, 40
  %v2809 = vpop.permute.xlu0 %2808
  %2810 = vrot.lane.b32.xlu0 %v1399, 40
  %v2811 = vpop.permute.xlu0 %2810
  %2812 = vrot.lane.b32.xlu0 %v1400, 40
  %v2813 = vpop.permute.xlu0 %2812
  %2814 = vrot.lane.b32.xlu0 %v1401, 40
  %v2815 = vpop.permute.xlu0 %2814
  %2816 = vrot.lane.b32.xlu0 %v1635, 40
  %v2817 = vpop.permute.xlu0 %2816
  %2818 = vrot.lane.b32.xlu0 %v1531, 80
  %v2819 = vpop.permute.xlu0 %2818
  %2820 = vrot.lane.b32.xlu0 %v1532, 80
  %v2821 = vpop.permute.xlu0 %2820
  %2822 = vrot.lane.b32.xlu0 %v1533, 80
  %v2823 = vpop.permute.xlu0 %2822
  %2824 = vrot.lane.b32.xlu0 %v1534, 80
  %v2825 = vpop.permute.xlu0 %2824
  %2826 = vrot.lane.b32.xlu0 %v1535, 80
  %v2827 = vpop.permute.xlu0 %2826
  %2828 = vrot.lane.b32.xlu0 %v1536, 80
  %v2829 = vpop.permute.xlu0 %2828
  %2830 = vrot.lane.b32.xlu0 %v1537, 80
  %v2831 = vpop.permute.xlu0 %2830
  %2832 = vrot.lane.b32.xlu0 %v1538, 80
  %v2833 = vpop.permute.xlu0 %2832
  %2834 = vrot.lane.b32.xlu0 %v1539, 80
  %v2835 = vpop.permute.xlu0 %2834
  %2836 = vrot.lane.b32.xlu0 %v1540, 80
  %v2837 = vpop.permute.xlu0 %2836
  %2838 = vrot.lane.b32.xlu0 %v1541, 80
  %v2839 = vpop.permute.xlu0 %2838
  %2840 = vrot.lane.b32.xlu0 %v1542, 80
  %v2841 = vpop.permute.xlu0 %2840
  %2842 = vrot.lane.b32.xlu0 %v1543, 80
  %v2843 = vpop.permute.xlu0 %2842
  %2844 = vrot.lane.b32.xlu0 %v1544, 80
  %v2845 = vpop.permute.xlu0 %2844
  %2846 = vrot.lane.b32.xlu0 %v1545, 80
  %v2847 = vpop.permute.xlu0 %2846
  %2848 = vrot.lane.b32.xlu0 %v1708, 80
  %v2849 = vpop.permute.xlu0 %2848
  %2850 = vrot.lane.b32.xlu0 %v1547, 80
  %v2851 = vpop.permute.xlu0 %2850
  %2852 = vrot.lane.b32.xlu0 %v1548, 80
  %v2853 = vpop.permute.xlu0 %2852
  %2854 = vrot.lane.b32.xlu0 %v1549, 80
  %v2855 = vpop.permute.xlu0 %2854
  %2856 = vrot.lane.b32.xlu0 %v1550, 80
  %v2857 = vpop.permute.xlu0 %2856
  %2858 = vrot.lane.b32.xlu0 %v1551, 80
  %v2859 = vpop.permute.xlu0 %2858
  %2860 = vrot.lane.b32.xlu0 %v1552, 80
  %v2861 = vpop.permute.xlu0 %2860
  %2862 = vrot.lane.b32.xlu0 %v1553, 80
  %v2863 = vpop.permute.xlu0 %2862
  %2864 = vrot.lane.b32.xlu0 %v1554, 80
  %v2865 = vpop.permute.xlu0 %2864
  %2866 = vrot.lane.b32.xlu0 %v1555, 80
  %v2867 = vpop.permute.xlu0 %2866
  %2868 = vrot.lane.b32.xlu0 %v1556, 80
  %v2869 = vpop.permute.xlu0 %2868
  %2870 = vrot.lane.b32.xlu0 %v1557, 80
  %v2871 = vpop.permute.xlu0 %2870
  %2872 = vrot.lane.b32.xlu0 %v1558, 80
  %v2873 = vpop.permute.xlu0 %2872
  %2874 = vrot.lane.b32.xlu0 %v1559, 80
  %v2875 = vpop.permute.xlu0 %2874
  %2876 = vrot.lane.b32.xlu0 %v1560, 80
  %v2877 = vpop.permute.xlu0 %2876
  %2878 = vrot.lane.b32.xlu0 %v1561, 80
  %v2879 = vpop.permute.xlu0 %2878
  %2880 = vrot.lane.b32.xlu0 %v1709, 80
  %v2881 = vpop.permute.xlu0 %2880
  %2882 = vrot.lane.b32.xlu0 %v1372, 120
  %v2883 = vpop.permute.xlu0 %2882
  %2884 = vrot.lane.b32.xlu0 %v1373, 120
  %v2885 = vpop.permute.xlu0 %2884
  %2886 = vrot.lane.b32.xlu0 %v1374, 120
  %v2887 = vpop.permute.xlu0 %2886
  %2888 = vrot.lane.b32.xlu0 %v1375, 120
  %v2889 = vpop.permute.xlu0 %2888
  %2890 = vrot.lane.b32.xlu0 %v1376, 120
  %v2891 = vpop.permute.xlu0 %2890
  %2892 = vrot.lane.b32.xlu0 %v1377, 120
  %v2893 = vpop.permute.xlu0 %2892
  %2894 = vrot.lane.b32.xlu0 %v1378, 120
  %v2895 = vpop.permute.xlu0 %2894
  %2896 = vrot.lane.b32.xlu0 %v1379, 120
  %v2897 = vpop.permute.xlu0 %2896
  %2898 = vrot.lane.b32.xlu0 %v1380, 120
  %v2899 = vpop.permute.xlu0 %2898
  %2900 = vrot.lane.b32.xlu0 %v1381, 120
  %v2901 = vpop.permute.xlu0 %2900
  %2902 = vrot.lane.b32.xlu0 %v1382, 120
  %v2903 = vpop.permute.xlu0 %2902
  %2904 = vrot.lane.b32.xlu0 %v1383, 120
  %v2905 = vpop.permute.xlu0 %2904
  %2906 = vrot.lane.b32.xlu0 %v1384, 120
  %v2907 = vpop.permute.xlu0 %2906
  %2908 = vrot.lane.b32.xlu0 %v1385, 120
  %v2909 = vpop.permute.xlu0 %2908
  %2910 = vrot.lane.b32.xlu0 %v1634, 120
  %v2911 = vpop.permute.xlu0 %2910
  %2912 = vrot.lane.b32.xlu0 %v1782, 120
  %v2913 = vpop.permute.xlu0 %2912
  %2914 = vrot.lane.b32.xlu0 %v1388, 120
  %v2915 = vpop.permute.xlu0 %2914
  %2916 = vrot.lane.b32.xlu0 %v1389, 120
  %v2917 = vpop.permute.xlu0 %2916
  %2918 = vrot.lane.b32.xlu0 %v1390, 120
  %v2919 = vpop.permute.xlu0 %2918
  %2920 = vrot.lane.b32.xlu0 %v1391, 120
  %v2921 = vpop.permute.xlu0 %2920
  %2922 = vrot.lane.b32.xlu0 %v1392, 120
  %v2923 = vpop.permute.xlu0 %2922
  %2924 = vrot.lane.b32.xlu0 %v1393, 120
  %v2925 = vpop.permute.xlu0 %2924
  %2926 = vrot.lane.b32.xlu0 %v1394, 120
  %v2927 = vpop.permute.xlu0 %2926
  %2928 = vrot.lane.b32.xlu0 %v1395, 120
  %v2929 = vpop.permute.xlu0 %2928
  %2930 = vrot.lane.b32.xlu0 %v1396, 120
  %v2931 = vpop.permute.xlu0 %2930
  %2932 = vrot.lane.b32.xlu0 %v1397, 120
  %v2933 = vpop.permute.xlu0 %2932
  %2934 = vrot.lane.b32.xlu0 %v1398, 120
  %v2935 = vpop.permute.xlu0 %2934
  %2936 = vrot.lane.b32.xlu0 %v1399, 120
  %v2937 = vpop.permute.xlu0 %2936
  %2938 = vrot.lane.b32.xlu0 %v1400, 120
  %v2939 = vpop.permute.xlu0 %2938
  %2940 = vrot.lane.b32.xlu0 %v1401, 120
  %v2941 = vpop.permute.xlu0 %2940
  %2942 = vrot.lane.b32.xlu0 %v1635, 120
  %v2943 = vpop.permute.xlu0 %2942
  %2944 = vrot.lane.b32.xlu0 %v1783, 120
  %v2945 = vpop.permute.xlu0 %2944
  %v2950 = vunpack.c.l.b16 %v308
  %v2951 = vunpack.c.l.b16 %v309
  %v2952 = vunpack.c.l.b16 %v310
  %v2953 = vunpack.c.l.b16 %v311
  %v2954 = vpack.c.b16 %v2951, %v2950
  %v2955 = vpack.c.b16 %v2953, %v2952
  %2956 = vrot.lane.b32.xlu0 %v1532, 32
  %v2957 = vpop.permute.xlu0 %2956
  %2958 = vrot.lane.b32.xlu0 %v1533, 32
  %v2959 = vpop.permute.xlu0 %2958
  %2960 = vrot.lane.b32.xlu0 %v1534, 32
  %v2961 = vpop.permute.xlu0 %2960
  %2962 = vrot.lane.b32.xlu0 %v1535, 32
  %v2963 = vpop.permute.xlu0 %2962
  %2964 = vrot.lane.b32.xlu0 %v1536, 32
  %v2965 = vpop.permute.xlu0 %2964
  %2966 = vrot.lane.b32.xlu0 %v1537, 32
  %v2967 = vpop.permute.xlu0 %2966
  %2968 = vrot.lane.b32.xlu0 %v1538, 32
  %v2969 = vpop.permute.xlu0 %2968
  %2970 = vrot.lane.b32.xlu0 %v1539, 32
  %v2971 = vpop.permute.xlu0 %2970
  %2972 = vrot.lane.b32.xlu0 %v1540, 32
  %v2973 = vpop.permute.xlu0 %2972
  %2974 = vrot.lane.b32.xlu0 %v1541, 32
  %v2975 = vpop.permute.xlu0 %2974
  %2976 = vrot.lane.b32.xlu0 %v1542, 32
  %v2977 = vpop.permute.xlu0 %2976
  %2978 = vrot.lane.b32.xlu0 %v1543, 32
  %v2979 = vpop.permute.xlu0 %2978
  %2980 = vrot.lane.b32.xlu0 %v1544, 32
  %v2981 = vpop.permute.xlu0 %2980
  %2982 = vrot.lane.b32.xlu0 %v1545, 32
  %v2983 = vpop.permute.xlu0 %2982
  %2984 = vrot.lane.b32.xlu0 %v1708, 32
  %v2985 = vpop.permute.xlu0 %2984
  %2986 = vrot.lane.b32.xlu0 %v2954, 32
  %v2987 = vpop.permute.xlu0 %2986
  %2988 = vrot.lane.b32.xlu0 %v1548, 32
  %v2989 = vpop.permute.xlu0 %2988
  %2990 = vrot.lane.b32.xlu0 %v1549, 32
  %v2991 = vpop.permute.xlu0 %2990
  %2992 = vrot.lane.b32.xlu0 %v1550, 32
  %v2993 = vpop.permute.xlu0 %2992
  %2994 = vrot.lane.b32.xlu0 %v1551, 32
  %v2995 = vpop.permute.xlu0 %2994
  %2996 = vrot.lane.b32.xlu0 %v1552, 32
  %v2997 = vpop.permute.xlu0 %2996
  %2998 = vrot.lane.b32.xlu0 %v1553, 32
  %v2999 = vpop.permute.xlu0 %2998
  %3000 = vrot.lane.b32.xlu0 %v1554, 32
  %v3001 = vpop.permute.xlu0 %3000
  %3002 = vrot.lane.b32.xlu0 %v1555, 32
  %v3003 = vpop.permute.xlu0 %3002
  %3004 = vrot.lane.b32.xlu0 %v1556, 32
  %v3005 = vpop.permute.xlu0 %3004
  %3006 = vrot.lane.b32.xlu0 %v1557, 32
  %v3007 = vpop.permute.xlu0 %3006
  %3008 = vrot.lane.b32.xlu0 %v1558, 32
  %v3009 = vpop.permute.xlu0 %3008
  %3010 = vrot.lane.b32.xlu0 %v1559, 32
  %v3011 = vpop.permute.xlu0 %3010
  %3012 = vrot.lane.b32.xlu0 %v1560, 32
  %v3013 = vpop.permute.xlu0 %3012
  %3014 = vrot.lane.b32.xlu0 %v1561, 32
  %v3015 = vpop.permute.xlu0 %3014
  %3016 = vrot.lane.b32.xlu0 %v1709, 32
  %v3017 = vpop.permute.xlu0 %3016
  %3018 = vrot.lane.b32.xlu0 %v2955, 32
  %v3019 = vpop.permute.xlu0 %3018
  %v3022 = vsel %vm918, %v1530, %v2755
  %v3025 = vsel %vm918, %v1531, %v2757
  %v3028 = vsel %vm918, %v1532, %v2759
  %v3031 = vsel %vm918, %v1533, %v2761
  %v3034 = vsel %vm918, %v1534, %v2763
  %v3037 = vsel %vm918, %v1535, %v2765
  %v3040 = vsel %vm918, %v1536, %v2767
  %v3043 = vsel %vm918, %v1537, %v2769
  %v3046 = vsel %vm918, %v1538, %v2771
  %v3049 = vsel %vm918, %v1539, %v2773
  %v3052 = vsel %vm918, %v1540, %v2775
  %v3055 = vsel %vm918, %v1541, %v2777
  %v3058 = vsel %vm918, %v1542, %v2779
  %v3061 = vsel %vm918, %v1543, %v2781
  %v3064 = vsel %vm918, %v1544, %v2783
  %v3067 = vsel %vm918, %v1545, %v2785
  %v3070 = vsel %vm918, %v1546, %v2787
  %v3073 = vsel %vm918, %v1547, %v2789
  %v3076 = vsel %vm918, %v1548, %v2791
  %v3079 = vsel %vm918, %v1549, %v2793
  %v3082 = vsel %vm918, %v1550, %v2795
  %v3085 = vsel %vm918, %v1551, %v2797
  %v3088 = vsel %vm918, %v1552, %v2799
  %v3091 = vsel %vm918, %v1553, %v2801
  %v3094 = vsel %vm918, %v1554, %v2803
  %v3097 = vsel %vm918, %v1555, %v2805
  %v3100 = vsel %vm918, %v1556, %v2807
  %v3103 = vsel %vm918, %v1557, %v2809
  %v3106 = vsel %vm918, %v1558, %v2811
  %v3109 = vsel %vm918, %v1559, %v2813
  %v3112 = vsel %vm918, %v1560, %v2815
  %v3115 = vsel %vm918, %v1561, %v2817
  %v3117 = vsel %vm1015, %v3022, %v2819
  %v3119 = vsel %vm1015, %v3025, %v2821
  %v3121 = vsel %vm1015, %v3028, %v2823
  %v3123 = vsel %vm1015, %v3031, %v2825
  %v3125 = vsel %vm1015, %v3034, %v2827
  %v3127 = vsel %vm1015, %v3037, %v2829
  %v3129 = vsel %vm1015, %v3040, %v2831
  %v3131 = vsel %vm1015, %v3043, %v2833
  %v3133 = vsel %vm1015, %v3046, %v2835
  %v3135 = vsel %vm1015, %v3049, %v2837
  %v3137 = vsel %vm1015, %v3052, %v2839
  %v3139 = vsel %vm1015, %v3055, %v2841
  %v3141 = vsel %vm1015, %v3058, %v2843
  %v3143 = vsel %vm1015, %v3061, %v2845
  %v3145 = vsel %vm1015, %v3064, %v2847
  %v3147 = vsel %vm1015, %v3067, %v2849
  %v3149 = vsel %vm1015, %v3070, %v2851
  %v3151 = vsel %vm1015, %v3073, %v2853
  %v3153 = vsel %vm1015, %v3076, %v2855
  %v3155 = vsel %vm1015, %v3079, %v2857
  %v3157 = vsel %vm1015, %v3082, %v2859
  %v3159 = vsel %vm1015, %v3085, %v2861
  %v3161 = vsel %vm1015, %v3088, %v2863
  %v3163 = vsel %vm1015, %v3091, %v2865
  %v3165 = vsel %vm1015, %v3094, %v2867
  %v3167 = vsel %vm1015, %v3097, %v2869
  %v3169 = vsel %vm1015, %v3100, %v2871
  %v3171 = vsel %vm1015, %v3103, %v2873
  %v3173 = vsel %vm1015, %v3106, %v2875
  %v3175 = vsel %vm1015, %v3109, %v2877
  %v3177 = vsel %vm1015, %v3112, %v2879
  %v3179 = vsel %vm1015, %v3115, %v2881
  %v3181 = vsel %vm1080, %v3117, %v2883
  %v3184 = vsel %vm1080, %v3119, %v2885
  %v3187 = vsel %vm1080, %v3121, %v2887
  %v3190 = vsel %vm1080, %v3123, %v2889
  %v3193 = vsel %vm1080, %v3125, %v2891
  %v3196 = vsel %vm1080, %v3127, %v2893
  %v3199 = vsel %vm1080, %v3129, %v2895
  %v3202 = vsel %vm1080, %v3131, %v2897
  %v3205 = vsel %vm1080, %v3133, %v2899
  %v3208 = vsel %vm1080, %v3135, %v2901
  %v3211 = vsel %vm1080, %v3137, %v2903
  %v3214 = vsel %vm1080, %v3139, %v2905
  %v3217 = vsel %vm1080, %v3141, %v2907
  %v3220 = vsel %vm1080, %v3143, %v2909
  %v3223 = vsel %vm1080, %v3145, %v2911
  %v3226 = vsel %vm1080, %v3147, %v2913
  %v3229 = vsel %vm1080, %v3149, %v2915
  %v3232 = vsel %vm1080, %v3151, %v2917
  %v3235 = vsel %vm1080, %v3153, %v2919
  %v3238 = vsel %vm1080, %v3155, %v2921
  %v3241 = vsel %vm1080, %v3157, %v2923
  %v3244 = vsel %vm1080, %v3159, %v2925
  %v3247 = vsel %vm1080, %v3161, %v2927
  %v3250 = vsel %vm1080, %v3163, %v2929
  %v3253 = vsel %vm1080, %v3165, %v2931
  %v3256 = vsel %vm1080, %v3167, %v2933
  %v3259 = vsel %vm1080, %v3169, %v2935
  %v3262 = vsel %vm1080, %v3171, %v2937
  %v3265 = vsel %vm1080, %v3173, %v2939
  %v3268 = vsel %vm1080, %v3175, %v2941
  %v3271 = vsel %vm1080, %v3177, %v2943
  %v3274 = vsel %vm1080, %v3179, %v2945
  %v3277 = vsel %vm1177, %v2883, %v2957
  %v3279 = vsel %vm1177, %v2885, %v2959
  %v3281 = vsel %vm1177, %v2887, %v2961
  %v3283 = vsel %vm1177, %v2889, %v2963
  %v3285 = vsel %vm1177, %v2891, %v2965
  %v3287 = vsel %vm1177, %v2893, %v2967
  %v3289 = vsel %vm1177, %v2895, %v2969
  %v3291 = vsel %vm1177, %v2897, %v2971
  %v3293 = vsel %vm1177, %v2899, %v2973
  %v3295 = vsel %vm1177, %v2901, %v2975
  %v3297 = vsel %vm1177, %v2903, %v2977
  %v3299 = vsel %vm1177, %v2905, %v2979
  %v3301 = vsel %vm1177, %v2907, %v2981
  %v3303 = vsel %vm1177, %v2909, %v2983
  %v3305 = vsel %vm1177, %v2911, %v2985
  %v3307 = vsel %vm1177, %v2913, %v2987
  %v3309 = vsel %vm1177, %v2915, %v2989
  %v3311 = vsel %vm1177, %v2917, %v2991
  %v3313 = vsel %vm1177, %v2919, %v2993
  %v3315 = vsel %vm1177, %v2921, %v2995
  %v3317 = vsel %vm1177, %v2923, %v2997
  %v3319 = vsel %vm1177, %v2925, %v2999
  %v3321 = vsel %vm1177, %v2927, %v3001
  %v3323 = vsel %vm1177, %v2929, %v3003
  %v3325 = vsel %vm1177, %v2931, %v3005
  %v3327 = vsel %vm1177, %v2933, %v3007
  %v3329 = vsel %vm1177, %v2935, %v3009
  %v3331 = vsel %vm1177, %v2937, %v3011
  %v3333 = vsel %vm1177, %v2939, %v3013
  %v3335 = vsel %vm1177, %v2941, %v3015
  %v3337 = vsel %vm1177, %v2943, %v3017
  %v3339 = vsel %vm1177, %v2945, %v3019
  %v3340 = vld [vmem:[%s4] sm:$0xf]
  %v3341 = vld [vmem:[%s4 + $0x4] sm:$0xf]
  %v3342 = vld [vmem:[%s4 + $0x8] sm:$0xf]
  %v3343 = vld [vmem:[%s4 + $0xc] sm:$0xf]
  %v3344 = vld [vmem:[%s4 + $0x10] sm:$0xf]
  %v3345 = vld [vmem:[%s4 + $0x14] sm:$0xf]
  %v3346 = vld [vmem:[%s4 + $0x18] sm:$0xf]
  %v3347 = vld [vmem:[%s4 + $0x1c] sm:$0xf]
  %v3348 = vld [vmem:[%s4 + $0x20] sm:$0xf]
  %v3349 = vld [vmem:[%s4 + $0x24] sm:$0xf]
  %v3350 = vld [vmem:[%s4 + $0x28] sm:$0xf]
  %v3351 = vld [vmem:[%s4 + $0x2c] sm:$0xf]
  %v3352 = vld [vmem:[%s4 + $0x30] sm:$0xf]
  %v3353 = vld [vmem:[%s4 + $0x34] sm:$0xf]
  %v3354 = vld [vmem:[%s4 + $0x38] sm:$0xf]
  %v3355 = vld [vmem:[%s4 + $0x3c] sm:$0xf]
  %v3356 = vld [vmem:[%s4 + $0x40] sm:$0xf]
  %v3357 = vld [vmem:[%s4 + $0x44] sm:$0xf]
  %v3358 = vld [vmem:[%s4 + $0x48] sm:$0xf]
  %v3359 = vld [vmem:[%s4 + $0x4c] sm:$0xf]
  %v3360 = vld [vmem:[%s4 + $0x50] sm:$0xf]
  %v3361 = vld [vmem:[%s4 + $0x54] sm:$0xf]
  %v3362 = vld [vmem:[%s4 + $0x58] sm:$0xf]
  %v3363 = vld [vmem:[%s4 + $0x5c] sm:$0xf]
  %v3364 = vld [vmem:[%s4 + $0x60] sm:$0xf]
  %v3390 = vunpack.c.l.b16 %v3340
  %v3391 = vunpack.c.l.b16 %v3341
  %v3392 = vunpack.c.l.b16 %v3342
  %v3393 = vunpack.c.l.b16 %v3343
  %v3394 = vunpack.c.l.b16 %v3344
  %v3395 = vunpack.c.l.b16 %v3345
  %v3396 = vunpack.c.l.b16 %v3346
  %v3397 = vunpack.c.l.b16 %v3347
  %v3398 = vunpack.c.l.b16 %v3348
  %v3399 = vunpack.c.l.b16 %v3349
  %v3400 = vunpack.c.l.b16 %v3350
  %v3401 = vunpack.c.l.b16 %v3351
  %v3402 = vunpack.c.l.b16 %v3352
  %v3403 = vunpack.c.l.b16 %v3353
  %v3404 = vunpack.c.l.b16 %v3354
  %v3405 = vunpack.c.l.b16 %v3355
  %v3406 = vunpack.c.l.b16 %v3356
  %v3407 = vunpack.c.l.b16 %v3357
  %v3408 = vunpack.c.l.b16 %v3358
  %v3409 = vunpack.c.l.b16 %v3359
  %v3410 = vunpack.c.l.b16 %v3360
  %v3411 = vunpack.c.l.b16 %v3361
  %v3412 = vunpack.c.l.b16 %v3362
  %v3413 = vunpack.c.l.b16 %v3363
  %v3414 = vunpack.c.l.b16 %v3364
  %v3415 = vpack.c.b16 %v3391, %v3390
  %v3416 = vpack.c.b16 %v3393, %v3392
  %v3417 = vpack.c.b16 %v3395, %v3394
  %v3418 = vpack.c.b16 %v3397, %v3396
  %v3419 = vpack.c.b16 %v3399, %v3398
  %v3420 = vpack.c.b16 %v3401, %v3400
  %v3421 = vpack.c.b16 %v3403, %v3402
  %v3422 = vpack.c.b16 %v3405, %v3404
  %v3423 = vpack.c.b16 %v3407, %v3406
  %v3424 = vpack.c.b16 %v3409, %v3408
  %v3425 = vpack.c.b16 %v3411, %v3410
  %v3426 = vpack.c.b16 %v3413, %v3412
  %v3427 = vpack.c.b16 %v3414, %v3414
  %vm3440 = vcmask 588800
  %v3441 = vsel %vm3440, %v1179, 0
  %v3443 = vsel %vm3440, %v1181, 0
  %v3445 = vsel %vm3440, %v1183, 0
  %v3447 = vsel %vm3440, %v1185, 0
  %v3449 = vsel %vm3440, %v1187, 0
  %v3451 = vsel %vm3440, %v1189, 0
  %v3453 = vsel %vm3440, %v1191, 0
  %v3455 = vsel %vm3440, %v1193, 0
  %v3457 = vsel %vm3440, %v1195, 0
  %v3459 = vsel %vm3440, %v1197, 0
  %v3461 = vsel %vm3440, %v1199, 0
  %v3463 = vsel %vm3440, %v1201, 0
  %v3465 = vsel %vm3440, %v1203, 0
  %v3467 = vsel %vm3440, %v1205, 0
  %v3469 = vsel %vm3440, %v1207, 0
  %v3471 = vsel %vm3440, %v1209, 0
  %v3473 = vsel %vm3440, %v1211, 0
  %v3475 = vsel %vm3440, %v1213, 0
  %v3477 = vsel %vm3440, %v1215, 0
  %v3479 = vsel %vm3440, %v1217, 0
  %v3481 = vsel %vm3440, %v1219, 0
  %v3483 = vsel %vm3440, %v1221, 0
  %v3485 = vsel %vm3440, %v1223, 0
  %v3487 = vsel %vm3440, %v1225, 0
  %v3489 = vsel %vm3440, %v1227, 0
  %v3491 = vsel %vm3440, %v1229, 0
  %v3493 = vsel %vm3440, %v1231, 0
  %v3495 = vsel %vm3440, %v1233, 0
  %v3497 = vsel %vm3440, %v1235, 0
  %v3499 = vsel %vm3440, %v1237, 0
  %v3501 = vsel %vm3440, %v1239, 0
  %v3503 = vsel %vm3440, %v1241, 0
  %v3505 = vsel %vm3440, %v2105, 0
  %v3507 = vsel %vm3440, %v2107, 0
  %v3509 = vsel %vm3440, %v2109, 0
  %v3511 = vsel %vm3440, %v2111, 0
  %v3513 = vsel %vm3440, %v2113, 0
  %v3515 = vsel %vm3440, %v2115, 0
  %v3517 = vsel %vm3440, %v2117, 0
  %v3519 = vsel %vm3440, %v2119, 0
  %v3521 = vsel %vm3440, %v2121, 0
  %v3523 = vsel %vm3440, %v2123, 0
  %v3525 = vsel %vm3440, %v2125, 0
  %v3527 = vsel %vm3440, %v2127, 0
  %v3529 = vsel %vm3440, %v2129, 0
  %v3531 = vsel %vm3440, %v2131, 0
  %v3533 = vsel %vm3440, %v2133, 0
  %v3535 = vsel %vm3440, %v2135, 0
  %v3537 = vsel %vm3440, %v2137, 0
  %v3539 = vsel %vm3440, %v2139, 0
  %v3541 = vsel %vm3440, %v2141, 0
  %v3543 = vsel %vm3440, %v2143, 0
  %v3545 = vsel %vm3440, %v2145, 0
  %v3547 = vsel %vm3440, %v2147, 0
  %v3549 = vsel %vm3440, %v2149, 0
  %v3551 = vsel %vm3440, %v2151, 0
  %v3553 = vsel %vm3440, %v2153, 0
  %v3555 = vsel %vm3440, %v2155, 0
  %v3557 = vsel %vm3440, %v2157, 0
  %v3559 = vsel %vm3440, %v2159, 0
  %v3561 = vsel %vm3440, %v2161, 0
  %v3563 = vsel %vm3440, %v2163, 0
  %v3565 = vsel %vm3440, %v2165, 0
  %v3567 = vsel %vm3440, %v2167, 0
  %v3569 = vsel %vm3440, %v2691, 0
  %v3571 = vsel %vm3440, %v2693, 0
  %v3573 = vsel %vm3440, %v2695, 0
  %v3575 = vsel %vm3440, %v2697, 0
  %v3577 = vsel %vm3440, %v2699, 0
  %v3579 = vsel %vm3440, %v2701, 0
  %v3581 = vsel %vm3440, %v2703, 0
  %v3583 = vsel %vm3440, %v2705, 0
  %v3585 = vsel %vm3440, %v2707, 0
  %v3587 = vsel %vm3440, %v2709, 0
  %v3589 = vsel %vm3440, %v2711, 0
  %v3591 = vsel %vm3440, %v2713, 0
  %v3593 = vsel %vm3440, %v2715, 0
  %v3595 = vsel %vm3440, %v2717, 0
  %v3597 = vsel %vm3440, %v2719, 0
  %v3599 = vsel %vm3440, %v2721, 0
  %v3601 = vsel %vm3440, %v2723, 0
  %v3603 = vsel %vm3440, %v2725, 0
  %v3605 = vsel %vm3440, %v2727, 0
  %v3607 = vsel %vm3440, %v2729, 0
  %v3609 = vsel %vm3440, %v2731, 0
  %v3611 = vsel %vm3440, %v2733, 0
  %v3613 = vsel %vm3440, %v2735, 0
  %v3615 = vsel %vm3440, %v2737, 0
  %v3617 = vsel %vm3440, %v2739, 0
  %v3619 = vsel %vm3440, %v2741, 0
  %v3621 = vsel %vm3440, %v2743, 0
  %v3623 = vsel %vm3440, %v2745, 0
  %v3625 = vsel %vm3440, %v2747, 0
  %v3627 = vsel %vm3440, %v2749, 0
  %v3629 = vsel %vm3440, %v2751, 0
  %v3631 = vsel %vm3440, %v2753, 0
  %v3633 = vsel %vm3440, %v3277, 0
  %v3635 = vsel %vm3440, %v3279, 0
  %v3637 = vsel %vm3440, %v3281, 0
  %v3639 = vsel %vm3440, %v3283, 0
  %v3641 = vsel %vm3440, %v3285, 0
  %v3643 = vsel %vm3440, %v3287, 0
  %v3645 = vsel %vm3440, %v3289, 0
  %v3647 = vsel %vm3440, %v3291, 0
  %v3649 = vsel %vm3440, %v3293, 0
  %v3651 = vsel %vm3440, %v3295, 0
  %v3653 = vsel %vm3440, %v3297, 0
  %v3655 = vsel %vm3440, %v3299, 0
  %v3657 = vsel %vm3440, %v3301, 0
  %v3659 = vsel %vm3440, %v3303, 0
  %v3661 = vsel %vm3440, %v3305, 0
  %v3663 = vsel %vm3440, %v3307, 0
  %v3665 = vsel %vm3440, %v3309, 0
  %v3667 = vsel %vm3440, %v3311, 0
  %v3669 = vsel %vm3440, %v3313, 0
  %v3671 = vsel %vm3440, %v3315, 0
  %v3673 = vsel %vm3440, %v3317, 0
  %v3675 = vsel %vm3440, %v3319, 0
  %v3677 = vsel %vm3440, %v3321, 0
  %v3679 = vsel %vm3440, %v3323, 0
  %v3681 = vsel %vm3440, %v3325, 0
  %v3683 = vsel %vm3440, %v3327, 0
  %v3685 = vsel %vm3440, %v3329, 0
  %v3687 = vsel %vm3440, %v3331, 0
  %v3689 = vsel %vm3440, %v3333, 0
  %v3691 = vsel %vm3440, %v3335, 0
  %v3693 = vsel %vm3440, %v3337, 0
  %v3695 = vsel %vm3440, %v3339, 0
  %vm3697 = vcmask 1043456
  %v3699 = vsel %vm3697, %v3427, 0
  %3701 = vmatpush.bf16.msra.mxu0 %v3422
  %3702 = vmatpush.bf16.msra.mxu0 %v3421
  %3703 = vmatpush.bf16.msra.mxu0 %v3420
  %3704 = vmatpush.bf16.msra.mxu0 %v3419
  %3705 = vmatpush.bf16.msra.mxu0 %v3418
  %3706 = vmatpush.bf16.msra.mxu0 %v3417
  %3707 = vmatpush.bf16.msra.mxu0 %v3416
  %3708 = vmatpush.bf16.msra.mxu0 %v3415
  %3709 = vmatmul.bf16.gmra.mxu0 %v1082
  %v3710 = vpop.f32.mrf.mxu0
  %v3711 = vadd.f32 0.0, %v3710
  %v3712 = vpop.f32.mrf.mxu0
  %v3713 = vadd.f32 0.0, %v3712
  %3714 = vmatmul.bf16.gmra.mxu0 %v1085
  %v3715 = vpop.f32.mrf.mxu0
  %v3716 = vadd.f32 0.0, %v3715
  %v3717 = vpop.f32.mrf.mxu0
  %v3718 = vadd.f32 0.0, %v3717
  %3719 = vmatmul.bf16.gmra.mxu0 %v1088
  %v3720 = vpop.f32.mrf.mxu0
  %v3721 = vadd.f32 0.0, %v3720
  %v3722 = vpop.f32.mrf.mxu0
  %v3723 = vadd.f32 0.0, %v3722
  %3724 = vmatmul.bf16.gmra.mxu0 %v1091
  %v3725 = vpop.f32.mrf.mxu0
  %v3726 = vadd.f32 0.0, %v3725
  %v3727 = vpop.f32.mrf.mxu0
  %v3728 = vadd.f32 0.0, %v3727
  %3729 = vmatmul.bf16.gmra.mxu0 %v1094
  %v3730 = vpop.f32.mrf.mxu0
  %v3731 = vadd.f32 0.0, %v3730
  %v3732 = vpop.f32.mrf.mxu0
  %v3733 = vadd.f32 0.0, %v3732
  %3734 = vmatmul.bf16.gmra.mxu0 %v1097
  %v3735 = vpop.f32.mrf.mxu0
  %v3736 = vadd.f32 0.0, %v3735
  %v3737 = vpop.f32.mrf.mxu0
  %v3738 = vadd.f32 0.0, %v3737
  %3739 = vmatmul.bf16.gmra.mxu0 %v1100
  %v3740 = vpop.f32.mrf.mxu0
  %v3741 = vadd.f32 0.0, %v3740
  %v3742 = vpop.f32.mrf.mxu0
  %v3743 = vadd.f32 0.0, %v3742
  %3744 = vmatmul.bf16.gmra.mxu0 %v1103
  %v3745 = vpop.f32.mrf.mxu0
  %v3746 = vadd.f32 0.0, %v3745
  %v3747 = vpop.f32.mrf.mxu0
  %v3748 = vadd.f32 0.0, %v3747
  %3749 = vmatmul.bf16.gmra.mxu0 %v1106
  %v3750 = vpop.f32.mrf.mxu0
  %v3751 = vadd.f32 0.0, %v3750
  %v3752 = vpop.f32.mrf.mxu0
  %v3753 = vadd.f32 0.0, %v3752
  %3754 = vmatmul.bf16.gmra.mxu0 %v1109
  %v3755 = vpop.f32.mrf.mxu0
  %v3756 = vadd.f32 0.0, %v3755
  %v3757 = vpop.f32.mrf.mxu0
  %v3758 = vadd.f32 0.0, %v3757
  %3759 = vmatmul.bf16.gmra.mxu0 %v1112
  %v3760 = vpop.f32.mrf.mxu0
  %v3761 = vadd.f32 0.0, %v3760
  %v3762 = vpop.f32.mrf.mxu0
  %v3763 = vadd.f32 0.0, %v3762
  %3764 = vmatmul.bf16.gmra.mxu0 %v1115
  %v3765 = vpop.f32.mrf.mxu0
  %v3766 = vadd.f32 0.0, %v3765
  %v3767 = vpop.f32.mrf.mxu0
  %v3768 = vadd.f32 0.0, %v3767
  %3769 = vmatmul.bf16.gmra.mxu0 %v1118
  %v3770 = vpop.f32.mrf.mxu0
  %v3771 = vadd.f32 0.0, %v3770
  %v3772 = vpop.f32.mrf.mxu0
  %v3773 = vadd.f32 0.0, %v3772
  %3774 = vmatmul.bf16.gmra.mxu0 %v1121
  %v3775 = vpop.f32.mrf.mxu0
  %v3776 = vadd.f32 0.0, %v3775
  %v3777 = vpop.f32.mrf.mxu0
  %v3778 = vadd.f32 0.0, %v3777
  %3779 = vmatmul.bf16.gmra.mxu0 %v1124
  %v3780 = vpop.f32.mrf.mxu0
  %v3781 = vadd.f32 0.0, %v3780
  %v3782 = vpop.f32.mrf.mxu0
  %v3783 = vadd.f32 0.0, %v3782
  %3784 = vmatmul.bf16.gmra.mxu0 %v1127
  %v3785 = vpop.f32.mrf.mxu0
  %v3786 = vadd.f32 0.0, %v3785
  %v3787 = vpop.f32.mrf.mxu0
  %v3788 = vadd.f32 0.0, %v3787
  %3789 = vmatmul.bf16.gmra.mxu0 %v1130
  %v3790 = vpop.f32.mrf.mxu0
  %v3791 = vadd.f32 0.0, %v3790
  %v3792 = vpop.f32.mrf.mxu0
  %v3793 = vadd.f32 0.0, %v3792
  %3794 = vmatmul.bf16.gmra.mxu0 %v1133
  %v3795 = vpop.f32.mrf.mxu0
  %v3796 = vadd.f32 0.0, %v3795
  %v3797 = vpop.f32.mrf.mxu0
  %v3798 = vadd.f32 0.0, %v3797
  %3799 = vmatmul.bf16.gmra.mxu0 %v1136
  %v3800 = vpop.f32.mrf.mxu0
  %v3801 = vadd.f32 0.0, %v3800
  %v3802 = vpop.f32.mrf.mxu0
  %v3803 = vadd.f32 0.0, %v3802
  %3804 = vmatmul.bf16.gmra.mxu0 %v1139
  %v3805 = vpop.f32.mrf.mxu0
  %v3806 = vadd.f32 0.0, %v3805
  %v3807 = vpop.f32.mrf.mxu0
  %v3808 = vadd.f32 0.0, %v3807
  %3809 = vmatmul.bf16.gmra.mxu0 %v1142
  %v3810 = vpop.f32.mrf.mxu0
  %v3811 = vadd.f32 0.0, %v3810
  %v3812 = vpop.f32.mrf.mxu0
  %v3813 = vadd.f32 0.0, %v3812
  %3814 = vmatmul.bf16.gmra.mxu0 %v1145
  %v3815 = vpop.f32.mrf.mxu0
  %v3816 = vadd.f32 0.0, %v3815
  %v3817 = vpop.f32.mrf.mxu0
  %v3818 = vadd.f32 0.0, %v3817
  %3819 = vmatmul.bf16.gmra.mxu0 %v1148
  %v3820 = vpop.f32.mrf.mxu0
  %v3821 = vadd.f32 0.0, %v3820
  %v3822 = vpop.f32.mrf.mxu0
  %v3823 = vadd.f32 0.0, %v3822
  %3824 = vmatmul.bf16.gmra.mxu0 %v1151
  %v3825 = vpop.f32.mrf.mxu0
  %v3826 = vadd.f32 0.0, %v3825
  %v3827 = vpop.f32.mrf.mxu0
  %v3828 = vadd.f32 0.0, %v3827
  %3829 = vmatmul.bf16.gmra.mxu0 %v1154
  %v3830 = vpop.f32.mrf.mxu0
  %v3831 = vadd.f32 0.0, %v3830
  %v3832 = vpop.f32.mrf.mxu0
  %v3833 = vadd.f32 0.0, %v3832
  %3834 = vmatmul.bf16.gmra.mxu0 %v1157
  %v3835 = vpop.f32.mrf.mxu0
  %v3836 = vadd.f32 0.0, %v3835
  %v3837 = vpop.f32.mrf.mxu0
  %v3838 = vadd.f32 0.0, %v3837
  %3839 = vmatmul.bf16.gmra.mxu0 %v1160
  %v3840 = vpop.f32.mrf.mxu0
  %v3841 = vadd.f32 0.0, %v3840
  %v3842 = vpop.f32.mrf.mxu0
  %v3843 = vadd.f32 0.0, %v3842
  %3844 = vmatmul.bf16.gmra.mxu0 %v1163
  %v3845 = vpop.f32.mrf.mxu0
  %v3846 = vadd.f32 0.0, %v3845
  %v3847 = vpop.f32.mrf.mxu0
  %v3848 = vadd.f32 0.0, %v3847
  %3849 = vmatmul.bf16.gmra.mxu0 %v1166
  %v3850 = vpop.f32.mrf.mxu0
  %v3851 = vadd.f32 0.0, %v3850
  %v3852 = vpop.f32.mrf.mxu0
  %v3853 = vadd.f32 0.0, %v3852
  %3854 = vmatmul.bf16.gmra.mxu0 %v1169
  %v3855 = vpop.f32.mrf.mxu0
  %v3856 = vadd.f32 0.0, %v3855
  %v3857 = vpop.f32.mrf.mxu0
  %v3858 = vadd.f32 0.0, %v3857
  %3859 = vmatmul.bf16.gmra.mxu0 %v1172
  %v3860 = vpop.f32.mrf.mxu0
  %v3861 = vadd.f32 0.0, %v3860
  %v3862 = vpop.f32.mrf.mxu0
  %v3863 = vadd.f32 0.0, %v3862
  %3864 = vmatmul.bf16.gmra.mxu0 %v1175
  %v3865 = vpop.f32.mrf.mxu0
  %v3866 = vadd.f32 0.0, %v3865
  %v3867 = vpop.f32.mrf.mxu0
  %v3868 = vadd.f32 0.0, %v3867
  %3869 = vmatmul.bf16.gmra.mxu0 %v2009
  %v3870 = vpop.f32.mrf.mxu0
  %v3871 = vadd.f32 0.0, %v3870
  %v3872 = vpop.f32.mrf.mxu0
  %v3873 = vadd.f32 0.0, %v3872
  %3874 = vmatmul.bf16.gmra.mxu0 %v2012
  %v3875 = vpop.f32.mrf.mxu0
  %v3876 = vadd.f32 0.0, %v3875
  %v3877 = vpop.f32.mrf.mxu0
  %v3878 = vadd.f32 0.0, %v3877
  %3879 = vmatmul.bf16.gmra.mxu0 %v2015
  %v3880 = vpop.f32.mrf.mxu0
  %v3881 = vadd.f32 0.0, %v3880
  %v3882 = vpop.f32.mrf.mxu0
  %v3883 = vadd.f32 0.0, %v3882
  %3884 = vmatmul.bf16.gmra.mxu0 %v2018
  %v3885 = vpop.f32.mrf.mxu0
  %v3886 = vadd.f32 0.0, %v3885
  %v3887 = vpop.f32.mrf.mxu0
  %v3888 = vadd.f32 0.0, %v3887
  %3889 = vmatmul.bf16.gmra.mxu0 %v2021
  %v3890 = vpop.f32.mrf.mxu0
  %v3891 = vadd.f32 0.0, %v3890
  %v3892 = vpop.f32.mrf.mxu0
  %v3893 = vadd.f32 0.0, %v3892
  %3894 = vmatmul.bf16.gmra.mxu0 %v2024
  %v3895 = vpop.f32.mrf.mxu0
  %v3896 = vadd.f32 0.0, %v3895
  %v3897 = vpop.f32.mrf.mxu0
  %v3898 = vadd.f32 0.0, %v3897
  %3899 = vmatmul.bf16.gmra.mxu0 %v2027
  %v3900 = vpop.f32.mrf.mxu0
  %v3901 = vadd.f32 0.0, %v3900
  %v3902 = vpop.f32.mrf.mxu0
  %v3903 = vadd.f32 0.0, %v3902
  %3904 = vmatmul.bf16.gmra.mxu0 %v2030
  %v3905 = vpop.f32.mrf.mxu0
  %v3906 = vadd.f32 0.0, %v3905
  %v3907 = vpop.f32.mrf.mxu0
  %v3908 = vadd.f32 0.0, %v3907
  %3909 = vmatmul.bf16.gmra.mxu0 %v2033
  %v3910 = vpop.f32.mrf.mxu0
  %v3911 = vadd.f32 0.0, %v3910
  %v3912 = vpop.f32.mrf.mxu0
  %v3913 = vadd.f32 0.0, %v3912
  %3914 = vmatmul.bf16.gmra.mxu0 %v2036
  %v3915 = vpop.f32.mrf.mxu0
  %v3916 = vadd.f32 0.0, %v3915
  %v3917 = vpop.f32.mrf.mxu0
  %v3918 = vadd.f32 0.0, %v3917
  %3919 = vmatmul.bf16.gmra.mxu0 %v2039
  %v3920 = vpop.f32.mrf.mxu0
  %v3921 = vadd.f32 0.0, %v3920
  %v3922 = vpop.f32.mrf.mxu0
  %v3923 = vadd.f32 0.0, %v3922
  %3924 = vmatmul.bf16.gmra.mxu0 %v2042
  %v3925 = vpop.f32.mrf.mxu0
  %v3926 = vadd.f32 0.0, %v3925
  %v3927 = vpop.f32.mrf.mxu0
  %v3928 = vadd.f32 0.0, %v3927
  %3929 = vmatmul.bf16.gmra.mxu0 %v2045
  %v3930 = vpop.f32.mrf.mxu0
  %v3931 = vadd.f32 0.0, %v3930
  %v3932 = vpop.f32.mrf.mxu0
  %v3933 = vadd.f32 0.0, %v3932
  %3934 = vmatmul.bf16.gmra.mxu0 %v2048
  %v3935 = vpop.f32.mrf.mxu0
  %v3936 = vadd.f32 0.0, %v3935
  %v3937 = vpop.f32.mrf.mxu0
  %v3938 = vadd.f32 0.0, %v3937
  %3939 = vmatmul.bf16.gmra.mxu0 %v2051
  %v3940 = vpop.f32.mrf.mxu0
  %v3941 = vadd.f32 0.0, %v3940
  %v3942 = vpop.f32.mrf.mxu0
  %v3943 = vadd.f32 0.0, %v3942
  %3944 = vmatmul.bf16.gmra.mxu0 %v2054
  %v3945 = vpop.f32.mrf.mxu0
  %v3946 = vadd.f32 0.0, %v3945
  %v3947 = vpop.f32.mrf.mxu0
  %v3948 = vadd.f32 0.0, %v3947
  %3949 = vmatmul.bf16.gmra.mxu0 %v2057
  %v3950 = vpop.f32.mrf.mxu0
  %v3951 = vadd.f32 0.0, %v3950
  %v3952 = vpop.f32.mrf.mxu0
  %v3953 = vadd.f32 0.0, %v3952
  %3954 = vmatmul.bf16.gmra.mxu0 %v2060
  %v3955 = vpop.f32.mrf.mxu0
  %v3956 = vadd.f32 0.0, %v3955
  %v3957 = vpop.f32.mrf.mxu0
  %v3958 = vadd.f32 0.0, %v3957
  %3959 = vmatmul.bf16.gmra.mxu0 %v2063
  %v3960 = vpop.f32.mrf.mxu0
  %v3961 = vadd.f32 0.0, %v3960
  %v3962 = vpop.f32.mrf.mxu0
  %v3963 = vadd.f32 0.0, %v3962
  %3964 = vmatmul.bf16.gmra.mxu0 %v2066
  %v3965 = vpop.f32.mrf.mxu0
  %v3966 = vadd.f32 0.0, %v3965
  %v3967 = vpop.f32.mrf.mxu0
  %v3968 = vadd.f32 0.0, %v3967
  %3969 = vmatmul.bf16.gmra.mxu0 %v2069
  %v3970 = vpop.f32.mrf.mxu0
  %v3971 = vadd.f32 0.0, %v3970
  %v3972 = vpop.f32.mrf.mxu0
  %v3973 = vadd.f32 0.0, %v3972
  %3974 = vmatmul.bf16.gmra.mxu0 %v2072
  %v3975 = vpop.f32.mrf.mxu0
  %v3976 = vadd.f32 0.0, %v3975
  %v3977 = vpop.f32.mrf.mxu0
  %v3978 = vadd.f32 0.0, %v3977
  %3979 = vmatmul.bf16.gmra.mxu0 %v2075
  %v3980 = vpop.f32.mrf.mxu0
  %v3981 = vadd.f32 0.0, %v3980
  %v3982 = vpop.f32.mrf.mxu0
  %v3983 = vadd.f32 0.0, %v3982
  %3984 = vmatmul.bf16.gmra.mxu0 %v2078
  %v3985 = vpop.f32.mrf.mxu0
  %v3986 = vadd.f32 0.0, %v3985
  %v3987 = vpop.f32.mrf.mxu0
  %v3988 = vadd.f32 0.0, %v3987
  %3989 = vmatmul.bf16.gmra.mxu0 %v2081
  %v3990 = vpop.f32.mrf.mxu0
  %v3991 = vadd.f32 0.0, %v3990
  %v3992 = vpop.f32.mrf.mxu0
  %v3993 = vadd.f32 0.0, %v3992
  %3994 = vmatmul.bf16.gmra.mxu0 %v2084
  %v3995 = vpop.f32.mrf.mxu0
  %v3996 = vadd.f32 0.0, %v3995
  %v3997 = vpop.f32.mrf.mxu0
  %v3998 = vadd.f32 0.0, %v3997
  %3999 = vmatmul.bf16.gmra.mxu0 %v2087
  %v4000 = vpop.f32.mrf.mxu0
  %v4001 = vadd.f32 0.0, %v4000
  %v4002 = vpop.f32.mrf.mxu0
  %v4003 = vadd.f32 0.0, %v4002
  %4004 = vmatmul.bf16.gmra.mxu0 %v2090
  %v4005 = vpop.f32.mrf.mxu0
  %v4006 = vadd.f32 0.0, %v4005
  %v4007 = vpop.f32.mrf.mxu0
  %v4008 = vadd.f32 0.0, %v4007
  %4009 = vmatmul.bf16.gmra.mxu0 %v2093
  %v4010 = vpop.f32.mrf.mxu0
  %v4011 = vadd.f32 0.0, %v4010
  %v4012 = vpop.f32.mrf.mxu0
  %v4013 = vadd.f32 0.0, %v4012
  %4014 = vmatmul.bf16.gmra.mxu0 %v2096
  %v4015 = vpop.f32.mrf.mxu0
  %v4016 = vadd.f32 0.0, %v4015
  %v4017 = vpop.f32.mrf.mxu0
  %v4018 = vadd.f32 0.0, %v4017
  %4019 = vmatmul.bf16.gmra.mxu0 %v2099
  %v4020 = vpop.f32.mrf.mxu0
  %v4021 = vadd.f32 0.0, %v4020
  %v4022 = vpop.f32.mrf.mxu0
  %v4023 = vadd.f32 0.0, %v4022
  %4024 = vmatmul.bf16.gmra.mxu0 %v2102
  %v4025 = vpop.f32.mrf.mxu0
  %v4026 = vadd.f32 0.0, %v4025
  %v4027 = vpop.f32.mrf.mxu0
  %v4028 = vadd.f32 0.0, %v4027
  %4029 = vmatmul.bf16.gmra.mxu0 %v2595
  %v4030 = vpop.f32.mrf.mxu0
  %v4031 = vadd.f32 0.0, %v4030
  %v4032 = vpop.f32.mrf.mxu0
  %v4033 = vadd.f32 0.0, %v4032
  %4034 = vmatmul.bf16.gmra.mxu0 %v2598
  %v4035 = vpop.f32.mrf.mxu0
  %v4036 = vadd.f32 0.0, %v4035
  %v4037 = vpop.f32.mrf.mxu0
  %v4038 = vadd.f32 0.0, %v4037
  %4039 = vmatmul.bf16.gmra.mxu0 %v2601
  %v4040 = vpop.f32.mrf.mxu0
  %v4041 = vadd.f32 0.0, %v4040
  %v4042 = vpop.f32.mrf.mxu0
  %v4043 = vadd.f32 0.0, %v4042
  %4044 = vmatmul.bf16.gmra.mxu0 %v2604
  %v4045 = vpop.f32.mrf.mxu0
  %v4046 = vadd.f32 0.0, %v4045
  %v4047 = vpop.f32.mrf.mxu0
  %v4048 = vadd.f32 0.0, %v4047
  %4049 = vmatmul.bf16.gmra.mxu0 %v2607
  %v4050 = vpop.f32.mrf.mxu0
  %v4051 = vadd.f32 0.0, %v4050
  %v4052 = vpop.f32.mrf.mxu0
  %v4053 = vadd.f32 0.0, %v4052
  %4054 = vmatmul.bf16.gmra.mxu0 %v2610
  %v4055 = vpop.f32.mrf.mxu0
  %v4056 = vadd.f32 0.0, %v4055
  %v4057 = vpop.f32.mrf.mxu0
  %v4058 = vadd.f32 0.0, %v4057
  %4059 = vmatmul.bf16.gmra.mxu0 %v2613
  %v4060 = vpop.f32.mrf.mxu0
  %v4061 = vadd.f32 0.0, %v4060
  %v4062 = vpop.f32.mrf.mxu0
  %v4063 = vadd.f32 0.0, %v4062
  %4064 = vmatmul.bf16.gmra.mxu0 %v2616
  %v4065 = vpop.f32.mrf.mxu0
  %v4066 = vadd.f32 0.0, %v4065
  %v4067 = vpop.f32.mrf.mxu0
  %v4068 = vadd.f32 0.0, %v4067
  %4069 = vmatmul.bf16.gmra.mxu0 %v2619
  %v4070 = vpop.f32.mrf.mxu0
  %v4071 = vadd.f32 0.0, %v4070
  %v4072 = vpop.f32.mrf.mxu0
  %v4073 = vadd.f32 0.0, %v4072
  %4074 = vmatmul.bf16.gmra.mxu0 %v2622
  %v4075 = vpop.f32.mrf.mxu0
  %v4076 = vadd.f32 0.0, %v4075
  %v4077 = vpop.f32.mrf.mxu0
  %v4078 = vadd.f32 0.0, %v4077
  %4079 = vmatmul.bf16.gmra.mxu0 %v2625
  %v4080 = vpop.f32.mrf.mxu0
  %v4081 = vadd.f32 0.0, %v4080
  %v4082 = vpop.f32.mrf.mxu0
  %v4083 = vadd.f32 0.0, %v4082
  %4084 = vmatmul.bf16.gmra.mxu0 %v2628
  %v4085 = vpop.f32.mrf.mxu0
  %v4086 = vadd.f32 0.0, %v4085
  %v4087 = vpop.f32.mrf.mxu0
  %v4088 = vadd.f32 0.0, %v4087
  %4089 = vmatmul.bf16.gmra.mxu0 %v2631
  %v4090 = vpop.f32.mrf.mxu0
  %v4091 = vadd.f32 0.0, %v4090
  %v4092 = vpop.f32.mrf.mxu0
  %v4093 = vadd.f32 0.0, %v4092
  %4094 = vmatmul.bf16.gmra.mxu0 %v2634
  %v4095 = vpop.f32.mrf.mxu0
  %v4096 = vadd.f32 0.0, %v4095
  %v4097 = vpop.f32.mrf.mxu0
  %v4098 = vadd.f32 0.0, %v4097
  %4099 = vmatmul.bf16.gmra.mxu0 %v2637
  %v4100 = vpop.f32.mrf.mxu0
  %v4101 = vadd.f32 0.0, %v4100
  %v4102 = vpop.f32.mrf.mxu0
  %v4103 = vadd.f32 0.0, %v4102
  %4104 = vmatmul.bf16.gmra.mxu0 %v2640
  %v4105 = vpop.f32.mrf.mxu0
  %v4106 = vadd.f32 0.0, %v4105
  %v4107 = vpop.f32.mrf.mxu0
  %v4108 = vadd.f32 0.0, %v4107
  %4109 = vmatmul.bf16.gmra.mxu0 %v2643
  %v4110 = vpop.f32.mrf.mxu0
  %v4111 = vadd.f32 0.0, %v4110
  %v4112 = vpop.f32.mrf.mxu0
  %v4113 = vadd.f32 0.0, %v4112
  %4114 = vmatmul.bf16.gmra.mxu0 %v2646
  %v4115 = vpop.f32.mrf.mxu0
  %v4116 = vadd.f32 0.0, %v4115
  %v4117 = vpop.f32.mrf.mxu0
  %v4118 = vadd.f32 0.0, %v4117
  %4119 = vmatmul.bf16.gmra.mxu0 %v2649
  %v4120 = vpop.f32.mrf.mxu0
  %v4121 = vadd.f32 0.0, %v4120
  %v4122 = vpop.f32.mrf.mxu0
  %v4123 = vadd.f32 0.0, %v4122
  %4124 = vmatmul.bf16.gmra.mxu0 %v2652
  %v4125 = vpop.f32.mrf.mxu0
  %v4126 = vadd.f32 0.0, %v4125
  %v4127 = vpop.f32.mrf.mxu0
  %v4128 = vadd.f32 0.0, %v4127
  %4129 = vmatmul.bf16.gmra.mxu0 %v2655
  %v4130 = vpop.f32.mrf.mxu0
  %v4131 = vadd.f32 0.0, %v4130
  %v4132 = vpop.f32.mrf.mxu0
  %v4133 = vadd.f32 0.0, %v4132
  %4134 = vmatmul.bf16.gmra.mxu0 %v2658
  %v4135 = vpop.f32.mrf.mxu0
  %v4136 = vadd.f32 0.0, %v4135
  %v4137 = vpop.f32.mrf.mxu0
  %v4138 = vadd.f32 0.0, %v4137
  %4139 = vmatmul.bf16.gmra.mxu0 %v2661
  %v4140 = vpop.f32.mrf.mxu0
  %v4141 = vadd.f32 0.0, %v4140
  %v4142 = vpop.f32.mrf.mxu0
  %v4143 = vadd.f32 0.0, %v4142
  %4144 = vmatmul.bf16.gmra.mxu0 %v2664
  %v4145 = vpop.f32.mrf.mxu0
  %v4146 = vadd.f32 0.0, %v4145
  %v4147 = vpop.f32.mrf.mxu0
  %v4148 = vadd.f32 0.0, %v4147
  %4149 = vmatmul.bf16.gmra.mxu0 %v2667
  %v4150 = vpop.f32.mrf.mxu0
  %v4151 = vadd.f32 0.0, %v4150
  %v4152 = vpop.f32.mrf.mxu0
  %v4153 = vadd.f32 0.0, %v4152
  %4154 = vmatmul.bf16.gmra.mxu0 %v2670
  %v4155 = vpop.f32.mrf.mxu0
  %v4156 = vadd.f32 0.0, %v4155
  %v4157 = vpop.f32.mrf.mxu0
  %v4158 = vadd.f32 0.0, %v4157
  %4159 = vmatmul.bf16.gmra.mxu0 %v2673
  %v4160 = vpop.f32.mrf.mxu0
  %v4161 = vadd.f32 0.0, %v4160
  %v4162 = vpop.f32.mrf.mxu0
  %v4163 = vadd.f32 0.0, %v4162
  %4164 = vmatmul.bf16.gmra.mxu0 %v2676
  %v4165 = vpop.f32.mrf.mxu0
  %v4166 = vadd.f32 0.0, %v4165
  %v4167 = vpop.f32.mrf.mxu0
  %v4168 = vadd.f32 0.0, %v4167
  %4169 = vmatmul.bf16.gmra.mxu0 %v2679
  %v4170 = vpop.f32.mrf.mxu0
  %v4171 = vadd.f32 0.0, %v4170
  %v4172 = vpop.f32.mrf.mxu0
  %v4173 = vadd.f32 0.0, %v4172
  %4174 = vmatmul.bf16.gmra.mxu0 %v2682
  %v4175 = vpop.f32.mrf.mxu0
  %v4176 = vadd.f32 0.0, %v4175
  %v4177 = vpop.f32.mrf.mxu0
  %v4178 = vadd.f32 0.0, %v4177
  %4179 = vmatmul.bf16.gmra.mxu0 %v2685
  %v4180 = vpop.f32.mrf.mxu0
  %v4181 = vadd.f32 0.0, %v4180
  %v4182 = vpop.f32.mrf.mxu0
  %v4183 = vadd.f32 0.0, %v4182
  %4184 = vmatmul.bf16.gmra.mxu0 %v2688
  %v4185 = vpop.f32.mrf.mxu0
  %v4186 = vadd.f32 0.0, %v4185
  %v4187 = vpop.f32.mrf.mxu0
  %v4188 = vadd.f32 0.0, %v4187
  %4189 = vmatmul.bf16.gmra.mxu0 %v3181
  %v4190 = vpop.f32.mrf.mxu0
  %v4191 = vadd.f32 0.0, %v4190
  %v4192 = vpop.f32.mrf.mxu0
  %v4193 = vadd.f32 0.0, %v4192
  %4194 = vmatmul.bf16.gmra.mxu0 %v3184
  %v4195 = vpop.f32.mrf.mxu0
  %v4196 = vadd.f32 0.0, %v4195
  %v4197 = vpop.f32.mrf.mxu0
  %v4198 = vadd.f32 0.0, %v4197
  %4199 = vmatmul.bf16.gmra.mxu0 %v3187
  %v4200 = vpop.f32.mrf.mxu0
  %v4201 = vadd.f32 0.0, %v4200
  %v4202 = vpop.f32.mrf.mxu0
  %v4203 = vadd.f32 0.0, %v4202
  %4204 = vmatmul.bf16.gmra.mxu0 %v3190
  %v4205 = vpop.f32.mrf.mxu0
  %v4206 = vadd.f32 0.0, %v4205
  %v4207 = vpop.f32.mrf.mxu0
  %v4208 = vadd.f32 0.0, %v4207
  %4209 = vmatmul.bf16.gmra.mxu0 %v3193
  %v4210 = vpop.f32.mrf.mxu0
  %v4211 = vadd.f32 0.0, %v4210
  %v4212 = vpop.f32.mrf.mxu0
  %v4213 = vadd.f32 0.0, %v4212
  %4214 = vmatmul.bf16.gmra.mxu0 %v3196
  %v4215 = vpop.f32.mrf.mxu0
  %v4216 = vadd.f32 0.0, %v4215
  %v4217 = vpop.f32.mrf.mxu0
  %v4218 = vadd.f32 0.0, %v4217
  %4219 = vmatmul.bf16.gmra.mxu0 %v3199
  %v4220 = vpop.f32.mrf.mxu0
  %v4221 = vadd.f32 0.0, %v4220
  %v4222 = vpop.f32.mrf.mxu0
  %v4223 = vadd.f32 0.0, %v4222
  %4224 = vmatmul.bf16.gmra.mxu0 %v3202
  %v4225 = vpop.f32.mrf.mxu0
  %v4226 = vadd.f32 0.0, %v4225
  %v4227 = vpop.f32.mrf.mxu0
  %v4228 = vadd.f32 0.0, %v4227
  %4229 = vmatmul.bf16.gmra.mxu0 %v3205
  %v4230 = vpop.f32.mrf.mxu0
  %v4231 = vadd.f32 0.0, %v4230
  %v4232 = vpop.f32.mrf.mxu0
  %v4233 = vadd.f32 0.0, %v4232
  %4234 = vmatmul.bf16.gmra.mxu0 %v3208
  %v4235 = vpop.f32.mrf.mxu0
  %v4236 = vadd.f32 0.0, %v4235
  %v4237 = vpop.f32.mrf.mxu0
  %v4238 = vadd.f32 0.0, %v4237
  %4239 = vmatmul.bf16.gmra.mxu0 %v3211
  %v4240 = vpop.f32.mrf.mxu0
  %v4241 = vadd.f32 0.0, %v4240
  %v4242 = vpop.f32.mrf.mxu0
  %v4243 = vadd.f32 0.0, %v4242
  %4244 = vmatmul.bf16.gmra.mxu0 %v3214
  %v4245 = vpop.f32.mrf.mxu0
  %v4246 = vadd.f32 0.0, %v4245
  %v4247 = vpop.f32.mrf.mxu0
  %v4248 = vadd.f32 0.0, %v4247
  %4249 = vmatmul.bf16.gmra.mxu0 %v3217
  %v4250 = vpop.f32.mrf.mxu0
  %v4251 = vadd.f32 0.0, %v4250
  %v4252 = vpop.f32.mrf.mxu0
  %v4253 = vadd.f32 0.0, %v4252
  %4254 = vmatmul.bf16.gmra.mxu0 %v3220
  %v4255 = vpop.f32.mrf.mxu0
  %v4256 = vadd.f32 0.0, %v4255
  %v4257 = vpop.f32.mrf.mxu0
  %v4258 = vadd.f32 0.0, %v4257
  %4259 = vmatmul.bf16.gmra.mxu0 %v3223
  %v4260 = vpop.f32.mrf.mxu0
  %v4261 = vadd.f32 0.0, %v4260
  %v4262 = vpop.f32.mrf.mxu0
  %v4263 = vadd.f32 0.0, %v4262
  %4264 = vmatmul.bf16.gmra.mxu0 %v3226
  %v4265 = vpop.f32.mrf.mxu0
  %v4266 = vadd.f32 0.0, %v4265
  %v4267 = vpop.f32.mrf.mxu0
  %v4268 = vadd.f32 0.0, %v4267
  %4269 = vmatmul.bf16.gmra.mxu0 %v3229
  %v4270 = vpop.f32.mrf.mxu0
  %v4271 = vadd.f32 0.0, %v4270
  %v4272 = vpop.f32.mrf.mxu0
  %v4273 = vadd.f32 0.0, %v4272
  %4274 = vmatmul.bf16.gmra.mxu0 %v3232
  %v4275 = vpop.f32.mrf.mxu0
  %v4276 = vadd.f32 0.0, %v4275
  %v4277 = vpop.f32.mrf.mxu0
  %v4278 = vadd.f32 0.0, %v4277
  %4279 = vmatmul.bf16.gmra.mxu0 %v3235
  %v4280 = vpop.f32.mrf.mxu0
  %v4281 = vadd.f32 0.0, %v4280
  %v4282 = vpop.f32.mrf.mxu0
  %v4283 = vadd.f32 0.0, %v4282
  %4284 = vmatmul.bf16.gmra.mxu0 %v3238
  %v4285 = vpop.f32.mrf.mxu0
  %v4286 = vadd.f32 0.0, %v4285
  %v4287 = vpop.f32.mrf.mxu0
  %v4288 = vadd.f32 0.0, %v4287
  %4289 = vmatmul.bf16.gmra.mxu0 %v3241
  %v4290 = vpop.f32.mrf.mxu0
  %v4291 = vadd.f32 0.0, %v4290
  %v4292 = vpop.f32.mrf.mxu0
  %v4293 = vadd.f32 0.0, %v4292
  %4294 = vmatmul.bf16.gmra.mxu0 %v3244
  %v4295 = vpop.f32.mrf.mxu0
  %v4296 = vadd.f32 0.0, %v4295
  %v4297 = vpop.f32.mrf.mxu0
  %v4298 = vadd.f32 0.0, %v4297
  %4299 = vmatmul.bf16.gmra.mxu0 %v3247
  %v4300 = vpop.f32.mrf.mxu0
  %v4301 = vadd.f32 0.0, %v4300
  %v4302 = vpop.f32.mrf.mxu0
  %v4303 = vadd.f32 0.0, %v4302
  %4304 = vmatmul.bf16.gmra.mxu0 %v3250
  %v4305 = vpop.f32.mrf.mxu0
  %v4306 = vadd.f32 0.0, %v4305
  %v4307 = vpop.f32.mrf.mxu0
  %v4308 = vadd.f32 0.0, %v4307
  %4309 = vmatmul.bf16.gmra.mxu0 %v3253
  %v4310 = vpop.f32.mrf.mxu0
  %v4311 = vadd.f32 0.0, %v4310
  %v4312 = vpop.f32.mrf.mxu0
  %v4313 = vadd.f32 0.0, %v4312
  %4314 = vmatmul.bf16.gmra.mxu0 %v3256
  %v4315 = vpop.f32.mrf.mxu0
  %v4316 = vadd.f32 0.0, %v4315
  %v4317 = vpop.f32.mrf.mxu0
  %v4318 = vadd.f32 0.0, %v4317
  %4319 = vmatmul.bf16.gmra.mxu0 %v3259
  %v4320 = vpop.f32.mrf.mxu0
  %v4321 = vadd.f32 0.0, %v4320
  %v4322 = vpop.f32.mrf.mxu0
  %v4323 = vadd.f32 0.0, %v4322
  %4324 = vmatmul.bf16.gmra.mxu0 %v3262
  %v4325 = vpop.f32.mrf.mxu0
  %v4326 = vadd.f32 0.0, %v4325
  %v4327 = vpop.f32.mrf.mxu0
  %v4328 = vadd.f32 0.0, %v4327
  %4329 = vmatmul.bf16.gmra.mxu0 %v3265
  %v4330 = vpop.f32.mrf.mxu0
  %v4331 = vadd.f32 0.0, %v4330
  %v4332 = vpop.f32.mrf.mxu0
  %v4333 = vadd.f32 0.0, %v4332
  %4334 = vmatmul.bf16.gmra.mxu0 %v3268
  %v4335 = vpop.f32.mrf.mxu0
  %v4336 = vadd.f32 0.0, %v4335
  %v4337 = vpop.f32.mrf.mxu0
  %v4338 = vadd.f32 0.0, %v4337
  %4339 = vmatmul.bf16.gmra.mxu0 %v3271
  %v4340 = vpop.f32.mrf.mxu0
  %v4341 = vadd.f32 0.0, %v4340
  %v4342 = vpop.f32.mrf.mxu0
  %v4343 = vadd.f32 0.0, %v4342
  %4344 = vmatmul.bf16.gmra.mxu0 %v3274
  %v4345 = vpop.f32.mrf.mxu0
  %v4346 = vadd.f32 0.0, %v4345
  %v4347 = vpop.f32.mrf.mxu0
  %v4348 = vadd.f32 0.0, %v4347
  %4349 = vdwg.mxu0
  %4350 = vmatpush.bf16.msra.mxu0 0
  %4351 = vmatpush.bf16.msra.mxu0 0
  %4352 = vmatpush.bf16.msra.mxu0 0
  %4353 = vmatpush.bf16.msra.mxu0 %v3699
  %4354 = vmatpush.bf16.msra.mxu0 %v3426
  %4355 = vmatpush.bf16.msra.mxu0 %v3425
  %4356 = vmatpush.bf16.msra.mxu0 %v3424
  %4357 = vmatpush.bf16.msra.mxu0 %v3423
  %4358 = vmatmul.bf16.gmra.mxu0 %v3441
  %v4359 = vpop.f32.mrf.mxu0
  %v4360 = vadd.f32 %v3711, %v4359
  %v4361 = vpop.f32.mrf.mxu0
  %v4362 = vadd.f32 %v3713, %v4361
  %4363 = vmatmul.bf16.gmra.mxu0 %v3443
  %v4364 = vpop.f32.mrf.mxu0
  %v4365 = vadd.f32 %v3716, %v4364
  %v4366 = vpop.f32.mrf.mxu0
  %v4367 = vadd.f32 %v3718, %v4366
  %4368 = vmatmul.bf16.gmra.mxu0 %v3445
  %v4369 = vpop.f32.mrf.mxu0
  %v4370 = vadd.f32 %v3721, %v4369
  %v4371 = vpop.f32.mrf.mxu0
  %v4372 = vadd.f32 %v3723, %v4371
  %4373 = vmatmul.bf16.gmra.mxu0 %v3447
  %v4374 = vpop.f32.mrf.mxu0
  %v4375 = vadd.f32 %v3726, %v4374
  %v4376 = vpop.f32.mrf.mxu0
  %v4377 = vadd.f32 %v3728, %v4376
  %4378 = vmatmul.bf16.gmra.mxu0 %v3449
  %v4379 = vpop.f32.mrf.mxu0
  %v4380 = vadd.f32 %v3731, %v4379
  %v4381 = vpop.f32.mrf.mxu0
  %v4382 = vadd.f32 %v3733, %v4381
  %4383 = vmatmul.bf16.gmra.mxu0 %v3451
  %v4384 = vpop.f32.mrf.mxu0
  %v4385 = vadd.f32 %v3736, %v4384
  %v4386 = vpop.f32.mrf.mxu0
  %v4387 = vadd.f32 %v3738, %v4386
  %4388 = vmatmul.bf16.gmra.mxu0 %v3453
  %v4389 = vpop.f32.mrf.mxu0
  %v4390 = vadd.f32 %v3741, %v4389
  %v4391 = vpop.f32.mrf.mxu0
  %v4392 = vadd.f32 %v3743, %v4391
  %4393 = vmatmul.bf16.gmra.mxu0 %v3455
  %v4394 = vpop.f32.mrf.mxu0
  %v4395 = vadd.f32 %v3746, %v4394
  %v4396 = vpop.f32.mrf.mxu0
  %v4397 = vadd.f32 %v3748, %v4396
  %4398 = vmatmul.bf16.gmra.mxu0 %v3457
  %v4399 = vpop.f32.mrf.mxu0
  %v4400 = vadd.f32 %v3751, %v4399
  %v4401 = vpop.f32.mrf.mxu0
  %v4402 = vadd.f32 %v3753, %v4401
  %4403 = vmatmul.bf16.gmra.mxu0 %v3459
  %v4404 = vpop.f32.mrf.mxu0
  %v4405 = vadd.f32 %v3756, %v4404
  %v4406 = vpop.f32.mrf.mxu0
  %v4407 = vadd.f32 %v3758, %v4406
  %4408 = vmatmul.bf16.gmra.mxu0 %v3461
  %v4409 = vpop.f32.mrf.mxu0
  %v4410 = vadd.f32 %v3761, %v4409
  %v4411 = vpop.f32.mrf.mxu0
  %v4412 = vadd.f32 %v3763, %v4411
  %4413 = vmatmul.bf16.gmra.mxu0 %v3463
  %v4414 = vpop.f32.mrf.mxu0
  %v4415 = vadd.f32 %v3766, %v4414
  %v4416 = vpop.f32.mrf.mxu0
  %v4417 = vadd.f32 %v3768, %v4416
  %4418 = vmatmul.bf16.gmra.mxu0 %v3465
  %v4419 = vpop.f32.mrf.mxu0
  %v4420 = vadd.f32 %v3771, %v4419
  %v4421 = vpop.f32.mrf.mxu0
  %v4422 = vadd.f32 %v3773, %v4421
  %4423 = vmatmul.bf16.gmra.mxu0 %v3467
  %v4424 = vpop.f32.mrf.mxu0
  %v4425 = vadd.f32 %v3776, %v4424
  %v4426 = vpop.f32.mrf.mxu0
  %v4427 = vadd.f32 %v3778, %v4426
  %4428 = vmatmul.bf16.gmra.mxu0 %v3469
  %v4429 = vpop.f32.mrf.mxu0
  %v4430 = vadd.f32 %v3781, %v4429
  %v4431 = vpop.f32.mrf.mxu0
  %v4432 = vadd.f32 %v3783, %v4431
  %4433 = vmatmul.bf16.gmra.mxu0 %v3471
  %v4434 = vpop.f32.mrf.mxu0
  %v4435 = vadd.f32 %v3786, %v4434
  %v4436 = vpop.f32.mrf.mxu0
  %v4437 = vadd.f32 %v3788, %v4436
  %4438 = vmatmul.bf16.gmra.mxu0 %v3473
  %v4439 = vpop.f32.mrf.mxu0
  %v4440 = vadd.f32 %v3791, %v4439
  %v4441 = vpop.f32.mrf.mxu0
  %v4442 = vadd.f32 %v3793, %v4441
  %4443 = vmatmul.bf16.gmra.mxu0 %v3475
  %v4444 = vpop.f32.mrf.mxu0
  %v4445 = vadd.f32 %v3796, %v4444
  %v4446 = vpop.f32.mrf.mxu0
  %v4447 = vadd.f32 %v3798, %v4446
  %4448 = vmatmul.bf16.gmra.mxu0 %v3477
  %v4449 = vpop.f32.mrf.mxu0
  %v4450 = vadd.f32 %v3801, %v4449
  %v4451 = vpop.f32.mrf.mxu0
  %v4452 = vadd.f32 %v3803, %v4451
  %4453 = vmatmul.bf16.gmra.mxu0 %v3479
  %v4454 = vpop.f32.mrf.mxu0
  %v4455 = vadd.f32 %v3806, %v4454
  %v4456 = vpop.f32.mrf.mxu0
  %v4457 = vadd.f32 %v3808, %v4456
  %4458 = vmatmul.bf16.gmra.mxu0 %v3481
  %v4459 = vpop.f32.mrf.mxu0
  %v4460 = vadd.f32 %v3811, %v4459
  %v4461 = vpop.f32.mrf.mxu0
  %v4462 = vadd.f32 %v3813, %v4461
  %4463 = vmatmul.bf16.gmra.mxu0 %v3483
  %v4464 = vpop.f32.mrf.mxu0
  %v4465 = vadd.f32 %v3816, %v4464
  %v4466 = vpop.f32.mrf.mxu0
  %v4467 = vadd.f32 %v3818, %v4466
  %4468 = vmatmul.bf16.gmra.mxu0 %v3485
  %v4469 = vpop.f32.mrf.mxu0
  %v4470 = vadd.f32 %v3821, %v4469
  %v4471 = vpop.f32.mrf.mxu0
  %v4472 = vadd.f32 %v3823, %v4471
  %4473 = vmatmul.bf16.gmra.mxu0 %v3487
  %v4474 = vpop.f32.mrf.mxu0
  %v4475 = vadd.f32 %v3826, %v4474
  %v4476 = vpop.f32.mrf.mxu0
  %v4477 = vadd.f32 %v3828, %v4476
  %4478 = vmatmul.bf16.gmra.mxu0 %v3489
  %v4479 = vpop.f32.mrf.mxu0
  %v4480 = vadd.f32 %v3831, %v4479
  %v4481 = vpop.f32.mrf.mxu0
  %v4482 = vadd.f32 %v3833, %v4481
  %4483 = vmatmul.bf16.gmra.mxu0 %v3491
  %v4484 = vpop.f32.mrf.mxu0
  %v4485 = vadd.f32 %v3836, %v4484
  %v4486 = vpop.f32.mrf.mxu0
  %v4487 = vadd.f32 %v3838, %v4486
  %4488 = vmatmul.bf16.gmra.mxu0 %v3493
  %v4489 = vpop.f32.mrf.mxu0
  %v4490 = vadd.f32 %v3841, %v4489
  %v4491 = vpop.f32.mrf.mxu0
  %v4492 = vadd.f32 %v3843, %v4491
  %4493 = vmatmul.bf16.gmra.mxu0 %v3495
  %v4494 = vpop.f32.mrf.mxu0
  %v4495 = vadd.f32 %v3846, %v4494
  %v4496 = vpop.f32.mrf.mxu0
  %v4497 = vadd.f32 %v3848, %v4496
  %4498 = vmatmul.bf16.gmra.mxu0 %v3497
  %v4499 = vpop.f32.mrf.mxu0
  %v4500 = vadd.f32 %v3851, %v4499
  %v4501 = vpop.f32.mrf.mxu0
  %v4502 = vadd.f32 %v3853, %v4501
  %4503 = vmatmul.bf16.gmra.mxu0 %v3499
  %v4504 = vpop.f32.mrf.mxu0
  %v4505 = vadd.f32 %v3856, %v4504
  %v4506 = vpop.f32.mrf.mxu0
  %v4507 = vadd.f32 %v3858, %v4506
  %4508 = vmatmul.bf16.gmra.mxu0 %v3501
  %v4509 = vpop.f32.mrf.mxu0
  %v4510 = vadd.f32 %v3861, %v4509
  %v4511 = vpop.f32.mrf.mxu0
  %v4512 = vadd.f32 %v3863, %v4511
  %4513 = vmatmul.bf16.gmra.mxu0 %v3503
  %v4514 = vpop.f32.mrf.mxu0
  %v4515 = vadd.f32 %v3866, %v4514
  %v4516 = vpop.f32.mrf.mxu0
  %v4517 = vadd.f32 %v3868, %v4516
  %4518 = vmatmul.bf16.gmra.mxu0 %v3505
  %v4519 = vpop.f32.mrf.mxu0
  %v4520 = vadd.f32 %v3871, %v4519
  %v4521 = vpop.f32.mrf.mxu0
  %v4522 = vadd.f32 %v3873, %v4521
  %4523 = vmatmul.bf16.gmra.mxu0 %v3507
  %v4524 = vpop.f32.mrf.mxu0
  %v4525 = vadd.f32 %v3876, %v4524
  %v4526 = vpop.f32.mrf.mxu0
  %v4527 = vadd.f32 %v3878, %v4526
  %4528 = vmatmul.bf16.gmra.mxu0 %v3509
  %v4529 = vpop.f32.mrf.mxu0
  %v4530 = vadd.f32 %v3881, %v4529
  %v4531 = vpop.f32.mrf.mxu0
  %v4532 = vadd.f32 %v3883, %v4531
  %4533 = vmatmul.bf16.gmra.mxu0 %v3511
  %v4534 = vpop.f32.mrf.mxu0
  %v4535 = vadd.f32 %v3886, %v4534
  %v4536 = vpop.f32.mrf.mxu0
  %v4537 = vadd.f32 %v3888, %v4536
  %4538 = vmatmul.bf16.gmra.mxu0 %v3513
  %v4539 = vpop.f32.mrf.mxu0
  %v4540 = vadd.f32 %v3891, %v4539
  %v4541 = vpop.f32.mrf.mxu0
  %v4542 = vadd.f32 %v3893, %v4541
  %4543 = vmatmul.bf16.gmra.mxu0 %v3515
  %v4544 = vpop.f32.mrf.mxu0
  %v4545 = vadd.f32 %v3896, %v4544
  %v4546 = vpop.f32.mrf.mxu0
  %v4547 = vadd.f32 %v3898, %v4546
  %4548 = vmatmul.bf16.gmra.mxu0 %v3517
  %v4549 = vpop.f32.mrf.mxu0
  %v4550 = vadd.f32 %v3901, %v4549
  %v4551 = vpop.f32.mrf.mxu0
  %v4552 = vadd.f32 %v3903, %v4551
  %4553 = vmatmul.bf16.gmra.mxu0 %v3519
  %v4554 = vpop.f32.mrf.mxu0
  %v4555 = vadd.f32 %v3906, %v4554
  %v4556 = vpop.f32.mrf.mxu0
  %v4557 = vadd.f32 %v3908, %v4556
  %4558 = vmatmul.bf16.gmra.mxu0 %v3521
  %v4559 = vpop.f32.mrf.mxu0
  %v4560 = vadd.f32 %v3911, %v4559
  %v4561 = vpop.f32.mrf.mxu0
  %v4562 = vadd.f32 %v3913, %v4561
  %4563 = vmatmul.bf16.gmra.mxu0 %v3523
  %v4564 = vpop.f32.mrf.mxu0
  %v4565 = vadd.f32 %v3916, %v4564
  %v4566 = vpop.f32.mrf.mxu0
  %v4567 = vadd.f32 %v3918, %v4566
  %4568 = vmatmul.bf16.gmra.mxu0 %v3525
  %v4569 = vpop.f32.mrf.mxu0
  %v4570 = vadd.f32 %v3921, %v4569
  %v4571 = vpop.f32.mrf.mxu0
  %v4572 = vadd.f32 %v3923, %v4571
  %4573 = vmatmul.bf16.gmra.mxu0 %v3527
  %v4574 = vpop.f32.mrf.mxu0
  %v4575 = vadd.f32 %v3926, %v4574
  %v4576 = vpop.f32.mrf.mxu0
  %v4577 = vadd.f32 %v3928, %v4576
  %4578 = vmatmul.bf16.gmra.mxu0 %v3529
  %v4579 = vpop.f32.mrf.mxu0
  %v4580 = vadd.f32 %v3931, %v4579
  %v4581 = vpop.f32.mrf.mxu0
  %v4582 = vadd.f32 %v3933, %v4581
  %4583 = vmatmul.bf16.gmra.mxu0 %v3531
  %v4584 = vpop.f32.mrf.mxu0
  %v4585 = vadd.f32 %v3936, %v4584
  %v4586 = vpop.f32.mrf.mxu0
  %v4587 = vadd.f32 %v3938, %v4586
  %4588 = vmatmul.bf16.gmra.mxu0 %v3533
  %v4589 = vpop.f32.mrf.mxu0
  %v4590 = vadd.f32 %v3941, %v4589
  %v4591 = vpop.f32.mrf.mxu0
  %v4592 = vadd.f32 %v3943, %v4591
  %4593 = vmatmul.bf16.gmra.mxu0 %v3535
  %v4594 = vpop.f32.mrf.mxu0
  %v4595 = vadd.f32 %v3946, %v4594
  %v4596 = vpop.f32.mrf.mxu0
  %v4597 = vadd.f32 %v3948, %v4596
  %4598 = vmatmul.bf16.gmra.mxu0 %v3537
  %v4599 = vpop.f32.mrf.mxu0
  %v4600 = vadd.f32 %v3951, %v4599
  %v4601 = vpop.f32.mrf.mxu0
  %v4602 = vadd.f32 %v3953, %v4601
  %4603 = vmatmul.bf16.gmra.mxu0 %v3539
  %v4604 = vpop.f32.mrf.mxu0
  %v4605 = vadd.f32 %v3956, %v4604
  %v4606 = vpop.f32.mrf.mxu0
  %v4607 = vadd.f32 %v3958, %v4606
  %4608 = vmatmul.bf16.gmra.mxu0 %v3541
  %v4609 = vpop.f32.mrf.mxu0
  %v4610 = vadd.f32 %v3961, %v4609
  %v4611 = vpop.f32.mrf.mxu0
  %v4612 = vadd.f32 %v3963, %v4611
  %4613 = vmatmul.bf16.gmra.mxu0 %v3543
  %v4614 = vpop.f32.mrf.mxu0
  %v4615 = vadd.f32 %v3966, %v4614
  %v4616 = vpop.f32.mrf.mxu0
  %v4617 = vadd.f32 %v3968, %v4616
  %4618 = vmatmul.bf16.gmra.mxu0 %v3545
  %v4619 = vpop.f32.mrf.mxu0
  %v4620 = vadd.f32 %v3971, %v4619
  %v4621 = vpop.f32.mrf.mxu0
  %v4622 = vadd.f32 %v3973, %v4621
  %4623 = vmatmul.bf16.gmra.mxu0 %v3547
  %v4624 = vpop.f32.mrf.mxu0
  %v4625 = vadd.f32 %v3976, %v4624
  %v4626 = vpop.f32.mrf.mxu0
  %v4627 = vadd.f32 %v3978, %v4626
  %4628 = vmatmul.bf16.gmra.mxu0 %v3549
  %v4629 = vpop.f32.mrf.mxu0
  %v4630 = vadd.f32 %v3981, %v4629
  %v4631 = vpop.f32.mrf.mxu0
  %v4632 = vadd.f32 %v3983, %v4631
  %4633 = vmatmul.bf16.gmra.mxu0 %v3551
  %v4634 = vpop.f32.mrf.mxu0
  %v4635 = vadd.f32 %v3986, %v4634
  %v4636 = vpop.f32.mrf.mxu0
  %v4637 = vadd.f32 %v3988, %v4636
  %4638 = vmatmul.bf16.gmra.mxu0 %v3553
  %v4639 = vpop.f32.mrf.mxu0
  %v4640 = vadd.f32 %v3991, %v4639
  %v4641 = vpop.f32.mrf.mxu0
  %v4642 = vadd.f32 %v3993, %v4641
  %4643 = vmatmul.bf16.gmra.mxu0 %v3555
  %v4644 = vpop.f32.mrf.mxu0
  %v4645 = vadd.f32 %v3996, %v4644
  %v4646 = vpop.f32.mrf.mxu0
  %v4647 = vadd.f32 %v3998, %v4646
  %4648 = vmatmul.bf16.gmra.mxu0 %v3557
  %v4649 = vpop.f32.mrf.mxu0
  %v4650 = vadd.f32 %v4001, %v4649
  %v4651 = vpop.f32.mrf.mxu0
  %v4652 = vadd.f32 %v4003, %v4651
  %4653 = vmatmul.bf16.gmra.mxu0 %v3559
  %v4654 = vpop.f32.mrf.mxu0
  %v4655 = vadd.f32 %v4006, %v4654
  %v4656 = vpop.f32.mrf.mxu0
  %v4657 = vadd.f32 %v4008, %v4656
  %4658 = vmatmul.bf16.gmra.mxu0 %v3561
  %v4659 = vpop.f32.mrf.mxu0
  %v4660 = vadd.f32 %v4011, %v4659
  %v4661 = vpop.f32.mrf.mxu0
  %v4662 = vadd.f32 %v4013, %v4661
  %4663 = vmatmul.bf16.gmra.mxu0 %v3563
  %v4664 = vpop.f32.mrf.mxu0
  %v4665 = vadd.f32 %v4016, %v4664
  %v4666 = vpop.f32.mrf.mxu0
  %v4667 = vadd.f32 %v4018, %v4666
  %4668 = vmatmul.bf16.gmra.mxu0 %v3565
  %v4669 = vpop.f32.mrf.mxu0
  %v4670 = vadd.f32 %v4021, %v4669
  %v4671 = vpop.f32.mrf.mxu0
  %v4672 = vadd.f32 %v4023, %v4671
  %4673 = vmatmul.bf16.gmra.mxu0 %v3567
  %v4674 = vpop.f32.mrf.mxu0
  %v4675 = vadd.f32 %v4026, %v4674
  %v4676 = vpop.f32.mrf.mxu0
  %v4677 = vadd.f32 %v4028, %v4676
  %4678 = vmatmul.bf16.gmra.mxu0 %v3569
  %v4679 = vpop.f32.mrf.mxu0
  %v4680 = vadd.f32 %v4031, %v4679
  %v4681 = vpop.f32.mrf.mxu0
  %v4682 = vadd.f32 %v4033, %v4681
  %4683 = vmatmul.bf16.gmra.mxu0 %v3571
  %v4684 = vpop.f32.mrf.mxu0
  %v4685 = vadd.f32 %v4036, %v4684
  %v4686 = vpop.f32.mrf.mxu0
  %v4687 = vadd.f32 %v4038, %v4686
  %4688 = vmatmul.bf16.gmra.mxu0 %v3573
  %v4689 = vpop.f32.mrf.mxu0
  %v4690 = vadd.f32 %v4041, %v4689
  %v4691 = vpop.f32.mrf.mxu0
  %v4692 = vadd.f32 %v4043, %v4691
  %4693 = vmatmul.bf16.gmra.mxu0 %v3575
  %v4694 = vpop.f32.mrf.mxu0
  %v4695 = vadd.f32 %v4046, %v4694
  %v4696 = vpop.f32.mrf.mxu0
  %v4697 = vadd.f32 %v4048, %v4696
  %4698 = vmatmul.bf16.gmra.mxu0 %v3577
  %v4699 = vpop.f32.mrf.mxu0
  %v4700 = vadd.f32 %v4051, %v4699
  %v4701 = vpop.f32.mrf.mxu0
  %v4702 = vadd.f32 %v4053, %v4701
  %4703 = vmatmul.bf16.gmra.mxu0 %v3579
  %v4704 = vpop.f32.mrf.mxu0
  %v4705 = vadd.f32 %v4056, %v4704
  %v4706 = vpop.f32.mrf.mxu0
  %v4707 = vadd.f32 %v4058, %v4706
  %4708 = vmatmul.bf16.gmra.mxu0 %v3581
  %v4709 = vpop.f32.mrf.mxu0
  %v4710 = vadd.f32 %v4061, %v4709
  %v4711 = vpop.f32.mrf.mxu0
  %v4712 = vadd.f32 %v4063, %v4711
  %4713 = vmatmul.bf16.gmra.mxu0 %v3583
  %v4714 = vpop.f32.mrf.mxu0
  %v4715 = vadd.f32 %v4066, %v4714
  %v4716 = vpop.f32.mrf.mxu0
  %v4717 = vadd.f32 %v4068, %v4716
  %4718 = vmatmul.bf16.gmra.mxu0 %v3585
  %v4719 = vpop.f32.mrf.mxu0
  %v4720 = vadd.f32 %v4071, %v4719
  %v4721 = vpop.f32.mrf.mxu0
  %v4722 = vadd.f32 %v4073, %v4721
  %4723 = vmatmul.bf16.gmra.mxu0 %v3587
  %v4724 = vpop.f32.mrf.mxu0
  %v4725 = vadd.f32 %v4076, %v4724
  %v4726 = vpop.f32.mrf.mxu0
  %v4727 = vadd.f32 %v4078, %v4726
  %4728 = vmatmul.bf16.gmra.mxu0 %v3589
  %v4729 = vpop.f32.mrf.mxu0
  %v4730 = vadd.f32 %v4081, %v4729
  %v4731 = vpop.f32.mrf.mxu0
  %v4732 = vadd.f32 %v4083, %v4731
  %4733 = vmatmul.bf16.gmra.mxu0 %v3591
  %v4734 = vpop.f32.mrf.mxu0
  %v4735 = vadd.f32 %v4086, %v4734
  %v4736 = vpop.f32.mrf.mxu0
  %v4737 = vadd.f32 %v4088, %v4736
  %4738 = vmatmul.bf16.gmra.mxu0 %v3593
  %v4739 = vpop.f32.mrf.mxu0
  %v4740 = vadd.f32 %v4091, %v4739
  %v4741 = vpop.f32.mrf.mxu0
  %v4742 = vadd.f32 %v4093, %v4741
  %4743 = vmatmul.bf16.gmra.mxu0 %v3595
  %v4744 = vpop.f32.mrf.mxu0
  %v4745 = vadd.f32 %v4096, %v4744
  %v4746 = vpop.f32.mrf.mxu0
  %v4747 = vadd.f32 %v4098, %v4746
  %4748 = vmatmul.bf16.gmra.mxu0 %v3597
  %v4749 = vpop.f32.mrf.mxu0
  %v4750 = vadd.f32 %v4101, %v4749
  %v4751 = vpop.f32.mrf.mxu0
  %v4752 = vadd.f32 %v4103, %v4751
  %4753 = vmatmul.bf16.gmra.mxu0 %v3599
  %v4754 = vpop.f32.mrf.mxu0
  %v4755 = vadd.f32 %v4106, %v4754
  %v4756 = vpop.f32.mrf.mxu0
  %v4757 = vadd.f32 %v4108, %v4756
  %4758 = vmatmul.bf16.gmra.mxu0 %v3601
  %v4759 = vpop.f32.mrf.mxu0
  %v4760 = vadd.f32 %v4111, %v4759
  %v4761 = vpop.f32.mrf.mxu0
  %v4762 = vadd.f32 %v4113, %v4761
  %4763 = vmatmul.bf16.gmra.mxu0 %v3603
  %v4764 = vpop.f32.mrf.mxu0
  %v4765 = vadd.f32 %v4116, %v4764
  %v4766 = vpop.f32.mrf.mxu0
  %v4767 = vadd.f32 %v4118, %v4766
  %4768 = vmatmul.bf16.gmra.mxu0 %v3605
  %v4769 = vpop.f32.mrf.mxu0
  %v4770 = vadd.f32 %v4121, %v4769
  %v4771 = vpop.f32.mrf.mxu0
  %v4772 = vadd.f32 %v4123, %v4771
  %4773 = vmatmul.bf16.gmra.mxu0 %v3607
  %v4774 = vpop.f32.mrf.mxu0
  %v4775 = vadd.f32 %v4126, %v4774
  %v4776 = vpop.f32.mrf.mxu0
  %v4777 = vadd.f32 %v4128, %v4776
  %4778 = vmatmul.bf16.gmra.mxu0 %v3609
  %v4779 = vpop.f32.mrf.mxu0
  %v4780 = vadd.f32 %v4131, %v4779
  %v4781 = vpop.f32.mrf.mxu0
  %v4782 = vadd.f32 %v4133, %v4781
  %4783 = vmatmul.bf16.gmra.mxu0 %v3611
  %v4784 = vpop.f32.mrf.mxu0
  %v4785 = vadd.f32 %v4136, %v4784
  %v4786 = vpop.f32.mrf.mxu0
  %v4787 = vadd.f32 %v4138, %v4786
  %4788 = vmatmul.bf16.gmra.mxu0 %v3613
  %v4789 = vpop.f32.mrf.mxu0
  %v4790 = vadd.f32 %v4141, %v4789
  %v4791 = vpop.f32.mrf.mxu0
  %v4792 = vadd.f32 %v4143, %v4791
  %4793 = vmatmul.bf16.gmra.mxu0 %v3615
  %v4794 = vpop.f32.mrf.mxu0
  %v4795 = vadd.f32 %v4146, %v4794
  %v4796 = vpop.f32.mrf.mxu0
  %v4797 = vadd.f32 %v4148, %v4796
  %4798 = vmatmul.bf16.gmra.mxu0 %v3617
  %v4799 = vpop.f32.mrf.mxu0
  %v4800 = vadd.f32 %v4151, %v4799
  %v4801 = vpop.f32.mrf.mxu0
  %v4802 = vadd.f32 %v4153, %v4801
  %4803 = vmatmul.bf16.gmra.mxu0 %v3619
  %v4804 = vpop.f32.mrf.mxu0
  %v4805 = vadd.f32 %v4156, %v4804
  %v4806 = vpop.f32.mrf.mxu0
  %v4807 = vadd.f32 %v4158, %v4806
  %4808 = vmatmul.bf16.gmra.mxu0 %v3621
  %v4809 = vpop.f32.mrf.mxu0
  %v4810 = vadd.f32 %v4161, %v4809
  %v4811 = vpop.f32.mrf.mxu0
  %v4812 = vadd.f32 %v4163, %v4811
  %4813 = vmatmul.bf16.gmra.mxu0 %v3623
  %v4814 = vpop.f32.mrf.mxu0
  %v4815 = vadd.f32 %v4166, %v4814
  %v4816 = vpop.f32.mrf.mxu0
  %v4817 = vadd.f32 %v4168, %v4816
  %4818 = vmatmul.bf16.gmra.mxu0 %v3625
  %v4819 = vpop.f32.mrf.mxu0
  %v4820 = vadd.f32 %v4171, %v4819
  %v4821 = vpop.f32.mrf.mxu0
  %v4822 = vadd.f32 %v4173, %v4821
  %4823 = vmatmul.bf16.gmra.mxu0 %v3627
  %v4824 = vpop.f32.mrf.mxu0
  %v4825 = vadd.f32 %v4176, %v4824
  %v4826 = vpop.f32.mrf.mxu0
  %v4827 = vadd.f32 %v4178, %v4826
  %4828 = vmatmul.bf16.gmra.mxu0 %v3629
  %v4829 = vpop.f32.mrf.mxu0
  %v4830 = vadd.f32 %v4181, %v4829
  %v4831 = vpop.f32.mrf.mxu0
  %v4832 = vadd.f32 %v4183, %v4831
  %4833 = vmatmul.bf16.gmra.mxu0 %v3631
  %v4834 = vpop.f32.mrf.mxu0
  %v4835 = vadd.f32 %v4186, %v4834
  %v4836 = vpop.f32.mrf.mxu0
  %v4837 = vadd.f32 %v4188, %v4836
  %4838 = vmatmul.bf16.gmra.mxu0 %v3633
  %v4839 = vpop.f32.mrf.mxu0
  %v4840 = vadd.f32 %v4191, %v4839
  %v4841 = vpop.f32.mrf.mxu0
  %v4842 = vadd.f32 %v4193, %v4841
  %4843 = vmatmul.bf16.gmra.mxu0 %v3635
  %v4844 = vpop.f32.mrf.mxu0
  %v4845 = vadd.f32 %v4196, %v4844
  %v4846 = vpop.f32.mrf.mxu0
  %v4847 = vadd.f32 %v4198, %v4846
  %4848 = vmatmul.bf16.gmra.mxu0 %v3637
  %v4849 = vpop.f32.mrf.mxu0
  %v4850 = vadd.f32 %v4201, %v4849
  %v4851 = vpop.f32.mrf.mxu0
  %v4852 = vadd.f32 %v4203, %v4851
  %4853 = vmatmul.bf16.gmra.mxu0 %v3639
  %v4854 = vpop.f32.mrf.mxu0
  %v4855 = vadd.f32 %v4206, %v4854
  %v4856 = vpop.f32.mrf.mxu0
  %v4857 = vadd.f32 %v4208, %v4856
  %4858 = vmatmul.bf16.gmra.mxu0 %v3641
  %v4859 = vpop.f32.mrf.mxu0
  %v4860 = vadd.f32 %v4211, %v4859
  %v4861 = vpop.f32.mrf.mxu0
  %v4862 = vadd.f32 %v4213, %v4861
  %4863 = vmatmul.bf16.gmra.mxu0 %v3643
  %v4864 = vpop.f32.mrf.mxu0
  %v4865 = vadd.f32 %v4216, %v4864
  %v4866 = vpop.f32.mrf.mxu0
  %v4867 = vadd.f32 %v4218, %v4866
  %4868 = vmatmul.bf16.gmra.mxu0 %v3645
  %v4869 = vpop.f32.mrf.mxu0
  %v4870 = vadd.f32 %v4221, %v4869
  %v4871 = vpop.f32.mrf.mxu0
  %v4872 = vadd.f32 %v4223, %v4871
  %4873 = vmatmul.bf16.gmra.mxu0 %v3647
  %v4874 = vpop.f32.mrf.mxu0
  %v4875 = vadd.f32 %v4226, %v4874
  %v4876 = vpop.f32.mrf.mxu0
  %v4877 = vadd.f32 %v4228, %v4876
  %4878 = vmatmul.bf16.gmra.mxu0 %v3649
  %v4879 = vpop.f32.mrf.mxu0
  %v4880 = vadd.f32 %v4231, %v4879
  %v4881 = vpop.f32.mrf.mxu0
  %v4882 = vadd.f32 %v4233, %v4881
  %4883 = vmatmul.bf16.gmra.mxu0 %v3651
  %v4884 = vpop.f32.mrf.mxu0
  %v4885 = vadd.f32 %v4236, %v4884
  %v4886 = vpop.f32.mrf.mxu0
  %v4887 = vadd.f32 %v4238, %v4886
  %4888 = vmatmul.bf16.gmra.mxu0 %v3653
  %v4889 = vpop.f32.mrf.mxu0
  %v4890 = vadd.f32 %v4241, %v4889
  %v4891 = vpop.f32.mrf.mxu0
  %v4892 = vadd.f32 %v4243, %v4891
  %4893 = vmatmul.bf16.gmra.mxu0 %v3655
  %v4894 = vpop.f32.mrf.mxu0
  %v4895 = vadd.f32 %v4246, %v4894
  %v4896 = vpop.f32.mrf.mxu0
  %v4897 = vadd.f32 %v4248, %v4896
  %4898 = vmatmul.bf16.gmra.mxu0 %v3657
  %v4899 = vpop.f32.mrf.mxu0
  %v4900 = vadd.f32 %v4251, %v4899
  %v4901 = vpop.f32.mrf.mxu0
  %v4902 = vadd.f32 %v4253, %v4901
  %4903 = vmatmul.bf16.gmra.mxu0 %v3659
  %v4904 = vpop.f32.mrf.mxu0
  %v4905 = vadd.f32 %v4256, %v4904
  %v4906 = vpop.f32.mrf.mxu0
  %v4907 = vadd.f32 %v4258, %v4906
  %4908 = vmatmul.bf16.gmra.mxu0 %v3661
  %v4909 = vpop.f32.mrf.mxu0
  %v4910 = vadd.f32 %v4261, %v4909
  %v4911 = vpop.f32.mrf.mxu0
  %v4912 = vadd.f32 %v4263, %v4911
  %4913 = vmatmul.bf16.gmra.mxu0 %v3663
  %v4914 = vpop.f32.mrf.mxu0
  %v4915 = vadd.f32 %v4266, %v4914
  %v4916 = vpop.f32.mrf.mxu0
  %v4917 = vadd.f32 %v4268, %v4916
  %4918 = vmatmul.bf16.gmra.mxu0 %v3665
  %v4919 = vpop.f32.mrf.mxu0
  %v4920 = vadd.f32 %v4271, %v4919
  %v4921 = vpop.f32.mrf.mxu0
  %v4922 = vadd.f32 %v4273, %v4921
  %4923 = vmatmul.bf16.gmra.mxu0 %v3667
  %v4924 = vpop.f32.mrf.mxu0
  %v4925 = vadd.f32 %v4276, %v4924
  %v4926 = vpop.f32.mrf.mxu0
  %v4927 = vadd.f32 %v4278, %v4926
  %4928 = vmatmul.bf16.gmra.mxu0 %v3669
  %v4929 = vpop.f32.mrf.mxu0
  %v4930 = vadd.f32 %v4281, %v4929
  %v4931 = vpop.f32.mrf.mxu0
  %v4932 = vadd.f32 %v4283, %v4931
  %4933 = vmatmul.bf16.gmra.mxu0 %v3671
  %v4934 = vpop.f32.mrf.mxu0
  %v4935 = vadd.f32 %v4286, %v4934
  %v4936 = vpop.f32.mrf.mxu0
  %v4937 = vadd.f32 %v4288, %v4936
  %4938 = vmatmul.bf16.gmra.mxu0 %v3673
  %v4939 = vpop.f32.mrf.mxu0
  %v4940 = vadd.f32 %v4291, %v4939
  %v4941 = vpop.f32.mrf.mxu0
  %v4942 = vadd.f32 %v4293, %v4941
  %4943 = vmatmul.bf16.gmra.mxu0 %v3675
  %v4944 = vpop.f32.mrf.mxu0
  %v4945 = vadd.f32 %v4296, %v4944
  %v4946 = vpop.f32.mrf.mxu0
  %v4947 = vadd.f32 %v4298, %v4946
  %4948 = vmatmul.bf16.gmra.mxu0 %v3677
  %v4949 = vpop.f32.mrf.mxu0
  %v4950 = vadd.f32 %v4301, %v4949
  %v4951 = vpop.f32.mrf.mxu0
  %v4952 = vadd.f32 %v4303, %v4951
  %4953 = vmatmul.bf16.gmra.mxu0 %v3679
  %v4954 = vpop.f32.mrf.mxu0
  %v4955 = vadd.f32 %v4306, %v4954
  %v4956 = vpop.f32.mrf.mxu0
  %v4957 = vadd.f32 %v4308, %v4956
  %4958 = vmatmul.bf16.gmra.mxu0 %v3681
  %v4959 = vpop.f32.mrf.mxu0
  %v4960 = vadd.f32 %v4311, %v4959
  %v4961 = vpop.f32.mrf.mxu0
  %v4962 = vadd.f32 %v4313, %v4961
  %4963 = vmatmul.bf16.gmra.mxu0 %v3683
  %v4964 = vpop.f32.mrf.mxu0
  %v4965 = vadd.f32 %v4316, %v4964
  %v4966 = vpop.f32.mrf.mxu0
  %v4967 = vadd.f32 %v4318, %v4966
  %4968 = vmatmul.bf16.gmra.mxu0 %v3685
  %v4969 = vpop.f32.mrf.mxu0
  %v4970 = vadd.f32 %v4321, %v4969
  %v4971 = vpop.f32.mrf.mxu0
  %v4972 = vadd.f32 %v4323, %v4971
  %4973 = vmatmul.bf16.gmra.mxu0 %v3687
  %v4974 = vpop.f32.mrf.mxu0
  %v4975 = vadd.f32 %v4326, %v4974
  %v4976 = vpop.f32.mrf.mxu0
  %v4977 = vadd.f32 %v4328, %v4976
  %4978 = vmatmul.bf16.gmra.mxu0 %v3689
  %v4979 = vpop.f32.mrf.mxu0
  %v4980 = vadd.f32 %v4331, %v4979
  %v4981 = vpop.f32.mrf.mxu0
  %v4982 = vadd.f32 %v4333, %v4981
  %4983 = vmatmul.bf16.gmra.mxu0 %v3691
  %v4984 = vpop.f32.mrf.mxu0
  %v4985 = vadd.f32 %v4336, %v4984
  %v4986 = vpop.f32.mrf.mxu0
  %v4987 = vadd.f32 %v4338, %v4986
  %4988 = vmatmul.bf16.gmra.mxu0 %v3693
  %v4989 = vpop.f32.mrf.mxu0
  %v4990 = vadd.f32 %v4341, %v4989
  %v4991 = vpop.f32.mrf.mxu0
  %v4992 = vadd.f32 %v4343, %v4991
  %4993 = vmatmul.bf16.gmra.mxu0 %v3695
  %v4994 = vpop.f32.mrf.mxu0
  %v4995 = vadd.f32 %v4346, %v4994
  %v4996 = vpop.f32.mrf.mxu0
  %v4997 = vadd.f32 %v4348, %v4996
  %4998 = vdwg.mxu0
  %v4999 = vmax.f32 %v4360, %v4520
  %v5000 = vmax.f32 %v4362, %v4522
  %v5001 = vmax.f32 %v4365, %v4525
  %v5002 = vmax.f32 %v4367, %v4527
  %v5003 = vmax.f32 %v4370, %v4530
  %v5004 = vmax.f32 %v4372, %v4532
  %v5005 = vmax.f32 %v4375, %v4535
  %v5006 = vmax.f32 %v4377, %v4537
  %v5007 = vmax.f32 %v4380, %v4540
  %v5008 = vmax.f32 %v4382, %v4542
  %v5009 = vmax.f32 %v4385, %v4545
  %v5010 = vmax.f32 %v4387, %v4547
  %v5011 = vmax.f32 %v4390, %v4550
  %v5012 = vmax.f32 %v4392, %v4552
  %v5013 = vmax.f32 %v4395, %v4555
  %v5014 = vmax.f32 %v4397, %v4557
  %v5015 = vmax.f32 %v4400, %v4560
  %v5016 = vmax.f32 %v4402, %v4562
  %v5017 = vmax.f32 %v4405, %v4565
  %v5018 = vmax.f32 %v4407, %v4567
  %v5019 = vmax.f32 %v4410, %v4570
  %v5020 = vmax.f32 %v4412, %v4572
  %v5021 = vmax.f32 %v4415, %v4575
  %v5022 = vmax.f32 %v4417, %v4577
  %v5023 = vmax.f32 %v4420, %v4580
  %v5024 = vmax.f32 %v4422, %v4582
  %v5025 = vmax.f32 %v4425, %v4585
  %v5026 = vmax.f32 %v4427, %v4587
  %v5027 = vmax.f32 %v4430, %v4590
  %v5028 = vmax.f32 %v4432, %v4592
  %v5029 = vmax.f32 %v4435, %v4595
  %v5030 = vmax.f32 %v4437, %v4597
  %v5031 = vmax.f32 %v4440, %v4600
  %v5032 = vmax.f32 %v4442, %v4602
  %v5033 = vmax.f32 %v4445, %v4605
  %v5034 = vmax.f32 %v4447, %v4607
  %v5035 = vmax.f32 %v4450, %v4610
  %v5036 = vmax.f32 %v4452, %v4612
  %v5037 = vmax.f32 %v4455, %v4615
  %v5038 = vmax.f32 %v4457, %v4617
  %v5039 = vmax.f32 %v4460, %v4620
  %v5040 = vmax.f32 %v4462, %v4622
  %v5041 = vmax.f32 %v4465, %v4625
  %v5042 = vmax.f32 %v4467, %v4627
  %v5043 = vmax.f32 %v4470, %v4630
  %v5044 = vmax.f32 %v4472, %v4632
  %v5045 = vmax.f32 %v4475, %v4635
  %v5046 = vmax.f32 %v4477, %v4637
  %v5047 = vmax.f32 %v4480, %v4640
  %v5048 = vmax.f32 %v4482, %v4642
  %v5049 = vmax.f32 %v4485, %v4645
  %v5050 = vmax.f32 %v4487, %v4647
  %v5051 = vmax.f32 %v4490, %v4650
  %v5052 = vmax.f32 %v4492, %v4652
  %v5053 = vmax.f32 %v4495, %v4655
  %v5054 = vmax.f32 %v4497, %v4657
  %v5055 = vmax.f32 %v4500, %v4660
  %v5056 = vmax.f32 %v4502, %v4662
  %v5057 = vmax.f32 %v4505, %v4665
  %v5058 = vmax.f32 %v4507, %v4667
  %v5059 = vmax.f32 %v4510, %v4670
  %v5060 = vmax.f32 %v4512, %v4672
  %v5061 = vmax.f32 %v4515, %v4675
  %v5062 = vmax.f32 %v4517, %v4677
  %v5063 = vmax.f32 %v4680, %v4840
  %v5064 = vmax.f32 %v4682, %v4842
  %v5065 = vmax.f32 %v4685, %v4845
  %v5066 = vmax.f32 %v4687, %v4847
  %v5067 = vmax.f32 %v4690, %v4850
  %v5068 = vmax.f32 %v4692, %v4852
  %v5069 = vmax.f32 %v4695, %v4855
  %v5070 = vmax.f32 %v4697, %v4857
  %v5071 = vmax.f32 %v4700, %v4860
  %v5072 = vmax.f32 %v4702, %v4862
  %v5073 = vmax.f32 %v4705, %v4865
  %v5074 = vmax.f32 %v4707, %v4867
  %v5075 = vmax.f32 %v4710, %v4870
  %v5076 = vmax.f32 %v4712, %v4872
  %v5077 = vmax.f32 %v4715, %v4875
  %v5078 = vmax.f32 %v4717, %v4877
  %v5079 = vmax.f32 %v4720, %v4880
  %v5080 = vmax.f32 %v4722, %v4882
  %v5081 = vmax.f32 %v4725, %v4885
  %v5082 = vmax.f32 %v4727, %v4887
  %v5083 = vmax.f32 %v4730, %v4890
  %v5084 = vmax.f32 %v4732, %v4892
  %v5085 = vmax.f32 %v4735, %v4895
  %v5086 = vmax.f32 %v4737, %v4897
  %v5087 = vmax.f32 %v4740, %v4900
  %v5088 = vmax.f32 %v4742, %v4902
  %v5089 = vmax.f32 %v4745, %v4905
  %v5090 = vmax.f32 %v4747, %v4907
  %v5091 = vmax.f32 %v4750, %v4910
  %v5092 = vmax.f32 %v4752, %v4912
  %v5093 = vmax.f32 %v4755, %v4915
  %v5094 = vmax.f32 %v4757, %v4917
  %v5095 = vmax.f32 %v4760, %v4920
  %v5096 = vmax.f32 %v4762, %v4922
  %v5097 = vmax.f32 %v4765, %v4925
  %v5098 = vmax.f32 %v4767, %v4927
  %v5099 = vmax.f32 %v4770, %v4930
  %v5100 = vmax.f32 %v4772, %v4932
  %v5101 = vmax.f32 %v4775, %v4935
  %v5102 = vmax.f32 %v4777, %v4937
  %v5103 = vmax.f32 %v4780, %v4940
  %v5104 = vmax.f32 %v4782, %v4942
  %v5105 = vmax.f32 %v4785, %v4945
  %v5106 = vmax.f32 %v4787, %v4947
  %v5107 = vmax.f32 %v4790, %v4950
  %v5108 = vmax.f32 %v4792, %v4952
  %v5109 = vmax.f32 %v4795, %v4955
  %v5110 = vmax.f32 %v4797, %v4957
  %v5111 = vmax.f32 %v4800, %v4960
  %v5112 = vmax.f32 %v4802, %v4962
  %v5113 = vmax.f32 %v4805, %v4965
  %v5114 = vmax.f32 %v4807, %v4967
  %v5115 = vmax.f32 %v4810, %v4970
  %v5116 = vmax.f32 %v4812, %v4972
  %v5117 = vmax.f32 %v4815, %v4975
  %v5118 = vmax.f32 %v4817, %v4977
  %v5119 = vmax.f32 %v4820, %v4980
  %v5120 = vmax.f32 %v4822, %v4982
  %v5121 = vmax.f32 %v4825, %v4985
  %v5122 = vmax.f32 %v4827, %v4987
  %v5123 = vmax.f32 %v4830, %v4990
  %v5124 = vmax.f32 %v4832, %v4992
  %v5125 = vmax.f32 %v4835, %v4995
  %v5126 = vmax.f32 %v4837, %v4997
  %v5127 = vmax.f32 %v4999, %v5063
  %v5128 = vmax.f32 %v5000, %v5064
  %v5129 = vmax.f32 %v5001, %v5065
  %v5130 = vmax.f32 %v5002, %v5066
  %v5131 = vmax.f32 %v5003, %v5067
  %v5132 = vmax.f32 %v5004, %v5068
  %v5133 = vmax.f32 %v5005, %v5069
  %v5134 = vmax.f32 %v5006, %v5070
  %v5135 = vmax.f32 %v5007, %v5071
  %v5136 = vmax.f32 %v5008, %v5072
  %v5137 = vmax.f32 %v5009, %v5073
  %v5138 = vmax.f32 %v5010, %v5074
  %v5139 = vmax.f32 %v5011, %v5075
  %v5140 = vmax.f32 %v5012, %v5076
  %v5141 = vmax.f32 %v5013, %v5077
  %v5142 = vmax.f32 %v5014, %v5078
  %v5143 = vmax.f32 %v5015, %v5079
  %v5144 = vmax.f32 %v5016, %v5080
  %v5145 = vmax.f32 %v5017, %v5081
  %v5146 = vmax.f32 %v5018, %v5082
  %v5147 = vmax.f32 %v5019, %v5083
  %v5148 = vmax.f32 %v5020, %v5084
  %v5149 = vmax.f32 %v5021, %v5085
  %v5150 = vmax.f32 %v5022, %v5086
  %v5151 = vmax.f32 %v5023, %v5087
  %v5152 = vmax.f32 %v5024, %v5088
  %v5153 = vmax.f32 %v5025, %v5089
  %v5154 = vmax.f32 %v5026, %v5090
  %v5155 = vmax.f32 %v5027, %v5091
  %v5156 = vmax.f32 %v5028, %v5092
  %v5157 = vmax.f32 %v5029, %v5093
  %v5158 = vmax.f32 %v5030, %v5094
  %v5159 = vmax.f32 %v5031, %v5095
  %v5160 = vmax.f32 %v5032, %v5096
  %v5161 = vmax.f32 %v5033, %v5097
  %v5162 = vmax.f32 %v5034, %v5098
  %v5163 = vmax.f32 %v5035, %v5099
  %v5164 = vmax.f32 %v5036, %v5100
  %v5165 = vmax.f32 %v5037, %v5101
  %v5166 = vmax.f32 %v5038, %v5102
  %v5167 = vmax.f32 %v5039, %v5103
  %v5168 = vmax.f32 %v5040, %v5104
  %v5169 = vmax.f32 %v5041, %v5105
  %v5170 = vmax.f32 %v5042, %v5106
  %v5171 = vmax.f32 %v5043, %v5107
  %v5172 = vmax.f32 %v5044, %v5108
  %v5173 = vmax.f32 %v5045, %v5109
  %v5174 = vmax.f32 %v5046, %v5110
  %v5175 = vmax.f32 %v5047, %v5111
  %v5176 = vmax.f32 %v5048, %v5112
  %v5177 = vmax.f32 %v5049, %v5113
  %v5178 = vmax.f32 %v5050, %v5114
  %v5179 = vmax.f32 %v5051, %v5115
  %v5180 = vmax.f32 %v5052, %v5116
  %v5181 = vmax.f32 %v5053, %v5117
  %v5182 = vmax.f32 %v5054, %v5118
  %v5183 = vmax.f32 %v5055, %v5119
  %v5184 = vmax.f32 %v5056, %v5120
  %v5185 = vmax.f32 %v5057, %v5121
  %v5186 = vmax.f32 %v5058, %v5122
  %v5187 = vmax.f32 %v5059, %v5123
  %v5188 = vmax.f32 %v5060, %v5124
  %v5189 = vmax.f32 %v5061, %v5125
  %v5190 = vmax.f32 %v5062, %v5126
  %v5191 = vld [vmem:[%s5] sm:$0x1]
  %v5193 = vperm.slane %v5191, 0
  %v5195 = vadd.f32 %v5127, %v5193
  %v5196 = vadd.f32 %v5128, %v5193
  %v5197 = vadd.f32 %v5129, %v5193
  %v5198 = vadd.f32 %v5130, %v5193
  %v5199 = vadd.f32 %v5131, %v5193
  %v5200 = vadd.f32 %v5132, %v5193
  %v5201 = vadd.f32 %v5133, %v5193
  %v5202 = vadd.f32 %v5134, %v5193
  %v5203 = vadd.f32 %v5135, %v5193
  %v5204 = vadd.f32 %v5136, %v5193
  %v5205 = vadd.f32 %v5137, %v5193
  %v5206 = vadd.f32 %v5138, %v5193
  %v5207 = vadd.f32 %v5139, %v5193
  %v5208 = vadd.f32 %v5140, %v5193
  %v5209 = vadd.f32 %v5141, %v5193
  %v5210 = vadd.f32 %v5142, %v5193
  %v5211 = vadd.f32 %v5143, %v5193
  %v5212 = vadd.f32 %v5144, %v5193
  %v5213 = vadd.f32 %v5145, %v5193
  %v5214 = vadd.f32 %v5146, %v5193
  %v5215 = vadd.f32 %v5147, %v5193
  %v5216 = vadd.f32 %v5148, %v5193
  %v5217 = vadd.f32 %v5149, %v5193
  %v5218 = vadd.f32 %v5150, %v5193
  %v5219 = vadd.f32 %v5151, %v5193
  %v5220 = vadd.f32 %v5152, %v5193
  %v5221 = vadd.f32 %v5153, %v5193
  %v5222 = vadd.f32 %v5154, %v5193
  %v5223 = vadd.f32 %v5155, %v5193
  %v5224 = vadd.f32 %v5156, %v5193
  %v5225 = vadd.f32 %v5157, %v5193
  %v5226 = vadd.f32 %v5158, %v5193
  %v5227 = vadd.f32 %v5159, %v5193
  %v5228 = vadd.f32 %v5160, %v5193
  %v5229 = vadd.f32 %v5161, %v5193
  %v5230 = vadd.f32 %v5162, %v5193
  %v5231 = vadd.f32 %v5163, %v5193
  %v5232 = vadd.f32 %v5164, %v5193
  %v5233 = vadd.f32 %v5165, %v5193
  %v5234 = vadd.f32 %v5166, %v5193
  %v5235 = vadd.f32 %v5167, %v5193
  %v5236 = vadd.f32 %v5168, %v5193
  %v5237 = vadd.f32 %v5169, %v5193
  %v5238 = vadd.f32 %v5170, %v5193
  %v5239 = vadd.f32 %v5171, %v5193
  %v5240 = vadd.f32 %v5172, %v5193
  %v5241 = vadd.f32 %v5173, %v5193
  %v5242 = vadd.f32 %v5174, %v5193
  %v5243 = vadd.f32 %v5175, %v5193
  %v5244 = vadd.f32 %v5176, %v5193
  %v5245 = vadd.f32 %v5177, %v5193
  %v5246 = vadd.f32 %v5178, %v5193
  %v5247 = vadd.f32 %v5179, %v5193
  %v5248 = vadd.f32 %v5180, %v5193
  %v5249 = vadd.f32 %v5181, %v5193
  %v5250 = vadd.f32 %v5182, %v5193
  %v5251 = vadd.f32 %v5183, %v5193
  %v5252 = vadd.f32 %v5184, %v5193
  %v5253 = vadd.f32 %v5185, %v5193
  %v5254 = vadd.f32 %v5186, %v5193
  %v5255 = vadd.f32 %v5187, %v5193
  %v5256 = vadd.f32 %v5188, %v5193
  %v5257 = vadd.f32 %v5189, %v5193
  %v5258 = vadd.f32 %v5190, %v5193
  %v5259 = vpack.c.bf16 %v5195, %v5195
  %v5260 = vpack.c.bf16 %v5196, %v5196
  %v5261 = vpack.c.bf16 %v5197, %v5197
  %v5262 = vpack.c.bf16 %v5198, %v5198
  %v5263 = vpack.c.bf16 %v5199, %v5199
  %v5264 = vpack.c.bf16 %v5200, %v5200
  %v5265 = vpack.c.bf16 %v5201, %v5201
  %v5266 = vpack.c.bf16 %v5202, %v5202
  %v5267 = vpack.c.bf16 %v5203, %v5203
  %v5268 = vpack.c.bf16 %v5204, %v5204
  %v5269 = vpack.c.bf16 %v5205, %v5205
  %v5270 = vpack.c.bf16 %v5206, %v5206
  %v5271 = vpack.c.bf16 %v5207, %v5207
  %v5272 = vpack.c.bf16 %v5208, %v5208
  %v5273 = vpack.c.bf16 %v5209, %v5209
  %v5274 = vpack.c.bf16 %v5210, %v5210
  %v5275 = vpack.c.bf16 %v5211, %v5211
  %v5276 = vpack.c.bf16 %v5212, %v5212
  %v5277 = vpack.c.bf16 %v5213, %v5213
  %v5278 = vpack.c.bf16 %v5214, %v5214
  %v5279 = vpack.c.bf16 %v5215, %v5215
  %v5280 = vpack.c.bf16 %v5216, %v5216
  %v5281 = vpack.c.bf16 %v5217, %v5217
  %v5282 = vpack.c.bf16 %v5218, %v5218
  %v5283 = vpack.c.bf16 %v5219, %v5219
  %v5284 = vpack.c.bf16 %v5220, %v5220
  %v5285 = vpack.c.bf16 %v5221, %v5221
  %v5286 = vpack.c.bf16 %v5222, %v5222
  %v5287 = vpack.c.bf16 %v5223, %v5223
  %v5288 = vpack.c.bf16 %v5224, %v5224
  %v5289 = vpack.c.bf16 %v5225, %v5225
  %v5290 = vpack.c.bf16 %v5226, %v5226
  %v5291 = vpack.c.bf16 %v5227, %v5227
  %v5292 = vpack.c.bf16 %v5228, %v5228
  %v5293 = vpack.c.bf16 %v5229, %v5229
  %v5294 = vpack.c.bf16 %v5230, %v5230
  %v5295 = vpack.c.bf16 %v5231, %v5231
  %v5296 = vpack.c.bf16 %v5232, %v5232
  %v5297 = vpack.c.bf16 %v5233, %v5233
  %v5298 = vpack.c.bf16 %v5234, %v5234
  %v5299 = vpack.c.bf16 %v5235, %v5235
  %v5300 = vpack.c.bf16 %v5236, %v5236
  %v5301 = vpack.c.bf16 %v5237, %v5237
  %v5302 = vpack.c.bf16 %v5238, %v5238
  %v5303 = vpack.c.bf16 %v5239, %v5239
  %v5304 = vpack.c.bf16 %v5240, %v5240
  %v5305 = vpack.c.bf16 %v5241, %v5241
  %v5306 = vpack.c.bf16 %v5242, %v5242
  %v5307 = vpack.c.bf16 %v5243, %v5243
  %v5308 = vpack.c.bf16 %v5244, %v5244
  %v5309 = vpack.c.bf16 %v5245, %v5245
  %v5310 = vpack.c.bf16 %v5246, %v5246
  %v5311 = vpack.c.bf16 %v5247, %v5247
  %v5312 = vpack.c.bf16 %v5248, %v5248
  %v5313 = vpack.c.bf16 %v5249, %v5249
  %v5314 = vpack.c.bf16 %v5250, %v5250
  %v5315 = vpack.c.bf16 %v5251, %v5251
  %v5316 = vpack.c.bf16 %v5252, %v5252
  %v5317 = vpack.c.bf16 %v5253, %v5253
  %v5318 = vpack.c.bf16 %v5254, %v5254
  %v5319 = vpack.c.bf16 %v5255, %v5255
  %v5320 = vpack.c.bf16 %v5256, %v5256
  %v5321 = vpack.c.bf16 %v5257, %v5257
  %v5322 = vpack.c.bf16 %v5258, %v5258
  %5323 = vst [vmem:[%s6] sm:$0xf] %v5259
  %5324 = vst [vmem:[%s6 + $0x4] sm:$0xf] %v5260
  %5325 = vst [vmem:[%s6 + $0x8] sm:$0xf] %v5261
  %5326 = vst [vmem:[%s6 + $0xc] sm:$0xf] %v5262
  %5327 = vst [vmem:[%s6 + $0x10] sm:$0xf] %v5263
  %5328 = vst [vmem:[%s6 + $0x14] sm:$0xf] %v5264
  %5329 = vst [vmem:[%s6 + $0x18] sm:$0xf] %v5265
  %5330 = vst [vmem:[%s6 + $0x1c] sm:$0xf] %v5266
  %5331 = vst [vmem:[%s6 + $0x20] sm:$0xf] %v5267
  %5332 = vst [vmem:[%s6 + $0x24] sm:$0xf] %v5268
  %5333 = vst [vmem:[%s6 + $0x28] sm:$0xf] %v5269
  %5334 = vst [vmem:[%s6 + $0x2c] sm:$0xf] %v5270
  %5335 = vst [vmem:[%s6 + $0x30] sm:$0xf] %v5271
  %5336 = vst [vmem:[%s6 + $0x34] sm:$0xf] %v5272
  %5337 = vst [vmem:[%s6 + $0x38] sm:$0xf] %v5273
  %5338 = vst [vmem:[%s6 + $0x3c] sm:$0xf] %v5274
  %5339 = vst [vmem:[%s6 + $0x40] sm:$0xf] %v5275
  %5340 = vst [vmem:[%s6 + $0x44] sm:$0xf] %v5276
  %5341 = vst [vmem:[%s6 + $0x48] sm:$0xf] %v5277
  %5342 = vst [vmem:[%s6 + $0x4c] sm:$0xf] %v5278
  %5343 = vst [vmem:[%s6 + $0x50] sm:$0xf] %v5279
  %5344 = vst [vmem:[%s6 + $0x54] sm:$0xf] %v5280
  %5345 = vst [vmem:[%s6 + $0x58] sm:$0xf] %v5281
  %5346 = vst [vmem:[%s6 + $0x5c] sm:$0xf] %v5282
  %5347 = vst [vmem:[%s6 + $0x60] sm:$0xf] %v5283
  %5348 = vst [vmem:[%s6 + $0x64] sm:$0xf] %v5284
  %5349 = vst [vmem:[%s6 + $0x68] sm:$0xf] %v5285
  %5350 = vst [vmem:[%s6 + $0x6c] sm:$0xf] %v5286
  %5351 = vst [vmem:[%s6 + $0x70] sm:$0xf] %v5287
  %5352 = vst [vmem:[%s6 + $0x74] sm:$0xf] %v5288
  %5353 = vst [vmem:[%s6 + $0x78] sm:$0xf] %v5289
  %5354 = vst [vmem:[%s6 + $0x7c] sm:$0xf] %v5290
  %5355 = vst [vmem:[%s6 + $0x80] sm:$0xf] %v5291
  %5356 = vst [vmem:[%s6 + $0x84] sm:$0xf] %v5292
  %5357 = vst [vmem:[%s6 + $0x88] sm:$0xf] %v5293
  %5358 = vst [vmem:[%s6 + $0x8c] sm:$0xf] %v5294
  %5359 = vst [vmem:[%s6 + $0x90] sm:$0xf] %v5295
  %5360 = vst [vmem:[%s6 + $0x94] sm:$0xf] %v5296
  %5361 = vst [vmem:[%s6 + $0x98] sm:$0xf] %v5297
  %5362 = vst [vmem:[%s6 + $0x9c] sm:$0xf] %v5298
  %5363 = vst [vmem:[%s6 + $0xa0] sm:$0xf] %v5299
  %5364 = vst [vmem:[%s6 + $0xa4] sm:$0xf] %v5300
  %5365 = vst [vmem:[%s6 + $0xa8] sm:$0xf] %v5301
  %5366 = vst [vmem:[%s6 + $0xac] sm:$0xf] %v5302
  %5367 = vst [vmem:[%s6 + $0xb0] sm:$0xf] %v5303
  %5368 = vst [vmem:[%s6 + $0xb4] sm:$0xf] %v5304
  %5369 = vst [vmem:[%s6 + $0xb8] sm:$0xf] %v5305
  %5370 = vst [vmem:[%s6 + $0xbc] sm:$0xf] %v5306
  %5371 = vst [vmem:[%s6 + $0xc0] sm:$0xf] %v5307
  %5372 = vst [vmem:[%s6 + $0xc4] sm:$0xf] %v5308
  %5373 = vst [vmem:[%s6 + $0xc8] sm:$0xf] %v5309
  %5374 = vst [vmem:[%s6 + $0xcc] sm:$0xf] %v5310
  %5375 = vst [vmem:[%s6 + $0xd0] sm:$0xf] %v5311
  %5376 = vst [vmem:[%s6 + $0xd4] sm:$0xf] %v5312
  %5377 = vst [vmem:[%s6 + $0xd8] sm:$0xf] %v5313
  %5378 = vst [vmem:[%s6 + $0xdc] sm:$0xf] %v5314
  %5379 = vst [vmem:[%s6 + $0xe0] sm:$0xf] %v5315
  %5380 = vst [vmem:[%s6 + $0xe4] sm:$0xf] %v5316
  %5381 = vst [vmem:[%s6 + $0xe8] sm:$0xf] %v5317
  %5382 = vst [vmem:[%s6 + $0xec] sm:$0xf] %v5318
  %5383 = vst [vmem:[%s6 + $0xf0] sm:$0xf] %v5319
  %5384 = vst [vmem:[%s6 + $0xf4] sm:$0xf] %v5320
  %5385 = vst [vmem:[%s6 + $0xf8] sm:$0xf] %v5321
  %5386 = vst [vmem:[%s6 + $0xfc] sm:$0xf] %v5322
  // Predicated region
  $region26: #{cifar10_forward.4} parent=0 // pred_check
    _
  $region27: #{cifar10_forward.4} parent=0 // pred_check_branch
    %5388 = sbr.rel (0) target = $region29
  $region28: #{cifar10_forward.4} parent=0 // pred_region
    _
  $region29: #{cifar10_forward.4} parent=0 // pred_fallthru
    _
  // Predicated region
  $region30: #{cifar10_forward.4} parent=0 // pred_check
    _
  $region31: #{cifar10_forward.4} parent=0 // pred_check_branch
    %5390 = sbr.rel (0) target = $region33
  $region32: #{cifar10_forward.4} parent=0 // pred_region
    _
  $region33: #{cifar10_forward.4} parent=0 // pred_fallthru
    _

// kernel: cifar10_forward.7
$region0: #{cifar10_forward.7}
  #allocation0 [shape = 'u32[]', space=smem, size = 0x4, offset = 0x4, fixed_abs, tag = 'smem constant byte address 0x4 - core index']
  #allocation1 [shape = 'u32[72,128]{1,0:T(1,128)}', space=vmem, size = 0x9000, scoped, tag = 'internal scratch']
  %s0 = inlined_call_operand.vmem [shape: bf16[8,2048], index: 0, kind: input, shape index: {}]
  %s1 = inlined_call_operand.vmem [shape: bf16[2048,128], index: 1, kind: input, shape index: {}]
  %s2 = inlined_call_operand.vmem [shape: f32[1,128], index: 2, kind: input, shape index: {}]
  %s3 = inlined_call_operand.vmem [shape: bf16[128,128], index: 3, kind: input, shape index: {}]
  %s4 = inlined_call_operand.vmem [shape: f32[1,128], index: 4, kind: input, shape index: {}]
  %s5 = inlined_call_operand.vmem [shape: f32[8,128], index: 5, kind: output, shape index: {}]
  %s6 = sld [smem:[#allocation0]]
  $region30: #{cifar10_forward.7} parent=0
    _
  %s8 = ssub.s32 1, %s6
  %s9 = scalar_select 0, %s8, %s6
  // Predicated region
  $region2: #{cifar10_forward.7} parent=0 // pred_check
    _
  $region3: #{cifar10_forward.7} parent=0 // pred_check_branch
    %11 = sbr.rel (0) target = $region5
  $region4: #{cifar10_forward.7} parent=0 // pred_region
    _
  $region5: #{cifar10_forward.7} parent=0 // pred_fallthru
    _
  // Predicated region
  $region6: #{cifar10_forward.7} parent=0 // pred_check
    _
  $region7: #{cifar10_forward.7} parent=0 // pred_check_branch
    %13 = sbr.rel (0) target = $region9
  $region8: #{cifar10_forward.7} parent=0 // pred_region
    _
  $region9: #{cifar10_forward.7} parent=0 // pred_fallthru
    _
  // Predicated region
  $region10: #{cifar10_forward.7} parent=0 // pred_check
    _
  $region11: #{cifar10_forward.7} parent=0 // pred_check_branch
    %15 = sbr.rel (0) target = $region13
  $region12: #{cifar10_forward.7} parent=0 // pred_region
    _
  $region13: #{cifar10_forward.7} parent=0 // pred_fallthru
    _
  // Predicated region
  $region14: #{cifar10_forward.7} parent=0 // pred_check
    _
  $region15: #{cifar10_forward.7} parent=0 // pred_check_branch
    %17 = sbr.rel (0) target = $region17
  $region16: #{cifar10_forward.7} parent=0 // pred_region
    _
  $region17: #{cifar10_forward.7} parent=0 // pred_fallthru
    _
  // Predicated region
  $region18: #{cifar10_forward.7} parent=0 // pred_check
    _
  $region19: #{cifar10_forward.7} parent=0 // pred_check_branch
    %19 = sbr.rel (0) target = $region21
  $region20: #{cifar10_forward.7} parent=0 // pred_region
    _
  $region21: #{cifar10_forward.7} parent=0 // pred_fallthru
    _
  %v20 = vld [vmem:[%s0] sm:$0xff]
  %v21 = vld [vmem:[%s0 + $0x8] sm:$0xff]
  %v22 = vld [vmem:[%s0 + $0x10] sm:$0xff]
  %v23 = vld [vmem:[%s0 + $0x18] sm:$0xff]
  %v24 = vld [vmem:[%s0 + $0x20] sm:$0xff]
  %v25 = vld [vmem:[%s0 + $0x28] sm:$0xff]
  %v26 = vld [vmem:[%s0 + $0x30] sm:$0xff]
  %v27 = vld [vmem:[%s0 + $0x38] sm:$0xff]
  %v28 = vld [vmem:[%s1] sm:$0xf]
  %v29 = vld [vmem:[%s1 + $0x4] sm:$0xf]
  %v30 = vld [vmem:[%s1 + $0x8] sm:$0xf]
  %v31 = vld [vmem:[%s1 + $0xc] sm:$0xf]
  %v32 = vld [vmem:[%s1 + $0x10] sm:$0xf]
  %v33 = vld [vmem:[%s1 + $0x14] sm:$0xf]
  %v34 = vld [vmem:[%s1 + $0x18] sm:$0xf]
  %v35 = vld [vmem:[%s1 + $0x1c] sm:$0xf]
  %v36 = vld [vmem:[%s1 + $0x20] sm:$0xf]
  %v37 = vld [vmem:[%s1 + $0x24] sm:$0xf]
  %v38 = vld [vmem:[%s1 + $0x28] sm:$0xf]
  %v39 = vld [vmem:[%s1 + $0x2c] sm:$0xf]
  %v40 = vld [vmem:[%s1 + $0x30] sm:$0xf]
  %v41 = vld [vmem:[%s1 + $0x34] sm:$0xf]
  %v42 = vld [vmem:[%s1 + $0x38] sm:$0xf]
  %v43 = vld [vmem:[%s1 + $0x3c] sm:$0xf]
  %v44 = vld [vmem:[%s1 + $0x40] sm:$0xf]
  %v45 = vld [vmem:[%s1 + $0x44] sm:$0xf]
  %v46 = vld [vmem:[%s1 + $0x48] sm:$0xf]
  %v47 = vld [vmem:[%s1 + $0x4c] sm:$0xf]
  %v48 = vld [vmem:[%s1 + $0x50] sm:$0xf]
  %v49 = vld [vmem:[%s1 + $0x54] sm:$0xf]
  %v50 = vld [vmem:[%s1 + $0x58] sm:$0xf]
  %v51 = vld [vmem:[%s1 + $0x5c] sm:$0xf]
  %v52 = vld [vmem:[%s1 + $0x60] sm:$0xf]
  %v53 = vld [vmem:[%s1 + $0x64] sm:$0xf]
  %v54 = vld [vmem:[%s1 + $0x68] sm:$0xf]
  %v55 = vld [vmem:[%s1 + $0x6c] sm:$0xf]
  %v56 = vld [vmem:[%s1 + $0x70] sm:$0xf]
  %v57 = vld [vmem:[%s1 + $0x74] sm:$0xf]
  %v58 = vld [vmem:[%s1 + $0x78] sm:$0xf]
  %v59 = vld [vmem:[%s1 + $0x7c] sm:$0xf]
  %v60 = vld [vmem:[%s1 + $0x80] sm:$0xf]
  %v61 = vld [vmem:[%s1 + $0x84] sm:$0xf]
  %v62 = vld [vmem:[%s1 + $0x88] sm:$0xf]
  %v63 = vld [vmem:[%s1 + $0x8c] sm:$0xf]
  %v64 = vld [vmem:[%s1 + $0x90] sm:$0xf]
  %v65 = vld [vmem:[%s1 + $0x94] sm:$0xf]
  %v66 = vld [vmem:[%s1 + $0x98] sm:$0xf]
  %v67 = vld [vmem:[%s1 + $0x9c] sm:$0xf]
  %v68 = vld [vmem:[%s1 + $0xa0] sm:$0xf]
  %v69 = vld [vmem:[%s1 + $0xa4] sm:$0xf]
  %v70 = vld [vmem:[%s1 + $0xa8] sm:$0xf]
  %v71 = vld [vmem:[%s1 + $0xac] sm:$0xf]
  %v72 = vld [vmem:[%s1 + $0xb0] sm:$0xf]
  %v73 = vld [vmem:[%s1 + $0xb4] sm:$0xf]
  %v74 = vld [vmem:[%s1 + $0xb8] sm:$0xf]
  %v75 = vld [vmem:[%s1 + $0xbc] sm:$0xf]
  %v76 = vld [vmem:[%s1 + $0xc0] sm:$0xf]
  %v77 = vld [vmem:[%s1 + $0xc4] sm:$0xf]
  %v78 = vld [vmem:[%s1 + $0xc8] sm:$0xf]
  %v79 = vld [vmem:[%s1 + $0xcc] sm:$0xf]
  %v80 = vld [vmem:[%s1 + $0xd0] sm:$0xf]
  %v81 = vld [vmem:[%s1 + $0xd4] sm:$0xf]
  %v82 = vld [vmem:[%s1 + $0xd8] sm:$0xf]
  %v83 = vld [vmem:[%s1 + $0xdc] sm:$0xf]
  %v84 = vld [vmem:[%s1 + $0xe0] sm:$0xf]
  %v85 = vld [vmem:[%s1 + $0xe4] sm:$0xf]
  %v86 = vld [vmem:[%s1 + $0xe8] sm:$0xf]
  %v87 = vld [vmem:[%s1 + $0xec] sm:$0xf]
  %v88 = vld [vmem:[%s1 + $0xf0] sm:$0xf]
  %v89 = vld [vmem:[%s1 + $0xf4] sm:$0xf]
  %v90 = vld [vmem:[%s1 + $0xf8] sm:$0xf]
  %v91 = vld [vmem:[%s1 + $0xfc] sm:$0xf]
  %v92 = vld [vmem:[%s1 + $0x100] sm:$0xf]
  %v93 = vld [vmem:[%s1 + $0x104] sm:$0xf]
  %v94 = vld [vmem:[%s1 + $0x108] sm:$0xf]
  %v95 = vld [vmem:[%s1 + $0x10c] sm:$0xf]
  %v96 = vld [vmem:[%s1 + $0x110] sm:$0xf]
  %v97 = vld [vmem:[%s1 + $0x114] sm:$0xf]
  %v98 = vld [vmem:[%s1 + $0x118] sm:$0xf]
  %v99 = vld [vmem:[%s1 + $0x11c] sm:$0xf]
  %v100 = vld [vmem:[%s1 + $0x120] sm:$0xf]
  %v101 = vld [vmem:[%s1 + $0x124] sm:$0xf]
  %v102 = vld [vmem:[%s1 + $0x128] sm:$0xf]
  %v103 = vld [vmem:[%s1 + $0x12c] sm:$0xf]
  %v104 = vld [vmem:[%s1 + $0x130] sm:$0xf]
  %v105 = vld [vmem:[%s1 + $0x134] sm:$0xf]
  %v106 = vld [vmem:[%s1 + $0x138] sm:$0xf]
  %v107 = vld [vmem:[%s1 + $0x13c] sm:$0xf]
  %v108 = vld [vmem:[%s1 + $0x140] sm:$0xf]
  %v109 = vld [vmem:[%s1 + $0x144] sm:$0xf]
  %v110 = vld [vmem:[%s1 + $0x148] sm:$0xf]
  %v111 = vld [vmem:[%s1 + $0x14c] sm:$0xf]
  %v112 = vld [vmem:[%s1 + $0x150] sm:$0xf]
  %v113 = vld [vmem:[%s1 + $0x154] sm:$0xf]
  %v114 = vld [vmem:[%s1 + $0x158] sm:$0xf]
  %v115 = vld [vmem:[%s1 + $0x15c] sm:$0xf]
  %v116 = vld [vmem:[%s1 + $0x160] sm:$0xf]
  %v117 = vld [vmem:[%s1 + $0x164] sm:$0xf]
  %v118 = vld [vmem:[%s1 + $0x168] sm:$0xf]
  %v119 = vld [vmem:[%s1 + $0x16c] sm:$0xf]
  %v120 = vld [vmem:[%s1 + $0x170] sm:$0xf]
  %v121 = vld [vmem:[%s1 + $0x174] sm:$0xf]
  %v122 = vld [vmem:[%s1 + $0x178] sm:$0xf]
  %v123 = vld [vmem:[%s1 + $0x17c] sm:$0xf]
  %v124 = vld [vmem:[%s1 + $0x180] sm:$0xf]
  %v125 = vld [vmem:[%s1 + $0x184] sm:$0xf]
  %v126 = vld [vmem:[%s1 + $0x188] sm:$0xf]
  %v127 = vld [vmem:[%s1 + $0x18c] sm:$0xf]
  %v128 = vld [vmem:[%s1 + $0x190] sm:$0xf]
  %v129 = vld [vmem:[%s1 + $0x194] sm:$0xf]
  %v130 = vld [vmem:[%s1 + $0x198] sm:$0xf]
  %v131 = vld [vmem:[%s1 + $0x19c] sm:$0xf]
  %v132 = vld [vmem:[%s1 + $0x1a0] sm:$0xf]
  %v133 = vld [vmem:[%s1 + $0x1a4] sm:$0xf]
  %v134 = vld [vmem:[%s1 + $0x1a8] sm:$0xf]
  %v135 = vld [vmem:[%s1 + $0x1ac] sm:$0xf]
  %v136 = vld [vmem:[%s1 + $0x1b0] sm:$0xf]
  %v137 = vld [vmem:[%s1 + $0x1b4] sm:$0xf]
  %v138 = vld [vmem:[%s1 + $0x1b8] sm:$0xf]
  %v139 = vld [vmem:[%s1 + $0x1bc] sm:$0xf]
  %v140 = vld [vmem:[%s1 + $0x1c0] sm:$0xf]
  %v141 = vld [vmem:[%s1 + $0x1c4] sm:$0xf]
  %v142 = vld [vmem:[%s1 + $0x1c8] sm:$0xf]
  %v143 = vld [vmem:[%s1 + $0x1cc] sm:$0xf]
  %v144 = vld [vmem:[%s1 + $0x1d0] sm:$0xf]
  %v145 = vld [vmem:[%s1 + $0x1d4] sm:$0xf]
  %v146 = vld [vmem:[%s1 + $0x1d8] sm:$0xf]
  %v147 = vld [vmem:[%s1 + $0x1dc] sm:$0xf]
  %v148 = vld [vmem:[%s1 + $0x1e0] sm:$0xf]
  %v149 = vld [vmem:[%s1 + $0x1e4] sm:$0xf]
  %v150 = vld [vmem:[%s1 + $0x1e8] sm:$0xf]
  %v151 = vld [vmem:[%s1 + $0x1ec] sm:$0xf]
  %v152 = vld [vmem:[%s1 + $0x1f0] sm:$0xf]
  %v153 = vld [vmem:[%s1 + $0x1f4] sm:$0xf]
  %v154 = vld [vmem:[%s1 + $0x1f8] sm:$0xf]
  %v155 = vld [vmem:[%s1 + $0x1fc] sm:$0xf]
  %v156 = vld [vmem:[%s1 + $0x200] sm:$0xf]
  %v157 = vld [vmem:[%s1 + $0x204] sm:$0xf]
  %v158 = vld [vmem:[%s1 + $0x208] sm:$0xf]
  %v159 = vld [vmem:[%s1 + $0x20c] sm:$0xf]
  %v160 = vld [vmem:[%s1 + $0x210] sm:$0xf]
  %v161 = vld [vmem:[%s1 + $0x214] sm:$0xf]
  %v162 = vld [vmem:[%s1 + $0x218] sm:$0xf]
  %v163 = vld [vmem:[%s1 + $0x21c] sm:$0xf]
  %v164 = vld [vmem:[%s1 + $0x220] sm:$0xf]
  %v165 = vld [vmem:[%s1 + $0x224] sm:$0xf]
  %v166 = vld [vmem:[%s1 + $0x228] sm:$0xf]
  %v167 = vld [vmem:[%s1 + $0x22c] sm:$0xf]
  %v168 = vld [vmem:[%s1 + $0x230] sm:$0xf]
  %v169 = vld [vmem:[%s1 + $0x234] sm:$0xf]
  %v170 = vld [vmem:[%s1 + $0x238] sm:$0xf]
  %v171 = vld [vmem:[%s1 + $0x23c] sm:$0xf]
  %v172 = vld [vmem:[%s1 + $0x240] sm:$0xf]
  %v173 = vld [vmem:[%s1 + $0x244] sm:$0xf]
  %v174 = vld [vmem:[%s1 + $0x248] sm:$0xf]
  %v175 = vld [vmem:[%s1 + $0x24c] sm:$0xf]
  %v176 = vld [vmem:[%s1 + $0x250] sm:$0xf]
  %v177 = vld [vmem:[%s1 + $0x254] sm:$0xf]
  %v178 = vld [vmem:[%s1 + $0x258] sm:$0xf]
  %v179 = vld [vmem:[%s1 + $0x25c] sm:$0xf]
  %v180 = vld [vmem:[%s1 + $0x260] sm:$0xf]
  %v181 = vld [vmem:[%s1 + $0x264] sm:$0xf]
  %v182 = vld [vmem:[%s1 + $0x268] sm:$0xf]
  %v183 = vld [vmem:[%s1 + $0x26c] sm:$0xf]
  %v184 = vld [vmem:[%s1 + $0x270] sm:$0xf]
  %v185 = vld [vmem:[%s1 + $0x274] sm:$0xf]
  %v186 = vld [vmem:[%s1 + $0x278] sm:$0xf]
  %v187 = vld [vmem:[%s1 + $0x27c] sm:$0xf]
  %v188 = vld [vmem:[%s1 + $0x280] sm:$0xf]
  %v189 = vld [vmem:[%s1 + $0x284] sm:$0xf]
  %v190 = vld [vmem:[%s1 + $0x288] sm:$0xf]
  %v191 = vld [vmem:[%s1 + $0x28c] sm:$0xf]
  %v192 = vld [vmem:[%s1 + $0x290] sm:$0xf]
  %v193 = vld [vmem:[%s1 + $0x294] sm:$0xf]
  %v194 = vld [vmem:[%s1 + $0x298] sm:$0xf]
  %v195 = vld [vmem:[%s1 + $0x29c] sm:$0xf]
  %v196 = vld [vmem:[%s1 + $0x2a0] sm:$0xf]
  %v197 = vld [vmem:[%s1 + $0x2a4] sm:$0xf]
  %v198 = vld [vmem:[%s1 + $0x2a8] sm:$0xf]
  %v199 = vld [vmem:[%s1 + $0x2ac] sm:$0xf]
  %v200 = vld [vmem:[%s1 + $0x2b0] sm:$0xf]
  %v201 = vld [vmem:[%s1 + $0x2b4] sm:$0xf]
  %v202 = vld [vmem:[%s1 + $0x2b8] sm:$0xf]
  %v203 = vld [vmem:[%s1 + $0x2bc] sm:$0xf]
  %v204 = vld [vmem:[%s1 + $0x2c0] sm:$0xf]
  %v205 = vld [vmem:[%s1 + $0x2c4] sm:$0xf]
  %v206 = vld [vmem:[%s1 + $0x2c8] sm:$0xf]
  %v207 = vld [vmem:[%s1 + $0x2cc] sm:$0xf]
  %v208 = vld [vmem:[%s1 + $0x2d0] sm:$0xf]
  %v209 = vld [vmem:[%s1 + $0x2d4] sm:$0xf]
  %v210 = vld [vmem:[%s1 + $0x2d8] sm:$0xf]
  %v211 = vld [vmem:[%s1 + $0x2dc] sm:$0xf]
  %v212 = vld [vmem:[%s1 + $0x2e0] sm:$0xf]
  %v213 = vld [vmem:[%s1 + $0x2e4] sm:$0xf]
  %v214 = vld [vmem:[%s1 + $0x2e8] sm:$0xf]
  %v215 = vld [vmem:[%s1 + $0x2ec] sm:$0xf]
  %v216 = vld [vmem:[%s1 + $0x2f0] sm:$0xf]
  %v217 = vld [vmem:[%s1 + $0x2f4] sm:$0xf]
  %v218 = vld [vmem:[%s1 + $0x2f8] sm:$0xf]
  %v219 = vld [vmem:[%s1 + $0x2fc] sm:$0xf]
  %v220 = vld [vmem:[%s1 + $0x300] sm:$0xf]
  %v221 = vld [vmem:[%s1 + $0x304] sm:$0xf]
  %v222 = vld [vmem:[%s1 + $0x308] sm:$0xf]
  %v223 = vld [vmem:[%s1 + $0x30c] sm:$0xf]
  %v224 = vld [vmem:[%s1 + $0x310] sm:$0xf]
  %v225 = vld [vmem:[%s1 + $0x314] sm:$0xf]
  %v226 = vld [vmem:[%s1 + $0x318] sm:$0xf]
  %v227 = vld [vmem:[%s1 + $0x31c] sm:$0xf]
  %v228 = vld [vmem:[%s1 + $0x320] sm:$0xf]
  %v229 = vld [vmem:[%s1 + $0x324] sm:$0xf]
  %v230 = vld [vmem:[%s1 + $0x328] sm:$0xf]
  %v231 = vld [vmem:[%s1 + $0x32c] sm:$0xf]
  %v232 = vld [vmem:[%s1 + $0x330] sm:$0xf]
  %v233 = vld [vmem:[%s1 + $0x334] sm:$0xf]
  %v234 = vld [vmem:[%s1 + $0x338] sm:$0xf]
  %v235 = vld [vmem:[%s1 + $0x33c] sm:$0xf]
  %v236 = vld [vmem:[%s1 + $0x340] sm:$0xf]
  %v237 = vld [vmem:[%s1 + $0x344] sm:$0xf]
  %v238 = vld [vmem:[%s1 + $0x348] sm:$0xf]
  %v239 = vld [vmem:[%s1 + $0x34c] sm:$0xf]
  %v240 = vld [vmem:[%s1 + $0x350] sm:$0xf]
  %v241 = vld [vmem:[%s1 + $0x354] sm:$0xf]
  %v242 = vld [vmem:[%s1 + $0x358] sm:$0xf]
  %v243 = vld [vmem:[%s1 + $0x35c] sm:$0xf]
  %v244 = vld [vmem:[%s1 + $0x360] sm:$0xf]
  %v245 = vld [vmem:[%s1 + $0x364] sm:$0xf]
  %v246 = vld [vmem:[%s1 + $0x368] sm:$0xf]
  %v247 = vld [vmem:[%s1 + $0x36c] sm:$0xf]
  %v248 = vld [vmem:[%s1 + $0x370] sm:$0xf]
  %v249 = vld [vmem:[%s1 + $0x374] sm:$0xf]
  %v250 = vld [vmem:[%s1 + $0x378] sm:$0xf]
  %v251 = vld [vmem:[%s1 + $0x37c] sm:$0xf]
  %v252 = vld [vmem:[%s1 + $0x380] sm:$0xf]
  %v253 = vld [vmem:[%s1 + $0x384] sm:$0xf]
  %v254 = vld [vmem:[%s1 + $0x388] sm:$0xf]
  %v255 = vld [vmem:[%s1 + $0x38c] sm:$0xf]
  %v256 = vld [vmem:[%s1 + $0x390] sm:$0xf]
  %v257 = vld [vmem:[%s1 + $0x394] sm:$0xf]
  %v258 = vld [vmem:[%s1 + $0x398] sm:$0xf]
  %v259 = vld [vmem:[%s1 + $0x39c] sm:$0xf]
  %v260 = vld [vmem:[%s1 + $0x3a0] sm:$0xf]
  %v261 = vld [vmem:[%s1 + $0x3a4] sm:$0xf]
  %v262 = vld [vmem:[%s1 + $0x3a8] sm:$0xf]
  %v263 = vld [vmem:[%s1 + $0x3ac] sm:$0xf]
  %v264 = vld [vmem:[%s1 + $0x3b0] sm:$0xf]
  %v265 = vld [vmem:[%s1 + $0x3b4] sm:$0xf]
  %v266 = vld [vmem:[%s1 + $0x3b8] sm:$0xf]
  %v267 = vld [vmem:[%s1 + $0x3bc] sm:$0xf]
  %v268 = vld [vmem:[%s1 + $0x3c0] sm:$0xf]
  %v269 = vld [vmem:[%s1 + $0x3c4] sm:$0xf]
  %v270 = vld [vmem:[%s1 + $0x3c8] sm:$0xf]
  %v271 = vld [vmem:[%s1 + $0x3cc] sm:$0xf]
  %v272 = vld [vmem:[%s1 + $0x3d0] sm:$0xf]
  %v273 = vld [vmem:[%s1 + $0x3d4] sm:$0xf]
  %v274 = vld [vmem:[%s1 + $0x3d8] sm:$0xf]
  %v275 = vld [vmem:[%s1 + $0x3dc] sm:$0xf]
  %v276 = vld [vmem:[%s1 + $0x3e0] sm:$0xf]
  %v277 = vld [vmem:[%s1 + $0x3e4] sm:$0xf]
  %v278 = vld [vmem:[%s1 + $0x3e8] sm:$0xf]
  %v279 = vld [vmem:[%s1 + $0x3ec] sm:$0xf]
  %v280 = vld [vmem:[%s1 + $0x3f0] sm:$0xf]
  %v281 = vld [vmem:[%s1 + $0x3f4] sm:$0xf]
  %v282 = vld [vmem:[%s1 + $0x3f8] sm:$0xf]
  %v283 = vld [vmem:[%s1 + $0x3fc] sm:$0xf]
  %v284 = vld [vmem:[%s2] sm:$0x1]
  %v286 = vperm.slane %v284, 0
  %v296 = vunpack.c.l.b16 %v20
  %v297 = vunpack.c.h.b16 %v20
  %v298 = vunpack.c.l.b16 %v21
  %v299 = vunpack.c.h.b16 %v21
  %v300 = vunpack.c.l.b16 %v22
  %v301 = vunpack.c.h.b16 %v22
  %v302 = vunpack.c.l.b16 %v23
  %v303 = vunpack.c.h.b16 %v23
  %v304 = vunpack.c.l.b16 %v24
  %v305 = vunpack.c.h.b16 %v24
  %v306 = vunpack.c.l.b16 %v25
  %v307 = vunpack.c.h.b16 %v25
  %v308 = vunpack.c.l.b16 %v26
  %v309 = vunpack.c.h.b16 %v26
  %v310 = vunpack.c.l.b16 %v27
  %v311 = vunpack.c.h.b16 %v27
  %v312 = vpack.c.b16 %v296, %v296
  %v313 = vpack.c.b16 %v297, %v297
  %v314 = vpack.c.b16 %v298, %v298
  %v315 = vpack.c.b16 %v299, %v299
  %v316 = vpack.c.b16 %v300, %v300
  %v317 = vpack.c.b16 %v301, %v301
  %v318 = vpack.c.b16 %v302, %v302
  %v319 = vpack.c.b16 %v303, %v303
  %v320 = vpack.c.b16 %v304, %v304
  %v321 = vpack.c.b16 %v305, %v305
  %v322 = vpack.c.b16 %v306, %v306
  %v323 = vpack.c.b16 %v307, %v307
  %v324 = vpack.c.b16 %v308, %v308
  %v325 = vpack.c.b16 %v309, %v309
  %v326 = vpack.c.b16 %v310, %v310
  %v327 = vpack.c.b16 %v311, %v311
  %v600 = vunpack.c.l.b16 %v28
  %v601 = vunpack.c.l.b16 %v29
  %v602 = vunpack.c.l.b16 %v30
  %v603 = vunpack.c.l.b16 %v31
  %v604 = vunpack.c.l.b16 %v32
  %v605 = vunpack.c.l.b16 %v33
  %v606 = vunpack.c.l.b16 %v34
  %v607 = vunpack.c.l.b16 %v35
  %v608 = vunpack.c.l.b16 %v36
  %v609 = vunpack.c.l.b16 %v37
  %v610 = vunpack.c.l.b16 %v38
  %v611 = vunpack.c.l.b16 %v39
  %v612 = vunpack.c.l.b16 %v40
  %v613 = vunpack.c.l.b16 %v41
  %v614 = vunpack.c.l.b16 %v42
  %v615 = vunpack.c.l.b16 %v43
  %v616 = vunpack.c.l.b16 %v44
  %v617 = vunpack.c.l.b16 %v45
  %v618 = vunpack.c.l.b16 %v46
  %v619 = vunpack.c.l.b16 %v47
  %v620 = vunpack.c.l.b16 %v48
  %v621 = vunpack.c.l.b16 %v49
  %v622 = vunpack.c.l.b16 %v50
  %v623 = vunpack.c.l.b16 %v51
  %v624 = vunpack.c.l.b16 %v52
  %v625 = vunpack.c.l.b16 %v53
  %v626 = vunpack.c.l.b16 %v54
  %v627 = vunpack.c.l.b16 %v55
  %v628 = vunpack.c.l.b16 %v56
  %v629 = vunpack.c.l.b16 %v57
  %v630 = vunpack.c.l.b16 %v58
  %v631 = vunpack.c.l.b16 %v59
  %v632 = vunpack.c.l.b16 %v60
  %v633 = vunpack.c.l.b16 %v61
  %v634 = vunpack.c.l.b16 %v62
  %v635 = vunpack.c.l.b16 %v63
  %v636 = vunpack.c.l.b16 %v64
  %v637 = vunpack.c.l.b16 %v65
  %v638 = vunpack.c.l.b16 %v66
  %v639 = vunpack.c.l.b16 %v67
  %v640 = vunpack.c.l.b16 %v68
  %v641 = vunpack.c.l.b16 %v69
  %v642 = vunpack.c.l.b16 %v70
  %v643 = vunpack.c.l.b16 %v71
  %v644 = vunpack.c.l.b16 %v72
  %v645 = vunpack.c.l.b16 %v73
  %v646 = vunpack.c.l.b16 %v74
  %v647 = vunpack.c.l.b16 %v75
  %v648 = vunpack.c.l.b16 %v76
  %v649 = vunpack.c.l.b16 %v77
  %v650 = vunpack.c.l.b16 %v78
  %v651 = vunpack.c.l.b16 %v79
  %v652 = vunpack.c.l.b16 %v80
  %v653 = vunpack.c.l.b16 %v81
  %v654 = vunpack.c.l.b16 %v82
  %v655 = vunpack.c.l.b16 %v83
  %v656 = vunpack.c.l.b16 %v84
  %v657 = vunpack.c.l.b16 %v85
  %v658 = vunpack.c.l.b16 %v86
  %v659 = vunpack.c.l.b16 %v87
  %v660 = vunpack.c.l.b16 %v88
  %v661 = vunpack.c.l.b16 %v89
  %v662 = vunpack.c.l.b16 %v90
  %v663 = vunpack.c.l.b16 %v91
  %v664 = vunpack.c.l.b16 %v92
  %v665 = vunpack.c.l.b16 %v93
  %v666 = vunpack.c.l.b16 %v94
  %v667 = vunpack.c.l.b16 %v95
  %v668 = vunpack.c.l.b16 %v96
  %v669 = vunpack.c.l.b16 %v97
  %v670 = vunpack.c.l.b16 %v98
  %v671 = vunpack.c.l.b16 %v99
  %v672 = vunpack.c.l.b16 %v100
  %v673 = vunpack.c.l.b16 %v101
  %v674 = vunpack.c.l.b16 %v102
  %v675 = vunpack.c.l.b16 %v103
  %v676 = vunpack.c.l.b16 %v104
  %v677 = vunpack.c.l.b16 %v105
  %v678 = vunpack.c.l.b16 %v106
  %v679 = vunpack.c.l.b16 %v107
  %v680 = vunpack.c.l.b16 %v108
  %v681 = vunpack.c.l.b16 %v109
  %v682 = vunpack.c.l.b16 %v110
  %v683 = vunpack.c.l.b16 %v111
  %v684 = vunpack.c.l.b16 %v112
  %v685 = vunpack.c.l.b16 %v113
  %v686 = vunpack.c.l.b16 %v114
  %v687 = vunpack.c.l.b16 %v115
  %v688 = vunpack.c.l.b16 %v116
  %v689 = vunpack.c.l.b16 %v117
  %v690 = vunpack.c.l.b16 %v118
  %v691 = vunpack.c.l.b16 %v119
  %v692 = vunpack.c.l.b16 %v120
  %v693 = vunpack.c.l.b16 %v121
  %v694 = vunpack.c.l.b16 %v122
  %v695 = vunpack.c.l.b16 %v123
  %v696 = vunpack.c.l.b16 %v124
  %v697 = vunpack.c.l.b16 %v125
  %v698 = vunpack.c.l.b16 %v126
  %v699 = vunpack.c.l.b16 %v127
  %v700 = vunpack.c.l.b16 %v128
  %v701 = vunpack.c.l.b16 %v129
  %v702 = vunpack.c.l.b16 %v130
  %v703 = vunpack.c.l.b16 %v131
  %v704 = vunpack.c.l.b16 %v132
  %v705 = vunpack.c.l.b16 %v133
  %v706 = vunpack.c.l.b16 %v134
  %v707 = vunpack.c.l.b16 %v135
  %v708 = vunpack.c.l.b16 %v136
  %v709 = vunpack.c.l.b16 %v137
  %v710 = vunpack.c.l.b16 %v138
  %v711 = vunpack.c.l.b16 %v139
  %v712 = vunpack.c.l.b16 %v140
  %v713 = vunpack.c.l.b16 %v141
  %v714 = vunpack.c.l.b16 %v142
  %v715 = vunpack.c.l.b16 %v143
  %v716 = vunpack.c.l.b16 %v144
  %v717 = vunpack.c.l.b16 %v145
  %v718 = vunpack.c.l.b16 %v146
  %v719 = vunpack.c.l.b16 %v147
  %v720 = vunpack.c.l.b16 %v148
  %v721 = vunpack.c.l.b16 %v149
  %v722 = vunpack.c.l.b16 %v150
  %v723 = vunpack.c.l.b16 %v151
  %v724 = vunpack.c.l.b16 %v152
  %v725 = vunpack.c.l.b16 %v153
  %v726 = vunpack.c.l.b16 %v154
  %v727 = vunpack.c.l.b16 %v155
  %v728 = vunpack.c.l.b16 %v156
  %v729 = vunpack.c.l.b16 %v157
  %v730 = vunpack.c.l.b16 %v158
  %v731 = vunpack.c.l.b16 %v159
  %v732 = vunpack.c.l.b16 %v160
  %v733 = vunpack.c.l.b16 %v161
  %v734 = vunpack.c.l.b16 %v162
  %v735 = vunpack.c.l.b16 %v163
  %v736 = vunpack.c.l.b16 %v164
  %v737 = vunpack.c.l.b16 %v165
  %v738 = vunpack.c.l.b16 %v166
  %v739 = vunpack.c.l.b16 %v167
  %v740 = vunpack.c.l.b16 %v168
  %v741 = vunpack.c.l.b16 %v169
  %v742 = vunpack.c.l.b16 %v170
  %v743 = vunpack.c.l.b16 %v171
  %v744 = vunpack.c.l.b16 %v172
  %v745 = vunpack.c.l.b16 %v173
  %v746 = vunpack.c.l.b16 %v174
  %v747 = vunpack.c.l.b16 %v175
  %v748 = vunpack.c.l.b16 %v176
  %v749 = vunpack.c.l.b16 %v177
  %v750 = vunpack.c.l.b16 %v178
  %v751 = vunpack.c.l.b16 %v179
  %v752 = vunpack.c.l.b16 %v180
  %v753 = vunpack.c.l.b16 %v181
  %v754 = vunpack.c.l.b16 %v182
  %v755 = vunpack.c.l.b16 %v183
  %v756 = vunpack.c.l.b16 %v184
  %v757 = vunpack.c.l.b16 %v185
  %v758 = vunpack.c.l.b16 %v186
  %v759 = vunpack.c.l.b16 %v187
  %v760 = vunpack.c.l.b16 %v188
  %v761 = vunpack.c.l.b16 %v189
  %v762 = vunpack.c.l.b16 %v190
  %v763 = vunpack.c.l.b16 %v191
  %v764 = vunpack.c.l.b16 %v192
  %v765 = vunpack.c.l.b16 %v193
  %v766 = vunpack.c.l.b16 %v194
  %v767 = vunpack.c.l.b16 %v195
  %v768 = vunpack.c.l.b16 %v196
  %v769 = vunpack.c.l.b16 %v197
  %v770 = vunpack.c.l.b16 %v198
  %v771 = vunpack.c.l.b16 %v199
  %v772 = vunpack.c.l.b16 %v200
  %v773 = vunpack.c.l.b16 %v201
  %v774 = vunpack.c.l.b16 %v202
  %v775 = vunpack.c.l.b16 %v203
  %v776 = vunpack.c.l.b16 %v204
  %v777 = vunpack.c.l.b16 %v205
  %v778 = vunpack.c.l.b16 %v206
  %v779 = vunpack.c.l.b16 %v207
  %v780 = vunpack.c.l.b16 %v208
  %v781 = vunpack.c.l.b16 %v209
  %v782 = vunpack.c.l.b16 %v210
  %v783 = vunpack.c.l.b16 %v211
  %v784 = vunpack.c.l.b16 %v212
  %v785 = vunpack.c.l.b16 %v213
  %v786 = vunpack.c.l.b16 %v214
  %v787 = vunpack.c.l.b16 %v215
  %v788 = vunpack.c.l.b16 %v216
  %v789 = vunpack.c.l.b16 %v217
  %v790 = vunpack.c.l.b16 %v218
  %v791 = vunpack.c.l.b16 %v219
  %v792 = vunpack.c.l.b16 %v220
  %v793 = vunpack.c.l.b16 %v221
  %v794 = vunpack.c.l.b16 %v222
  %v795 = vunpack.c.l.b16 %v223
  %v796 = vunpack.c.l.b16 %v224
  %v797 = vunpack.c.l.b16 %v225
  %v798 = vunpack.c.l.b16 %v226
  %v799 = vunpack.c.l.b16 %v227
  %v800 = vunpack.c.l.b16 %v228
  %v801 = vunpack.c.l.b16 %v229
  %v802 = vunpack.c.l.b16 %v230
  %v803 = vunpack.c.l.b16 %v231
  %v804 = vunpack.c.l.b16 %v232
  %v805 = vunpack.c.l.b16 %v233
  %v806 = vunpack.c.l.b16 %v234
  %v807 = vunpack.c.l.b16 %v235
  %v808 = vunpack.c.l.b16 %v236
  %v809 = vunpack.c.l.b16 %v237
  %v810 = vunpack.c.l.b16 %v238
  %v811 = vunpack.c.l.b16 %v239
  %v812 = vunpack.c.l.b16 %v240
  %v813 = vunpack.c.l.b16 %v241
  %v814 = vunpack.c.l.b16 %v242
  %v815 = vunpack.c.l.b16 %v243
  %v816 = vunpack.c.l.b16 %v244
  %v817 = vunpack.c.l.b16 %v245
  %v818 = vunpack.c.l.b16 %v246
  %v819 = vunpack.c.l.b16 %v247
  %v820 = vunpack.c.l.b16 %v248
  %v821 = vunpack.c.l.b16 %v249
  %v822 = vunpack.c.l.b16 %v250
  %v823 = vunpack.c.l.b16 %v251
  %v824 = vunpack.c.l.b16 %v252
  %v825 = vunpack.c.l.b16 %v253
  %v826 = vunpack.c.l.b16 %v254
  %v827 = vunpack.c.l.b16 %v255
  %v828 = vunpack.c.l.b16 %v256
  %v829 = vunpack.c.l.b16 %v257
  %v830 = vunpack.c.l.b16 %v258
  %v831 = vunpack.c.l.b16 %v259
  %v832 = vunpack.c.l.b16 %v260
  %v833 = vunpack.c.l.b16 %v261
  %v834 = vunpack.c.l.b16 %v262
  %v835 = vunpack.c.l.b16 %v263
  %v836 = vunpack.c.l.b16 %v264
  %v837 = vunpack.c.l.b16 %v265
  %v838 = vunpack.c.l.b16 %v266
  %v839 = vunpack.c.l.b16 %v267
  %v840 = vunpack.c.l.b16 %v268
  %v841 = vunpack.c.l.b16 %v269
  %v842 = vunpack.c.l.b16 %v270
  %v843 = vunpack.c.l.b16 %v271
  %v844 = vunpack.c.l.b16 %v272
  %v845 = vunpack.c.l.b16 %v273
  %v846 = vunpack.c.l.b16 %v274
  %v847 = vunpack.c.l.b16 %v275
  %v848 = vunpack.c.l.b16 %v276
  %v849 = vunpack.c.l.b16 %v277
  %v850 = vunpack.c.l.b16 %v278
  %v851 = vunpack.c.l.b16 %v279
  %v852 = vunpack.c.l.b16 %v280
  %v853 = vunpack.c.l.b16 %v281
  %v854 = vunpack.c.l.b16 %v282
  %v855 = vunpack.c.l.b16 %v283
  %v856 = vpack.c.b16 %v601, %v600
  %v857 = vpack.c.b16 %v603, %v602
  %v858 = vpack.c.b16 %v605, %v604
  %v859 = vpack.c.b16 %v607, %v606
  %v860 = vpack.c.b16 %v609, %v608
  %v861 = vpack.c.b16 %v611, %v610
  %v862 = vpack.c.b16 %v613, %v612
  %v863 = vpack.c.b16 %v615, %v614
  %v864 = vpack.c.b16 %v617, %v616
  %v865 = vpack.c.b16 %v619, %v618
  %v866 = vpack.c.b16 %v621, %v620
  %v867 = vpack.c.b16 %v623, %v622
  %v868 = vpack.c.b16 %v625, %v624
  %v869 = vpack.c.b16 %v627, %v626
  %v870 = vpack.c.b16 %v629, %v628
  %v871 = vpack.c.b16 %v631, %v630
  %v872 = vpack.c.b16 %v633, %v632
  %v873 = vpack.c.b16 %v635, %v634
  %v874 = vpack.c.b16 %v637, %v636
  %v875 = vpack.c.b16 %v639, %v638
  %v876 = vpack.c.b16 %v641, %v640
  %v877 = vpack.c.b16 %v643, %v642
  %v878 = vpack.c.b16 %v645, %v644
  %v879 = vpack.c.b16 %v647, %v646
  %v880 = vpack.c.b16 %v649, %v648
  %v881 = vpack.c.b16 %v651, %v650
  %v882 = vpack.c.b16 %v653, %v652
  %v883 = vpack.c.b16 %v655, %v654
  %v884 = vpack.c.b16 %v657, %v656
  %v885 = vpack.c.b16 %v659, %v658
  %v886 = vpack.c.b16 %v661, %v660
  %v887 = vpack.c.b16 %v663, %v662
  %v888 = vpack.c.b16 %v665, %v664
  %v889 = vpack.c.b16 %v667, %v666
  %v890 = vpack.c.b16 %v669, %v668
  %v891 = vpack.c.b16 %v671, %v670
  %v892 = vpack.c.b16 %v673, %v672
  %v893 = vpack.c.b16 %v675, %v674
  %v894 = vpack.c.b16 %v677, %v676
  %v895 = vpack.c.b16 %v679, %v678
  %v896 = vpack.c.b16 %v681, %v680
  %v897 = vpack.c.b16 %v683, %v682
  %v898 = vpack.c.b16 %v685, %v684
  %v899 = vpack.c.b16 %v687, %v686
  %v900 = vpack.c.b16 %v689, %v688
  %v901 = vpack.c.b16 %v691, %v690
  %v902 = vpack.c.b16 %v693, %v692
  %v903 = vpack.c.b16 %v695, %v694
  %v904 = vpack.c.b16 %v697, %v696
  %v905 = vpack.c.b16 %v699, %v698
  %v906 = vpack.c.b16 %v701, %v700
  %v907 = vpack.c.b16 %v703, %v702
  %v908 = vpack.c.b16 %v705, %v704
  %v909 = vpack.c.b16 %v707, %v706
  %v910 = vpack.c.b16 %v709, %v708
  %v911 = vpack.c.b16 %v711, %v710
  %v912 = vpack.c.b16 %v713, %v712
  %v913 = vpack.c.b16 %v715, %v714
  %v914 = vpack.c.b16 %v717, %v716
  %v915 = vpack.c.b16 %v719, %v718
  %v916 = vpack.c.b16 %v721, %v720
  %v917 = vpack.c.b16 %v723, %v722
  %v918 = vpack.c.b16 %v725, %v724
  %v919 = vpack.c.b16 %v727, %v726
  %v920 = vpack.c.b16 %v729, %v728
  %v921 = vpack.c.b16 %v731, %v730
  %v922 = vpack.c.b16 %v733, %v732
  %v923 = vpack.c.b16 %v735, %v734
  %v924 = vpack.c.b16 %v737, %v736
  %v925 = vpack.c.b16 %v739, %v738
  %v926 = vpack.c.b16 %v741, %v740
  %v927 = vpack.c.b16 %v743, %v742
  %v928 = vpack.c.b16 %v745, %v744
  %v929 = vpack.c.b16 %v747, %v746
  %v930 = vpack.c.b16 %v749, %v748
  %v931 = vpack.c.b16 %v751, %v750
  %v932 = vpack.c.b16 %v753, %v752
  %v933 = vpack.c.b16 %v755, %v754
  %v934 = vpack.c.b16 %v757, %v756
  %v935 = vpack.c.b16 %v759, %v758
  %v936 = vpack.c.b16 %v761, %v760
  %v937 = vpack.c.b16 %v763, %v762
  %v938 = vpack.c.b16 %v765, %v764
  %v939 = vpack.c.b16 %v767, %v766
  %v940 = vpack.c.b16 %v769, %v768
  %v941 = vpack.c.b16 %v771, %v770
  %v942 = vpack.c.b16 %v773, %v772
  %v943 = vpack.c.b16 %v775, %v774
  %v944 = vpack.c.b16 %v777, %v776
  %v945 = vpack.c.b16 %v779, %v778
  %v946 = vpack.c.b16 %v781, %v780
  %v947 = vpack.c.b16 %v783, %v782
  %v948 = vpack.c.b16 %v785, %v784
  %v949 = vpack.c.b16 %v787, %v786
  %v950 = vpack.c.b16 %v789, %v788
  %v951 = vpack.c.b16 %v791, %v790
  %v952 = vpack.c.b16 %v793, %v792
  %v953 = vpack.c.b16 %v795, %v794
  %v954 = vpack.c.b16 %v797, %v796
  %v955 = vpack.c.b16 %v799, %v798
  %v956 = vpack.c.b16 %v801, %v800
  %v957 = vpack.c.b16 %v803, %v802
  %v958 = vpack.c.b16 %v805, %v804
  %v959 = vpack.c.b16 %v807, %v806
  %v960 = vpack.c.b16 %v809, %v808
  %v961 = vpack.c.b16 %v811, %v810
  %v962 = vpack.c.b16 %v813, %v812
  %v963 = vpack.c.b16 %v815, %v814
  %v964 = vpack.c.b16 %v817, %v816
  %v965 = vpack.c.b16 %v819, %v818
  %v966 = vpack.c.b16 %v821, %v820
  %v967 = vpack.c.b16 %v823, %v822
  %v968 = vpack.c.b16 %v825, %v824
  %v969 = vpack.c.b16 %v827, %v826
  %v970 = vpack.c.b16 %v829, %v828
  %v971 = vpack.c.b16 %v831, %v830
  %v972 = vpack.c.b16 %v833, %v832
  %v973 = vpack.c.b16 %v835, %v834
  %v974 = vpack.c.b16 %v837, %v836
  %v975 = vpack.c.b16 %v839, %v838
  %v976 = vpack.c.b16 %v841, %v840
  %v977 = vpack.c.b16 %v843, %v842
  %v978 = vpack.c.b16 %v845, %v844
  %v979 = vpack.c.b16 %v847, %v846
  %v980 = vpack.c.b16 %v849, %v848
  %v981 = vpack.c.b16 %v851, %v850
  %v982 = vpack.c.b16 %v853, %v852
  %v983 = vpack.c.b16 %v855, %v854
  %1112 = vmatpush.bf16.msra.mxu0 %v863
  %1113 = vmatpush.bf16.msra.mxu0 %v862
  %1114 = vmatpush.bf16.msra.mxu0 %v861
  %1115 = vmatpush.bf16.msra.mxu0 %v860
  %1116 = vmatpush.bf16.msra.mxu0 %v859
  %1117 = vmatpush.bf16.msra.mxu0 %v858
  %1118 = vmatpush.bf16.msra.mxu0 %v857
  %1119 = vmatpush.bf16.msra.mxu0 %v856
  %1120 = vmatmul.bf16.gmra.mxu0 %v312
  %v1121 = vpop.f32.mrf.mxu0
  %v1122 = vadd.f32 %v286, %v1121
  %v1123 = vpop.f32.mrf.mxu0
  %1124 = vdwg.mxu0
  %1125 = vmatpush.bf16.msra.mxu0 %v871
  %1126 = vmatpush.bf16.msra.mxu0 %v870
  %1127 = vmatpush.bf16.msra.mxu0 %v869
  %1128 = vmatpush.bf16.msra.mxu0 %v868
  %1129 = vmatpush.bf16.msra.mxu0 %v867
  %1130 = vmatpush.bf16.msra.mxu0 %v866
  %1131 = vmatpush.bf16.msra.mxu0 %v865
  %1132 = vmatpush.bf16.msra.mxu0 %v864
  %1133 = vmatmul.bf16.gmra.mxu0 %v313
  %v1134 = vpop.f32.mrf.mxu0
  %v1135 = vadd.f32 %v1122, %v1134
  %v1136 = vpop.f32.mrf.mxu0
  %1137 = vdwg.mxu0
  %1138 = vmatpush.bf16.msra.mxu0 %v879
  %1139 = vmatpush.bf16.msra.mxu0 %v878
  %1140 = vmatpush.bf16.msra.mxu0 %v877
  %1141 = vmatpush.bf16.msra.mxu0 %v876
  %1142 = vmatpush.bf16.msra.mxu0 %v875
  %1143 = vmatpush.bf16.msra.mxu0 %v874
  %1144 = vmatpush.bf16.msra.mxu0 %v873
  %1145 = vmatpush.bf16.msra.mxu0 %v872
  %1146 = vmatmul.bf16.gmra.mxu0 %v314
  %v1147 = vpop.f32.mrf.mxu0
  %v1148 = vadd.f32 %v1135, %v1147
  %v1149 = vpop.f32.mrf.mxu0
  %1150 = vdwg.mxu0
  %1151 = vmatpush.bf16.msra.mxu0 %v887
  %1152 = vmatpush.bf16.msra.mxu0 %v886
  %1153 = vmatpush.bf16.msra.mxu0 %v885
  %1154 = vmatpush.bf16.msra.mxu0 %v884
  %1155 = vmatpush.bf16.msra.mxu0 %v883
  %1156 = vmatpush.bf16.msra.mxu0 %v882
  %1157 = vmatpush.bf16.msra.mxu0 %v881
  %1158 = vmatpush.bf16.msra.mxu0 %v880
  %1159 = vmatmul.bf16.gmra.mxu0 %v315
  %v1160 = vpop.f32.mrf.mxu0
  %v1161 = vadd.f32 %v1148, %v1160
  %v1162 = vpop.f32.mrf.mxu0
  %1163 = vdwg.mxu0
  %1164 = vmatpush.bf16.msra.mxu0 %v895
  %1165 = vmatpush.bf16.msra.mxu0 %v894
  %1166 = vmatpush.bf16.msra.mxu0 %v893
  %1167 = vmatpush.bf16.msra.mxu0 %v892
  %1168 = vmatpush.bf16.msra.mxu0 %v891
  %1169 = vmatpush.bf16.msra.mxu0 %v890
  %1170 = vmatpush.bf16.msra.mxu0 %v889
  %1171 = vmatpush.bf16.msra.mxu0 %v888
  %1172 = vmatmul.bf16.gmra.mxu0 %v316
  %v1173 = vpop.f32.mrf.mxu0
  %v1174 = vadd.f32 %v1161, %v1173
  %v1175 = vpop.f32.mrf.mxu0
  %1176 = vdwg.mxu0
  %1177 = vmatpush.bf16.msra.mxu0 %v903
  %1178 = vmatpush.bf16.msra.mxu0 %v902
  %1179 = vmatpush.bf16.msra.mxu0 %v901
  %1180 = vmatpush.bf16.msra.mxu0 %v900
  %1181 = vmatpush.bf16.msra.mxu0 %v899
  %1182 = vmatpush.bf16.msra.mxu0 %v898
  %1183 = vmatpush.bf16.msra.mxu0 %v897
  %1184 = vmatpush.bf16.msra.mxu0 %v896
  %1185 = vmatmul.bf16.gmra.mxu0 %v317
  %v1186 = vpop.f32.mrf.mxu0
  %v1187 = vadd.f32 %v1174, %v1186
  %v1188 = vpop.f32.mrf.mxu0
  %1189 = vdwg.mxu0
  %1190 = vmatpush.bf16.msra.mxu0 %v911
  %1191 = vmatpush.bf16.msra.mxu0 %v910
  %1192 = vmatpush.bf16.msra.mxu0 %v909
  %1193 = vmatpush.bf16.msra.mxu0 %v908
  %1194 = vmatpush.bf16.msra.mxu0 %v907
  %1195 = vmatpush.bf16.msra.mxu0 %v906
  %1196 = vmatpush.bf16.msra.mxu0 %v905
  %1197 = vmatpush.bf16.msra.mxu0 %v904
  %1198 = vmatmul.bf16.gmra.mxu0 %v318
  %v1199 = vpop.f32.mrf.mxu0
  %v1200 = vadd.f32 %v1187, %v1199
  %v1201 = vpop.f32.mrf.mxu0
  %1202 = vdwg.mxu0
  %1203 = vmatpush.bf16.msra.mxu0 %v919
  %1204 = vmatpush.bf16.msra.mxu0 %v918
  %1205 = vmatpush.bf16.msra.mxu0 %v917
  %1206 = vmatpush.bf16.msra.mxu0 %v916
  %1207 = vmatpush.bf16.msra.mxu0 %v915
  %1208 = vmatpush.bf16.msra.mxu0 %v914
  %1209 = vmatpush.bf16.msra.mxu0 %v913
  %1210 = vmatpush.bf16.msra.mxu0 %v912
  %1211 = vmatmul.bf16.gmra.mxu0 %v319
  %v1212 = vpop.f32.mrf.mxu0
  %v1213 = vadd.f32 %v1200, %v1212
  %v1214 = vpop.f32.mrf.mxu0
  %1215 = vdwg.mxu0
  %1216 = vmatpush.bf16.msra.mxu0 %v927
  %1217 = vmatpush.bf16.msra.mxu0 %v926
  %1218 = vmatpush.bf16.msra.mxu0 %v925
  %1219 = vmatpush.bf16.msra.mxu0 %v924
  %1220 = vmatpush.bf16.msra.mxu0 %v923
  %1221 = vmatpush.bf16.msra.mxu0 %v922
  %1222 = vmatpush.bf16.msra.mxu0 %v921
  %1223 = vmatpush.bf16.msra.mxu0 %v920
  %1224 = vmatmul.bf16.gmra.mxu0 %v320
  %v1225 = vpop.f32.mrf.mxu0
  %v1226 = vadd.f32 %v1213, %v1225
  %v1227 = vpop.f32.mrf.mxu0
  %1228 = vdwg.mxu0
  %1229 = vmatpush.bf16.msra.mxu0 %v935
  %1230 = vmatpush.bf16.msra.mxu0 %v934
  %1231 = vmatpush.bf16.msra.mxu0 %v933
  %1232 = vmatpush.bf16.msra.mxu0 %v932
  %1233 = vmatpush.bf16.msra.mxu0 %v931
  %1234 = vmatpush.bf16.msra.mxu0 %v930
  %1235 = vmatpush.bf16.msra.mxu0 %v929
  %1236 = vmatpush.bf16.msra.mxu0 %v928
  %1237 = vmatmul.bf16.gmra.mxu0 %v321
  %v1238 = vpop.f32.mrf.mxu0
  %v1239 = vadd.f32 %v1226, %v1238
  %v1240 = vpop.f32.mrf.mxu0
  %1241 = vdwg.mxu0
  %1242 = vmatpush.bf16.msra.mxu0 %v943
  %1243 = vmatpush.bf16.msra.mxu0 %v942
  %1244 = vmatpush.bf16.msra.mxu0 %v941
  %1245 = vmatpush.bf16.msra.mxu0 %v940
  %1246 = vmatpush.bf16.msra.mxu0 %v939
  %1247 = vmatpush.bf16.msra.mxu0 %v938
  %1248 = vmatpush.bf16.msra.mxu0 %v937
  %1249 = vmatpush.bf16.msra.mxu0 %v936
  %1250 = vmatmul.bf16.gmra.mxu0 %v322
  %v1251 = vpop.f32.mrf.mxu0
  %v1252 = vadd.f32 %v1239, %v1251
  %v1253 = vpop.f32.mrf.mxu0
  %1254 = vdwg.mxu0
  %1255 = vmatpush.bf16.msra.mxu0 %v951
  %1256 = vmatpush.bf16.msra.mxu0 %v950
  %1257 = vmatpush.bf16.msra.mxu0 %v949
  %1258 = vmatpush.bf16.msra.mxu0 %v948
  %1259 = vmatpush.bf16.msra.mxu0 %v947
  %1260 = vmatpush.bf16.msra.mxu0 %v946
  %1261 = vmatpush.bf16.msra.mxu0 %v945
  %1262 = vmatpush.bf16.msra.mxu0 %v944
  %1263 = vmatmul.bf16.gmra.mxu0 %v323
  %v1264 = vpop.f32.mrf.mxu0
  %v1265 = vadd.f32 %v1252, %v1264
  %v1266 = vpop.f32.mrf.mxu0
  %1267 = vdwg.mxu0
  %1268 = vmatpush.bf16.msra.mxu0 %v959
  %1269 = vmatpush.bf16.msra.mxu0 %v958
  %1270 = vmatpush.bf16.msra.mxu0 %v957
  %1271 = vmatpush.bf16.msra.mxu0 %v956
  %1272 = vmatpush.bf16.msra.mxu0 %v955
  %1273 = vmatpush.bf16.msra.mxu0 %v954
  %1274 = vmatpush.bf16.msra.mxu0 %v953
  %1275 = vmatpush.bf16.msra.mxu0 %v952
  %1276 = vmatmul.bf16.gmra.mxu0 %v324
  %v1277 = vpop.f32.mrf.mxu0
  %v1278 = vadd.f32 %v1265, %v1277
  %v1279 = vpop.f32.mrf.mxu0
  %1280 = vdwg.mxu0
  %1281 = vmatpush.bf16.msra.mxu0 %v967
  %1282 = vmatpush.bf16.msra.mxu0 %v966
  %1283 = vmatpush.bf16.msra.mxu0 %v965
  %1284 = vmatpush.bf16.msra.mxu0 %v964
  %1285 = vmatpush.bf16.msra.mxu0 %v963
  %1286 = vmatpush.bf16.msra.mxu0 %v962
  %1287 = vmatpush.bf16.msra.mxu0 %v961
  %1288 = vmatpush.bf16.msra.mxu0 %v960
  %1289 = vmatmul.bf16.gmra.mxu0 %v325
  %v1290 = vpop.f32.mrf.mxu0
  %v1291 = vadd.f32 %v1278, %v1290
  %v1292 = vpop.f32.mrf.mxu0
  %1293 = vdwg.mxu0
  %1294 = vmatpush.bf16.msra.mxu0 %v975
  %1295 = vmatpush.bf16.msra.mxu0 %v974
  %1296 = vmatpush.bf16.msra.mxu0 %v973
  %1297 = vmatpush.bf16.msra.mxu0 %v972
  %1298 = vmatpush.bf16.msra.mxu0 %v971
  %1299 = vmatpush.bf16.msra.mxu0 %v970
  %1300 = vmatpush.bf16.msra.mxu0 %v969
  %1301 = vmatpush.bf16.msra.mxu0 %v968
  %1302 = vmatmul.bf16.gmra.mxu0 %v326
  %v1303 = vpop.f32.mrf.mxu0
  %v1304 = vadd.f32 %v1291, %v1303
  %v1305 = vpop.f32.mrf.mxu0
  %1306 = vdwg.mxu0
  %1307 = vmatpush.bf16.msra.mxu0 %v983
  %1308 = vmatpush.bf16.msra.mxu0 %v982
  %1309 = vmatpush.bf16.msra.mxu0 %v981
  %1310 = vmatpush.bf16.msra.mxu0 %v980
  %1311 = vmatpush.bf16.msra.mxu0 %v979
  %1312 = vmatpush.bf16.msra.mxu0 %v978
  %1313 = vmatpush.bf16.msra.mxu0 %v977
  %1314 = vmatpush.bf16.msra.mxu0 %v976
  %1315 = vmatmul.bf16.gmra.mxu0 %v327
  %v1316 = vpop.f32.mrf.mxu0
  %v1317 = vadd.f32 %v1304, %v1316
  %v1318 = vpop.f32.mrf.mxu0
  %1319 = vdwg.mxu0
  %v1320 = vpack.c.bf16 %v1317, %v1317
  %v1321 = vld [vmem:[%s3] sm:$0xf]
  %v1322 = vld [vmem:[%s3 + $0x4] sm:$0xf]
  %v1323 = vld [vmem:[%s3 + $0x8] sm:$0xf]
  %v1324 = vld [vmem:[%s3 + $0xc] sm:$0xf]
  %v1325 = vld [vmem:[%s3 + $0x10] sm:$0xf]
  %v1326 = vld [vmem:[%s3 + $0x14] sm:$0xf]
  %v1327 = vld [vmem:[%s3 + $0x18] sm:$0xf]
  %v1328 = vld [vmem:[%s3 + $0x1c] sm:$0xf]
  %v1329 = vld [vmem:[%s3 + $0x20] sm:$0xf]
  %v1330 = vld [vmem:[%s3 + $0x24] sm:$0xf]
  %v1331 = vld [vmem:[%s3 + $0x28] sm:$0xf]
  %v1332 = vld [vmem:[%s3 + $0x2c] sm:$0xf]
  %v1333 = vld [vmem:[%s3 + $0x30] sm:$0xf]
  %v1334 = vld [vmem:[%s3 + $0x34] sm:$0xf]
  %v1335 = vld [vmem:[%s3 + $0x38] sm:$0xf]
  %v1336 = vld [vmem:[%s3 + $0x3c] sm:$0xf]
  %v1337 = vld [vmem:[%s4] sm:$0x1]
  %v1339 = vperm.slane %v1337, 0
  %v1357 = vunpack.c.l.b16 %v1321
  %v1358 = vunpack.c.l.b16 %v1322
  %v1359 = vunpack.c.l.b16 %v1323
  %v1360 = vunpack.c.l.b16 %v1324
  %v1361 = vunpack.c.l.b16 %v1325
  %v1362 = vunpack.c.l.b16 %v1326
  %v1363 = vunpack.c.l.b16 %v1327
  %v1364 = vunpack.c.l.b16 %v1328
  %v1365 = vunpack.c.l.b16 %v1329
  %v1366 = vunpack.c.l.b16 %v1330
  %v1367 = vunpack.c.l.b16 %v1331
  %v1368 = vunpack.c.l.b16 %v1332
  %v1369 = vunpack.c.l.b16 %v1333
  %v1370 = vunpack.c.l.b16 %v1334
  %v1371 = vunpack.c.l.b16 %v1335
  %v1372 = vunpack.c.l.b16 %v1336
  %v1373 = vpack.c.b16 %v1358, %v1357
  %v1374 = vpack.c.b16 %v1360, %v1359
  %v1375 = vpack.c.b16 %v1362, %v1361
  %v1376 = vpack.c.b16 %v1364, %v1363
  %v1377 = vpack.c.b16 %v1366, %v1365
  %v1378 = vpack.c.b16 %v1368, %v1367
  %v1379 = vpack.c.b16 %v1370, %v1369
  %v1380 = vpack.c.b16 %v1372, %v1371
  %1389 = vmatpush.bf16.msra.mxu0 %v1380
  %1390 = vmatpush.bf16.msra.mxu0 %v1379
  %1391 = vmatpush.bf16.msra.mxu0 %v1378
  %1392 = vmatpush.bf16.msra.mxu0 %v1377
  %1393 = vmatpush.bf16.msra.mxu0 %v1376
  %1394 = vmatpush.bf16.msra.mxu0 %v1375
  %1395 = vmatpush.bf16.msra.mxu0 %v1374
  %1396 = vmatpush.bf16.msra.mxu0 %v1373
  %1397 = vmatmul.bf16.gmra.mxu0 %v1320
  %v1398 = vpop.f32.mrf.mxu0
  %v1399 = vadd.f32 %v1339, %v1398
  %v1400 = vpop.f32.mrf.mxu0
  %1401 = vdwg.mxu0
  %1402 = vst [vmem:[%s5] sm:$0xff] %v1399
  // Predicated region
  $region22: #{cifar10_forward.7} parent=0 // pred_check
    _
  $region23: #{cifar10_forward.7} parent=0 // pred_check_branch
    %1404 = sbr.rel (0) target = $region25
  $region24: #{cifar10_forward.7} parent=0 // pred_region
    _
  $region25: #{cifar10_forward.7} parent=0 // pred_fallthru
    _
  // Predicated region
  $region26: #{cifar10_forward.7} parent=0 // pred_check
    _
  $region27: #{cifar10_forward.7} parent=0 // pred_check_branch
    %1406 = sbr.rel (0) target = $region29
  $region28: #{cifar10_forward.7} parent=0 // pred_region
    _
  $region29: #{cifar10_forward.7} parent=0 // pred_fallthru
    _

</llo_original>
